<compile_context>
chip_gen: v7x
topology: tpu7x:2x2x1
jax: 0.10.0
libtpu: 0.0.40
codegen_flags: <defaults>
</compile_context>

<pallas_src>
import functools

import jax
import jax.numpy as jnp
from jax.experimental import pallas as pl
from jax.experimental.pallas import tpu as pltpu

VMEM_SPEC = pl.BlockSpec(memory_space=pltpu.MemorySpace.VMEM)


# ---------------------------------------------------------------------------
# Small helpers
# ---------------------------------------------------------------------------
def _round_up(x, m):
    return (x + m - 1) // m * m


def _pick_tile(dim, tile_max, align):
    """Pick (tile, padded_dim): padded_dim is `dim` rounded up to `align`,
    tile is the largest multiple of `align` <= tile_max dividing padded_dim."""
    padded = _round_up(dim, align)
    if padded <= tile_max:
        return padded, padded
    tile = align
    for t in range(tile_max, 0, -align):
        if padded % t == 0:
            tile = t
            break
    return tile, padded


# ---------------------------------------------------------------------------
# Pallas kernels
# ---------------------------------------------------------------------------
def _gemm_bias_kernel(a_ref, b_ref, bias_ref, o_ref, acc_ref):
    # Tiled (M,K)@(K,N) with f32 accumulation; bias fused in the K-final step.
    @pl.when(pl.program_id(2) == 0)
    def _():
        acc_ref[...] = jnp.zeros_like(acc_ref)

    acc_ref[...] += jnp.dot(a_ref[...], b_ref[...],
                            preferred_element_type=jnp.float32)

    @pl.when(pl.program_id(2) == pl.num_programs(2) - 1)
    def _():
        o_ref[...] = acc_ref[...] + bias_ref[...]


def _inorm_kernel(x_ref, o_ref, *, relu):
    # InstanceNorm2d (affine=False, eps=1e-5, biased variance) over the
    # spatial (sublane) axis; channels stay on the lane axis.
    x = x_ref[...]                                   # (1, H*W, cblk) f32
    mean = jnp.mean(x, axis=1, keepdims=True)
    xc = x - mean
    var = jnp.mean(xc * xc, axis=1, keepdims=True)
    y = xc * jax.lax.rsqrt(var + 1e-5)
    if relu:
        y = jnp.maximum(y, 0.0)
    o_ref[...] = y


def _inorm_add_kernel(x_ref, skip_ref, o_ref):
    # InstanceNorm2d followed by the residual add (ResidualBlock tail).
    x = x_ref[...]
    mean = jnp.mean(x, axis=1, keepdims=True)
    xc = x - mean
    var = jnp.mean(xc * xc, axis=1, keepdims=True)
    o_ref[...] = skip_ref[...] + xc * jax.lax.rsqrt(var + 1e-5)


def _tanh_kernel(x_ref, o_ref):
    o_ref[...] = jnp.tanh(x_ref[...])


# ---------------------------------------------------------------------------
# pallas_call wrappers
# ---------------------------------------------------------------------------
def gemm_bias(a, b, bias, *, tm_max=256, tn_max=256, tk_max=512):
    """f32-accurate GEMM + bias; operands cast to bf16 for the MXU.
    Tile caps (256,256,512) fit comfortably in VMEM on v5e/v6e/v7x; raise on
    v6e (128 MiB VMEM) for more MXU occupancy if desired."""
    M, K = a.shape
    _, N = b.shape
    tm, Mp = _pick_tile(M, tm_max, 8)
    tn, Np = _pick_tile(N, tn_max, 128)
    tk, Kp = _pick_tile(K, tk_max, 128)

    a_p = jnp.pad(a.astype(jnp.bfloat16), ((0, Mp - M), (0, Kp - K)))
    b_p = jnp.pad(b.astype(jnp.bfloat16), ((0, Kp - K), (0, Np - N)))
    bias_p = jnp.pad(bias.astype(jnp.float32).reshape(1, N),
                     ((0, 0), (0, Np - N)))

    out = pl.pallas_call(
        _gemm_bias_kernel,
        out_shape=jax.ShapeDtypeStruct((Mp, Np), jnp.float32),
        grid_spec=pltpu.PrefetchScalarGridSpec(
            num_scalar_prefetch=0,
            grid=(Mp // tm, Np // tn, Kp // tk),
            in_specs=[pl.BlockSpec((tm, tk), lambda i, j, k: (i, k)),
                      pl.BlockSpec((tk, tn), lambda i, j, k: (k, j)),
                      pl.BlockSpec((1, tn), lambda i, j, k: (0, j))],
            out_specs=pl.BlockSpec((tm, tn), lambda i, j, k: (i, j)),
            scratch_shapes=[pltpu.VMEM((tm, tn), jnp.float32)]),
        compiler_params=pltpu.CompilerParams(
            dimension_semantics=("parallel", "parallel", "arbitrary")),
    )(a_p, b_p, bias_p)

    if Mp != M or Np != N:
        out = out[:M, :N]
    return out


def _channel_block(C):
    return 128 if C % 128 == 0 else C


def instance_norm(x, relu):
    # x: (N, H, W, C) f32
    N, H, W, C = x.shape
    x3 = x.reshape(N, H * W, C)
    cblk = _channel_block(C)
    spec = pl.BlockSpec((1, H * W, cblk), lambda n, c: (n, 0, c))
    y = pl.pallas_call(
        functools.partial(_inorm_kernel, relu=relu),
        out_shape=jax.ShapeDtypeStruct(x3.shape, jnp.float32),
        grid=(N, C // cblk),
        in_specs=[spec],
        out_specs=spec,
        compiler_params=pltpu.CompilerParams(
            dimension_semantics=("parallel", "parallel")),
    )(x3)
    return y.reshape(N, H, W, C)


def instance_norm_add(x, skip):
    N, H, W, C = x.shape
    x3 = x.reshape(N, H * W, C)
    s3 = skip.reshape(N, H * W, C)
    cblk = _channel_block(C)
    spec = pl.BlockSpec((1, H * W, cblk), lambda n, c: (n, 0, c))
    y = pl.pallas_call(
        _inorm_add_kernel,
        out_shape=jax.ShapeDtypeStruct(x3.shape, jnp.float32),
        grid=(N, C // cblk),
        in_specs=[spec, spec],
        out_specs=spec,
        compiler_params=pltpu.CompilerParams(
            dimension_semantics=("parallel", "parallel")),
    )(x3, s3)
    return y.reshape(N, H, W, C)


def tanh_op(x):
    # Final activation (Cout=1): flatten so the lane dim is dense (H*W*C).
    N, H, W, C = x.shape
    x2 = x.reshape(N, H * W * C)
    y = pl.pallas_call(
        _tanh_kernel,
        out_shape=jax.ShapeDtypeStruct(x2.shape, jnp.float32),
        in_specs=[VMEM_SPEC],
        out_specs=VMEM_SPEC,
    )(x2)
    return y.reshape(N, H, W, C)


# ---------------------------------------------------------------------------
# Convolution glue (NHWC im2col -> gridded GEMM)
# ---------------------------------------------------------------------------
def _im2col_nhwc(x, kh, kw, stride):
    # x: (N, H, W, C) -> patches (N*Ho*Wo, kh*kw*C) with K ordered (i, j, c)
    N, H, W, C = x.shape
    Ho = (H - kh) // stride + 1
    Wo = (W - kw) // stride + 1
    cols = []
    for i in range(kh):
        for j in range(kw):
            cols.append(x[:, i:i + stride * (Ho - 1) + 1:stride,
                          j:j + stride * (Wo - 1) + 1:stride, :])
    p = jnp.stack(cols, axis=3)                      # (N, Ho, Wo, kh*kw, C)
    return p.reshape(N * Ho * Wo, kh * kw * C), Ho, Wo


def conv2d_nhwc(x, w, b, stride=1, padding=0):
    # x: (N, H, W, Cin); w: (Cout, Cin, kh, kw)  [PyTorch Conv2d layout]
    if padding:
        x = jnp.pad(x, ((0, 0), (padding, padding), (padding, padding), (0, 0)))
    N = x.shape[0]
    Cout, Cin, kh, kw = w.shape
    patches, Ho, Wo = _im2col_nhwc(x, kh, kw, stride)
    wm = jnp.transpose(w, (2, 3, 1, 0)).reshape(kh * kw * Cin, Cout)
    out = gemm_bias(patches, wm, b)                  # (N*Ho*Wo, Cout) f32
    return out.reshape(N, Ho, Wo, Cout)


def _deconv_weight_matrix(w):
    # w: (Cin, Cout, 3, 3) [PyTorch ConvTranspose2d layout] -> (4*Cin, 4*Cout)
    # Rows grouped by input tap (ty, tx, ci); columns by output phase (dy, dx, co).
    Cin, Cout = w.shape[0], w.shape[1]
    K_IDX = ((1, -1), (2, 0))    # [output parity][tap offset] -> kernel index
    zero = jnp.zeros((Cin, Cout), w.dtype)
    cols = []
    for dy in range(2):
        for dx in range(2):
            rows = []
            for ty in range(2):
                for tx in range(2):
                    ky, kx = K_IDX[dy][ty], K_IDX[dx][tx]
                    rows.append(w[:, :, ky, kx] if (ky >= 0 and kx >= 0) else zero)
            cols.append(jnp.concatenate(rows, axis=0))   # (4*Cin, Cout)
    return jnp.concatenate(cols, axis=1)                 # (4*Cin, 4*Cout)


def conv_transpose2d_nhwc(x, w, b):
    # ConvTranspose2d(kernel=3, stride=2, padding=1, output_padding=1) via
    # sub-pixel decomposition: one GEMM over 2x2 taps -> 4 interleaved phases.
    N, H, W, Cin = x.shape
    Cout = w.shape[1]
    xp = jnp.pad(x, ((0, 0), (0, 1), (0, 1), (0, 0)))    # zero tap at H / W edge
    patches, _, _ = _im2col_nhwc(xp, 2, 2, 1)            # (N*H*W, 4*Cin)
    wm = _deconv_weight_matrix(w)                        # (4*Cin, 4*Cout)
    bm = jnp.tile(b, 4)                                  # bias per (dy, dx, co)
    y = gemm_bias(patches, wm, bm)                       # (N*H*W, 4*Cout)
    y = y.reshape(N, H, W, 2, 2, Cout)                   # (..., dy, dx, co)
    y = y.transpose(0, 1, 3, 2, 4, 5).reshape(N, 2 * H, 2 * W, Cout)
    return y


def reflection_pad_nhwc(x, p):
    return jnp.pad(x, ((0, 0), (p, p), (p, p), (0, 0)), mode='reflect')


# ---------------------------------------------------------------------------
# Deterministic parameter construction (shapes from Generator.__init__)
# ---------------------------------------------------------------------------
def init_params(key, input_nc=1, output_nc=1, n_residual_blocks=9):
    def conv_p(k, shape_w, cout):
        k1, k2 = jax.random.split(k)
        w = jax.random.normal(k1, shape_w, jnp.float32) * 0.05
        b = jax.random.normal(k2, (cout,), jnp.float32) * 0.05
        return w, b

    keys = iter(jax.random.split(key, 64))
    params = {}
    # c7s1-64
    params['c7s1'] = conv_p(next(keys), (64, input_nc, 7, 7), 64)
    # downsampling: 64->128->256 (3x3, stride 2, pad 1)
    params['down'] = [conv_p(next(keys), (128, 64, 3, 3), 128),
                      conv_p(next(keys), (256, 128, 3, 3), 256)]
    # residual blocks (256 features)
    params['res'] = [(conv_p(next(keys), (256, 256, 3, 3), 256),
                      conv_p(next(keys), (256, 256, 3, 3), 256))
                     for _ in range(n_residual_blocks)]
    # upsampling (ConvTranspose2d weights are (Cin, Cout, 3, 3))
    params['up'] = [conv_p(next(keys), (256, 128, 3, 3), 128),
                    conv_p(next(keys), (128, 64, 3, 3), 64)]
    # c7s1-output
    params['final'] = conv_p(next(keys), (output_nc, 64, 7, 7), output_nc)
    return params


# ---------------------------------------------------------------------------
# Generator forward (PyTorch NCHW at the boundary, NHWC internally)
# ---------------------------------------------------------------------------
def generator_forward(params, x):
    h = jnp.transpose(x, (0, 2, 3, 1)).astype(jnp.float32)   # NCHW -> NHWC once

    # ReflectionPad(3) -> Conv 7x7 -> IN -> ReLU
    w, b = params['c7s1']
    h = reflection_pad_nhwc(h, 3)
    h = conv2d_nhwc(h, w, b)
    h = instance_norm(h, relu=True)

    # 2x downsample: Conv 3x3 s2 p1 -> IN -> ReLU
    for w, b in params['down']:
        h = conv2d_nhwc(h, w, b, stride=2, padding=1)
        h = instance_norm(h, relu=True)

    # 9x ResidualBlock
    for (w1, b1), (w2, b2) in params['res']:
        t = reflection_pad_nhwc(h, 1)
        t = conv2d_nhwc(t, w1, b1)
        t = instance_norm(t, relu=True)
        t = reflection_pad_nhwc(t, 1)
        t = conv2d_nhwc(t, w2, b2)
        h = instance_norm_add(t, h)          # x + block(x)

    # 2x upsample: ConvTranspose 3x3 s2 p1 op1 -> IN -> ReLU
    for w, b in params['up']:
        h = conv_transpose2d_nhwc(h, w, b)
        h = instance_norm(h, relu=True)

    # ReflectionPad(3) -> Conv 7x7 -> Tanh
    w, b = params['final']
    h = reflection_pad_nhwc(h, 3)
    h = conv2d_nhwc(h, w, b)
    h = tanh_op(h)

    return jnp.transpose(h, (0, 3, 1, 2))    # back to NCHW, like PyTorch


if __name__ == "__main__":
    key = jax.random.PRNGKey(0)
    k_param, k_x = jax.random.split(key)
    params = init_params(k_param, input_nc=1, output_nc=1, n_residual_blocks=9)
    x = jax.random.normal(k_x, (2, 1, 16, 16), jnp.float32)   # NCHW, like PyTorch

    fwd = jax.jit(generator_forward)
    y = fwd(params, x)
    jax.block_until_ready(y)
    assert y.shape == (2, 1, 16, 16)
    print("KERNEL_OK")
</pallas_src>

<mosaic_0001>
module attributes {stable_mosaic.version = 11 : i64} {
  func.func @_inorm_kernel(%arg0: i32, %arg1: i32, %arg2: memref<1x256x64xf32, #tpu.memory_space<vmem>>, %arg3: memref<1x256x64xf32, #tpu.memory_space<vmem>>) attributes {dimension_semantics = [#tpu.dimension_semantics<parallel>, #tpu.dimension_semantics<parallel>], iteration_bounds = array<i64: 2, 1>, scalar_prefetch = 0 : i64, scratch_operands = 0 : i64, tpu.core_type = #tpu.core_type<tc>, window_params = [{transform_indices = @transform_0, window_bounds = array<i64: 1, 256, 64>}, {transform_indices = @transform_1, window_bounds = array<i64: 1, 256, 64>}]} {
    %c0 = arith.constant 0 : index
    %c0_0 = arith.constant 0 : index
    %c0_1 = arith.constant 0 : index
    %0 = vector.load %arg2[%c0, %c0_0, %c0_1] : memref<1x256x64xf32, #tpu.memory_space<vmem>>, vector<1x256x64xf32>
    %cst = arith.constant dense<0.000000e+00> : vector<1x64xf32>
    %1 = vector.multi_reduction <add>, %0, %cst [1] : vector<1x256x64xf32> to vector<1x64xf32>
    %2 = vector.shape_cast %1 : vector<1x64xf32> to vector<1x1x64xf32>
    %cst_2 = arith.constant 2.560000e+02 : f32
    %3 = vector.broadcast %cst_2 : f32 to vector<1x1x64xf32>
    %4 = arith.divf %2, %3 : vector<1x1x64xf32>
    %5 = vector.broadcast %4 : vector<1x1x64xf32> to vector<1x256x64xf32>
    %6 = arith.subf %0, %5 : vector<1x256x64xf32>
    %7 = arith.mulf %6, %6 : vector<1x256x64xf32>
    %cst_3 = arith.constant dense<0.000000e+00> : vector<1x64xf32>
    %8 = vector.multi_reduction <add>, %7, %cst_3 [1] : vector<1x256x64xf32> to vector<1x64xf32>
    %9 = vector.shape_cast %8 : vector<1x64xf32> to vector<1x1x64xf32>
    %cst_4 = arith.constant 2.560000e+02 : f32
    %10 = vector.broadcast %cst_4 : f32 to vector<1x1x64xf32>
    %11 = arith.divf %9, %10 : vector<1x1x64xf32>
    %cst_5 = arith.constant 9.99999974E-6 : f32
    %12 = vector.broadcast %cst_5 : f32 to vector<1x1x64xf32>
    %13 = arith.addf %11, %12 : vector<1x1x64xf32>
    %14 = math.rsqrt %13 : vector<1x1x64xf32>
    %15 = vector.broadcast %14 : vector<1x1x64xf32> to vector<1x256x64xf32>
    %16 = arith.mulf %6, %15 : vector<1x256x64xf32>
    %cst_6 = arith.constant 0.000000e+00 : f32
    %17 = vector.broadcast %cst_6 : f32 to vector<1x256x64xf32>
    %18 = arith.maximumf %16, %17 : vector<1x256x64xf32>
    %c0_7 = arith.constant 0 : index
    %c0_8 = arith.constant 0 : index
    %c0_9 = arith.constant 0 : index
    %19 = vector.load %arg3[%c0_7, %c0_8, %c0_9] : memref<1x256x64xf32, #tpu.memory_space<vmem>>, vector<1x256x64xf32>
    tpu.vector_store %arg3[%c0_7, %c0_8, %c0_9], %18 {strides = array<i32>} : memref<1x256x64xf32, #tpu.memory_space<vmem>>, vector<1x256x64xf32>,
    return
  }
  func.func @transform_0(%arg0: i32, %arg1: i32) -> (i32, i32, i32) {
    %c0_i32 = arith.constant 0 : i32
    %c0_i32_0 = arith.constant 0 : i32
    return %arg0, %c0_i32, %arg1 : i32, i32, i32
  }
  func.func @transform_1(%arg0: i32, %arg1: i32) -> (i32, i32, i32) {
    %c0_i32 = arith.constant 0 : i32
    %c0_i32_0 = arith.constant 0 : i32
    return %arg0, %c0_i32, %arg1 : i32, i32, i32
  }
}

module attributes {stable_mosaic.version = 11 : i64} {
  func.func @_gemm_bias_kernel(%arg0: i32, %arg1: i32, %arg2: i32, %arg3: memref<256x128xbf16, #tpu.memory_space<vmem>>, %arg4: memref<128x128xbf16, #tpu.memory_space<vmem>>, %arg5: memref<1x128xf32, #tpu.memory_space<vmem>>, %arg6: memref<256x128xf32, #tpu.memory_space<vmem>>, %arg7: memref<256x128xf32, #tpu.memory_space<vmem>>) attributes {dimension_semantics = [#tpu.dimension_semantics<parallel>, #tpu.dimension_semantics<parallel>, #tpu.dimension_semantics<arbitrary>], iteration_bounds = array<i64: 2, 1, 1>, scalar_prefetch = 0 : i64, scratch_operands = 1 : i64, tpu.core_type = #tpu.core_type<tc>, window_params = [{transform_indices = @transform_0, window_bounds = array<i64: 256, 128>}, {transform_indices = @transform_1, window_bounds = array<i64: 128, 128>}, {transform_indices = @transform_2, window_bounds = array<i64: 1, 128>}, {transform_indices = @transform_3, window_bounds = array<i64: 256, 128>}]} {
    %c0_i32 = arith.constant 0 : i32
    %0 = arith.cmpi eq, %arg2, %c0_i32 : i32
    %1 = arith.extui %0 : i1 to i32
    %c0_i32_0 = arith.constant 0 : i32
    %2 = arith.cmpi ne, %1, %c0_i32_0 : i32
    scf.if %2 {
      %cst_10 = arith.constant 0.000000e+00 : f32
      %12 = vector.broadcast %cst_10 : f32 to vector<256x128xf32>
      %c0_11 = arith.constant 0 : index
      %c0_12 = arith.constant 0 : index
      %13 = vector.load %arg7[%c0_11, %c0_12] : memref<256x128xf32, #tpu.memory_space<vmem>>, vector<256x128xf32>
      tpu.vector_store %arg7[%c0_11, %c0_12], %12 {strides = array<i32>} : memref<256x128xf32, #tpu.memory_space<vmem>>, vector<256x128xf32>,
    } else {
    }
    %c0 = arith.constant 0 : index
    %c0_1 = arith.constant 0 : index
    %3 = vector.load %arg7[%c0, %c0_1] : memref<256x128xf32, #tpu.memory_space<vmem>>, vector<256x128xf32>
    %c0_2 = arith.constant 0 : index
    %c0_3 = arith.constant 0 : index
    %4 = vector.load %arg3[%c0_2, %c0_3] : memref<256x128xbf16, #tpu.memory_space<vmem>>, vector<256x128xbf16>
    %c0_4 = arith.constant 0 : index
    %c0_5 = arith.constant 0 : index
    %5 = vector.load %arg4[%c0_4, %c0_5] : memref<128x128xbf16, #tpu.memory_space<vmem>>, vector<128x128xbf16>
    %cst = arith.constant dense<0.000000e+00> : vector<256x128xf32>
    %6 = tpu.matmul %4, %5, %cst {dimension_numbers = #tpu.dot_dimension_numbers<[1], [0], [0], [1], [0, 0, 1, 1], [], []>} : vector<256x128xbf16>, vector<128x128xbf16>, vector<256x128xf32> -> vector<256x128xf32>
    %7 = arith.addf %3, %6 : vector<256x128xf32>
    %c0_6 = arith.constant 0 : index
    %c0_7 = arith.constant 0 : index
    %8 = vector.load %arg7[%c0_6, %c0_7] : memref<256x128xf32, #tpu.memory_space<vmem>>, vector<256x128xf32>
    tpu.vector_store %arg7[%c0_6, %c0_7], %7 {strides = array<i32>} : memref<256x128xf32, #tpu.memory_space<vmem>>, vector<256x128xf32>,
    %c0_i32_8 = arith.constant 0 : i32
    %9 = arith.cmpi eq, %arg2, %c0_i32_8 : i32
    %10 = arith.extui %9 : i1 to i32
    %c0_i32_9 = arith.constant 0 : i32
    %11 = arith.cmpi ne, %10, %c0_i32_9 : i32
    scf.if %11 {
      %c0_10 = arith.constant 0 : index
      %c0_11 = arith.constant 0 : index
      %12 = vector.load %arg7[%c0_10, %c0_11] : memref<256x128xf32, #tpu.memory_space<vmem>>, vector<256x128xf32>
      %c0_12 = arith.constant 0 : index
      %c0_13 = arith.constant 0 : index
      %13 = vector.load %arg5[%c0_12, %c0_13] : memref<1x128xf32, #tpu.memory_space<vmem>>, vector<1x128xf32>
      %14 = vector.broadcast %13 : vector<1x128xf32> to vector<256x128xf32>
      %15 = arith.addf %12, %14 : vector<256x128xf32>
      %c0_14 = arith.constant 0 : index
      %c0_15 = arith.constant 0 : index
      %16 = vector.load %arg6[%c0_14, %c0_15] : memref<256x128xf32, #tpu.memory_space<vmem>>, vector<256x128xf32>
      tpu.vector_store %arg6[%c0_14, %c0_15], %15 {strides = array<i32>} : memref<256x128xf32, #tpu.memory_space<vmem>>, vector<256x128xf32>,
    } else {
    }
    return
  }
  func.func @transform_0(%arg0: i32, %arg1: i32, %arg2: i32) -> (i32, i32) {
    %c0_i32 = arith.constant 0 : i32
    return %arg0, %arg2 : i32, i32
  }
  func.func @transform_1(%arg0: i32, %arg1: i32, %arg2: i32) -> (i32, i32) {
    %c0_i32 = arith.constant 0 : i32
    return %arg2, %arg1 : i32, i32
  }
  func.func @transform_2(%arg0: i32, %arg1: i32, %arg2: i32) -> (i32, i32) {
    %c0_i32 = arith.constant 0 : i32
    %c0_i32_0 = arith.constant 0 : i32
    return %c0_i32, %arg1 : i32, i32
  }
  func.func @transform_3(%arg0: i32, %arg1: i32, %arg2: i32) -> (i32, i32) {
    %c0_i32 = arith.constant 0 : i32
    return %arg0, %arg1 : i32, i32
  }
}

module attributes {stable_mosaic.version = 11 : i64} {
  func.func @_gemm_bias_kernel(%arg0: i32, %arg1: i32, %arg2: i32, %arg3: memref<128x128xbf16, #tpu.memory_space<vmem>>, %arg4: memref<128x128xbf16, #tpu.memory_space<vmem>>, %arg5: memref<1x128xf32, #tpu.memory_space<vmem>>, %arg6: memref<128x128xf32, #tpu.memory_space<vmem>>, %arg7: memref<128x128xf32, #tpu.memory_space<vmem>>) attributes {dimension_semantics = [#tpu.dimension_semantics<parallel>, #tpu.dimension_semantics<parallel>, #tpu.dimension_semantics<arbitrary>], iteration_bounds = array<i64: 1, 1, 5>, scalar_prefetch = 0 : i64, scratch_operands = 1 : i64, tpu.core_type = #tpu.core_type<tc>, window_params = [{transform_indices = @transform_0, window_bounds = array<i64: 128, 128>}, {transform_indices = @transform_1, window_bounds = array<i64: 128, 128>}, {transform_indices = @transform_2, window_bounds = array<i64: 1, 128>}, {transform_indices = @transform_3, window_bounds = array<i64: 128, 128>}]} {
    %c0_i32 = arith.constant 0 : i32
    %0 = arith.cmpi eq, %arg2, %c0_i32 : i32
    %1 = arith.extui %0 : i1 to i32
    %c0_i32_0 = arith.constant 0 : i32
    %2 = arith.cmpi ne, %1, %c0_i32_0 : i32
    scf.if %2 {
      %cst_9 = arith.constant 0.000000e+00 : f32
      %12 = vector.broadcast %cst_9 : f32 to vector<128x128xf32>
      %c0_10 = arith.constant 0 : index
      %c0_11 = arith.constant 0 : index
      %13 = vector.load %arg7[%c0_10, %c0_11] : memref<128x128xf32, #tpu.memory_space<vmem>>, vector<128x128xf32>
      tpu.vector_store %arg7[%c0_10, %c0_11], %12 {strides = array<i32>} : memref<128x128xf32, #tpu.memory_space<vmem>>, vector<128x128xf32>,
    } else {
    }
    %c0 = arith.constant 0 : index
    %c0_1 = arith.constant 0 : index
    %3 = vector.load %arg7[%c0, %c0_1] : memref<128x128xf32, #tpu.memory_space<vmem>>, vector<128x128xf32>
    %c0_2 = arith.constant 0 : index
    %c0_3 = arith.constant 0 : index
    %4 = vector.load %arg3[%c0_2, %c0_3] : memref<128x128xbf16, #tpu.memory_space<vmem>>, vector<128x128xbf16>
    %c0_4 = arith.constant 0 : index
    %c0_5 = arith.constant 0 : index
    %5 = vector.load %arg4[%c0_4, %c0_5] : memref<128x128xbf16, #tpu.memory_space<vmem>>, vector<128x128xbf16>
    %cst = arith.constant dense<0.000000e+00> : vector<128x128xf32>
    %6 = tpu.matmul %4, %5, %cst {dimension_numbers = #tpu.dot_dimension_numbers<[1], [0], [0], [1], [0, 0, 1, 1], [], []>} : vector<128x128xbf16>, vector<128x128xbf16>, vector<128x128xf32> -> vector<128x128xf32>
    %7 = arith.addf %3, %6 : vector<128x128xf32>
    %c0_6 = arith.constant 0 : index
    %c0_7 = arith.constant 0 : index
    %8 = vector.load %arg7[%c0_6, %c0_7] : memref<128x128xf32, #tpu.memory_space<vmem>>, vector<128x128xf32>
    tpu.vector_store %arg7[%c0_6, %c0_7], %7 {strides = array<i32>} : memref<128x128xf32, #tpu.memory_space<vmem>>, vector<128x128xf32>,
    %c4_i32 = arith.constant 4 : i32
    %9 = arith.cmpi eq, %arg2, %c4_i32 : i32
    %10 = arith.extui %9 : i1 to i32
    %c0_i32_8 = arith.constant 0 : i32
    %11 = arith.cmpi ne, %10, %c0_i32_8 : i32
    scf.if %11 {
      %c0_9 = arith.constant 0 : index
      %c0_10 = arith.constant 0 : index
      %12 = vector.load %arg7[%c0_9, %c0_10] : memref<128x128xf32, #tpu.memory_space<vmem>>, vector<128x128xf32>
      %c0_11 = arith.constant 0 : index
      %c0_12 = arith.constant 0 : index
      %13 = vector.load %arg5[%c0_11, %c0_12] : memref<1x128xf32, #tpu.memory_space<vmem>>, vector<1x128xf32>
      %14 = vector.broadcast %13 : vector<1x128xf32> to vector<128x128xf32>
      %15 = arith.addf %12, %14 : vector<128x128xf32>
      %c0_13 = arith.constant 0 : index
      %c0_14 = arith.constant 0 : index
      %16 = vector.load %arg6[%c0_13, %c0_14] : memref<128x128xf32, #tpu.memory_space<vmem>>, vector<128x128xf32>
      tpu.vector_store %arg6[%c0_13, %c0_14], %15 {strides = array<i32>} : memref<128x128xf32, #tpu.memory_space<vmem>>, vector<128x128xf32>,
    } else {
    }
    return
  }
  func.func @transform_0(%arg0: i32, %arg1: i32, %arg2: i32) -> (i32, i32) {
    %c0_i32 = arith.constant 0 : i32
    return %arg0, %arg2 : i32, i32
  }
  func.func @transform_1(%arg0: i32, %arg1: i32, %arg2: i32) -> (i32, i32) {
    %c0_i32 = arith.constant 0 : i32
    return %arg2, %arg1 : i32, i32
  }
  func.func @transform_2(%arg0: i32, %arg1: i32, %arg2: i32) -> (i32, i32) {
    %c0_i32 = arith.constant 0 : i32
    %c0_i32_0 = arith.constant 0 : i32
    return %c0_i32, %arg1 : i32, i32
  }
  func.func @transform_3(%arg0: i32, %arg1: i32, %arg2: i32) -> (i32, i32) {
    %c0_i32 = arith.constant 0 : i32
    return %arg0, %arg1 : i32, i32
  }
}

module attributes {stable_mosaic.version = 11 : i64} {
  func.func @_inorm_kernel(%arg0: i32, %arg1: i32, %arg2: memref<1x64x128xf32, #tpu.memory_space<vmem>>, %arg3: memref<1x64x128xf32, #tpu.memory_space<vmem>>) attributes {dimension_semantics = [#tpu.dimension_semantics<parallel>, #tpu.dimension_semantics<parallel>], iteration_bounds = array<i64: 2, 1>, scalar_prefetch = 0 : i64, scratch_operands = 0 : i64, tpu.core_type = #tpu.core_type<tc>, window_params = [{transform_indices = @transform_0, window_bounds = array<i64: 1, 64, 128>}, {transform_indices = @transform_1, window_bounds = array<i64: 1, 64, 128>}]} {
    %c0 = arith.constant 0 : index
    %c0_0 = arith.constant 0 : index
    %c0_1 = arith.constant 0 : index
    %0 = vector.load %arg2[%c0, %c0_0, %c0_1] : memref<1x64x128xf32, #tpu.memory_space<vmem>>, vector<1x64x128xf32>
    %cst = arith.constant dense<0.000000e+00> : vector<1x128xf32>
    %1 = vector.multi_reduction <add>, %0, %cst [1] : vector<1x64x128xf32> to vector<1x128xf32>
    %2 = vector.shape_cast %1 : vector<1x128xf32> to vector<1x1x128xf32>
    %cst_2 = arith.constant 6.400000e+01 : f32
    %3 = vector.broadcast %cst_2 : f32 to vector<1x1x128xf32>
    %4 = arith.divf %2, %3 : vector<1x1x128xf32>
    %5 = vector.broadcast %4 : vector<1x1x128xf32> to vector<1x64x128xf32>
    %6 = arith.subf %0, %5 : vector<1x64x128xf32>
    %7 = arith.mulf %6, %6 : vector<1x64x128xf32>
    %cst_3 = arith.constant dense<0.000000e+00> : vector<1x128xf32>
    %8 = vector.multi_reduction <add>, %7, %cst_3 [1] : vector<1x64x128xf32> to vector<1x128xf32>
    %9 = vector.shape_cast %8 : vector<1x128xf32> to vector<1x1x128xf32>
    %cst_4 = arith.constant 6.400000e+01 : f32
    %10 = vector.broadcast %cst_4 : f32 to vector<1x1x128xf32>
    %11 = arith.divf %9, %10 : vector<1x1x128xf32>
    %cst_5 = arith.constant 9.99999974E-6 : f32
    %12 = vector.broadcast %cst_5 : f32 to vector<1x1x128xf32>
    %13 = arith.addf %11, %12 : vector<1x1x128xf32>
    %14 = math.rsqrt %13 : vector<1x1x128xf32>
    %15 = vector.broadcast %14 : vector<1x1x128xf32> to vector<1x64x128xf32>
    %16 = arith.mulf %6, %15 : vector<1x64x128xf32>
    %cst_6 = arith.constant 0.000000e+00 : f32
    %17 = vector.broadcast %cst_6 : f32 to vector<1x64x128xf32>
    %18 = arith.maximumf %16, %17 : vector<1x64x128xf32>
    %c0_7 = arith.constant 0 : index
    %c0_8 = arith.constant 0 : index
    %c0_9 = arith.constant 0 : index
    %19 = vector.load %arg3[%c0_7, %c0_8, %c0_9] : memref<1x64x128xf32, #tpu.memory_space<vmem>>, vector<1x64x128xf32>
    tpu.vector_store %arg3[%c0_7, %c0_8, %c0_9], %18 {strides = array<i32>} : memref<1x64x128xf32, #tpu.memory_space<vmem>>, vector<1x64x128xf32>,
    return
  }
  func.func @transform_0(%arg0: i32, %arg1: i32) -> (i32, i32, i32) {
    %c0_i32 = arith.constant 0 : i32
    %c0_i32_0 = arith.constant 0 : i32
    return %arg0, %c0_i32, %arg1 : i32, i32, i32
  }
  func.func @transform_1(%arg0: i32, %arg1: i32) -> (i32, i32, i32) {
    %c0_i32 = arith.constant 0 : i32
    %c0_i32_0 = arith.constant 0 : i32
    return %arg0, %c0_i32, %arg1 : i32, i32, i32
  }
}

module attributes {stable_mosaic.version = 11 : i64} {
  func.func @_gemm_bias_kernel(%arg0: i32, %arg1: i32, %arg2: i32, %arg3: memref<32x384xbf16, #tpu.memory_space<vmem>>, %arg4: memref<384x256xbf16, #tpu.memory_space<vmem>>, %arg5: memref<1x256xf32, #tpu.memory_space<vmem>>, %arg6: memref<32x256xf32, #tpu.memory_space<vmem>>, %arg7: memref<32x256xf32, #tpu.memory_space<vmem>>) attributes {dimension_semantics = [#tpu.dimension_semantics<parallel>, #tpu.dimension_semantics<parallel>, #tpu.dimension_semantics<arbitrary>], iteration_bounds = array<i64: 1, 1, 3>, scalar_prefetch = 0 : i64, scratch_operands = 1 : i64, tpu.core_type = #tpu.core_type<tc>, window_params = [{transform_indices = @transform_0, window_bounds = array<i64: 32, 384>}, {transform_indices = @transform_1, window_bounds = array<i64: 384, 256>}, {transform_indices = @transform_2, window_bounds = array<i64: 1, 256>}, {transform_indices = @transform_3, window_bounds = array<i64: 32, 256>}]} {
    %c0_i32 = arith.constant 0 : i32
    %0 = arith.cmpi eq, %arg2, %c0_i32 : i32
    %1 = arith.extui %0 : i1 to i32
    %c0_i32_0 = arith.constant 0 : i32
    %2 = arith.cmpi ne, %1, %c0_i32_0 : i32
    scf.if %2 {
      %cst_9 = arith.constant 0.000000e+00 : f32
      %12 = vector.broadcast %cst_9 : f32 to vector<32x256xf32>
      %c0_10 = arith.constant 0 : index
      %c0_11 = arith.constant 0 : index
      %13 = vector.load %arg7[%c0_10, %c0_11] : memref<32x256xf32, #tpu.memory_space<vmem>>, vector<32x256xf32>
      tpu.vector_store %arg7[%c0_10, %c0_11], %12 {strides = array<i32>} : memref<32x256xf32, #tpu.memory_space<vmem>>, vector<32x256xf32>,
    } else {
    }
    %c0 = arith.constant 0 : index
    %c0_1 = arith.constant 0 : index
    %3 = vector.load %arg7[%c0, %c0_1] : memref<32x256xf32, #tpu.memory_space<vmem>>, vector<32x256xf32>
    %c0_2 = arith.constant 0 : index
    %c0_3 = arith.constant 0 : index
    %4 = vector.load %arg3[%c0_2, %c0_3] : memref<32x384xbf16, #tpu.memory_space<vmem>>, vector<32x384xbf16>
    %c0_4 = arith.constant 0 : index
    %c0_5 = arith.constant 0 : index
    %5 = vector.load %arg4[%c0_4, %c0_5] : memref<384x256xbf16, #tpu.memory_space<vmem>>, vector<384x256xbf16>
    %cst = arith.constant dense<0.000000e+00> : vector<32x256xf32>
    %6 = tpu.matmul %4, %5, %cst {dimension_numbers = #tpu.dot_dimension_numbers<[1], [0], [0], [1], [0, 0, 1, 1], [], []>} : vector<32x384xbf16>, vector<384x256xbf16>, vector<32x256xf32> -> vector<32x256xf32>
    %7 = arith.addf %3, %6 : vector<32x256xf32>
    %c0_6 = arith.constant 0 : index
    %c0_7 = arith.constant 0 : index
    %8 = vector.load %arg7[%c0_6, %c0_7] : memref<32x256xf32, #tpu.memory_space<vmem>>, vector<32x256xf32>
    tpu.vector_store %arg7[%c0_6, %c0_7], %7 {strides = array<i32>} : memref<32x256xf32, #tpu.memory_space<vmem>>, vector<32x256xf32>,
    %c2_i32 = arith.constant 2 : i32
    %9 = arith.cmpi eq, %arg2, %c2_i32 : i32
    %10 = arith.extui %9 : i1 to i32
    %c0_i32_8 = arith.constant 0 : i32
    %11 = arith.cmpi ne, %10, %c0_i32_8 : i32
    scf.if %11 {
      %c0_9 = arith.constant 0 : index
      %c0_10 = arith.constant 0 : index
      %12 = vector.load %arg7[%c0_9, %c0_10] : memref<32x256xf32, #tpu.memory_space<vmem>>, vector<32x256xf32>
      %c0_11 = arith.constant 0 : index
      %c0_12 = arith.constant 0 : index
      %13 = vector.load %arg5[%c0_11, %c0_12] : memref<1x256xf32, #tpu.memory_space<vmem>>, vector<1x256xf32>
      %14 = vector.broadcast %13 : vector<1x256xf32> to vector<32x256xf32>
      %15 = arith.addf %12, %14 : vector<32x256xf32>
      %c0_13 = arith.constant 0 : index
      %c0_14 = arith.constant 0 : index
      %16 = vector.load %arg6[%c0_13, %c0_14] : memref<32x256xf32, #tpu.memory_space<vmem>>, vector<32x256xf32>
      tpu.vector_store %arg6[%c0_13, %c0_14], %15 {strides = array<i32>} : memref<32x256xf32, #tpu.memory_space<vmem>>, vector<32x256xf32>,
    } else {
    }
    return
  }
  func.func @transform_0(%arg0: i32, %arg1: i32, %arg2: i32) -> (i32, i32) {
    %c0_i32 = arith.constant 0 : i32
    return %arg0, %arg2 : i32, i32
  }
  func.func @transform_1(%arg0: i32, %arg1: i32, %arg2: i32) -> (i32, i32) {
    %c0_i32 = arith.constant 0 : i32
    return %arg2, %arg1 : i32, i32
  }
  func.func @transform_2(%arg0: i32, %arg1: i32, %arg2: i32) -> (i32, i32) {
    %c0_i32 = arith.constant 0 : i32
    %c0_i32_0 = arith.constant 0 : i32
    return %c0_i32, %arg1 : i32, i32
  }
  func.func @transform_3(%arg0: i32, %arg1: i32, %arg2: i32) -> (i32, i32) {
    %c0_i32 = arith.constant 0 : i32
    return %arg0, %arg1 : i32, i32
  }
}

module attributes {stable_mosaic.version = 11 : i64} {
  func.func @_inorm_kernel(%arg0: i32, %arg1: i32, %arg2: memref<1x16x128xf32, #tpu.memory_space<vmem>>, %arg3: memref<1x16x128xf32, #tpu.memory_space<vmem>>) attributes {dimension_semantics = [#tpu.dimension_semantics<parallel>, #tpu.dimension_semantics<parallel>], iteration_bounds = array<i64: 2, 2>, scalar_prefetch = 0 : i64, scratch_operands = 0 : i64, tpu.core_type = #tpu.core_type<tc>, window_params = [{transform_indices = @transform_0, window_bounds = array<i64: 1, 16, 128>}, {transform_indices = @transform_1, window_bounds = array<i64: 1, 16, 128>}]} {
    %c0 = arith.constant 0 : index
    %c0_0 = arith.constant 0 : index
    %c0_1 = arith.constant 0 : index
    %0 = vector.load %arg2[%c0, %c0_0, %c0_1] : memref<1x16x128xf32, #tpu.memory_space<vmem>>, vector<1x16x128xf32>
    %cst = arith.constant dense<0.000000e+00> : vector<1x128xf32>
    %1 = vector.multi_reduction <add>, %0, %cst [1] : vector<1x16x128xf32> to vector<1x128xf32>
    %2 = vector.shape_cast %1 : vector<1x128xf32> to vector<1x1x128xf32>
    %cst_2 = arith.constant 1.600000e+01 : f32
    %3 = vector.broadcast %cst_2 : f32 to vector<1x1x128xf32>
    %4 = arith.divf %2, %3 : vector<1x1x128xf32>
    %5 = vector.broadcast %4 : vector<1x1x128xf32> to vector<1x16x128xf32>
    %6 = arith.subf %0, %5 : vector<1x16x128xf32>
    %7 = arith.mulf %6, %6 : vector<1x16x128xf32>
    %cst_3 = arith.constant dense<0.000000e+00> : vector<1x128xf32>
    %8 = vector.multi_reduction <add>, %7, %cst_3 [1] : vector<1x16x128xf32> to vector<1x128xf32>
    %9 = vector.shape_cast %8 : vector<1x128xf32> to vector<1x1x128xf32>
    %cst_4 = arith.constant 1.600000e+01 : f32
    %10 = vector.broadcast %cst_4 : f32 to vector<1x1x128xf32>
    %11 = arith.divf %9, %10 : vector<1x1x128xf32>
    %cst_5 = arith.constant 9.99999974E-6 : f32
    %12 = vector.broadcast %cst_5 : f32 to vector<1x1x128xf32>
    %13 = arith.addf %11, %12 : vector<1x1x128xf32>
    %14 = math.rsqrt %13 : vector<1x1x128xf32>
    %15 = vector.broadcast %14 : vector<1x1x128xf32> to vector<1x16x128xf32>
    %16 = arith.mulf %6, %15 : vector<1x16x128xf32>
    %cst_6 = arith.constant 0.000000e+00 : f32
    %17 = vector.broadcast %cst_6 : f32 to vector<1x16x128xf32>
    %18 = arith.maximumf %16, %17 : vector<1x16x128xf32>
    %c0_7 = arith.constant 0 : index
    %c0_8 = arith.constant 0 : index
    %c0_9 = arith.constant 0 : index
    %19 = vector.load %arg3[%c0_7, %c0_8, %c0_9] : memref<1x16x128xf32, #tpu.memory_space<vmem>>, vector<1x16x128xf32>
    tpu.vector_store %arg3[%c0_7, %c0_8, %c0_9], %18 {strides = array<i32>} : memref<1x16x128xf32, #tpu.memory_space<vmem>>, vector<1x16x128xf32>,
    return
  }
  func.func @transform_0(%arg0: i32, %arg1: i32) -> (i32, i32, i32) {
    %c0_i32 = arith.constant 0 : i32
    %c0_i32_0 = arith.constant 0 : i32
    return %arg0, %c0_i32, %arg1 : i32, i32, i32
  }
  func.func @transform_1(%arg0: i32, %arg1: i32) -> (i32, i32, i32) {
    %c0_i32 = arith.constant 0 : i32
    %c0_i32_0 = arith.constant 0 : i32
    return %arg0, %c0_i32, %arg1 : i32, i32, i32
  }
}

module attributes {stable_mosaic.version = 11 : i64} {
  func.func @_gemm_bias_kernel(%arg0: i32, %arg1: i32, %arg2: i32, %arg3: memref<32x384xbf16, #tpu.memory_space<vmem>>, %arg4: memref<384x256xbf16, #tpu.memory_space<vmem>>, %arg5: memref<1x256xf32, #tpu.memory_space<vmem>>, %arg6: memref<32x256xf32, #tpu.memory_space<vmem>>, %arg7: memref<32x256xf32, #tpu.memory_space<vmem>>) attributes {dimension_semantics = [#tpu.dimension_semantics<parallel>, #tpu.dimension_semantics<parallel>, #tpu.dimension_semantics<arbitrary>], iteration_bounds = array<i64: 1, 1, 6>, scalar_prefetch = 0 : i64, scratch_operands = 1 : i64, tpu.core_type = #tpu.core_type<tc>, window_params = [{transform_indices = @transform_0, window_bounds = array<i64: 32, 384>}, {transform_indices = @transform_1, window_bounds = array<i64: 384, 256>}, {transform_indices = @transform_2, window_bounds = array<i64: 1, 256>}, {transform_indices = @transform_3, window_bounds = array<i64: 32, 256>}]} {
    %c0_i32 = arith.constant 0 : i32
    %0 = arith.cmpi eq, %arg2, %c0_i32 : i32
    %1 = arith.extui %0 : i1 to i32
    %c0_i32_0 = arith.constant 0 : i32
    %2 = arith.cmpi ne, %1, %c0_i32_0 : i32
    scf.if %2 {
      %cst_9 = arith.constant 0.000000e+00 : f32
      %12 = vector.broadcast %cst_9 : f32 to vector<32x256xf32>
      %c0_10 = arith.constant 0 : index
      %c0_11 = arith.constant 0 : index
      %13 = vector.load %arg7[%c0_10, %c0_11] : memref<32x256xf32, #tpu.memory_space<vmem>>, vector<32x256xf32>
      tpu.vector_store %arg7[%c0_10, %c0_11], %12 {strides = array<i32>} : memref<32x256xf32, #tpu.memory_space<vmem>>, vector<32x256xf32>,
    } else {
    }
    %c0 = arith.constant 0 : index
    %c0_1 = arith.constant 0 : index
    %3 = vector.load %arg7[%c0, %c0_1] : memref<32x256xf32, #tpu.memory_space<vmem>>, vector<32x256xf32>
    %c0_2 = arith.constant 0 : index
    %c0_3 = arith.constant 0 : index
    %4 = vector.load %arg3[%c0_2, %c0_3] : memref<32x384xbf16, #tpu.memory_space<vmem>>, vector<32x384xbf16>
    %c0_4 = arith.constant 0 : index
    %c0_5 = arith.constant 0 : index
    %5 = vector.load %arg4[%c0_4, %c0_5] : memref<384x256xbf16, #tpu.memory_space<vmem>>, vector<384x256xbf16>
    %cst = arith.constant dense<0.000000e+00> : vector<32x256xf32>
    %6 = tpu.matmul %4, %5, %cst {dimension_numbers = #tpu.dot_dimension_numbers<[1], [0], [0], [1], [0, 0, 1, 1], [], []>} : vector<32x384xbf16>, vector<384x256xbf16>, vector<32x256xf32> -> vector<32x256xf32>
    %7 = arith.addf %3, %6 : vector<32x256xf32>
    %c0_6 = arith.constant 0 : index
    %c0_7 = arith.constant 0 : index
    %8 = vector.load %arg7[%c0_6, %c0_7] : memref<32x256xf32, #tpu.memory_space<vmem>>, vector<32x256xf32>
    tpu.vector_store %arg7[%c0_6, %c0_7], %7 {strides = array<i32>} : memref<32x256xf32, #tpu.memory_space<vmem>>, vector<32x256xf32>,
    %c5_i32 = arith.constant 5 : i32
    %9 = arith.cmpi eq, %arg2, %c5_i32 : i32
    %10 = arith.extui %9 : i1 to i32
    %c0_i32_8 = arith.constant 0 : i32
    %11 = arith.cmpi ne, %10, %c0_i32_8 : i32
    scf.if %11 {
      %c0_9 = arith.constant 0 : index
      %c0_10 = arith.constant 0 : index
      %12 = vector.load %arg7[%c0_9, %c0_10] : memref<32x256xf32, #tpu.memory_space<vmem>>, vector<32x256xf32>
      %c0_11 = arith.constant 0 : index
      %c0_12 = arith.constant 0 : index
      %13 = vector.load %arg5[%c0_11, %c0_12] : memref<1x256xf32, #tpu.memory_space<vmem>>, vector<1x256xf32>
      %14 = vector.broadcast %13 : vector<1x256xf32> to vector<32x256xf32>
      %15 = arith.addf %12, %14 : vector<32x256xf32>
      %c0_13 = arith.constant 0 : index
      %c0_14 = arith.constant 0 : index
      %16 = vector.load %arg6[%c0_13, %c0_14] : memref<32x256xf32, #tpu.memory_space<vmem>>, vector<32x256xf32>
      tpu.vector_store %arg6[%c0_13, %c0_14], %15 {strides = array<i32>} : memref<32x256xf32, #tpu.memory_space<vmem>>, vector<32x256xf32>,
    } else {
    }
    return
  }
  func.func @transform_0(%arg0: i32, %arg1: i32, %arg2: i32) -> (i32, i32) {
    %c0_i32 = arith.constant 0 : i32
    return %arg0, %arg2 : i32, i32
  }
  func.func @transform_1(%arg0: i32, %arg1: i32, %arg2: i32) -> (i32, i32) {
    %c0_i32 = arith.constant 0 : i32
    return %arg2, %arg1 : i32, i32
  }
  func.func @transform_2(%arg0: i32, %arg1: i32, %arg2: i32) -> (i32, i32) {
    %c0_i32 = arith.constant 0 : i32
    %c0_i32_0 = arith.constant 0 : i32
    return %c0_i32, %arg1 : i32, i32
  }
  func.func @transform_3(%arg0: i32, %arg1: i32, %arg2: i32) -> (i32, i32) {
    %c0_i32 = arith.constant 0 : i32
    return %arg0, %arg1 : i32, i32
  }
}

module attributes {stable_mosaic.version = 11 : i64} {
  func.func @_inorm_add_kernel(%arg0: i32, %arg1: i32, %arg2: memref<1x16x128xf32, #tpu.memory_space<vmem>>, %arg3: memref<1x16x128xf32, #tpu.memory_space<vmem>>, %arg4: memref<1x16x128xf32, #tpu.memory_space<vmem>>) attributes {dimension_semantics = [#tpu.dimension_semantics<parallel>, #tpu.dimension_semantics<parallel>], iteration_bounds = array<i64: 2, 2>, scalar_prefetch = 0 : i64, scratch_operands = 0 : i64, tpu.core_type = #tpu.core_type<tc>, window_params = [{transform_indices = @transform_0, window_bounds = array<i64: 1, 16, 128>}, {transform_indices = @transform_1, window_bounds = array<i64: 1, 16, 128>}, {transform_indices = @transform_2, window_bounds = array<i64: 1, 16, 128>}]} {
    %c0 = arith.constant 0 : index
    %c0_0 = arith.constant 0 : index
    %c0_1 = arith.constant 0 : index
    %0 = vector.load %arg2[%c0, %c0_0, %c0_1] : memref<1x16x128xf32, #tpu.memory_space<vmem>>, vector<1x16x128xf32>
    %cst = arith.constant dense<0.000000e+00> : vector<1x128xf32>
    %1 = vector.multi_reduction <add>, %0, %cst [1] : vector<1x16x128xf32> to vector<1x128xf32>
    %2 = vector.shape_cast %1 : vector<1x128xf32> to vector<1x1x128xf32>
    %cst_2 = arith.constant 1.600000e+01 : f32
    %3 = vector.broadcast %cst_2 : f32 to vector<1x1x128xf32>
    %4 = arith.divf %2, %3 : vector<1x1x128xf32>
    %5 = vector.broadcast %4 : vector<1x1x128xf32> to vector<1x16x128xf32>
    %6 = arith.subf %0, %5 : vector<1x16x128xf32>
    %7 = arith.mulf %6, %6 : vector<1x16x128xf32>
    %cst_3 = arith.constant dense<0.000000e+00> : vector<1x128xf32>
    %8 = vector.multi_reduction <add>, %7, %cst_3 [1] : vector<1x16x128xf32> to vector<1x128xf32>
    %9 = vector.shape_cast %8 : vector<1x128xf32> to vector<1x1x128xf32>
    %cst_4 = arith.constant 1.600000e+01 : f32
    %10 = vector.broadcast %cst_4 : f32 to vector<1x1x128xf32>
    %11 = arith.divf %9, %10 : vector<1x1x128xf32>
    %c0_5 = arith.constant 0 : index
    %c0_6 = arith.constant 0 : index
    %c0_7 = arith.constant 0 : index
    %12 = vector.load %arg3[%c0_5, %c0_6, %c0_7] : memref<1x16x128xf32, #tpu.memory_space<vmem>>, vector<1x16x128xf32>
    %cst_8 = arith.constant 9.99999974E-6 : f32
    %13 = vector.broadcast %cst_8 : f32 to vector<1x1x128xf32>
    %14 = arith.addf %11, %13 : vector<1x1x128xf32>
    %15 = math.rsqrt %14 : vector<1x1x128xf32>
    %16 = vector.broadcast %15 : vector<1x1x128xf32> to vector<1x16x128xf32>
    %17 = arith.mulf %6, %16 : vector<1x16x128xf32>
    %18 = arith.addf %12, %17 : vector<1x16x128xf32>
    %c0_9 = arith.constant 0 : index
    %c0_10 = arith.constant 0 : index
    %c0_11 = arith.constant 0 : index
    %19 = vector.load %arg4[%c0_9, %c0_10, %c0_11] : memref<1x16x128xf32, #tpu.memory_space<vmem>>, vector<1x16x128xf32>
    tpu.vector_store %arg4[%c0_9, %c0_10, %c0_11], %18 {strides = array<i32>} : memref<1x16x128xf32, #tpu.memory_space<vmem>>, vector<1x16x128xf32>,
    return
  }
  func.func @transform_0(%arg0: i32, %arg1: i32) -> (i32, i32, i32) {
    %c0_i32 = arith.constant 0 : i32
    %c0_i32_0 = arith.constant 0 : i32
    return %arg0, %c0_i32, %arg1 : i32, i32, i32
  }
  func.func @transform_1(%arg0: i32, %arg1: i32) -> (i32, i32, i32) {
    %c0_i32 = arith.constant 0 : i32
    %c0_i32_0 = arith.constant 0 : i32
    return %arg0, %c0_i32, %arg1 : i32, i32, i32
  }
  func.func @transform_2(%arg0: i32, %arg1: i32) -> (i32, i32, i32) {
    %c0_i32 = arith.constant 0 : i32
    %c0_i32_0 = arith.constant 0 : i32
    return %arg0, %c0_i32, %arg1 : i32, i32, i32
  }
}

module attributes {stable_mosaic.version = 11 : i64} {
  func.func @_gemm_bias_kernel(%arg0: i32, %arg1: i32, %arg2: i32, %arg3: memref<32x512xbf16, #tpu.memory_space<vmem>>, %arg4: memref<512x256xbf16, #tpu.memory_space<vmem>>, %arg5: memref<1x256xf32, #tpu.memory_space<vmem>>, %arg6: memref<32x256xf32, #tpu.memory_space<vmem>>, %arg7: memref<32x256xf32, #tpu.memory_space<vmem>>) attributes {dimension_semantics = [#tpu.dimension_semantics<parallel>, #tpu.dimension_semantics<parallel>, #tpu.dimension_semantics<arbitrary>], iteration_bounds = array<i64: 1, 2, 2>, scalar_prefetch = 0 : i64, scratch_operands = 1 : i64, tpu.core_type = #tpu.core_type<tc>, window_params = [{transform_indices = @transform_0, window_bounds = array<i64: 32, 512>}, {transform_indices = @transform_1, window_bounds = array<i64: 512, 256>}, {transform_indices = @transform_2, window_bounds = array<i64: 1, 256>}, {transform_indices = @transform_3, window_bounds = array<i64: 32, 256>}]} {
    %c0_i32 = arith.constant 0 : i32
    %0 = arith.cmpi eq, %arg2, %c0_i32 : i32
    %1 = arith.extui %0 : i1 to i32
    %c0_i32_0 = arith.constant 0 : i32
    %2 = arith.cmpi ne, %1, %c0_i32_0 : i32
    scf.if %2 {
      %cst_9 = arith.constant 0.000000e+00 : f32
      %12 = vector.broadcast %cst_9 : f32 to vector<32x256xf32>
      %c0_10 = arith.constant 0 : index
      %c0_11 = arith.constant 0 : index
      %13 = vector.load %arg7[%c0_10, %c0_11] : memref<32x256xf32, #tpu.memory_space<vmem>>, vector<32x256xf32>
      tpu.vector_store %arg7[%c0_10, %c0_11], %12 {strides = array<i32>} : memref<32x256xf32, #tpu.memory_space<vmem>>, vector<32x256xf32>,
    } else {
    }
    %c0 = arith.constant 0 : index
    %c0_1 = arith.constant 0 : index
    %3 = vector.load %arg7[%c0, %c0_1] : memref<32x256xf32, #tpu.memory_space<vmem>>, vector<32x256xf32>
    %c0_2 = arith.constant 0 : index
    %c0_3 = arith.constant 0 : index
    %4 = vector.load %arg3[%c0_2, %c0_3] : memref<32x512xbf16, #tpu.memory_space<vmem>>, vector<32x512xbf16>
    %c0_4 = arith.constant 0 : index
    %c0_5 = arith.constant 0 : index
    %5 = vector.load %arg4[%c0_4, %c0_5] : memref<512x256xbf16, #tpu.memory_space<vmem>>, vector<512x256xbf16>
    %cst = arith.constant dense<0.000000e+00> : vector<32x256xf32>
    %6 = tpu.matmul %4, %5, %cst {dimension_numbers = #tpu.dot_dimension_numbers<[1], [0], [0], [1], [0, 0, 1, 1], [], []>} : vector<32x512xbf16>, vector<512x256xbf16>, vector<32x256xf32> -> vector<32x256xf32>
    %7 = arith.addf %3, %6 : vector<32x256xf32>
    %c0_6 = arith.constant 0 : index
    %c0_7 = arith.constant 0 : index
    %8 = vector.load %arg7[%c0_6, %c0_7] : memref<32x256xf32, #tpu.memory_space<vmem>>, vector<32x256xf32>
    tpu.vector_store %arg7[%c0_6, %c0_7], %7 {strides = array<i32>} : memref<32x256xf32, #tpu.memory_space<vmem>>, vector<32x256xf32>,
    %c1_i32 = arith.constant 1 : i32
    %9 = arith.cmpi eq, %arg2, %c1_i32 : i32
    %10 = arith.extui %9 : i1 to i32
    %c0_i32_8 = arith.constant 0 : i32
    %11 = arith.cmpi ne, %10, %c0_i32_8 : i32
    scf.if %11 {
      %c0_9 = arith.constant 0 : index
      %c0_10 = arith.constant 0 : index
      %12 = vector.load %arg7[%c0_9, %c0_10] : memref<32x256xf32, #tpu.memory_space<vmem>>, vector<32x256xf32>
      %c0_11 = arith.constant 0 : index
      %c0_12 = arith.constant 0 : index
      %13 = vector.load %arg5[%c0_11, %c0_12] : memref<1x256xf32, #tpu.memory_space<vmem>>, vector<1x256xf32>
      %14 = vector.broadcast %13 : vector<1x256xf32> to vector<32x256xf32>
      %15 = arith.addf %12, %14 : vector<32x256xf32>
      %c0_13 = arith.constant 0 : index
      %c0_14 = arith.constant 0 : index
      %16 = vector.load %arg6[%c0_13, %c0_14] : memref<32x256xf32, #tpu.memory_space<vmem>>, vector<32x256xf32>
      tpu.vector_store %arg6[%c0_13, %c0_14], %15 {strides = array<i32>} : memref<32x256xf32, #tpu.memory_space<vmem>>, vector<32x256xf32>,
    } else {
    }
    return
  }
  func.func @transform_0(%arg0: i32, %arg1: i32, %arg2: i32) -> (i32, i32) {
    %c0_i32 = arith.constant 0 : i32
    return %arg0, %arg2 : i32, i32
  }
  func.func @transform_1(%arg0: i32, %arg1: i32, %arg2: i32) -> (i32, i32) {
    %c0_i32 = arith.constant 0 : i32
    return %arg2, %arg1 : i32, i32
  }
  func.func @transform_2(%arg0: i32, %arg1: i32, %arg2: i32) -> (i32, i32) {
    %c0_i32 = arith.constant 0 : i32
    %c0_i32_0 = arith.constant 0 : i32
    return %c0_i32, %arg1 : i32, i32
  }
  func.func @transform_3(%arg0: i32, %arg1: i32, %arg2: i32) -> (i32, i32) {
    %c0_i32 = arith.constant 0 : i32
    return %arg0, %arg1 : i32, i32
  }
}

module attributes {stable_mosaic.version = 11 : i64} {
  func.func @_gemm_bias_kernel(%arg0: i32, %arg1: i32, %arg2: i32, %arg3: memref<128x512xbf16, #tpu.memory_space<vmem>>, %arg4: memref<512x256xbf16, #tpu.memory_space<vmem>>, %arg5: memref<1x256xf32, #tpu.memory_space<vmem>>, %arg6: memref<128x256xf32, #tpu.memory_space<vmem>>, %arg7: memref<128x256xf32, #tpu.memory_space<vmem>>) attributes {dimension_semantics = [#tpu.dimension_semantics<parallel>, #tpu.dimension_semantics<parallel>, #tpu.dimension_semantics<arbitrary>], iteration_bounds = array<i64: 1, 1, 1>, scalar_prefetch = 0 : i64, scratch_operands = 1 : i64, tpu.core_type = #tpu.core_type<tc>, window_params = [{transform_indices = @transform_0, window_bounds = array<i64: 128, 512>}, {transform_indices = @transform_1, window_bounds = array<i64: 512, 256>}, {transform_indices = @transform_2, window_bounds = array<i64: 1, 256>}, {transform_indices = @transform_3, window_bounds = array<i64: 128, 256>}]} {
    %c0_i32 = arith.constant 0 : i32
    %0 = arith.cmpi eq, %arg2, %c0_i32 : i32
    %1 = arith.extui %0 : i1 to i32
    %c0_i32_0 = arith.constant 0 : i32
    %2 = arith.cmpi ne, %1, %c0_i32_0 : i32
    scf.if %2 {
      %cst_10 = arith.constant 0.000000e+00 : f32
      %12 = vector.broadcast %cst_10 : f32 to vector<128x256xf32>
      %c0_11 = arith.constant 0 : index
      %c0_12 = arith.constant 0 : index
      %13 = vector.load %arg7[%c0_11, %c0_12] : memref<128x256xf32, #tpu.memory_space<vmem>>, vector<128x256xf32>
      tpu.vector_store %arg7[%c0_11, %c0_12], %12 {strides = array<i32>} : memref<128x256xf32, #tpu.memory_space<vmem>>, vector<128x256xf32>,
    } else {
    }
    %c0 = arith.constant 0 : index
    %c0_1 = arith.constant 0 : index
    %3 = vector.load %arg7[%c0, %c0_1] : memref<128x256xf32, #tpu.memory_space<vmem>>, vector<128x256xf32>
    %c0_2 = arith.constant 0 : index
    %c0_3 = arith.constant 0 : index
    %4 = vector.load %arg3[%c0_2, %c0_3] : memref<128x512xbf16, #tpu.memory_space<vmem>>, vector<128x512xbf16>
    %c0_4 = arith.constant 0 : index
    %c0_5 = arith.constant 0 : index
    %5 = vector.load %arg4[%c0_4, %c0_5] : memref<512x256xbf16, #tpu.memory_space<vmem>>, vector<512x256xbf16>
    %cst = arith.constant dense<0.000000e+00> : vector<128x256xf32>
    %6 = tpu.matmul %4, %5, %cst {dimension_numbers = #tpu.dot_dimension_numbers<[1], [0], [0], [1], [0, 0, 1, 1], [], []>} : vector<128x512xbf16>, vector<512x256xbf16>, vector<128x256xf32> -> vector<128x256xf32>
    %7 = arith.addf %3, %6 : vector<128x256xf32>
    %c0_6 = arith.constant 0 : index
    %c0_7 = arith.constant 0 : index
    %8 = vector.load %arg7[%c0_6, %c0_7] : memref<128x256xf32, #tpu.memory_space<vmem>>, vector<128x256xf32>
    tpu.vector_store %arg7[%c0_6, %c0_7], %7 {strides = array<i32>} : memref<128x256xf32, #tpu.memory_space<vmem>>, vector<128x256xf32>,
    %c0_i32_8 = arith.constant 0 : i32
    %9 = arith.cmpi eq, %arg2, %c0_i32_8 : i32
    %10 = arith.extui %9 : i1 to i32
    %c0_i32_9 = arith.constant 0 : i32
    %11 = arith.cmpi ne, %10, %c0_i32_9 : i32
    scf.if %11 {
      %c0_10 = arith.constant 0 : index
      %c0_11 = arith.constant 0 : index
      %12 = vector.load %arg7[%c0_10, %c0_11] : memref<128x256xf32, #tpu.memory_space<vmem>>, vector<128x256xf32>
      %c0_12 = arith.constant 0 : index
      %c0_13 = arith.constant 0 : index
      %13 = vector.load %arg5[%c0_12, %c0_13] : memref<1x256xf32, #tpu.memory_space<vmem>>, vector<1x256xf32>
      %14 = vector.broadcast %13 : vector<1x256xf32> to vector<128x256xf32>
      %15 = arith.addf %12, %14 : vector<128x256xf32>
      %c0_14 = arith.constant 0 : index
      %c0_15 = arith.constant 0 : index
      %16 = vector.load %arg6[%c0_14, %c0_15] : memref<128x256xf32, #tpu.memory_space<vmem>>, vector<128x256xf32>
      tpu.vector_store %arg6[%c0_14, %c0_15], %15 {strides = array<i32>} : memref<128x256xf32, #tpu.memory_space<vmem>>, vector<128x256xf32>,
    } else {
    }
    return
  }
  func.func @transform_0(%arg0: i32, %arg1: i32, %arg2: i32) -> (i32, i32) {
    %c0_i32 = arith.constant 0 : i32
    return %arg0, %arg2 : i32, i32
  }
  func.func @transform_1(%arg0: i32, %arg1: i32, %arg2: i32) -> (i32, i32) {
    %c0_i32 = arith.constant 0 : i32
    return %arg2, %arg1 : i32, i32
  }
  func.func @transform_2(%arg0: i32, %arg1: i32, %arg2: i32) -> (i32, i32) {
    %c0_i32 = arith.constant 0 : i32
    %c0_i32_0 = arith.constant 0 : i32
    return %c0_i32, %arg1 : i32, i32
  }
  func.func @transform_3(%arg0: i32, %arg1: i32, %arg2: i32) -> (i32, i32) {
    %c0_i32 = arith.constant 0 : i32
    return %arg0, %arg1 : i32, i32
  }
}

module attributes {stable_mosaic.version = 11 : i64} {
  func.func @_gemm_bias_kernel(%arg0: i32, %arg1: i32, %arg2: i32, %arg3: memref<256x128xbf16, #tpu.memory_space<vmem>>, %arg4: memref<128x128xbf16, #tpu.memory_space<vmem>>, %arg5: memref<1x128xf32, #tpu.memory_space<vmem>>, %arg6: memref<256x128xf32, #tpu.memory_space<vmem>>, %arg7: memref<256x128xf32, #tpu.memory_space<vmem>>) attributes {dimension_semantics = [#tpu.dimension_semantics<parallel>, #tpu.dimension_semantics<parallel>, #tpu.dimension_semantics<arbitrary>], iteration_bounds = array<i64: 2, 1, 25>, scalar_prefetch = 0 : i64, scratch_operands = 1 : i64, tpu.core_type = #tpu.core_type<tc>, window_params = [{transform_indices = @transform_0, window_bounds = array<i64: 256, 128>}, {transform_indices = @transform_1, window_bounds = array<i64: 128, 128>}, {transform_indices = @transform_2, window_bounds = array<i64: 1, 128>}, {transform_indices = @transform_3, window_bounds = array<i64: 256, 128>}]} {
    %c0_i32 = arith.constant 0 : i32
    %0 = arith.cmpi eq, %arg2, %c0_i32 : i32
    %1 = arith.extui %0 : i1 to i32
    %c0_i32_0 = arith.constant 0 : i32
    %2 = arith.cmpi ne, %1, %c0_i32_0 : i32
    scf.if %2 {
      %cst_9 = arith.constant 0.000000e+00 : f32
      %12 = vector.broadcast %cst_9 : f32 to vector<256x128xf32>
      %c0_10 = arith.constant 0 : index
      %c0_11 = arith.constant 0 : index
      %13 = vector.load %arg7[%c0_10, %c0_11] : memref<256x128xf32, #tpu.memory_space<vmem>>, vector<256x128xf32>
      tpu.vector_store %arg7[%c0_10, %c0_11], %12 {strides = array<i32>} : memref<256x128xf32, #tpu.memory_space<vmem>>, vector<256x128xf32>,
    } else {
    }
    %c0 = arith.constant 0 : index
    %c0_1 = arith.constant 0 : index
    %3 = vector.load %arg7[%c0, %c0_1] : memref<256x128xf32, #tpu.memory_space<vmem>>, vector<256x128xf32>
    %c0_2 = arith.constant 0 : index
    %c0_3 = arith.constant 0 : index
    %4 = vector.load %arg3[%c0_2, %c0_3] : memref<256x128xbf16, #tpu.memory_space<vmem>>, vector<256x128xbf16>
    %c0_4 = arith.constant 0 : index
    %c0_5 = arith.constant 0 : index
    %5 = vector.load %arg4[%c0_4, %c0_5] : memref<128x128xbf16, #tpu.memory_space<vmem>>, vector<128x128xbf16>
    %cst = arith.constant dense<0.000000e+00> : vector<256x128xf32>
    %6 = tpu.matmul %4, %5, %cst {dimension_numbers = #tpu.dot_dimension_numbers<[1], [0], [0], [1], [0, 0, 1, 1], [], []>} : vector<256x128xbf16>, vector<128x128xbf16>, vector<256x128xf32> -> vector<256x128xf32>
    %7 = arith.addf %3, %6 : vector<256x128xf32>
    %c0_6 = arith.constant 0 : index
    %c0_7 = arith.constant 0 : index
    %8 = vector.load %arg7[%c0_6, %c0_7] : memref<256x128xf32, #tpu.memory_space<vmem>>, vector<256x128xf32>
    tpu.vector_store %arg7[%c0_6, %c0_7], %7 {strides = array<i32>} : memref<256x128xf32, #tpu.memory_space<vmem>>, vector<256x128xf32>,
    %c24_i32 = arith.constant 24 : i32
    %9 = arith.cmpi eq, %arg2, %c24_i32 : i32
    %10 = arith.extui %9 : i1 to i32
    %c0_i32_8 = arith.constant 0 : i32
    %11 = arith.cmpi ne, %10, %c0_i32_8 : i32
    scf.if %11 {
      %c0_9 = arith.constant 0 : index
      %c0_10 = arith.constant 0 : index
      %12 = vector.load %arg7[%c0_9, %c0_10] : memref<256x128xf32, #tpu.memory_space<vmem>>, vector<256x128xf32>
      %c0_11 = arith.constant 0 : index
      %c0_12 = arith.constant 0 : index
      %13 = vector.load %arg5[%c0_11, %c0_12] : memref<1x128xf32, #tpu.memory_space<vmem>>, vector<1x128xf32>
      %14 = vector.broadcast %13 : vector<1x128xf32> to vector<256x128xf32>
      %15 = arith.addf %12, %14 : vector<256x128xf32>
      %c0_13 = arith.constant 0 : index
      %c0_14 = arith.constant 0 : index
      %16 = vector.load %arg6[%c0_13, %c0_14] : memref<256x128xf32, #tpu.memory_space<vmem>>, vector<256x128xf32>
      tpu.vector_store %arg6[%c0_13, %c0_14], %15 {strides = array<i32>} : memref<256x128xf32, #tpu.memory_space<vmem>>, vector<256x128xf32>,
    } else {
    }
    return
  }
  func.func @transform_0(%arg0: i32, %arg1: i32, %arg2: i32) -> (i32, i32) {
    %c0_i32 = arith.constant 0 : i32
    return %arg0, %arg2 : i32, i32
  }
  func.func @transform_1(%arg0: i32, %arg1: i32, %arg2: i32) -> (i32, i32) {
    %c0_i32 = arith.constant 0 : i32
    return %arg2, %arg1 : i32, i32
  }
  func.func @transform_2(%arg0: i32, %arg1: i32, %arg2: i32) -> (i32, i32) {
    %c0_i32 = arith.constant 0 : i32
    %c0_i32_0 = arith.constant 0 : i32
    return %c0_i32, %arg1 : i32, i32
  }
  func.func @transform_3(%arg0: i32, %arg1: i32, %arg2: i32) -> (i32, i32) {
    %c0_i32 = arith.constant 0 : i32
    return %arg0, %arg1 : i32, i32
  }
}

module attributes {stable_mosaic.version = 11 : i64} {
  func.func @_tanh_kernel(%arg0: memref<2x256xf32, #tpu.memory_space<vmem>>, %arg1: memref<2x256xf32, #tpu.memory_space<vmem>>) attributes {dimension_semantics = [], scalar_prefetch = 0 : i64, scratch_operands = 0 : i64, tpu.core_type = #tpu.core_type<tc>} {
    %c0 = arith.constant 0 : index
    %c0_0 = arith.constant 0 : index
    %0 = vector.load %arg0[%c0, %c0_0] : memref<2x256xf32, #tpu.memory_space<vmem>>, vector<2x256xf32>
    %1 = math.tanh %0 : vector<2x256xf32>
    %c0_1 = arith.constant 0 : index
    %c0_2 = arith.constant 0 : index
    %2 = vector.load %arg1[%c0_1, %c0_2] : memref<2x256xf32, #tpu.memory_space<vmem>>, vector<2x256xf32>
    tpu.vector_store %arg1[%c0_1, %c0_2], %1 {strides = array<i32>} : memref<2x256xf32, #tpu.memory_space<vmem>>, vector<2x256xf32>,
    return
  }
}

</mosaic_0001>

<llo_original>
// kernel: generator_forward.49
$region0: #{generator_forward.49}
  #allocation0 [shape = 'u32[]', space=smem, size = 0x4, offset = 0x4, fixed_abs, tag = 'smem constant byte address 0x4 - core index']
  #allocation1 [shape = 'u32[144,128]{1,0:T(1,128)}', space=vmem, size = 0x12000, scoped, tag = 'internal scratch']
  %s0 = inlined_call_operand.vmem [shape: f32[2,256,64], index: 0, kind: input, shape index: {}]
  %s1 = inlined_call_operand.vmem [shape: f32[2,256,64], index: 1, kind: output, shape index: {}]
  %s2 = sld [smem:[#allocation0]]
  $region37: #{generator_forward.49} parent=0
    _
  %s4 = ssub.s32 1, %s2
  %s5 = scalar_select 0, %s4, %s2
  loop: start=0, step=1, limit=4
  $region2: #{generator_forward.49} parent=0 // loop_pre_header
    _
  $region3: #{generator_forward.49} parent=0 // loop_header
    %s7 = sphi 0, %s11
    %p8 = scmp.ge.s32.totalorder %s7, 4
    %s14 = sphi 0, %s26
    %s15 = sphi 0, %s22
    %s16 = sphi 0, %s14
    %s17 = sphi 0, %s15
    %s18 = sphi 0, %s16
    %s19 = sphi 0, %s17
    %s31 = sphi 0, %s33
    %s34 = sphi 0, %s31
    %s35 = sphi 0, %s34
    %s51 = sphi 0, %s35
    %s59 = sphi 0, %s61
    %s62 = sphi 0, %s59
    %s63 = sphi 0, %s62
    %s79 = sphi 0, %s63
  $region4: #{generator_forward.49} parent=0 // loop_header_branch
    %10 = sbr.rel (%p8) target = $region8
  $region5: #{generator_forward.49} parent=0 // loop_body
    %s12 = ssub.s32 %s7, 1
    %s13 = ssub.s32 %s7, 2
    %s20 = sadd.s32 1, %s15
    %p21 = scmp.ge.s32.totalorder %s20, 1
    %s22 = scalar_select %p21, 0, %s20
    %s23 = sadd.s32 1, %s14
    %s24 = scalar_select %p21, %s23, %s14
    %p25 = scmp.ge.s32.totalorder %s24, 2
    %s26 = scalar_select %p25, 0, %s24
    %s27 = ssub.s32 %s14, %s26
    %s28 = ssub.s32 %s15, %s22
    %s29 = sor.u32 %s27, %s28
    %p30 = scmp.eq.s32.totalorder %s29, 0
    %s32 = sadd.s32 %s31, 1
    %s33 = scalar_select %p30, %s31, %s32
    %p36 = pneg %p30
    %p37 = scmp.eq.s32.totalorder %s7, 1
    %p38 = por %p36, %p37
    %p39 = scmp.ne.s32.totalorder %s31, %s34
    %p40 = scmp.eq.s32.totalorder %s7, 0
    %p41 = por %p39, %p40
    %p42 = scmp.ne.s32.totalorder %s31, %s34
    %p43 = scmp.eq.s32.totalorder %s12, 1
    %p44 = por %p42, %p43
    %p45 = scmp.ne.s32.totalorder %s34, %s35
    %p46 = scmp.eq.s32.totalorder %s12, 0
    %p47 = por %p45, %p46
    %p48 = scmp.ne.s32.totalorder %s34, %s35
    %p49 = scmp.eq.s32.totalorder %s13, 1
    %p50 = por %p48, %p49
    %p52 = scmp.ne.s32.totalorder %s35, %s51
    %p53 = scmp.eq.s32.totalorder %s13, 0
    %p54 = por %p52, %p53
    %s55 = ssub.s32 %s14, %s26
    %s56 = ssub.s32 %s15, %s22
    %s57 = sor.u32 %s55, %s56
    %p58 = scmp.eq.s32.totalorder %s57, 0
    %s60 = sadd.s32 %s59, 1
    %s61 = scalar_select %p58, %s59, %s60
    %p64 = pneg %p58
    %p65 = scmp.eq.s32.totalorder %s7, 1
    %p66 = por %p64, %p65
    %p67 = scmp.ne.s32.totalorder %s59, %s62
    %p68 = scmp.eq.s32.totalorder %s7, 0
    %p69 = por %p67, %p68
    %p70 = scmp.ne.s32.totalorder %s59, %s62
    %p71 = scmp.eq.s32.totalorder %s12, 1
    %p72 = por %p70, %p71
    %p73 = scmp.ne.s32.totalorder %s62, %s63
    %p74 = scmp.eq.s32.totalorder %s12, 0
    %p75 = por %p73, %p74
    %p76 = scmp.ne.s32.totalorder %s62, %s63
    %p77 = scmp.eq.s32.totalorder %s13, 1
    %p78 = por %p76, %p77
    %p80 = scmp.ne.s32.totalorder %s63, %s79
    %p81 = scmp.eq.s32.totalorder %s13, 0
    %p82 = por %p80, %p81
    %p83 = scmp.le.s32.totalorder 1, %s7
    %p84 = scmp.lt.s32.totalorder %s7, 3
    %p85 = pnand %p83, %p84
    %p86 = pneg %p85
    // Predicated region
    $region9: #{generator_forward.49} parent=5 // pred_check
      _
    $region10: #{generator_forward.49} parent=5 // pred_check_branch
      %88 = sbr.rel (%p85) target = $region12
    $region11: #{generator_forward.49} parent=5 // pred_region
      %s89 = ssub.s32 %s7, 1
    $region12: #{generator_forward.49} parent=5 // pred_fallthru
      _
    %p90 = scmp.lt.s32.totalorder %s7, 2
    // Predicated region
    $region13: #{generator_forward.49} parent=5 // pred_check
      %p91 = pneg %p90
    $region14: #{generator_forward.49} parent=5 // pred_check_branch
      %93 = sbr.rel (%p91) target = $region16
    $region15: #{generator_forward.49} parent=5 // pred_region
      // Predicated region
      $region17: #{generator_forward.49} parent=15 // pred_check
        %p94 = pneg %p41
      $region18: #{generator_forward.49} parent=15 // pred_check_branch
        %96 = sbr.rel (%p94) target = $region20
      $region19: #{generator_forward.49} parent=15 // pred_region
        %p97 = scmp.lt.s32.totalorder %s14, 1
        %s98 = scalar_select %p97, %s14, 1
        %p99 = scmp.lt.s32.totalorder %s15, 0
        %s100 = scalar_select %p99, %s15, 0
        %s101 = smul.addr %s98, 32
        %s102 = sadd.s32 %s100, %s101
        %s103 = smul.addr %s102, 8
        %s104 = scalar_lea.vmem %s0, %s103
      $region20: #{generator_forward.49} parent=15 // pred_fallthru
        _
    $region16: #{generator_forward.49} parent=5 // pred_fallthru
      _
    %p105 = scmp.le.s32.totalorder 1, %s7
    %p106 = scmp.lt.s32.totalorder %s7, 3
    %p107 = pnand %p105, %p106
    %p108 = pneg %p107
    // Predicated region
    $region21: #{generator_forward.49} parent=5 // pred_check
      _
    $region22: #{generator_forward.49} parent=5 // pred_check_branch
      %110 = sbr.rel (%p107) target = $region24
    $region23: #{generator_forward.49} parent=5 // pred_region
      %s111 = ssub.s32 %s7, 1
      %p112 = scmp.lt.s32.totalorder %s16, 1
      %s113 = scalar_select %p112, %s16, 1
      %p114 = scmp.lt.s32.totalorder %s17, 0
      %s115 = scalar_select %p114, %s17, 0
      %s116 = smul.addr %s113, 32
      %s117 = sadd.s32 %s115, %s116
      %s118 = smul.addr %s117, 8
      %s119 = scalar_lea.vmem %s0, %s118
      %p120 = pneg %p47
      %p121 = pneg %p44
      %p122 = pneg %p75
      %p123 = pneg %p72
      %p124 = scmp.lt.s32.totalorder %s16, 1
      %s125 = scalar_select %p124, %s16, 1
      %p126 = scmp.lt.s32.totalorder %s17, 0
      %s127 = scalar_select %p126, %s17, 0
      %s128 = smul.addr %s125, 32
      %s129 = sadd.s32 %s127, %s128
      %s130 = smul.addr %s129, 8
      %s131 = scalar_lea.vmem %s1, %s130
      %p132 = scmp.lt.s32.totalorder %s16, 1
      %s133 = scalar_select %p132, %s16, 1
      %p134 = scmp.lt.s32.totalorder %s17, 0
      %s135 = scalar_select %p134, %s17, 0
      %s136 = smul.addr %s133, 32
      %s137 = sadd.s32 %s135, %s136
      %s138 = smul.addr %s137, 8
      %s139 = scalar_lea.vmem %s0, %s138
      %p140 = scmp.lt.s32.totalorder %s16, 1
      %s141 = scalar_select %p140, %s16, 1
      %p142 = scmp.lt.s32.totalorder %s17, 0
      %s143 = scalar_select %p142, %s17, 0
      %s144 = smul.addr %s141, 32
      %s145 = sadd.s32 %s143, %s144
      %s146 = smul.addr %s145, 8
      %s147 = scalar_lea.vmem %s1, %s146
      %v148 = vld [vmem:[%s139] sm:$0xff]
      %v149 = vld [vmem:[%s139 + $0x8] sm:$0xff]
      %v150 = vld [vmem:[%s139 + $0x10] sm:$0xff]
      %v151 = vld [vmem:[%s139 + $0x18] sm:$0xff]
      %v152 = vld [vmem:[%s139 + $0x20] sm:$0xff]
      %v153 = vld [vmem:[%s139 + $0x28] sm:$0xff]
      %v154 = vld [vmem:[%s139 + $0x30] sm:$0xff]
      %v155 = vld [vmem:[%s139 + $0x38] sm:$0xff]
      %v156 = vld [vmem:[%s139 + $0x40] sm:$0xff]
      %v157 = vld [vmem:[%s139 + $0x48] sm:$0xff]
      %v158 = vld [vmem:[%s139 + $0x50] sm:$0xff]
      %v159 = vld [vmem:[%s139 + $0x58] sm:$0xff]
      %v160 = vld [vmem:[%s139 + $0x60] sm:$0xff]
      %v161 = vld [vmem:[%s139 + $0x68] sm:$0xff]
      %v162 = vld [vmem:[%s139 + $0x70] sm:$0xff]
      %v163 = vld [vmem:[%s139 + $0x78] sm:$0xff]
      %v164 = vld [vmem:[%s139 + $0x80] sm:$0xff]
      %v165 = vld [vmem:[%s139 + $0x88] sm:$0xff]
      %v166 = vld [vmem:[%s139 + $0x90] sm:$0xff]
      %v167 = vld [vmem:[%s139 + $0x98] sm:$0xff]
      %v168 = vld [vmem:[%s139 + $0xa0] sm:$0xff]
      %v169 = vld [vmem:[%s139 + $0xa8] sm:$0xff]
      %v170 = vld [vmem:[%s139 + $0xb0] sm:$0xff]
      %v171 = vld [vmem:[%s139 + $0xb8] sm:$0xff]
      %v172 = vld [vmem:[%s139 + $0xc0] sm:$0xff]
      %v173 = vld [vmem:[%s139 + $0xc8] sm:$0xff]
      %v174 = vld [vmem:[%s139 + $0xd0] sm:$0xff]
      %v175 = vld [vmem:[%s139 + $0xd8] sm:$0xff]
      %v176 = vld [vmem:[%s139 + $0xe0] sm:$0xff]
      %v177 = vld [vmem:[%s139 + $0xe8] sm:$0xff]
      %v178 = vld [vmem:[%s139 + $0xf0] sm:$0xff]
      %v179 = vld [vmem:[%s139 + $0xf8] sm:$0xff]
      %vm180 = vcmask 523264
      %v181 = vsel %vm180, %v148, 0.0
      %v182 = vsel %vm180, %v149, 0.0
      %v183 = vadd.f32 %v181, %v182
      %v184 = vsel %vm180, %v150, 0.0
      %v185 = vadd.f32 %v183, %v184
      %v186 = vsel %vm180, %v151, 0.0
      %v187 = vadd.f32 %v185, %v186
      %v188 = vsel %vm180, %v152, 0.0
      %v189 = vadd.f32 %v187, %v188
      %v190 = vsel %vm180, %v153, 0.0
      %v191 = vadd.f32 %v189, %v190
      %v192 = vsel %vm180, %v154, 0.0
      %v193 = vadd.f32 %v191, %v192
      %v194 = vsel %vm180, %v155, 0.0
      %v195 = vadd.f32 %v193, %v194
      %v196 = vsel %vm180, %v156, 0.0
      %v197 = vadd.f32 %v195, %v196
      %v198 = vsel %vm180, %v157, 0.0
      %v199 = vadd.f32 %v197, %v198
      %v200 = vsel %vm180, %v158, 0.0
      %v201 = vadd.f32 %v199, %v200
      %v202 = vsel %vm180, %v159, 0.0
      %v203 = vadd.f32 %v201, %v202
      %v204 = vsel %vm180, %v160, 0.0
      %v205 = vadd.f32 %v203, %v204
      %v206 = vsel %vm180, %v161, 0.0
      %v207 = vadd.f32 %v205, %v206
      %v208 = vsel %vm180, %v162, 0.0
      %v209 = vadd.f32 %v207, %v208
      %v210 = vsel %vm180, %v163, 0.0
      %v211 = vadd.f32 %v209, %v210
      %v212 = vsel %vm180, %v164, 0.0
      %v213 = vadd.f32 %v211, %v212
      %v214 = vsel %vm180, %v165, 0.0
      %v215 = vadd.f32 %v213, %v214
      %v216 = vsel %vm180, %v166, 0.0
      %v217 = vadd.f32 %v215, %v216
      %v218 = vsel %vm180, %v167, 0.0
      %v219 = vadd.f32 %v217, %v218
      %v220 = vsel %vm180, %v168, 0.0
      %v221 = vadd.f32 %v219, %v220
      %v222 = vsel %vm180, %v169, 0.0
      %v223 = vadd.f32 %v221, %v222
      %v224 = vsel %vm180, %v170, 0.0
      %v225 = vadd.f32 %v223, %v224
      %v226 = vsel %vm180, %v171, 0.0
      %v227 = vadd.f32 %v225, %v226
      %v228 = vsel %vm180, %v172, 0.0
      %v229 = vadd.f32 %v227, %v228
      %v230 = vsel %vm180, %v173, 0.0
      %v231 = vadd.f32 %v229, %v230
      %v232 = vsel %vm180, %v174, 0.0
      %v233 = vadd.f32 %v231, %v232
      %v234 = vsel %vm180, %v175, 0.0
      %v235 = vadd.f32 %v233, %v234
      %v236 = vsel %vm180, %v176, 0.0
      %v237 = vadd.f32 %v235, %v236
      %v238 = vsel %vm180, %v177, 0.0
      %v239 = vadd.f32 %v237, %v238
      %v240 = vsel %vm180, %v178, 0.0
      %v241 = vadd.f32 %v239, %v240
      %v242 = vsel %vm180, %v179, 0.0
      %v243 = vadd.f32 %v241, %v242
      %v244 = vrot.slane %v243, 4
      %v245 = vadd.f32 %v243, %v244
      %v246 = vrot.slane %v245, 2
      %v247 = vadd.f32 %v245, %v246
      %v248 = vrot.slane %v247, 1
      %v249 = vadd.f32 %v247, %v248
      %v250 = vrcp.pop 256.0
      %v251 = vmul.f32 %v249, %v250
      %v252 = vsub.f32 %v148, %v251
      %v253 = vsub.f32 %v149, %v251
      %v254 = vsub.f32 %v150, %v251
      %v255 = vsub.f32 %v151, %v251
      %v256 = vsub.f32 %v152, %v251
      %v257 = vsub.f32 %v153, %v251
      %v258 = vsub.f32 %v154, %v251
      %v259 = vsub.f32 %v155, %v251
      %v260 = vsub.f32 %v156, %v251
      %v261 = vsub.f32 %v157, %v251
      %v262 = vsub.f32 %v158, %v251
      %v263 = vsub.f32 %v159, %v251
      %v264 = vsub.f32 %v160, %v251
      %v265 = vsub.f32 %v161, %v251
      %v266 = vsub.f32 %v162, %v251
      %v267 = vsub.f32 %v163, %v251
      %v268 = vsub.f32 %v164, %v251
      %v269 = vsub.f32 %v165, %v251
      %v270 = vsub.f32 %v166, %v251
      %v271 = vsub.f32 %v167, %v251
      %v272 = vsub.f32 %v168, %v251
      %v273 = vsub.f32 %v169, %v251
      %v274 = vsub.f32 %v170, %v251
      %v275 = vsub.f32 %v171, %v251
      %v276 = vsub.f32 %v172, %v251
      %v277 = vsub.f32 %v173, %v251
      %v278 = vsub.f32 %v174, %v251
      %v279 = vsub.f32 %v175, %v251
      %v280 = vsub.f32 %v176, %v251
      %v281 = vsub.f32 %v177, %v251
      %v282 = vsub.f32 %v178, %v251
      %v283 = vsub.f32 %v179, %v251
      %v284 = vmul.f32 %v252, %v252
      %v285 = vmul.f32 %v253, %v253
      %v286 = vmul.f32 %v254, %v254
      %v287 = vmul.f32 %v255, %v255
      %v288 = vmul.f32 %v256, %v256
      %v289 = vmul.f32 %v257, %v257
      %v290 = vmul.f32 %v258, %v258
      %v291 = vmul.f32 %v259, %v259
      %v292 = vmul.f32 %v260, %v260
      %v293 = vmul.f32 %v261, %v261
      %v294 = vmul.f32 %v262, %v262
      %v295 = vmul.f32 %v263, %v263
      %v296 = vmul.f32 %v264, %v264
      %v297 = vmul.f32 %v265, %v265
      %v298 = vmul.f32 %v266, %v266
      %v299 = vmul.f32 %v267, %v267
      %v300 = vmul.f32 %v268, %v268
      %v301 = vmul.f32 %v269, %v269
      %v302 = vmul.f32 %v270, %v270
      %v303 = vmul.f32 %v271, %v271
      %v304 = vmul.f32 %v272, %v272
      %v305 = vmul.f32 %v273, %v273
      %v306 = vmul.f32 %v274, %v274
      %v307 = vmul.f32 %v275, %v275
      %v308 = vmul.f32 %v276, %v276
      %v309 = vmul.f32 %v277, %v277
      %v310 = vmul.f32 %v278, %v278
      %v311 = vmul.f32 %v279, %v279
      %v312 = vmul.f32 %v280, %v280
      %v313 = vmul.f32 %v281, %v281
      %v314 = vmul.f32 %v282, %v282
      %v315 = vmul.f32 %v283, %v283
      %v316 = vsel %vm180, %v284, 0.0
      %v317 = vsel %vm180, %v285, 0.0
      %v318 = vadd.f32 %v316, %v317
      %v319 = vsel %vm180, %v286, 0.0
      %v320 = vadd.f32 %v318, %v319
      %v321 = vsel %vm180, %v287, 0.0
      %v322 = vadd.f32 %v320, %v321
      %v323 = vsel %vm180, %v288, 0.0
      %v324 = vadd.f32 %v322, %v323
      %v325 = vsel %vm180, %v289, 0.0
      %v326 = vadd.f32 %v324, %v325
      %v327 = vsel %vm180, %v290, 0.0
      %v328 = vadd.f32 %v326, %v327
      %v329 = vsel %vm180, %v291, 0.0
      %v330 = vadd.f32 %v328, %v329
      %v331 = vsel %vm180, %v292, 0.0
      %v332 = vadd.f32 %v330, %v331
      %v333 = vsel %vm180, %v293, 0.0
      %v334 = vadd.f32 %v332, %v333
      %v335 = vsel %vm180, %v294, 0.0
      %v336 = vadd.f32 %v334, %v335
      %v337 = vsel %vm180, %v295, 0.0
      %v338 = vadd.f32 %v336, %v337
      %v339 = vsel %vm180, %v296, 0.0
      %v340 = vadd.f32 %v338, %v339
      %v341 = vsel %vm180, %v297, 0.0
      %v342 = vadd.f32 %v340, %v341
      %v343 = vsel %vm180, %v298, 0.0
      %v344 = vadd.f32 %v342, %v343
      %v345 = vsel %vm180, %v299, 0.0
      %v346 = vadd.f32 %v344, %v345
      %v347 = vsel %vm180, %v300, 0.0
      %v348 = vadd.f32 %v346, %v347
      %v349 = vsel %vm180, %v301, 0.0
      %v350 = vadd.f32 %v348, %v349
      %v351 = vsel %vm180, %v302, 0.0
      %v352 = vadd.f32 %v350, %v351
      %v353 = vsel %vm180, %v303, 0.0
      %v354 = vadd.f32 %v352, %v353
      %v355 = vsel %vm180, %v304, 0.0
      %v356 = vadd.f32 %v354, %v355
      %v357 = vsel %vm180, %v305, 0.0
      %v358 = vadd.f32 %v356, %v357
      %v359 = vsel %vm180, %v306, 0.0
      %v360 = vadd.f32 %v358, %v359
      %v361 = vsel %vm180, %v307, 0.0
      %v362 = vadd.f32 %v360, %v361
      %v363 = vsel %vm180, %v308, 0.0
      %v364 = vadd.f32 %v362, %v363
      %v365 = vsel %vm180, %v309, 0.0
      %v366 = vadd.f32 %v364, %v365
      %v367 = vsel %vm180, %v310, 0.0
      %v368 = vadd.f32 %v366, %v367
      %v369 = vsel %vm180, %v311, 0.0
      %v370 = vadd.f32 %v368, %v369
      %v371 = vsel %vm180, %v312, 0.0
      %v372 = vadd.f32 %v370, %v371
      %v373 = vsel %vm180, %v313, 0.0
      %v374 = vadd.f32 %v372, %v373
      %v375 = vsel %vm180, %v314, 0.0
      %v376 = vadd.f32 %v374, %v375
      %v377 = vsel %vm180, %v315, 0.0
      %v378 = vadd.f32 %v376, %v377
      %v379 = vrot.slane %v378, 4
      %v380 = vadd.f32 %v378, %v379
      %v381 = vrot.slane %v380, 2
      %v382 = vadd.f32 %v380, %v381
      %v383 = vrot.slane %v382, 1
      %v384 = vadd.f32 %v382, %v383
      %v385 = vmul.f32 %v384, %v250
      %v386 = vadd.f32 %v385, 1e-05
      %v387 = vrsqrt.pop %v386
      %v388 = vmul.f32 %v252, %v387
      %v389 = vmul.f32 %v253, %v387
      %v390 = vmul.f32 %v254, %v387
      %v391 = vmul.f32 %v255, %v387
      %v392 = vmul.f32 %v256, %v387
      %v393 = vmul.f32 %v257, %v387
      %v394 = vmul.f32 %v258, %v387
      %v395 = vmul.f32 %v259, %v387
      %v396 = vmul.f32 %v260, %v387
      %v397 = vmul.f32 %v261, %v387
      %v398 = vmul.f32 %v262, %v387
      %v399 = vmul.f32 %v263, %v387
      %v400 = vmul.f32 %v264, %v387
      %v401 = vmul.f32 %v265, %v387
      %v402 = vmul.f32 %v266, %v387
      %v403 = vmul.f32 %v267, %v387
      %v404 = vmul.f32 %v268, %v387
      %v405 = vmul.f32 %v269, %v387
      %v406 = vmul.f32 %v270, %v387
      %v407 = vmul.f32 %v271, %v387
      %v408 = vmul.f32 %v272, %v387
      %v409 = vmul.f32 %v273, %v387
      %v410 = vmul.f32 %v274, %v387
      %v411 = vmul.f32 %v275, %v387
      %v412 = vmul.f32 %v276, %v387
      %v413 = vmul.f32 %v277, %v387
      %v414 = vmul.f32 %v278, %v387
      %v415 = vmul.f32 %v279, %v387
      %v416 = vmul.f32 %v280, %v387
      %v417 = vmul.f32 %v281, %v387
      %v418 = vmul.f32 %v282, %v387
      %v419 = vmul.f32 %v283, %v387
      %v420 = vmax.f32 %v388, 0.0
      %v421 = vmax.f32 %v389, 0.0
      %v422 = vmax.f32 %v390, 0.0
      %v423 = vmax.f32 %v391, 0.0
      %v424 = vmax.f32 %v392, 0.0
      %v425 = vmax.f32 %v393, 0.0
      %v426 = vmax.f32 %v394, 0.0
      %v427 = vmax.f32 %v395, 0.0
      %v428 = vmax.f32 %v396, 0.0
      %v429 = vmax.f32 %v397, 0.0
      %v430 = vmax.f32 %v398, 0.0
      %v431 = vmax.f32 %v399, 0.0
      %v432 = vmax.f32 %v400, 0.0
      %v433 = vmax.f32 %v401, 0.0
      %v434 = vmax.f32 %v402, 0.0
      %v435 = vmax.f32 %v403, 0.0
      %v436 = vmax.f32 %v404, 0.0
      %v437 = vmax.f32 %v405, 0.0
      %v438 = vmax.f32 %v406, 0.0
      %v439 = vmax.f32 %v407, 0.0
      %v440 = vmax.f32 %v408, 0.0
      %v441 = vmax.f32 %v409, 0.0
      %v442 = vmax.f32 %v410, 0.0
      %v443 = vmax.f32 %v411, 0.0
      %v444 = vmax.f32 %v412, 0.0
      %v445 = vmax.f32 %v413, 0.0
      %v446 = vmax.f32 %v414, 0.0
      %v447 = vmax.f32 %v415, 0.0
      %v448 = vmax.f32 %v416, 0.0
      %v449 = vmax.f32 %v417, 0.0
      %v450 = vmax.f32 %v418, 0.0
      %v451 = vmax.f32 %v419, 0.0
      %452 = vst.msk [vmem:[%s147] sm:$0xff] %vm180, %v420
      %453 = vst.msk [vmem:[%s147 + $0x8] sm:$0xff] %vm180, %v421
      %454 = vst.msk [vmem:[%s147 + $0x10] sm:$0xff] %vm180, %v422
      %455 = vst.msk [vmem:[%s147 + $0x18] sm:$0xff] %vm180, %v423
      %456 = vst.msk [vmem:[%s147 + $0x20] sm:$0xff] %vm180, %v424
      %457 = vst.msk [vmem:[%s147 + $0x28] sm:$0xff] %vm180, %v425
      %458 = vst.msk [vmem:[%s147 + $0x30] sm:$0xff] %vm180, %v426
      %459 = vst.msk [vmem:[%s147 + $0x38] sm:$0xff] %vm180, %v427
      %460 = vst.msk [vmem:[%s147 + $0x40] sm:$0xff] %vm180, %v428
      %461 = vst.msk [vmem:[%s147 + $0x48] sm:$0xff] %vm180, %v429
      %462 = vst.msk [vmem:[%s147 + $0x50] sm:$0xff] %vm180, %v430
      %463 = vst.msk [vmem:[%s147 + $0x58] sm:$0xff] %vm180, %v431
      %464 = vst.msk [vmem:[%s147 + $0x60] sm:$0xff] %vm180, %v432
      %465 = vst.msk [vmem:[%s147 + $0x68] sm:$0xff] %vm180, %v433
      %466 = vst.msk [vmem:[%s147 + $0x70] sm:$0xff] %vm180, %v434
      %467 = vst.msk [vmem:[%s147 + $0x78] sm:$0xff] %vm180, %v435
      %468 = vst.msk [vmem:[%s147 + $0x80] sm:$0xff] %vm180, %v436
      %469 = vst.msk [vmem:[%s147 + $0x88] sm:$0xff] %vm180, %v437
      %470 = vst.msk [vmem:[%s147 + $0x90] sm:$0xff] %vm180, %v438
      %471 = vst.msk [vmem:[%s147 + $0x98] sm:$0xff] %vm180, %v439
      %472 = vst.msk [vmem:[%s147 + $0xa0] sm:$0xff] %vm180, %v440
      %473 = vst.msk [vmem:[%s147 + $0xa8] sm:$0xff] %vm180, %v441
      %474 = vst.msk [vmem:[%s147 + $0xb0] sm:$0xff] %vm180, %v442
      %475 = vst.msk [vmem:[%s147 + $0xb8] sm:$0xff] %vm180, %v443
      %476 = vst.msk [vmem:[%s147 + $0xc0] sm:$0xff] %vm180, %v444
      %477 = vst.msk [vmem:[%s147 + $0xc8] sm:$0xff] %vm180, %v445
      %478 = vst.msk [vmem:[%s147 + $0xd0] sm:$0xff] %vm180, %v446
      %479 = vst.msk [vmem:[%s147 + $0xd8] sm:$0xff] %vm180, %v447
      %480 = vst.msk [vmem:[%s147 + $0xe0] sm:$0xff] %vm180, %v448
      %481 = vst.msk [vmem:[%s147 + $0xe8] sm:$0xff] %vm180, %v449
      %482 = vst.msk [vmem:[%s147 + $0xf0] sm:$0xff] %vm180, %v450
      %483 = vst.msk [vmem:[%s147 + $0xf8] sm:$0xff] %vm180, %v451
      %p484 = scmp.lt.s32.totalorder %s16, 1
      %s485 = scalar_select %p484, %s16, 1
      %p486 = scmp.lt.s32.totalorder %s17, 0
      %s487 = scalar_select %p486, %s17, 0
      %s488 = smul.addr %s485, 32
      %s489 = sadd.s32 %s487, %s488
      %s490 = smul.addr %s489, 8
      %s491 = scalar_lea.vmem %s1, %s490
      // Predicated region
      $region25: #{generator_forward.49} parent=23 // pred_check
        %p492 = pneg %p72
      $region26: #{generator_forward.49} parent=23 // pred_check_branch
        %494 = sbr.rel (%p492) target = $region28
      $region27: #{generator_forward.49} parent=23 // pred_region
        _
      $region28: #{generator_forward.49} parent=23 // pred_fallthru
        _
    $region24: #{generator_forward.49} parent=5 // pred_fallthru
      _
    %p495 = scmp.le.s32.totalorder 2, %s7
    // Predicated region
    $region29: #{generator_forward.49} parent=5 // pred_check
      %p496 = pneg %p495
    $region30: #{generator_forward.49} parent=5 // pred_check_branch
      %498 = sbr.rel (%p496) target = $region32
    $region31: #{generator_forward.49} parent=5 // pred_region
      %s499 = ssub.s32 %s7, 2
      // Predicated region
      $region33: #{generator_forward.49} parent=31 // pred_check
        %p500 = pneg %p78
      $region34: #{generator_forward.49} parent=31 // pred_check_branch
        %502 = sbr.rel (%p500) target = $region36
      $region35: #{generator_forward.49} parent=31 // pred_region
        %p503 = scmp.lt.s32.totalorder %s18, 1
        %s504 = scalar_select %p503, %s18, 1
        %p505 = scmp.lt.s32.totalorder %s19, 0
        %s506 = scalar_select %p505, %s19, 0
        %s507 = smul.addr %s504, 32
        %s508 = sadd.s32 %s506, %s507
        %s509 = smul.addr %s508, 8
        %s510 = scalar_lea.vmem %s1, %s509
      $region36: #{generator_forward.49} parent=31 // pred_fallthru
        _
    $region32: #{generator_forward.49} parent=5 // pred_fallthru
      _
  $region6: #{generator_forward.49} parent=0 // loop_footer
    %s11 = sadd.s32 1, %s7
  $region7: #{generator_forward.49} parent=0 // loop_footer_branch
    %6 = sbr.rel target = $region3
  $region8: #{generator_forward.49} parent=0 // loop_exit
    _

// kernel: generator_forward.48
$region0: #{generator_forward.48}
  #allocation0 [shape = 'u32[]', space=smem, size = 0x4, offset = 0x4, fixed_abs, tag = 'smem constant byte address 0x4 - core index']
  #allocation1 [shape = 'u32[144,128]{1,0:T(1,128)}', space=vmem, size = 0x12000, scoped, tag = 'internal scratch']
  #allocation2 [shape = 'f32[256,128]{1,0:T(8,128)}', space=vmem, size = 0x20000, scoped, tag = 'scratch operand']
  %s0 = inlined_call_operand.vmem [shape: bf16[512,128], index: 0, kind: input, shape index: {}]
  %s1 = inlined_call_operand.vmem [shape: bf16[128,128], index: 1, kind: input, shape index: {}]
  %s2 = inlined_call_operand.vmem [shape: f32[1,128], index: 2, kind: input, shape index: {}]
  %s3 = inlined_call_operand.vmem [shape: f32[512,128], index: 3, kind: output, shape index: {}]
  %s4 = sld [smem:[#allocation0]]
  $region53: #{generator_forward.48} parent=0
    _
  %s6 = ssub.s32 1, %s4
  %s7 = scalar_select 0, %s6, %s4
  loop: start=0, step=1, limit=4
  $region2: #{generator_forward.48} parent=0 // loop_pre_header
    _
  $region3: #{generator_forward.48} parent=0 // loop_header
    %s9 = sphi 0, %s13
    %p10 = scmp.ge.s32.totalorder %s9, 4
    %s16 = sphi 0, %s35
    %s17 = sphi 0, %s31
    %s18 = sphi 0, %s27
    %s19 = sphi 0, %s16
    %s20 = sphi 0, %s17
    %s21 = sphi 0, %s18
    %s22 = sphi 0, %s19
    %s23 = sphi 0, %s20
    %s24 = sphi 0, %s21
    %s40 = sphi 0, %s42
    %s43 = sphi 0, %s40
    %s44 = sphi 0, %s43
    %s60 = sphi 0, %s44
    %s68 = sphi 0, %s70
    %s71 = sphi 0, %s68
    %s72 = sphi 0, %s71
    %s88 = sphi 0, %s72
    %s94 = sphi 0, %s96
    %s97 = sphi 0, %s94
    %s98 = sphi 0, %s97
    %s114 = sphi 0, %s98
    %s122 = sphi 0, %s124
    %s125 = sphi 0, %s122
    %s126 = sphi 0, %s125
    %s142 = sphi 0, %s126
  $region4: #{generator_forward.48} parent=0 // loop_header_branch
    %12 = sbr.rel (%p10) target = $region8
  $region5: #{generator_forward.48} parent=0 // loop_body
    %s14 = ssub.s32 %s9, 1
    %s15 = ssub.s32 %s9, 2
    %s25 = sadd.s32 1, %s18
    %p26 = scmp.ge.s32.totalorder %s25, 1
    %s27 = scalar_select %p26, 0, %s25
    %s28 = sadd.s32 1, %s17
    %s29 = scalar_select %p26, %s28, %s17
    %p30 = scmp.ge.s32.totalorder %s29, 1
    %s31 = scalar_select %p30, 0, %s29
    %s32 = sadd.s32 1, %s16
    %s33 = scalar_select %p30, %s32, %s16
    %p34 = scmp.ge.s32.totalorder %s33, 2
    %s35 = scalar_select %p34, 0, %s33
    %s36 = ssub.s32 %s16, %s35
    %s37 = ssub.s32 %s18, %s27
    %s38 = sor.u32 %s36, %s37
    %p39 = scmp.eq.s32.totalorder %s38, 0
    %s41 = sadd.s32 %s40, 1
    %s42 = scalar_select %p39, %s40, %s41
    %p45 = pneg %p39
    %p46 = scmp.eq.s32.totalorder %s9, 1
    %p47 = por %p45, %p46
    %p48 = scmp.ne.s32.totalorder %s40, %s43
    %p49 = scmp.eq.s32.totalorder %s9, 0
    %p50 = por %p48, %p49
    %p51 = scmp.ne.s32.totalorder %s40, %s43
    %p52 = scmp.eq.s32.totalorder %s14, 1
    %p53 = por %p51, %p52
    %p54 = scmp.ne.s32.totalorder %s43, %s44
    %p55 = scmp.eq.s32.totalorder %s14, 0
    %p56 = por %p54, %p55
    %p57 = scmp.ne.s32.totalorder %s43, %s44
    %p58 = scmp.eq.s32.totalorder %s15, 1
    %p59 = por %p57, %p58
    %p61 = scmp.ne.s32.totalorder %s44, %s60
    %p62 = scmp.eq.s32.totalorder %s15, 0
    %p63 = por %p61, %p62
    %s64 = ssub.s32 %s18, %s27
    %s65 = ssub.s32 %s17, %s31
    %s66 = sor.u32 %s64, %s65
    %p67 = scmp.eq.s32.totalorder %s66, 0
    %s69 = sadd.s32 %s68, 1
    %s70 = scalar_select %p67, %s68, %s69
    %p73 = pneg %p67
    %p74 = scmp.eq.s32.totalorder %s9, 1
    %p75 = por %p73, %p74
    %p76 = scmp.ne.s32.totalorder %s68, %s71
    %p77 = scmp.eq.s32.totalorder %s9, 0
    %p78 = por %p76, %p77
    %p79 = scmp.ne.s32.totalorder %s68, %s71
    %p80 = scmp.eq.s32.totalorder %s14, 1
    %p81 = por %p79, %p80
    %p82 = scmp.ne.s32.totalorder %s71, %s72
    %p83 = scmp.eq.s32.totalorder %s14, 0
    %p84 = por %p82, %p83
    %p85 = scmp.ne.s32.totalorder %s71, %s72
    %p86 = scmp.eq.s32.totalorder %s15, 1
    %p87 = por %p85, %p86
    %p89 = scmp.ne.s32.totalorder %s72, %s88
    %p90 = scmp.eq.s32.totalorder %s15, 0
    %p91 = por %p89, %p90
    %s92 = ssub.s32 %s17, %s31
    %p93 = scmp.eq.s32.totalorder %s92, 0
    %s95 = sadd.s32 %s94, 1
    %s96 = scalar_select %p93, %s94, %s95
    %p99 = pneg %p93
    %p100 = scmp.eq.s32.totalorder %s9, 1
    %p101 = por %p99, %p100
    %p102 = scmp.ne.s32.totalorder %s94, %s97
    %p103 = scmp.eq.s32.totalorder %s9, 0
    %p104 = por %p102, %p103
    %p105 = scmp.ne.s32.totalorder %s94, %s97
    %p106 = scmp.eq.s32.totalorder %s14, 1
    %p107 = por %p105, %p106
    %p108 = scmp.ne.s32.totalorder %s97, %s98
    %p109 = scmp.eq.s32.totalorder %s14, 0
    %p110 = por %p108, %p109
    %p111 = scmp.ne.s32.totalorder %s97, %s98
    %p112 = scmp.eq.s32.totalorder %s15, 1
    %p113 = por %p111, %p112
    %p115 = scmp.ne.s32.totalorder %s98, %s114
    %p116 = scmp.eq.s32.totalorder %s15, 0
    %p117 = por %p115, %p116
    %s118 = ssub.s32 %s16, %s35
    %s119 = ssub.s32 %s17, %s31
    %s120 = sor.u32 %s118, %s119
    %p121 = scmp.eq.s32.totalorder %s120, 0
    %s123 = sadd.s32 %s122, 1
    %s124 = scalar_select %p121, %s122, %s123
    %p127 = pneg %p121
    %p128 = scmp.eq.s32.totalorder %s9, 1
    %p129 = por %p127, %p128
    %p130 = scmp.ne.s32.totalorder %s122, %s125
    %p131 = scmp.eq.s32.totalorder %s9, 0
    %p132 = por %p130, %p131
    %p133 = scmp.ne.s32.totalorder %s122, %s125
    %p134 = scmp.eq.s32.totalorder %s14, 1
    %p135 = por %p133, %p134
    %p136 = scmp.ne.s32.totalorder %s125, %s126
    %p137 = scmp.eq.s32.totalorder %s14, 0
    %p138 = por %p136, %p137
    %p139 = scmp.ne.s32.totalorder %s125, %s126
    %p140 = scmp.eq.s32.totalorder %s15, 1
    %p141 = por %p139, %p140
    %p143 = scmp.ne.s32.totalorder %s126, %s142
    %p144 = scmp.eq.s32.totalorder %s15, 0
    %p145 = por %p143, %p144
    %p146 = scmp.le.s32.totalorder 1, %s9
    %p147 = scmp.lt.s32.totalorder %s9, 3
    %p148 = pnand %p146, %p147
    %p149 = pneg %p148
    // Predicated region
    $region9: #{generator_forward.48} parent=5 // pred_check
      _
    $region10: #{generator_forward.48} parent=5 // pred_check_branch
      %151 = sbr.rel (%p148) target = $region12
    $region11: #{generator_forward.48} parent=5 // pred_region
      %s152 = ssub.s32 %s9, 1
      // Predicated region
      $region13: #{generator_forward.48} parent=11 // pred_check
        %p153 = pneg %p84
      $region14: #{generator_forward.48} parent=11 // pred_check_branch
        %155 = sbr.rel (%p153) target = $region16
      $region15: #{generator_forward.48} parent=11 // pred_region
        %s156 = smul.u32 16, %s21
        %p157 = scmp.lt.s32.totalorder %s156, 15
        %s158 = scalar_select %p157, %s156, 15
        %p159 = scmp.lt.s32.totalorder %s20, 0
        %s160 = scalar_select %p159, %s20, 0
        %s161 = sadd.s32 %s160, %s158
        %s162 = smul.addr %s161, 4
        %s163 = scalar_lea.vmem %s1, %s162
        %s164 = smul.u32 16, %s21
      $region16: #{generator_forward.48} parent=11 // pred_fallthru
        _
      // Predicated region
      $region17: #{generator_forward.48} parent=11 // pred_check
        %p165 = pneg %p110
      $region18: #{generator_forward.48} parent=11 // pred_check_branch
        %167 = sbr.rel (%p165) target = $region20
      $region19: #{generator_forward.48} parent=11 // pred_region
        %p168 = scmp.lt.s32.totalorder %s20, 0
        %s169 = scalar_select %p168, %s20, 0
        %s170 = scalar_lea.vmem %s2, %s169
      $region20: #{generator_forward.48} parent=11 // pred_fallthru
        _
    $region12: #{generator_forward.48} parent=5 // pred_fallthru
      _
    %p171 = scmp.lt.s32.totalorder %s9, 2
    // Predicated region
    $region21: #{generator_forward.48} parent=5 // pred_check
      %p172 = pneg %p171
    $region22: #{generator_forward.48} parent=5 // pred_check_branch
      %174 = sbr.rel (%p172) target = $region24
    $region23: #{generator_forward.48} parent=5 // pred_region
      // Predicated region
      $region25: #{generator_forward.48} parent=23 // pred_check
        %p175 = pneg %p50
      $region26: #{generator_forward.48} parent=23 // pred_check_branch
        %177 = sbr.rel (%p175) target = $region28
      $region27: #{generator_forward.48} parent=23 // pred_region
        %s178 = smul.u32 32, %s16
        %p179 = scmp.lt.s32.totalorder %s178, 63
        %s180 = scalar_select %p179, %s178, 63
        %p181 = scmp.lt.s32.totalorder %s18, 0
        %s182 = scalar_select %p181, %s18, 0
        %s183 = sadd.s32 %s182, %s180
        %s184 = smul.addr %s183, 4
        %s185 = scalar_lea.vmem %s0, %s184
        %s186 = smul.u32 32, %s16
      $region28: #{generator_forward.48} parent=23 // pred_fallthru
        _
    $region24: #{generator_forward.48} parent=5 // pred_fallthru
      _
    %p187 = scmp.le.s32.totalorder 1, %s9
    %p188 = scmp.lt.s32.totalorder %s9, 3
    %p189 = pnand %p187, %p188
    %p190 = pneg %p189
    // Predicated region
    $region29: #{generator_forward.48} parent=5 // pred_check
      _
    $region30: #{generator_forward.48} parent=5 // pred_check_branch
      %192 = sbr.rel (%p189) target = $region32
    $region31: #{generator_forward.48} parent=5 // pred_region
      %s193 = ssub.s32 %s9, 1
      %s194 = smul.u32 32, %s19
      %p195 = scmp.lt.s32.totalorder %s194, 63
      %s196 = scalar_select %p195, %s194, 63
      %p197 = scmp.lt.s32.totalorder %s21, 0
      %s198 = scalar_select %p197, %s21, 0
      %s199 = sadd.s32 %s198, %s196
      %s200 = smul.addr %s199, 4
      %s201 = scalar_lea.vmem %s0, %s200
      %p202 = pneg %p56
      %p203 = pneg %p53
      %s204 = smul.u32 16, %s21
      %p205 = scmp.lt.s32.totalorder %s204, 15
      %s206 = scalar_select %p205, %s204, 15
      %p207 = scmp.lt.s32.totalorder %s20, 0
      %s208 = scalar_select %p207, %s20, 0
      %s209 = sadd.s32 %s208, %s206
      %s210 = smul.addr %s209, 4
      %s211 = scalar_lea.vmem %s1, %s210
      %p212 = pneg %p84
      %p213 = pneg %p81
      %p214 = scmp.lt.s32.totalorder %s20, 0
      %s215 = scalar_select %p214, %s20, 0
      %s216 = scalar_lea.vmem %s2, %s215
      %p217 = pneg %p110
      %p218 = pneg %p107
      %p219 = pneg %p138
      %p220 = pneg %p135
      %s221 = smul.u32 32, %s19
      %p222 = scmp.lt.s32.totalorder %s221, 63
      %s223 = scalar_select %p222, %s221, 63
      %p224 = scmp.lt.s32.totalorder %s20, 0
      %s225 = scalar_select %p224, %s20, 0
      %s226 = sadd.s32 %s225, %s223
      %s227 = smul.addr %s226, 8
      %s228 = scalar_lea.vmem %s3, %s227
      %s229 = smul.u32 32, %s19
      %p230 = scmp.lt.s32.totalorder %s229, 63
      %s231 = scalar_select %p230, %s229, 63
      %p232 = scmp.lt.s32.totalorder %s21, 0
      %s233 = scalar_select %p232, %s21, 0
      %s234 = sadd.s32 %s233, %s231
      %s235 = smul.addr %s234, 4
      %s236 = scalar_lea.vmem %s0, %s235
      %s237 = smul.u32 32, %s19
      %s238 = smul.u32 16, %s21
      %p239 = scmp.lt.s32.totalorder %s238, 15
      %s240 = scalar_select %p239, %s238, 15
      %p241 = scmp.lt.s32.totalorder %s20, 0
      %s242 = scalar_select %p241, %s20, 0
      %s243 = sadd.s32 %s242, %s240
      %s244 = smul.addr %s243, 4
      %s245 = scalar_lea.vmem %s1, %s244
      %s246 = smul.u32 16, %s21
      %p247 = scmp.lt.s32.totalorder %s20, 0
      %s248 = scalar_select %p247, %s20, 0
      %s249 = scalar_lea.vmem %s2, %s248
      %s250 = smul.u32 32, %s19
      %p251 = scmp.lt.s32.totalorder %s250, 63
      %s252 = scalar_select %p251, %s250, 63
      %p253 = scmp.lt.s32.totalorder %s20, 0
      %s254 = scalar_select %p253, %s20, 0
      %s255 = sadd.s32 %s254, %s252
      %s256 = smul.addr %s255, 8
      %s257 = scalar_lea.vmem %s3, %s256
      %s258 = smul.u32 32, %s19
      %p260 = scmp.eq.s32.totalorder %s21, 0
      // Predicated region
      $region33: #{generator_forward.48} parent=31 // pred_check
        %p261 = pneg %p260
      $region34: #{generator_forward.48} parent=31 // pred_check_branch
        %263 = sbr.rel (%p261) target = $region36
      $region35: #{generator_forward.48} parent=31 // pred_region
        %264 = vst [vmem:[#allocation2] sm:$0xff] 0.0
        %265 = vst [vmem:[#allocation2 + $0x8] sm:$0xff] 0.0
        %266 = vst [vmem:[#allocation2 + $0x10] sm:$0xff] 0.0
        %267 = vst [vmem:[#allocation2 + $0x18] sm:$0xff] 0.0
        %268 = vst [vmem:[#allocation2 + $0x20] sm:$0xff] 0.0
        %269 = vst [vmem:[#allocation2 + $0x28] sm:$0xff] 0.0
        %270 = vst [vmem:[#allocation2 + $0x30] sm:$0xff] 0.0
        %271 = vst [vmem:[#allocation2 + $0x38] sm:$0xff] 0.0
        %272 = vst [vmem:[#allocation2 + $0x40] sm:$0xff] 0.0
        %273 = vst [vmem:[#allocation2 + $0x48] sm:$0xff] 0.0
        %274 = vst [vmem:[#allocation2 + $0x50] sm:$0xff] 0.0
        %275 = vst [vmem:[#allocation2 + $0x58] sm:$0xff] 0.0
        %276 = vst [vmem:[#allocation2 + $0x60] sm:$0xff] 0.0
        %277 = vst [vmem:[#allocation2 + $0x68] sm:$0xff] 0.0
        %278 = vst [vmem:[#allocation2 + $0x70] sm:$0xff] 0.0
        %279 = vst [vmem:[#allocation2 + $0x78] sm:$0xff] 0.0
        %280 = vst [vmem:[#allocation2 + $0x80] sm:$0xff] 0.0
        %281 = vst [vmem:[#allocation2 + $0x88] sm:$0xff] 0.0
        %282 = vst [vmem:[#allocation2 + $0x90] sm:$0xff] 0.0
        %283 = vst [vmem:[#allocation2 + $0x98] sm:$0xff] 0.0
        %284 = vst [vmem:[#allocation2 + $0xa0] sm:$0xff] 0.0
        %285 = vst [vmem:[#allocation2 + $0xa8] sm:$0xff] 0.0
        %286 = vst [vmem:[#allocation2 + $0xb0] sm:$0xff] 0.0
        %287 = vst [vmem:[#allocation2 + $0xb8] sm:$0xff] 0.0
        %288 = vst [vmem:[#allocation2 + $0xc0] sm:$0xff] 0.0
        %289 = vst [vmem:[#allocation2 + $0xc8] sm:$0xff] 0.0
        %290 = vst [vmem:[#allocation2 + $0xd0] sm:$0xff] 0.0
        %291 = vst [vmem:[#allocation2 + $0xd8] sm:$0xff] 0.0
        %292 = vst [vmem:[#allocation2 + $0xe0] sm:$0xff] 0.0
        %293 = vst [vmem:[#allocation2 + $0xe8] sm:$0xff] 0.0
        %294 = vst [vmem:[#allocation2 + $0xf0] sm:$0xff] 0.0
        %295 = vst [vmem:[#allocation2 + $0xf8] sm:$0xff] 0.0
      $region36: #{generator_forward.48} parent=31 // pred_fallthru
        _
      %v296 = vld [vmem:[#allocation2] sm:$0xff]
      %v297 = vld [vmem:[#allocation2 + $0x8] sm:$0xff]
      %v298 = vld [vmem:[#allocation2 + $0x10] sm:$0xff]
      %v299 = vld [vmem:[#allocation2 + $0x18] sm:$0xff]
      %v300 = vld [vmem:[#allocation2 + $0x20] sm:$0xff]
      %v301 = vld [vmem:[#allocation2 + $0x28] sm:$0xff]
      %v302 = vld [vmem:[#allocation2 + $0x30] sm:$0xff]
      %v303 = vld [vmem:[#allocation2 + $0x38] sm:$0xff]
      %v304 = vld [vmem:[#allocation2 + $0x40] sm:$0xff]
      %v305 = vld [vmem:[#allocation2 + $0x48] sm:$0xff]
      %v306 = vld [vmem:[#allocation2 + $0x50] sm:$0xff]
      %v307 = vld [vmem:[#allocation2 + $0x58] sm:$0xff]
      %v308 = vld [vmem:[#allocation2 + $0x60] sm:$0xff]
      %v309 = vld [vmem:[#allocation2 + $0x68] sm:$0xff]
      %v310 = vld [vmem:[#allocation2 + $0x70] sm:$0xff]
      %v311 = vld [vmem:[#allocation2 + $0x78] sm:$0xff]
      %v312 = vld [vmem:[#allocation2 + $0x80] sm:$0xff]
      %v313 = vld [vmem:[#allocation2 + $0x88] sm:$0xff]
      %v314 = vld [vmem:[#allocation2 + $0x90] sm:$0xff]
      %v315 = vld [vmem:[#allocation2 + $0x98] sm:$0xff]
      %v316 = vld [vmem:[#allocation2 + $0xa0] sm:$0xff]
      %v317 = vld [vmem:[#allocation2 + $0xa8] sm:$0xff]
      %v318 = vld [vmem:[#allocation2 + $0xb0] sm:$0xff]
      %v319 = vld [vmem:[#allocation2 + $0xb8] sm:$0xff]
      %v320 = vld [vmem:[#allocation2 + $0xc0] sm:$0xff]
      %v321 = vld [vmem:[#allocation2 + $0xc8] sm:$0xff]
      %v322 = vld [vmem:[#allocation2 + $0xd0] sm:$0xff]
      %v323 = vld [vmem:[#allocation2 + $0xd8] sm:$0xff]
      %v324 = vld [vmem:[#allocation2 + $0xe0] sm:$0xff]
      %v325 = vld [vmem:[#allocation2 + $0xe8] sm:$0xff]
      %v326 = vld [vmem:[#allocation2 + $0xf0] sm:$0xff]
      %v327 = vld [vmem:[#allocation2 + $0xf8] sm:$0xff]
      %v328 = vld [vmem:[%s236] sm:$0xf]
      %v329 = vld [vmem:[%s236 + $0x4] sm:$0xf]
      %v330 = vld [vmem:[%s236 + $0x8] sm:$0xf]
      %v331 = vld [vmem:[%s236 + $0xc] sm:$0xf]
      %v332 = vld [vmem:[%s236 + $0x10] sm:$0xf]
      %v333 = vld [vmem:[%s236 + $0x14] sm:$0xf]
      %v334 = vld [vmem:[%s236 + $0x18] sm:$0xf]
      %v335 = vld [vmem:[%s236 + $0x1c] sm:$0xf]
      %v336 = vld [vmem:[%s236 + $0x20] sm:$0xf]
      %v337 = vld [vmem:[%s236 + $0x24] sm:$0xf]
      %v338 = vld [vmem:[%s236 + $0x28] sm:$0xf]
      %v339 = vld [vmem:[%s236 + $0x2c] sm:$0xf]
      %v340 = vld [vmem:[%s236 + $0x30] sm:$0xf]
      %v341 = vld [vmem:[%s236 + $0x34] sm:$0xf]
      %v342 = vld [vmem:[%s236 + $0x38] sm:$0xf]
      %v343 = vld [vmem:[%s236 + $0x3c] sm:$0xf]
      %v344 = vld [vmem:[%s236 + $0x40] sm:$0xf]
      %v345 = vld [vmem:[%s236 + $0x44] sm:$0xf]
      %v346 = vld [vmem:[%s236 + $0x48] sm:$0xf]
      %v347 = vld [vmem:[%s236 + $0x4c] sm:$0xf]
      %v348 = vld [vmem:[%s236 + $0x50] sm:$0xf]
      %v349 = vld [vmem:[%s236 + $0x54] sm:$0xf]
      %v350 = vld [vmem:[%s236 + $0x58] sm:$0xf]
      %v351 = vld [vmem:[%s236 + $0x5c] sm:$0xf]
      %v352 = vld [vmem:[%s236 + $0x60] sm:$0xf]
      %v353 = vld [vmem:[%s236 + $0x64] sm:$0xf]
      %v354 = vld [vmem:[%s236 + $0x68] sm:$0xf]
      %v355 = vld [vmem:[%s236 + $0x6c] sm:$0xf]
      %v356 = vld [vmem:[%s236 + $0x70] sm:$0xf]
      %v357 = vld [vmem:[%s236 + $0x74] sm:$0xf]
      %v358 = vld [vmem:[%s236 + $0x78] sm:$0xf]
      %v359 = vld [vmem:[%s236 + $0x7c] sm:$0xf]
      %v360 = vld [vmem:[%s245] sm:$0xf]
      %v361 = vld [vmem:[%s245 + $0x4] sm:$0xf]
      %v362 = vld [vmem:[%s245 + $0x8] sm:$0xf]
      %v363 = vld [vmem:[%s245 + $0xc] sm:$0xf]
      %v364 = vld [vmem:[%s245 + $0x10] sm:$0xf]
      %v365 = vld [vmem:[%s245 + $0x14] sm:$0xf]
      %v366 = vld [vmem:[%s245 + $0x18] sm:$0xf]
      %v367 = vld [vmem:[%s245 + $0x1c] sm:$0xf]
      %v368 = vld [vmem:[%s245 + $0x20] sm:$0xf]
      %v369 = vld [vmem:[%s245 + $0x24] sm:$0xf]
      %v370 = vld [vmem:[%s245 + $0x28] sm:$0xf]
      %v371 = vld [vmem:[%s245 + $0x2c] sm:$0xf]
      %v372 = vld [vmem:[%s245 + $0x30] sm:$0xf]
      %v373 = vld [vmem:[%s245 + $0x34] sm:$0xf]
      %v374 = vld [vmem:[%s245 + $0x38] sm:$0xf]
      %v375 = vld [vmem:[%s245 + $0x3c] sm:$0xf]
      %v408 = vunpack.c.l.b16 %v328
      %v409 = vunpack.c.l.b16 %v329
      %v410 = vunpack.c.l.b16 %v330
      %v411 = vunpack.c.l.b16 %v331
      %v412 = vunpack.c.l.b16 %v332
      %v413 = vunpack.c.l.b16 %v333
      %v414 = vunpack.c.l.b16 %v334
      %v415 = vunpack.c.l.b16 %v335
      %v416 = vunpack.c.l.b16 %v336
      %v417 = vunpack.c.l.b16 %v337
      %v418 = vunpack.c.l.b16 %v338
      %v419 = vunpack.c.l.b16 %v339
      %v420 = vunpack.c.l.b16 %v340
      %v421 = vunpack.c.l.b16 %v341
      %v422 = vunpack.c.l.b16 %v342
      %v423 = vunpack.c.l.b16 %v343
      %v424 = vunpack.c.l.b16 %v344
      %v425 = vunpack.c.l.b16 %v345
      %v426 = vunpack.c.l.b16 %v346
      %v427 = vunpack.c.l.b16 %v347
      %v428 = vunpack.c.l.b16 %v348
      %v429 = vunpack.c.l.b16 %v349
      %v430 = vunpack.c.l.b16 %v350
      %v431 = vunpack.c.l.b16 %v351
      %v432 = vunpack.c.l.b16 %v352
      %v433 = vunpack.c.l.b16 %v353
      %v434 = vunpack.c.l.b16 %v354
      %v435 = vunpack.c.l.b16 %v355
      %v436 = vunpack.c.l.b16 %v356
      %v437 = vunpack.c.l.b16 %v357
      %v438 = vunpack.c.l.b16 %v358
      %v439 = vunpack.c.l.b16 %v359
      %v440 = vpack.c.b16 %v409, %v408
      %v441 = vpack.c.b16 %v411, %v410
      %v442 = vpack.c.b16 %v413, %v412
      %v443 = vpack.c.b16 %v415, %v414
      %v444 = vpack.c.b16 %v417, %v416
      %v445 = vpack.c.b16 %v419, %v418
      %v446 = vpack.c.b16 %v421, %v420
      %v447 = vpack.c.b16 %v423, %v422
      %v448 = vpack.c.b16 %v425, %v424
      %v449 = vpack.c.b16 %v427, %v426
      %v450 = vpack.c.b16 %v429, %v428
      %v451 = vpack.c.b16 %v431, %v430
      %v452 = vpack.c.b16 %v433, %v432
      %v453 = vpack.c.b16 %v435, %v434
      %v454 = vpack.c.b16 %v437, %v436
      %v455 = vpack.c.b16 %v439, %v438
      %v488 = vunpack.c.l.b16 %v360
      %v489 = vunpack.c.l.b16 %v361
      %v490 = vunpack.c.l.b16 %v362
      %v491 = vunpack.c.l.b16 %v363
      %v492 = vunpack.c.l.b16 %v364
      %v493 = vunpack.c.l.b16 %v365
      %v494 = vunpack.c.l.b16 %v366
      %v495 = vunpack.c.l.b16 %v367
      %v496 = vunpack.c.l.b16 %v368
      %v497 = vunpack.c.l.b16 %v369
      %v498 = vunpack.c.l.b16 %v370
      %v499 = vunpack.c.l.b16 %v371
      %v500 = vunpack.c.l.b16 %v372
      %v501 = vunpack.c.l.b16 %v373
      %v502 = vunpack.c.l.b16 %v374
      %v503 = vunpack.c.l.b16 %v375
      %v504 = vpack.c.b16 %v489, %v488
      %v505 = vpack.c.b16 %v491, %v490
      %v506 = vpack.c.b16 %v493, %v492
      %v507 = vpack.c.b16 %v495, %v494
      %v508 = vpack.c.b16 %v497, %v496
      %v509 = vpack.c.b16 %v499, %v498
      %v510 = vpack.c.b16 %v501, %v500
      %v511 = vpack.c.b16 %v503, %v502
      %520 = vmatprep.subr.bf16.mxu0 0
      %521 = vmatpush1.bf16.msra.mxu0 %v504
      %522 = vmatprep.subr.bf16.mxu0 0
      %523 = vmatpush1.bf16.msra.mxu0 %v505
      %524 = vmatprep.subr.bf16.mxu0 0
      %525 = vmatpush1.bf16.msra.mxu0 %v506
      %526 = vmatprep.subr.bf16.mxu0 0
      %527 = vmatpush1.bf16.msra.mxu0 %v507
      %528 = vmatprep.subr.bf16.mxu0 0
      %529 = vmatpush1.bf16.msra.mxu0 %v508
      %530 = vmatprep.subr.bf16.mxu0 0
      %531 = vmatpush1.bf16.msra.mxu0 %v509
      %532 = vmatprep.subr.bf16.mxu0 0
      %533 = vmatpush1.bf16.msra.mxu0 %v510
      %534 = vmatprep.subr.bf16.mxu0 0
      %535 = vmatpush1.bf16.msra.mxu0 %v511
      %536 = vmatprep.subr.bf16.mxu0 0
      %537 = vmatpush1.bf16.msra.mxu0 0
      %538 = vmatprep.subr.bf16.mxu0 0
      %539 = vmatpush1.bf16.msra.mxu0 0
      %540 = vmatprep.subr.bf16.mxu0 0
      %541 = vmatpush1.bf16.msra.mxu0 0
      %542 = vmatprep.subr.bf16.mxu0 0
      %543 = vmatpush1.bf16.msra.mxu0 0
      %544 = vmatprep.subr.bf16.mxu0 0
      %545 = vmatpush1.bf16.msra.mxu0 0
      %546 = vmatprep.subr.bf16.mxu0 0
      %547 = vmatpush1.bf16.msra.mxu0 0
      %548 = vmatprep.subr.bf16.mxu0 0
      %549 = vmatpush1.bf16.msra.mxu0 0
      %550 = vmatprep.subr.bf16.mxu0 0
      %551 = vmatpush1.bf16.msra.mxu0 0
      %552 = vmatprep.mubr.bf16.mxu0 0
      %553 = vmatmul.mubr.bf16.gmra.mrb[0].mxu0 %v440
      %v554 = vpop.f32.mrb[0].mxu0
      %v555 = vadd.f32 0.0, %v554
      %v556 = vpop.f32.mrb[0].mxu0
      %v557 = vpop.f32.mrb[0].mxu0
      %v558 = vadd.f32 0.0, %v557
      %v559 = vpop.f32.mrb[0].mxu0
      %560 = vmatprep.mubr.bf16.mxu0 0
      %561 = vmatmul.mubr.bf16.gmra.mrb[0].mxu0 %v441
      %v562 = vpop.f32.mrb[0].mxu0
      %v563 = vadd.f32 0.0, %v562
      %v564 = vpop.f32.mrb[0].mxu0
      %v565 = vpop.f32.mrb[0].mxu0
      %v566 = vadd.f32 0.0, %v565
      %v567 = vpop.f32.mrb[0].mxu0
      %568 = vmatprep.mubr.bf16.mxu0 0
      %569 = vmatmul.mubr.bf16.gmra.mrb[0].mxu0 %v442
      %v570 = vpop.f32.mrb[0].mxu0
      %v571 = vadd.f32 0.0, %v570
      %v572 = vpop.f32.mrb[0].mxu0
      %v573 = vpop.f32.mrb[0].mxu0
      %v574 = vadd.f32 0.0, %v573
      %v575 = vpop.f32.mrb[0].mxu0
      %576 = vmatprep.mubr.bf16.mxu0 0
      %577 = vmatmul.mubr.bf16.gmra.mrb[0].mxu0 %v443
      %v578 = vpop.f32.mrb[0].mxu0
      %v579 = vadd.f32 0.0, %v578
      %v580 = vpop.f32.mrb[0].mxu0
      %v581 = vpop.f32.mrb[0].mxu0
      %v582 = vadd.f32 0.0, %v581
      %v583 = vpop.f32.mrb[0].mxu0
      %584 = vmatprep.mubr.bf16.mxu0 0
      %585 = vmatmul.mubr.bf16.gmra.mrb[0].mxu0 %v444
      %v586 = vpop.f32.mrb[0].mxu0
      %v587 = vadd.f32 0.0, %v586
      %v588 = vpop.f32.mrb[0].mxu0
      %v589 = vpop.f32.mrb[0].mxu0
      %v590 = vadd.f32 0.0, %v589
      %v591 = vpop.f32.mrb[0].mxu0
      %592 = vmatprep.mubr.bf16.mxu0 0
      %593 = vmatmul.mubr.bf16.gmra.mrb[0].mxu0 %v445
      %v594 = vpop.f32.mrb[0].mxu0
      %v595 = vadd.f32 0.0, %v594
      %v596 = vpop.f32.mrb[0].mxu0
      %v597 = vpop.f32.mrb[0].mxu0
      %v598 = vadd.f32 0.0, %v597
      %v599 = vpop.f32.mrb[0].mxu0
      %600 = vmatprep.mubr.bf16.mxu0 0
      %601 = vmatmul.mubr.bf16.gmra.mrb[0].mxu0 %v446
      %v602 = vpop.f32.mrb[0].mxu0
      %v603 = vadd.f32 0.0, %v602
      %v604 = vpop.f32.mrb[0].mxu0
      %v605 = vpop.f32.mrb[0].mxu0
      %v606 = vadd.f32 0.0, %v605
      %v607 = vpop.f32.mrb[0].mxu0
      %608 = vmatprep.mubr.bf16.mxu0 0
      %609 = vmatmul.mubr.bf16.gmra.mrb[0].mxu0 %v447
      %v610 = vpop.f32.mrb[0].mxu0
      %v611 = vadd.f32 0.0, %v610
      %v612 = vpop.f32.mrb[0].mxu0
      %v613 = vpop.f32.mrb[0].mxu0
      %v614 = vadd.f32 0.0, %v613
      %v615 = vpop.f32.mrb[0].mxu0
      %616 = vmatprep.mubr.bf16.mxu0 0
      %617 = vmatmul.mubr.bf16.gmra.mrb[0].mxu0 %v448
      %v618 = vpop.f32.mrb[0].mxu0
      %v619 = vadd.f32 0.0, %v618
      %v620 = vpop.f32.mrb[0].mxu0
      %v621 = vpop.f32.mrb[0].mxu0
      %v622 = vadd.f32 0.0, %v621
      %v623 = vpop.f32.mrb[0].mxu0
      %624 = vmatprep.mubr.bf16.mxu0 0
      %625 = vmatmul.mubr.bf16.gmra.mrb[0].mxu0 %v449
      %v626 = vpop.f32.mrb[0].mxu0
      %v627 = vadd.f32 0.0, %v626
      %v628 = vpop.f32.mrb[0].mxu0
      %v629 = vpop.f32.mrb[0].mxu0
      %v630 = vadd.f32 0.0, %v629
      %v631 = vpop.f32.mrb[0].mxu0
      %632 = vmatprep.mubr.bf16.mxu0 0
      %633 = vmatmul.mubr.bf16.gmra.mrb[0].mxu0 %v450
      %v634 = vpop.f32.mrb[0].mxu0
      %v635 = vadd.f32 0.0, %v634
      %v636 = vpop.f32.mrb[0].mxu0
      %v637 = vpop.f32.mrb[0].mxu0
      %v638 = vadd.f32 0.0, %v637
      %v639 = vpop.f32.mrb[0].mxu0
      %640 = vmatprep.mubr.bf16.mxu0 0
      %641 = vmatmul.mubr.bf16.gmra.mrb[0].mxu0 %v451
      %v642 = vpop.f32.mrb[0].mxu0
      %v643 = vadd.f32 0.0, %v642
      %v644 = vpop.f32.mrb[0].mxu0
      %v645 = vpop.f32.mrb[0].mxu0
      %v646 = vadd.f32 0.0, %v645
      %v647 = vpop.f32.mrb[0].mxu0
      %648 = vmatprep.mubr.bf16.mxu0 0
      %649 = vmatmul.mubr.bf16.gmra.mrb[0].mxu0 %v452
      %v650 = vpop.f32.mrb[0].mxu0
      %v651 = vadd.f32 0.0, %v650
      %v652 = vpop.f32.mrb[0].mxu0
      %v653 = vpop.f32.mrb[0].mxu0
      %v654 = vadd.f32 0.0, %v653
      %v655 = vpop.f32.mrb[0].mxu0
      %656 = vmatprep.mubr.bf16.mxu0 0
      %657 = vmatmul.mubr.bf16.gmra.mrb[0].mxu0 %v453
      %v658 = vpop.f32.mrb[0].mxu0
      %v659 = vadd.f32 0.0, %v658
      %v660 = vpop.f32.mrb[0].mxu0
      %v661 = vpop.f32.mrb[0].mxu0
      %v662 = vadd.f32 0.0, %v661
      %v663 = vpop.f32.mrb[0].mxu0
      %664 = vmatprep.mubr.bf16.mxu0 0
      %665 = vmatmul.mubr.bf16.gmra.mrb[0].mxu0 %v454
      %v666 = vpop.f32.mrb[0].mxu0
      %v667 = vadd.f32 0.0, %v666
      %v668 = vpop.f32.mrb[0].mxu0
      %v669 = vpop.f32.mrb[0].mxu0
      %v670 = vadd.f32 0.0, %v669
      %v671 = vpop.f32.mrb[0].mxu0
      %672 = vmatprep.mubr.bf16.mxu0 0
      %673 = vmatmul.mubr.bf16.gmra.mrb[0].mxu0 %v455
      %v674 = vpop.f32.mrb[0].mxu0
      %v675 = vadd.f32 0.0, %v674
      %v676 = vpop.f32.mrb[0].mxu0
      %v677 = vpop.f32.mrb[0].mxu0
      %v678 = vadd.f32 0.0, %v677
      %v679 = vpop.f32.mrb[0].mxu0
      %680 = vdwg.mxu0
      %v681 = vadd.f32 %v296, %v555
      %v682 = vadd.f32 %v297, %v558
      %v683 = vadd.f32 %v298, %v563
      %v684 = vadd.f32 %v299, %v566
      %v685 = vadd.f32 %v300, %v571
      %v686 = vadd.f32 %v301, %v574
      %v687 = vadd.f32 %v302, %v579
      %v688 = vadd.f32 %v303, %v582
      %v689 = vadd.f32 %v304, %v587
      %v690 = vadd.f32 %v305, %v590
      %v691 = vadd.f32 %v306, %v595
      %v692 = vadd.f32 %v307, %v598
      %v693 = vadd.f32 %v308, %v603
      %v694 = vadd.f32 %v309, %v606
      %v695 = vadd.f32 %v310, %v611
      %v696 = vadd.f32 %v311, %v614
      %v697 = vadd.f32 %v312, %v619
      %v698 = vadd.f32 %v313, %v622
      %v699 = vadd.f32 %v314, %v627
      %v700 = vadd.f32 %v315, %v630
      %v701 = vadd.f32 %v316, %v635
      %v702 = vadd.f32 %v317, %v638
      %v703 = vadd.f32 %v318, %v643
      %v704 = vadd.f32 %v319, %v646
      %v705 = vadd.f32 %v320, %v651
      %v706 = vadd.f32 %v321, %v654
      %v707 = vadd.f32 %v322, %v659
      %v708 = vadd.f32 %v323, %v662
      %v709 = vadd.f32 %v324, %v667
      %v710 = vadd.f32 %v325, %v670
      %v711 = vadd.f32 %v326, %v675
      %v712 = vadd.f32 %v327, %v678
      %713 = vst [vmem:[#allocation2] sm:$0xff] %v681
      %714 = vst [vmem:[#allocation2 + $0x8] sm:$0xff] %v682
      %715 = vst [vmem:[#allocation2 + $0x10] sm:$0xff] %v683
      %716 = vst [vmem:[#allocation2 + $0x18] sm:$0xff] %v684
      %717 = vst [vmem:[#allocation2 + $0x20] sm:$0xff] %v685
      %718 = vst [vmem:[#allocation2 + $0x28] sm:$0xff] %v686
      %719 = vst [vmem:[#allocation2 + $0x30] sm:$0xff] %v687
      %720 = vst [vmem:[#allocation2 + $0x38] sm:$0xff] %v688
      %721 = vst [vmem:[#allocation2 + $0x40] sm:$0xff] %v689
      %722 = vst [vmem:[#allocation2 + $0x48] sm:$0xff] %v690
      %723 = vst [vmem:[#allocation2 + $0x50] sm:$0xff] %v691
      %724 = vst [vmem:[#allocation2 + $0x58] sm:$0xff] %v692
      %725 = vst [vmem:[#allocation2 + $0x60] sm:$0xff] %v693
      %726 = vst [vmem:[#allocation2 + $0x68] sm:$0xff] %v694
      %727 = vst [vmem:[#allocation2 + $0x70] sm:$0xff] %v695
      %728 = vst [vmem:[#allocation2 + $0x78] sm:$0xff] %v696
      %729 = vst [vmem:[#allocation2 + $0x80] sm:$0xff] %v697
      %730 = vst [vmem:[#allocation2 + $0x88] sm:$0xff] %v698
      %731 = vst [vmem:[#allocation2 + $0x90] sm:$0xff] %v699
      %732 = vst [vmem:[#allocation2 + $0x98] sm:$0xff] %v700
      %733 = vst [vmem:[#allocation2 + $0xa0] sm:$0xff] %v701
      %734 = vst [vmem:[#allocation2 + $0xa8] sm:$0xff] %v702
      %735 = vst [vmem:[#allocation2 + $0xb0] sm:$0xff] %v703
      %736 = vst [vmem:[#allocation2 + $0xb8] sm:$0xff] %v704
      %737 = vst [vmem:[#allocation2 + $0xc0] sm:$0xff] %v705
      %738 = vst [vmem:[#allocation2 + $0xc8] sm:$0xff] %v706
      %739 = vst [vmem:[#allocation2 + $0xd0] sm:$0xff] %v707
      %740 = vst [vmem:[#allocation2 + $0xd8] sm:$0xff] %v708
      %741 = vst [vmem:[#allocation2 + $0xe0] sm:$0xff] %v709
      %742 = vst [vmem:[#allocation2 + $0xe8] sm:$0xff] %v710
      %743 = vst [vmem:[#allocation2 + $0xf0] sm:$0xff] %v711
      %744 = vst [vmem:[#allocation2 + $0xf8] sm:$0xff] %v712
      // Predicated region
      $region37: #{generator_forward.48} parent=31 // pred_check
        %p745 = pneg %p260
      $region38: #{generator_forward.48} parent=31 // pred_check_branch
        %747 = sbr.rel (%p745) target = $region40
      $region39: #{generator_forward.48} parent=31 // pred_region
        %v748 = vld [vmem:[#allocation2] sm:$0xff]
        %v749 = vld [vmem:[#allocation2 + $0x8] sm:$0xff]
        %v750 = vld [vmem:[#allocation2 + $0x10] sm:$0xff]
        %v751 = vld [vmem:[#allocation2 + $0x18] sm:$0xff]
        %v752 = vld [vmem:[#allocation2 + $0x20] sm:$0xff]
        %v753 = vld [vmem:[#allocation2 + $0x28] sm:$0xff]
        %v754 = vld [vmem:[#allocation2 + $0x30] sm:$0xff]
        %v755 = vld [vmem:[#allocation2 + $0x38] sm:$0xff]
        %v756 = vld [vmem:[#allocation2 + $0x40] sm:$0xff]
        %v757 = vld [vmem:[#allocation2 + $0x48] sm:$0xff]
        %v758 = vld [vmem:[#allocation2 + $0x50] sm:$0xff]
        %v759 = vld [vmem:[#allocation2 + $0x58] sm:$0xff]
        %v760 = vld [vmem:[#allocation2 + $0x60] sm:$0xff]
        %v761 = vld [vmem:[#allocation2 + $0x68] sm:$0xff]
        %v762 = vld [vmem:[#allocation2 + $0x70] sm:$0xff]
        %v763 = vld [vmem:[#allocation2 + $0x78] sm:$0xff]
        %v764 = vld [vmem:[#allocation2 + $0x80] sm:$0xff]
        %v765 = vld [vmem:[#allocation2 + $0x88] sm:$0xff]
        %v766 = vld [vmem:[#allocation2 + $0x90] sm:$0xff]
        %v767 = vld [vmem:[#allocation2 + $0x98] sm:$0xff]
        %v768 = vld [vmem:[#allocation2 + $0xa0] sm:$0xff]
        %v769 = vld [vmem:[#allocation2 + $0xa8] sm:$0xff]
        %v770 = vld [vmem:[#allocation2 + $0xb0] sm:$0xff]
        %v771 = vld [vmem:[#allocation2 + $0xb8] sm:$0xff]
        %v772 = vld [vmem:[#allocation2 + $0xc0] sm:$0xff]
        %v773 = vld [vmem:[#allocation2 + $0xc8] sm:$0xff]
        %v774 = vld [vmem:[#allocation2 + $0xd0] sm:$0xff]
        %v775 = vld [vmem:[#allocation2 + $0xd8] sm:$0xff]
        %v776 = vld [vmem:[#allocation2 + $0xe0] sm:$0xff]
        %v777 = vld [vmem:[#allocation2 + $0xe8] sm:$0xff]
        %v778 = vld [vmem:[#allocation2 + $0xf0] sm:$0xff]
        %v779 = vld [vmem:[#allocation2 + $0xf8] sm:$0xff]
        %v780 = vld [vmem:[%s249] sm:$0x1]
        %v782 = vlaneseq
        %v783 = vshrl.u32 %v782, 7
        %v784 = vsub.s32 0, %v783
        %v785 = vrot.slane %v780, %v784
        %v787 = vadd.f32 %v748, %v785
        %v788 = vadd.f32 %v749, %v785
        %v789 = vadd.f32 %v750, %v785
        %v790 = vadd.f32 %v751, %v785
        %v791 = vadd.f32 %v752, %v785
        %v792 = vadd.f32 %v753, %v785
        %v793 = vadd.f32 %v754, %v785
        %v794 = vadd.f32 %v755, %v785
        %v795 = vadd.f32 %v756, %v785
        %v796 = vadd.f32 %v757, %v785
        %v797 = vadd.f32 %v758, %v785
        %v798 = vadd.f32 %v759, %v785
        %v799 = vadd.f32 %v760, %v785
        %v800 = vadd.f32 %v761, %v785
        %v801 = vadd.f32 %v762, %v785
        %v802 = vadd.f32 %v763, %v785
        %v803 = vadd.f32 %v764, %v785
        %v804 = vadd.f32 %v765, %v785
        %v805 = vadd.f32 %v766, %v785
        %v806 = vadd.f32 %v767, %v785
        %v807 = vadd.f32 %v768, %v785
        %v808 = vadd.f32 %v769, %v785
        %v809 = vadd.f32 %v770, %v785
        %v810 = vadd.f32 %v771, %v785
        %v811 = vadd.f32 %v772, %v785
        %v812 = vadd.f32 %v773, %v785
        %v813 = vadd.f32 %v774, %v785
        %v814 = vadd.f32 %v775, %v785
        %v815 = vadd.f32 %v776, %v785
        %v816 = vadd.f32 %v777, %v785
        %v817 = vadd.f32 %v778, %v785
        %v818 = vadd.f32 %v779, %v785
        %819 = vst [vmem:[%s257] sm:$0xff] %v787
        %820 = vst [vmem:[%s257 + $0x8] sm:$0xff] %v788
        %821 = vst [vmem:[%s257 + $0x10] sm:$0xff] %v789
        %822 = vst [vmem:[%s257 + $0x18] sm:$0xff] %v790
        %823 = vst [vmem:[%s257 + $0x20] sm:$0xff] %v791
        %824 = vst [vmem:[%s257 + $0x28] sm:$0xff] %v792
        %825 = vst [vmem:[%s257 + $0x30] sm:$0xff] %v793
        %826 = vst [vmem:[%s257 + $0x38] sm:$0xff] %v794
        %827 = vst [vmem:[%s257 + $0x40] sm:$0xff] %v795
        %828 = vst [vmem:[%s257 + $0x48] sm:$0xff] %v796
        %829 = vst [vmem:[%s257 + $0x50] sm:$0xff] %v797
        %830 = vst [vmem:[%s257 + $0x58] sm:$0xff] %v798
        %831 = vst [vmem:[%s257 + $0x60] sm:$0xff] %v799
        %832 = vst [vmem:[%s257 + $0x68] sm:$0xff] %v800
        %833 = vst [vmem:[%s257 + $0x70] sm:$0xff] %v801
        %834 = vst [vmem:[%s257 + $0x78] sm:$0xff] %v802
        %835 = vst [vmem:[%s257 + $0x80] sm:$0xff] %v803
        %836 = vst [vmem:[%s257 + $0x88] sm:$0xff] %v804
        %837 = vst [vmem:[%s257 + $0x90] sm:$0xff] %v805
        %838 = vst [vmem:[%s257 + $0x98] sm:$0xff] %v806
        %839 = vst [vmem:[%s257 + $0xa0] sm:$0xff] %v807
        %840 = vst [vmem:[%s257 + $0xa8] sm:$0xff] %v808
        %841 = vst [vmem:[%s257 + $0xb0] sm:$0xff] %v809
        %842 = vst [vmem:[%s257 + $0xb8] sm:$0xff] %v810
        %843 = vst [vmem:[%s257 + $0xc0] sm:$0xff] %v811
        %844 = vst [vmem:[%s257 + $0xc8] sm:$0xff] %v812
        %845 = vst [vmem:[%s257 + $0xd0] sm:$0xff] %v813
        %846 = vst [vmem:[%s257 + $0xd8] sm:$0xff] %v814
        %847 = vst [vmem:[%s257 + $0xe0] sm:$0xff] %v815
        %848 = vst [vmem:[%s257 + $0xe8] sm:$0xff] %v816
        %849 = vst [vmem:[%s257 + $0xf0] sm:$0xff] %v817
        %850 = vst [vmem:[%s257 + $0xf8] sm:$0xff] %v818
      $region40: #{generator_forward.48} parent=31 // pred_fallthru
        _
      %s851 = smul.u32 32, %s19
      %p852 = scmp.lt.s32.totalorder %s851, 63
      %s853 = scalar_select %p852, %s851, 63
      %p854 = scmp.lt.s32.totalorder %s20, 0
      %s855 = scalar_select %p854, %s20, 0
      %s856 = sadd.s32 %s855, %s853
      %s857 = smul.addr %s856, 8
      %s858 = scalar_lea.vmem %s3, %s857
      // Predicated region
      $region41: #{generator_forward.48} parent=31 // pred_check
        %p859 = pneg %p135
      $region42: #{generator_forward.48} parent=31 // pred_check_branch
        %861 = sbr.rel (%p859) target = $region44
      $region43: #{generator_forward.48} parent=31 // pred_region
        %s862 = smul.u32 32, %s19
      $region44: #{generator_forward.48} parent=31 // pred_fallthru
        _
    $region32: #{generator_forward.48} parent=5 // pred_fallthru
      _
    %p863 = scmp.le.s32.totalorder 2, %s9
    // Predicated region
    $region45: #{generator_forward.48} parent=5 // pred_check
      %p864 = pneg %p863
    $region46: #{generator_forward.48} parent=5 // pred_check_branch
      %866 = sbr.rel (%p864) target = $region48
    $region47: #{generator_forward.48} parent=5 // pred_region
      %s867 = ssub.s32 %s9, 2
      // Predicated region
      $region49: #{generator_forward.48} parent=47 // pred_check
        %p868 = pneg %p141
      $region50: #{generator_forward.48} parent=47 // pred_check_branch
        %870 = sbr.rel (%p868) target = $region52
      $region51: #{generator_forward.48} parent=47 // pred_region
        %s871 = smul.u32 32, %s22
        %p872 = scmp.lt.s32.totalorder %s871, 63
        %s873 = scalar_select %p872, %s871, 63
        %p874 = scmp.lt.s32.totalorder %s23, 0
        %s875 = scalar_select %p874, %s23, 0
        %s876 = sadd.s32 %s875, %s873
        %s877 = smul.addr %s876, 8
        %s878 = scalar_lea.vmem %s3, %s877
      $region52: #{generator_forward.48} parent=47 // pred_fallthru
        _
    $region48: #{generator_forward.48} parent=5 // pred_fallthru
      _
  $region6: #{generator_forward.48} parent=0 // loop_footer
    %s13 = sadd.s32 1, %s9
  $region7: #{generator_forward.48} parent=0 // loop_footer_branch
    %8 = sbr.rel target = $region3
  $region8: #{generator_forward.48} parent=0 // loop_exit
    _

// kernel: generator_forward.51
$region0: #{generator_forward.51}
  #allocation0 [shape = 'u32[]', space=smem, size = 0x4, offset = 0x4, fixed_abs, tag = 'smem constant byte address 0x4 - core index']
  #allocation1 [shape = 'u32[144,128]{1,0:T(1,128)}', space=vmem, size = 0x12000, scoped, tag = 'internal scratch']
  %s0 = inlined_call_operand.vmem [shape: f32[2,64,128], index: 0, kind: input, shape index: {}]
  %s1 = inlined_call_operand.vmem [shape: f32[2,64,128], index: 1, kind: output, shape index: {}]
  %s2 = sld [smem:[#allocation0]]
  $region37: #{generator_forward.51} parent=0
    _
  %s4 = ssub.s32 1, %s2
  %s5 = scalar_select 0, %s4, %s2
  loop: start=0, step=1, limit=4
  $region2: #{generator_forward.51} parent=0 // loop_pre_header
    _
  $region3: #{generator_forward.51} parent=0 // loop_header
    %s7 = sphi 0, %s11
    %p8 = scmp.ge.s32.totalorder %s7, 4
    %s14 = sphi 0, %s26
    %s15 = sphi 0, %s22
    %s16 = sphi 0, %s14
    %s17 = sphi 0, %s15
    %s18 = sphi 0, %s16
    %s19 = sphi 0, %s17
    %s31 = sphi 0, %s33
    %s34 = sphi 0, %s31
    %s35 = sphi 0, %s34
    %s51 = sphi 0, %s35
    %s59 = sphi 0, %s61
    %s62 = sphi 0, %s59
    %s63 = sphi 0, %s62
    %s79 = sphi 0, %s63
  $region4: #{generator_forward.51} parent=0 // loop_header_branch
    %10 = sbr.rel (%p8) target = $region8
  $region5: #{generator_forward.51} parent=0 // loop_body
    %s12 = ssub.s32 %s7, 1
    %s13 = ssub.s32 %s7, 2
    %s20 = sadd.s32 1, %s15
    %p21 = scmp.ge.s32.totalorder %s20, 1
    %s22 = scalar_select %p21, 0, %s20
    %s23 = sadd.s32 1, %s14
    %s24 = scalar_select %p21, %s23, %s14
    %p25 = scmp.ge.s32.totalorder %s24, 2
    %s26 = scalar_select %p25, 0, %s24
    %s27 = ssub.s32 %s14, %s26
    %s28 = ssub.s32 %s15, %s22
    %s29 = sor.u32 %s27, %s28
    %p30 = scmp.eq.s32.totalorder %s29, 0
    %s32 = sadd.s32 %s31, 1
    %s33 = scalar_select %p30, %s31, %s32
    %p36 = pneg %p30
    %p37 = scmp.eq.s32.totalorder %s7, 1
    %p38 = por %p36, %p37
    %p39 = scmp.ne.s32.totalorder %s31, %s34
    %p40 = scmp.eq.s32.totalorder %s7, 0
    %p41 = por %p39, %p40
    %p42 = scmp.ne.s32.totalorder %s31, %s34
    %p43 = scmp.eq.s32.totalorder %s12, 1
    %p44 = por %p42, %p43
    %p45 = scmp.ne.s32.totalorder %s34, %s35
    %p46 = scmp.eq.s32.totalorder %s12, 0
    %p47 = por %p45, %p46
    %p48 = scmp.ne.s32.totalorder %s34, %s35
    %p49 = scmp.eq.s32.totalorder %s13, 1
    %p50 = por %p48, %p49
    %p52 = scmp.ne.s32.totalorder %s35, %s51
    %p53 = scmp.eq.s32.totalorder %s13, 0
    %p54 = por %p52, %p53
    %s55 = ssub.s32 %s14, %s26
    %s56 = ssub.s32 %s15, %s22
    %s57 = sor.u32 %s55, %s56
    %p58 = scmp.eq.s32.totalorder %s57, 0
    %s60 = sadd.s32 %s59, 1
    %s61 = scalar_select %p58, %s59, %s60
    %p64 = pneg %p58
    %p65 = scmp.eq.s32.totalorder %s7, 1
    %p66 = por %p64, %p65
    %p67 = scmp.ne.s32.totalorder %s59, %s62
    %p68 = scmp.eq.s32.totalorder %s7, 0
    %p69 = por %p67, %p68
    %p70 = scmp.ne.s32.totalorder %s59, %s62
    %p71 = scmp.eq.s32.totalorder %s12, 1
    %p72 = por %p70, %p71
    %p73 = scmp.ne.s32.totalorder %s62, %s63
    %p74 = scmp.eq.s32.totalorder %s12, 0
    %p75 = por %p73, %p74
    %p76 = scmp.ne.s32.totalorder %s62, %s63
    %p77 = scmp.eq.s32.totalorder %s13, 1
    %p78 = por %p76, %p77
    %p80 = scmp.ne.s32.totalorder %s63, %s79
    %p81 = scmp.eq.s32.totalorder %s13, 0
    %p82 = por %p80, %p81
    %p83 = scmp.le.s32.totalorder 1, %s7
    %p84 = scmp.lt.s32.totalorder %s7, 3
    %p85 = pnand %p83, %p84
    %p86 = pneg %p85
    // Predicated region
    $region9: #{generator_forward.51} parent=5 // pred_check
      _
    $region10: #{generator_forward.51} parent=5 // pred_check_branch
      %88 = sbr.rel (%p85) target = $region12
    $region11: #{generator_forward.51} parent=5 // pred_region
      %s89 = ssub.s32 %s7, 1
    $region12: #{generator_forward.51} parent=5 // pred_fallthru
      _
    %p90 = scmp.lt.s32.totalorder %s7, 2
    // Predicated region
    $region13: #{generator_forward.51} parent=5 // pred_check
      %p91 = pneg %p90
    $region14: #{generator_forward.51} parent=5 // pred_check_branch
      %93 = sbr.rel (%p91) target = $region16
    $region15: #{generator_forward.51} parent=5 // pred_region
      // Predicated region
      $region17: #{generator_forward.51} parent=15 // pred_check
        %p94 = pneg %p41
      $region18: #{generator_forward.51} parent=15 // pred_check_branch
        %96 = sbr.rel (%p94) target = $region20
      $region19: #{generator_forward.51} parent=15 // pred_region
        %p97 = scmp.lt.s32.totalorder %s14, 1
        %s98 = scalar_select %p97, %s14, 1
        %p99 = scmp.lt.s32.totalorder %s15, 0
        %s100 = scalar_select %p99, %s15, 0
        %s101 = smul.addr %s98, 8
        %s102 = sadd.s32 %s100, %s101
        %s103 = smul.addr %s102, 8
        %s104 = scalar_lea.vmem %s0, %s103
      $region20: #{generator_forward.51} parent=15 // pred_fallthru
        _
    $region16: #{generator_forward.51} parent=5 // pred_fallthru
      _
    %p105 = scmp.le.s32.totalorder 1, %s7
    %p106 = scmp.lt.s32.totalorder %s7, 3
    %p107 = pnand %p105, %p106
    %p108 = pneg %p107
    // Predicated region
    $region21: #{generator_forward.51} parent=5 // pred_check
      _
    $region22: #{generator_forward.51} parent=5 // pred_check_branch
      %110 = sbr.rel (%p107) target = $region24
    $region23: #{generator_forward.51} parent=5 // pred_region
      %s111 = ssub.s32 %s7, 1
      %p112 = scmp.lt.s32.totalorder %s16, 1
      %s113 = scalar_select %p112, %s16, 1
      %p114 = scmp.lt.s32.totalorder %s17, 0
      %s115 = scalar_select %p114, %s17, 0
      %s116 = smul.addr %s113, 8
      %s117 = sadd.s32 %s115, %s116
      %s118 = smul.addr %s117, 8
      %s119 = scalar_lea.vmem %s0, %s118
      %p120 = pneg %p47
      %p121 = pneg %p44
      %p122 = pneg %p75
      %p123 = pneg %p72
      %p124 = scmp.lt.s32.totalorder %s16, 1
      %s125 = scalar_select %p124, %s16, 1
      %p126 = scmp.lt.s32.totalorder %s17, 0
      %s127 = scalar_select %p126, %s17, 0
      %s128 = smul.addr %s125, 8
      %s129 = sadd.s32 %s127, %s128
      %s130 = smul.addr %s129, 8
      %s131 = scalar_lea.vmem %s1, %s130
      %p132 = scmp.lt.s32.totalorder %s16, 1
      %s133 = scalar_select %p132, %s16, 1
      %p134 = scmp.lt.s32.totalorder %s17, 0
      %s135 = scalar_select %p134, %s17, 0
      %s136 = smul.addr %s133, 8
      %s137 = sadd.s32 %s135, %s136
      %s138 = smul.addr %s137, 8
      %s139 = scalar_lea.vmem %s0, %s138
      %p140 = scmp.lt.s32.totalorder %s16, 1
      %s141 = scalar_select %p140, %s16, 1
      %p142 = scmp.lt.s32.totalorder %s17, 0
      %s143 = scalar_select %p142, %s17, 0
      %s144 = smul.addr %s141, 8
      %s145 = sadd.s32 %s143, %s144
      %s146 = smul.addr %s145, 8
      %s147 = scalar_lea.vmem %s1, %s146
      %v148 = vld [vmem:[%s139] sm:$0xff]
      %v149 = vld [vmem:[%s139 + $0x8] sm:$0xff]
      %v150 = vld [vmem:[%s139 + $0x10] sm:$0xff]
      %v151 = vld [vmem:[%s139 + $0x18] sm:$0xff]
      %v152 = vld [vmem:[%s139 + $0x20] sm:$0xff]
      %v153 = vld [vmem:[%s139 + $0x28] sm:$0xff]
      %v154 = vld [vmem:[%s139 + $0x30] sm:$0xff]
      %v155 = vld [vmem:[%s139 + $0x38] sm:$0xff]
      %v156 = vadd.f32 %v148, %v149
      %v157 = vadd.f32 %v156, %v150
      %v158 = vadd.f32 %v157, %v151
      %v159 = vadd.f32 %v158, %v152
      %v160 = vadd.f32 %v159, %v153
      %v161 = vadd.f32 %v160, %v154
      %v162 = vadd.f32 %v161, %v155
      %v163 = vrot.slane %v162, 4
      %v164 = vadd.f32 %v162, %v163
      %v165 = vrot.slane %v164, 2
      %v166 = vadd.f32 %v164, %v165
      %v167 = vrot.slane %v166, 1
      %v168 = vadd.f32 %v166, %v167
      %v169 = vrcp.pop 64.0
      %v170 = vmul.f32 %v168, %v169
      %v171 = vsub.f32 %v148, %v170
      %v172 = vsub.f32 %v149, %v170
      %v173 = vsub.f32 %v150, %v170
      %v174 = vsub.f32 %v151, %v170
      %v175 = vsub.f32 %v152, %v170
      %v176 = vsub.f32 %v153, %v170
      %v177 = vsub.f32 %v154, %v170
      %v178 = vsub.f32 %v155, %v170
      %v179 = vmul.f32 %v171, %v171
      %v180 = vmul.f32 %v172, %v172
      %v181 = vmul.f32 %v173, %v173
      %v182 = vmul.f32 %v174, %v174
      %v183 = vmul.f32 %v175, %v175
      %v184 = vmul.f32 %v176, %v176
      %v185 = vmul.f32 %v177, %v177
      %v186 = vmul.f32 %v178, %v178
      %v187 = vadd.f32 %v179, %v180
      %v188 = vadd.f32 %v187, %v181
      %v189 = vadd.f32 %v188, %v182
      %v190 = vadd.f32 %v189, %v183
      %v191 = vadd.f32 %v190, %v184
      %v192 = vadd.f32 %v191, %v185
      %v193 = vadd.f32 %v192, %v186
      %v194 = vrot.slane %v193, 4
      %v195 = vadd.f32 %v193, %v194
      %v196 = vrot.slane %v195, 2
      %v197 = vadd.f32 %v195, %v196
      %v198 = vrot.slane %v197, 1
      %v199 = vadd.f32 %v197, %v198
      %v200 = vmul.f32 %v199, %v169
      %v201 = vadd.f32 %v200, 1e-05
      %v202 = vrsqrt.pop %v201
      %v203 = vmul.f32 %v171, %v202
      %v204 = vmul.f32 %v172, %v202
      %v205 = vmul.f32 %v173, %v202
      %v206 = vmul.f32 %v174, %v202
      %v207 = vmul.f32 %v175, %v202
      %v208 = vmul.f32 %v176, %v202
      %v209 = vmul.f32 %v177, %v202
      %v210 = vmul.f32 %v178, %v202
      %v211 = vmax.f32 %v203, 0.0
      %v212 = vmax.f32 %v204, 0.0
      %v213 = vmax.f32 %v205, 0.0
      %v214 = vmax.f32 %v206, 0.0
      %v215 = vmax.f32 %v207, 0.0
      %v216 = vmax.f32 %v208, 0.0
      %v217 = vmax.f32 %v209, 0.0
      %v218 = vmax.f32 %v210, 0.0
      %219 = vst [vmem:[%s147] sm:$0xff] %v211
      %220 = vst [vmem:[%s147 + $0x8] sm:$0xff] %v212
      %221 = vst [vmem:[%s147 + $0x10] sm:$0xff] %v213
      %222 = vst [vmem:[%s147 + $0x18] sm:$0xff] %v214
      %223 = vst [vmem:[%s147 + $0x20] sm:$0xff] %v215
      %224 = vst [vmem:[%s147 + $0x28] sm:$0xff] %v216
      %225 = vst [vmem:[%s147 + $0x30] sm:$0xff] %v217
      %226 = vst [vmem:[%s147 + $0x38] sm:$0xff] %v218
      %p227 = scmp.lt.s32.totalorder %s16, 1
      %s228 = scalar_select %p227, %s16, 1
      %p229 = scmp.lt.s32.totalorder %s17, 0
      %s230 = scalar_select %p229, %s17, 0
      %s231 = smul.addr %s228, 8
      %s232 = sadd.s32 %s230, %s231
      %s233 = smul.addr %s232, 8
      %s234 = scalar_lea.vmem %s1, %s233
      // Predicated region
      $region25: #{generator_forward.51} parent=23 // pred_check
        %p235 = pneg %p72
      $region26: #{generator_forward.51} parent=23 // pred_check_branch
        %237 = sbr.rel (%p235) target = $region28
      $region27: #{generator_forward.51} parent=23 // pred_region
        _
      $region28: #{generator_forward.51} parent=23 // pred_fallthru
        _
    $region24: #{generator_forward.51} parent=5 // pred_fallthru
      _
    %p238 = scmp.le.s32.totalorder 2, %s7
    // Predicated region
    $region29: #{generator_forward.51} parent=5 // pred_check
      %p239 = pneg %p238
    $region30: #{generator_forward.51} parent=5 // pred_check_branch
      %241 = sbr.rel (%p239) target = $region32
    $region31: #{generator_forward.51} parent=5 // pred_region
      %s242 = ssub.s32 %s7, 2
      // Predicated region
      $region33: #{generator_forward.51} parent=31 // pred_check
        %p243 = pneg %p78
      $region34: #{generator_forward.51} parent=31 // pred_check_branch
        %245 = sbr.rel (%p243) target = $region36
      $region35: #{generator_forward.51} parent=31 // pred_region
        %p246 = scmp.lt.s32.totalorder %s18, 1
        %s247 = scalar_select %p246, %s18, 1
        %p248 = scmp.lt.s32.totalorder %s19, 0
        %s249 = scalar_select %p248, %s19, 0
        %s250 = smul.addr %s247, 8
        %s251 = sadd.s32 %s249, %s250
        %s252 = smul.addr %s251, 8
        %s253 = scalar_lea.vmem %s1, %s252
      $region36: #{generator_forward.51} parent=31 // pred_fallthru
        _
    $region32: #{generator_forward.51} parent=5 // pred_fallthru
      _
  $region6: #{generator_forward.51} parent=0 // loop_footer
    %s11 = sadd.s32 1, %s7
  $region7: #{generator_forward.51} parent=0 // loop_footer_branch
    %6 = sbr.rel target = $region3
  $region8: #{generator_forward.51} parent=0 // loop_exit
    _

// kernel: generator_forward.50
$region0: #{generator_forward.50}
  #allocation0 [shape = 'u32[]', space=smem, size = 0x4, offset = 0x4, fixed_abs, tag = 'smem constant byte address 0x4 - core index']
  #allocation1 [shape = 'u32[144,128]{1,0:T(1,128)}', space=vmem, size = 0x12000, scoped, tag = 'internal scratch']
  #allocation2 [shape = 'f32[128,128]{1,0:T(8,128)}', space=vmem, size = 0x10000, scoped, tag = 'scratch operand']
  %s0 = inlined_call_operand.vmem [shape: bf16[128,640], index: 0, kind: input, shape index: {}]
  %s1 = inlined_call_operand.vmem [shape: bf16[640,128], index: 1, kind: input, shape index: {}]
  %s2 = inlined_call_operand.vmem [shape: f32[1,128], index: 2, kind: input, shape index: {}]
  %s3 = inlined_call_operand.vmem [shape: f32[128,128], index: 3, kind: output, shape index: {}]
  %s4 = sld [smem:[#allocation0]]
  $region94: #{generator_forward.50} parent=0
    _
  %s6 = ssub.s32 1, %s4
  %s7 = scalar_select 0, %s6, %s4
  $region1: #{generator_forward.50} parent=0
    #allocation3 [shape = 'u8[65536]{0}', space=vmem, size = 0x10000, scoped, tag = 'input window, operand 0']
    loop: start=0, step=1, limit=7
    $region2: #{generator_forward.50} parent=1 // loop_pre_header
      _
    $region3: #{generator_forward.50} parent=1 // loop_header
      %s9 = sphi 0, %s13
      %p10 = scmp.ge.s32.totalorder %s9, 7
      %s16 = sphi 0, %s35
      %s17 = sphi 0, %s31
      %s18 = sphi 0, %s27
      %s19 = sphi 0, %s16
      %s20 = sphi 0, %s17
      %s21 = sphi 0, %s18
      %s22 = sphi 0, %s19
      %s23 = sphi 0, %s20
      %s24 = sphi 0, %s21
      %s40 = sphi 0, %s42
      %s43 = sphi 0, %s40
      %s44 = sphi 0, %s43
      %s60 = sphi 0, %s44
      %s68 = sphi 0, %s70
      %s71 = sphi 0, %s68
      %s72 = sphi 0, %s71
      %s88 = sphi 0, %s72
      %s94 = sphi 0, %s96
      %s97 = sphi 0, %s94
      %s98 = sphi 0, %s97
      %s114 = sphi 0, %s98
      %s122 = sphi 0, %s124
      %s125 = sphi 0, %s122
      %s126 = sphi 0, %s125
      %s142 = sphi 0, %s126
    $region4: #{generator_forward.50} parent=1 // loop_header_branch
      %12 = sbr.rel (%p10) target = $region8
    $region5: #{generator_forward.50} parent=1 // loop_body
      %s14 = ssub.s32 %s9, 1
      %s15 = ssub.s32 %s9, 2
      %s25 = sadd.s32 1, %s18
      %p26 = scmp.ge.s32.totalorder %s25, 5
      %s27 = scalar_select %p26, 0, %s25
      %s28 = sadd.s32 1, %s17
      %s29 = scalar_select %p26, %s28, %s17
      %p30 = scmp.ge.s32.totalorder %s29, 1
      %s31 = scalar_select %p30, 0, %s29
      %s32 = sadd.s32 1, %s16
      %s33 = scalar_select %p30, %s32, %s16
      %p34 = scmp.ge.s32.totalorder %s33, 1
      %s35 = scalar_select %p34, 0, %s33
      %s36 = ssub.s32 %s16, %s35
      %s37 = ssub.s32 %s18, %s27
      %s38 = sor.u32 %s36, %s37
      %p39 = scmp.eq.s32.totalorder %s38, 0
      %s41 = sadd.s32 %s40, 1
      %s42 = scalar_select %p39, %s40, %s41
      %p45 = pneg %p39
      %p46 = scmp.eq.s32.totalorder %s9, 4
      %p47 = por %p45, %p46
      %p48 = scmp.ne.s32.totalorder %s40, %s43
      %p49 = scmp.eq.s32.totalorder %s9, 0
      %p50 = por %p48, %p49
      %p51 = scmp.ne.s32.totalorder %s40, %s43
      %p52 = scmp.eq.s32.totalorder %s14, 4
      %p53 = por %p51, %p52
      %p54 = scmp.ne.s32.totalorder %s43, %s44
      %p55 = scmp.eq.s32.totalorder %s14, 0
      %p56 = por %p54, %p55
      %p57 = scmp.ne.s32.totalorder %s43, %s44
      %p58 = scmp.eq.s32.totalorder %s15, 4
      %p59 = por %p57, %p58
      %p61 = scmp.ne.s32.totalorder %s44, %s60
      %p62 = scmp.eq.s32.totalorder %s15, 0
      %p63 = por %p61, %p62
      %s64 = ssub.s32 %s18, %s27
      %s65 = ssub.s32 %s17, %s31
      %s66 = sor.u32 %s64, %s65
      %p67 = scmp.eq.s32.totalorder %s66, 0
      %s69 = sadd.s32 %s68, 1
      %s70 = scalar_select %p67, %s68, %s69
      %p73 = pneg %p67
      %p74 = scmp.eq.s32.totalorder %s9, 4
      %p75 = por %p73, %p74
      %p76 = scmp.ne.s32.totalorder %s68, %s71
      %p77 = scmp.eq.s32.totalorder %s9, 0
      %p78 = por %p76, %p77
      %p79 = scmp.ne.s32.totalorder %s68, %s71
      %p80 = scmp.eq.s32.totalorder %s14, 4
      %p81 = por %p79, %p80
      %p82 = scmp.ne.s32.totalorder %s71, %s72
      %p83 = scmp.eq.s32.totalorder %s14, 0
      %p84 = por %p82, %p83
      %p85 = scmp.ne.s32.totalorder %s71, %s72
      %p86 = scmp.eq.s32.totalorder %s15, 4
      %p87 = por %p85, %p86
      %p89 = scmp.ne.s32.totalorder %s72, %s88
      %p90 = scmp.eq.s32.totalorder %s15, 0
      %p91 = por %p89, %p90
      %s92 = ssub.s32 %s17, %s31
      %p93 = scmp.eq.s32.totalorder %s92, 0
      %s95 = sadd.s32 %s94, 1
      %s96 = scalar_select %p93, %s94, %s95
      %p99 = pneg %p93
      %p100 = scmp.eq.s32.totalorder %s9, 4
      %p101 = por %p99, %p100
      %p102 = scmp.ne.s32.totalorder %s94, %s97
      %p103 = scmp.eq.s32.totalorder %s9, 0
      %p104 = por %p102, %p103
      %p105 = scmp.ne.s32.totalorder %s94, %s97
      %p106 = scmp.eq.s32.totalorder %s14, 4
      %p107 = por %p105, %p106
      %p108 = scmp.ne.s32.totalorder %s97, %s98
      %p109 = scmp.eq.s32.totalorder %s14, 0
      %p110 = por %p108, %p109
      %p111 = scmp.ne.s32.totalorder %s97, %s98
      %p112 = scmp.eq.s32.totalorder %s15, 4
      %p113 = por %p111, %p112
      %p115 = scmp.ne.s32.totalorder %s98, %s114
      %p116 = scmp.eq.s32.totalorder %s15, 0
      %p117 = por %p115, %p116
      %s118 = ssub.s32 %s16, %s35
      %s119 = ssub.s32 %s17, %s31
      %s120 = sor.u32 %s118, %s119
      %p121 = scmp.eq.s32.totalorder %s120, 0
      %s123 = sadd.s32 %s122, 1
      %s124 = scalar_select %p121, %s122, %s123
      %p127 = pneg %p121
      %p128 = scmp.eq.s32.totalorder %s9, 4
      %p129 = por %p127, %p128
      %p130 = scmp.ne.s32.totalorder %s122, %s125
      %p131 = scmp.eq.s32.totalorder %s9, 0
      %p132 = por %p130, %p131
      %p133 = scmp.ne.s32.totalorder %s122, %s125
      %p134 = scmp.eq.s32.totalorder %s14, 4
      %p135 = por %p133, %p134
      %p136 = scmp.ne.s32.totalorder %s125, %s126
      %p137 = scmp.eq.s32.totalorder %s14, 0
      %p138 = por %p136, %p137
      %p139 = scmp.ne.s32.totalorder %s125, %s126
      %p140 = scmp.eq.s32.totalorder %s15, 4
      %p141 = por %p139, %p140
      %p143 = scmp.ne.s32.totalorder %s126, %s142
      %p144 = scmp.eq.s32.totalorder %s15, 0
      %p145 = por %p143, %p144
      %p146 = scmp.le.s32.totalorder 1, %s9
      %p147 = scmp.lt.s32.totalorder %s9, 6
      %p148 = pnand %p146, %p147
      %p149 = pneg %p148
      // Predicated region
      $region9: #{generator_forward.50} parent=5 // pred_check
        _
      $region10: #{generator_forward.50} parent=5 // pred_check_branch
        %151 = sbr.rel (%p148) target = $region12
      $region11: #{generator_forward.50} parent=5 // pred_region
        %s152 = ssub.s32 %s9, 1
        // Predicated region
        $region13: #{generator_forward.50} parent=11 // pred_check
          %p153 = pneg %p110
        $region14: #{generator_forward.50} parent=11 // pred_check_branch
          %155 = sbr.rel (%p153) target = $region16
        $region15: #{generator_forward.50} parent=11 // pred_region
          %p156 = scmp.lt.s32.totalorder %s20, 0
          %s157 = scalar_select %p156, %s20, 0
          %s158 = scalar_lea.vmem %s2, %s157
        $region16: #{generator_forward.50} parent=11 // pred_fallthru
          _
      $region12: #{generator_forward.50} parent=5 // pred_fallthru
        _
      %p159 = scmp.lt.s32.totalorder %s9, 5
      // Predicated region
      $region17: #{generator_forward.50} parent=5 // pred_check
        %p160 = pneg %p159
      $region18: #{generator_forward.50} parent=5 // pred_check_branch
        %162 = sbr.rel (%p160) target = $region20
      $region19: #{generator_forward.50} parent=5 // pred_region
        // Predicated region
        $region21: #{generator_forward.50} parent=19 // pred_check
          %p163 = pneg %p50
        $region22: #{generator_forward.50} parent=19 // pred_check_branch
          %165 = sbr.rel (%p163) target = $region24
        $region23: #{generator_forward.50} parent=19 // pred_region
          %s166 = sand.u32 %s40, 1
          %s167 = sand.u32 %s40, 1
          %s168 = smul.addr %s167, 64
          %s169 = scalar_lea.vmem [#allocation3], %s168
          %s170 = smul.u32 16, %s16
          %s171 = smul.addr %s170, 5
          %s172 = sadd.s32 %s18, %s171
          %s173 = smul.addr %s172, 4
          %s174 = scalar_lea.vmem %s0, %s173
          // Predicated region
          $region25: #{generator_forward.50} parent=23 // pred_check
            _
          $region26: #{generator_forward.50} parent=23 // pred_check_branch
            %176 = sbr.rel (0) target = $region28
          $region27: #{generator_forward.50} parent=23 // pred_region
            // Predicated region
            $region29: #{generator_forward.50} parent=27 // pred_check
              _
            $region30: #{generator_forward.50} parent=27 // pred_check_branch
              %178 = sbr.rel target = $region32
            $region31: #{generator_forward.50} parent=27 // pred_region
              // Predicated region
              $region44: #{generator_forward.50} parent=31 // pred_check
                _
              $region45: #{generator_forward.50} parent=31 // pred_check_branch
                %223 = sbr.rel (0) target = $region47
              $region46: #{generator_forward.50} parent=31 // pred_region
                loop: start=0, step=1, limit=1
                $region48: #{generator_forward.50} parent=46 // loop_pre_header
                  _
                $region49: #{generator_forward.50} parent=46 // loop_header
                  %s225 = sphi 0, %s229
                  %p226 = scmp.ge.s32.totalorder %s225, 1
                  %s230 = sphi %s174, %s174
                  %s231 = sphi %s169, %s169
                $region50: #{generator_forward.50} parent=46 // loop_header_branch
                  %228 = sbr.rel (%p226) target = $region54
                $region51: #{generator_forward.50} parent=46 // loop_body
                  _
                $region52: #{generator_forward.50} parent=46 // loop_footer
                  %s229 = sadd.s32 1, %s225
                $region53: #{generator_forward.50} parent=46 // loop_footer_branch
                  %224 = sbr.rel target = $region49
                $region54: #{generator_forward.50} parent=46 // loop_exit
                  _
                loop: start=0, step=1, limit=1
                $region55: #{generator_forward.50} parent=46 // loop_pre_header
                  _
                $region56: #{generator_forward.50} parent=46 // loop_header
                  %s234 = sphi 0, %s238
                  %p235 = scmp.ge.s32.totalorder %s234, 1
                  %s239 = sphi %s174, %s174
                  %s240 = sphi %s169, %s169
                $region57: #{generator_forward.50} parent=46 // loop_header_branch
                  %237 = sbr.rel (%p235) target = $region61
                $region58: #{generator_forward.50} parent=46 // loop_body
                  %v241 = vld [vmem:[%s239] sm:$0xf]
                  %242 = vst [vmem:[%s240] sm:$0xf] %v241
                  %v243 = vld [vmem:[%s239 + $0x14] sm:$0xf]
                  %244 = vst [vmem:[%s240 + $0x4] sm:$0xf] %v243
                  %v245 = vld [vmem:[%s239 + $0x28] sm:$0xf]
                  %246 = vst [vmem:[%s240 + $0x8] sm:$0xf] %v245
                  %v247 = vld [vmem:[%s239 + $0x3c] sm:$0xf]
                  %248 = vst [vmem:[%s240 + $0xc] sm:$0xf] %v247
                  %v249 = vld [vmem:[%s239 + $0x50] sm:$0xf]
                  %250 = vst [vmem:[%s240 + $0x10] sm:$0xf] %v249
                  %v251 = vld [vmem:[%s239 + $0x64] sm:$0xf]
                  %252 = vst [vmem:[%s240 + $0x14] sm:$0xf] %v251
                  %v253 = vld [vmem:[%s239 + $0x78] sm:$0xf]
                  %254 = vst [vmem:[%s240 + $0x18] sm:$0xf] %v253
                  %v255 = vld [vmem:[%s239 + $0x8c] sm:$0xf]
                  %256 = vst [vmem:[%s240 + $0x1c] sm:$0xf] %v255
                  %v257 = vld [vmem:[%s239 + $0xa0] sm:$0xf]
                  %258 = vst [vmem:[%s240 + $0x20] sm:$0xf] %v257
                  %v259 = vld [vmem:[%s239 + $0xb4] sm:$0xf]
                  %260 = vst [vmem:[%s240 + $0x24] sm:$0xf] %v259
                  %v261 = vld [vmem:[%s239 + $0xc8] sm:$0xf]
                  %262 = vst [vmem:[%s240 + $0x28] sm:$0xf] %v261
                  %v263 = vld [vmem:[%s239 + $0xdc] sm:$0xf]
                  %264 = vst [vmem:[%s240 + $0x2c] sm:$0xf] %v263
                  %v265 = vld [vmem:[%s239 + $0xf0] sm:$0xf]
                  %266 = vst [vmem:[%s240 + $0x30] sm:$0xf] %v265
                  %v267 = vld [vmem:[%s239 + $0x104] sm:$0xf]
                  %268 = vst [vmem:[%s240 + $0x34] sm:$0xf] %v267
                  %v269 = vld [vmem:[%s239 + $0x118] sm:$0xf]
                  %270 = vst [vmem:[%s240 + $0x38] sm:$0xf] %v269
                  %v271 = vld [vmem:[%s239 + $0x12c] sm:$0xf]
                  %272 = vst [vmem:[%s240 + $0x3c] sm:$0xf] %v271
                $region59: #{generator_forward.50} parent=46 // loop_footer
                  %s238 = sadd.s32 1, %s234
                $region60: #{generator_forward.50} parent=46 // loop_footer_branch
                  %233 = sbr.rel target = $region56
                $region61: #{generator_forward.50} parent=46 // loop_exit
                  _
              $region47: #{generator_forward.50} parent=31 // pred_fallthru
                _
            $region32: #{generator_forward.50} parent=27 // pred_fallthru
              _
            // Predicated region
            $region33: #{generator_forward.50} parent=27 // pred_check
              _
            $region34: #{generator_forward.50} parent=27 // pred_check_branch
              %180 = sbr.rel (0) target = $region36
            $region35: #{generator_forward.50} parent=27 // pred_region
              loop: start=0, step=1, limit=1
              $region37: #{generator_forward.50} parent=35 // loop_pre_header
                _
              $region38: #{generator_forward.50} parent=35 // loop_header
                %s183 = sphi 0, %s187
                %p184 = scmp.ge.s32.totalorder %s183, 1
                %s188 = sphi %s174, %s174
                %s189 = sphi %s169, %s169
              $region39: #{generator_forward.50} parent=35 // loop_header_branch
                %186 = sbr.rel (%p184) target = $region43
              $region40: #{generator_forward.50} parent=35 // loop_body
                %v190 = vld [vmem:[%s188] sm:$0xf]
                %191 = vst [vmem:[%s189] sm:$0xf] %v190
                %v192 = vld [vmem:[%s188 + $0x14] sm:$0xf]
                %193 = vst [vmem:[%s189 + $0x4] sm:$0xf] %v192
                %v194 = vld [vmem:[%s188 + $0x28] sm:$0xf]
                %195 = vst [vmem:[%s189 + $0x8] sm:$0xf] %v194
                %v196 = vld [vmem:[%s188 + $0x3c] sm:$0xf]
                %197 = vst [vmem:[%s189 + $0xc] sm:$0xf] %v196
                %v198 = vld [vmem:[%s188 + $0x50] sm:$0xf]
                %199 = vst [vmem:[%s189 + $0x10] sm:$0xf] %v198
                %v200 = vld [vmem:[%s188 + $0x64] sm:$0xf]
                %201 = vst [vmem:[%s189 + $0x14] sm:$0xf] %v200
                %v202 = vld [vmem:[%s188 + $0x78] sm:$0xf]
                %203 = vst [vmem:[%s189 + $0x18] sm:$0xf] %v202
                %v204 = vld [vmem:[%s188 + $0x8c] sm:$0xf]
                %205 = vst [vmem:[%s189 + $0x1c] sm:$0xf] %v204
                %v206 = vld [vmem:[%s188 + $0xa0] sm:$0xf]
                %207 = vst [vmem:[%s189 + $0x20] sm:$0xf] %v206
                %v208 = vld [vmem:[%s188 + $0xb4] sm:$0xf]
                %209 = vst [vmem:[%s189 + $0x24] sm:$0xf] %v208
                %v210 = vld [vmem:[%s188 + $0xc8] sm:$0xf]
                %211 = vst [vmem:[%s189 + $0x28] sm:$0xf] %v210
                %v212 = vld [vmem:[%s188 + $0xdc] sm:$0xf]
                %213 = vst [vmem:[%s189 + $0x2c] sm:$0xf] %v212
                %v214 = vld [vmem:[%s188 + $0xf0] sm:$0xf]
                %215 = vst [vmem:[%s189 + $0x30] sm:$0xf] %v214
                %v216 = vld [vmem:[%s188 + $0x104] sm:$0xf]
                %217 = vst [vmem:[%s189 + $0x34] sm:$0xf] %v216
                %v218 = vld [vmem:[%s188 + $0x118] sm:$0xf]
                %219 = vst [vmem:[%s189 + $0x38] sm:$0xf] %v218
                %v220 = vld [vmem:[%s188 + $0x12c] sm:$0xf]
                %221 = vst [vmem:[%s189 + $0x3c] sm:$0xf] %v220
              $region41: #{generator_forward.50} parent=35 // loop_footer
                %s187 = sadd.s32 1, %s183
              $region42: #{generator_forward.50} parent=35 // loop_footer_branch
                %182 = sbr.rel target = $region38
              $region43: #{generator_forward.50} parent=35 // loop_exit
                _
            $region36: #{generator_forward.50} parent=27 // pred_fallthru
              _
          $region28: #{generator_forward.50} parent=23 // pred_fallthru
            _
          %273 = vnop
        $region24: #{generator_forward.50} parent=19 // pred_fallthru
          _
        // Predicated region
        $region62: #{generator_forward.50} parent=19 // pred_check
          %p274 = pneg %p78
        $region63: #{generator_forward.50} parent=19 // pred_check_branch
          %276 = sbr.rel (%p274) target = $region65
        $region64: #{generator_forward.50} parent=19 // pred_region
          %s277 = smul.u32 16, %s18
          %p278 = scmp.lt.s32.totalorder %s277, 79
          %s279 = scalar_select %p278, %s277, 79
          %p280 = scmp.lt.s32.totalorder %s17, 0
          %s281 = scalar_select %p280, %s17, 0
          %s282 = sadd.s32 %s281, %s279
          %s283 = smul.addr %s282, 4
          %s284 = scalar_lea.vmem %s1, %s283
          %s285 = smul.u32 16, %s18
        $region65: #{generator_forward.50} parent=19 // pred_fallthru
          _
      $region20: #{generator_forward.50} parent=5 // pred_fallthru
        _
      %p286 = scmp.le.s32.totalorder 1, %s9
      %p287 = scmp.lt.s32.totalorder %s9, 6
      %p288 = pnand %p286, %p287
      %p289 = pneg %p288
      // Predicated region
      $region66: #{generator_forward.50} parent=5 // pred_check
        _
      $region67: #{generator_forward.50} parent=5 // pred_check_branch
        %291 = sbr.rel (%p288) target = $region69
      $region68: #{generator_forward.50} parent=5 // pred_region
        %s292 = ssub.s32 %s9, 1
        %s293 = sand.u32 %s43, 1
        %s294 = sand.u32 %s43, 1
        %s295 = smul.addr %s294, 64
        %s296 = scalar_lea.vmem [#allocation3], %s295
        // Predicated region
        $region70: #{generator_forward.50} parent=68 // pred_check
          %p297 = pneg %p56
        $region71: #{generator_forward.50} parent=68 // pred_check_branch
          %299 = sbr.rel (%p297) target = $region73
        $region72: #{generator_forward.50} parent=68 // pred_region
          _
        $region73: #{generator_forward.50} parent=68 // pred_fallthru
          _
        %s300 = sand.u32 %s43, 1
        %s301 = sand.u32 %s43, 1
        %s302 = smul.addr %s301, 64
        %s303 = scalar_lea.vmem [#allocation3], %s302
        %p304 = pneg %p56
        %p305 = pneg %p53
        %s306 = smul.u32 16, %s21
        %p307 = scmp.lt.s32.totalorder %s306, 79
        %s308 = scalar_select %p307, %s306, 79
        %p309 = scmp.lt.s32.totalorder %s20, 0
        %s310 = scalar_select %p309, %s20, 0
        %s311 = sadd.s32 %s310, %s308
        %s312 = smul.addr %s311, 4
        %s313 = scalar_lea.vmem %s1, %s312
        %p314 = pneg %p84
        %p315 = pneg %p81
        %p316 = scmp.lt.s32.totalorder %s20, 0
        %s317 = scalar_select %p316, %s20, 0
        %s318 = scalar_lea.vmem %s2, %s317
        %p319 = pneg %p110
        %p320 = pneg %p107
        %p321 = pneg %p138
        %p322 = pneg %p135
        %s323 = smul.u32 16, %s19
        %p324 = scmp.lt.s32.totalorder %s323, 15
        %s325 = scalar_select %p324, %s323, 15
        %p326 = scmp.lt.s32.totalorder %s20, 0
        %s327 = scalar_select %p326, %s20, 0
        %s328 = sadd.s32 %s327, %s325
        %s329 = smul.addr %s328, 8
        %s330 = scalar_lea.vmem %s3, %s329
        %s331 = smul.u32 16, %s19
        %s332 = smul.u32 16, %s21
        %p333 = scmp.lt.s32.totalorder %s332, 79
        %s334 = scalar_select %p333, %s332, 79
        %p335 = scmp.lt.s32.totalorder %s20, 0
        %s336 = scalar_select %p335, %s20, 0
        %s337 = sadd.s32 %s336, %s334
        %s338 = smul.addr %s337, 4
        %s339 = scalar_lea.vmem %s1, %s338
        %s340 = smul.u32 16, %s21
        %p341 = scmp.lt.s32.totalorder %s20, 0
        %s342 = scalar_select %p341, %s20, 0
        %s343 = scalar_lea.vmem %s2, %s342
        %s344 = smul.u32 16, %s19
        %p345 = scmp.lt.s32.totalorder %s344, 15
        %s346 = scalar_select %p345, %s344, 15
        %p347 = scmp.lt.s32.totalorder %s20, 0
        %s348 = scalar_select %p347, %s20, 0
        %s349 = sadd.s32 %s348, %s346
        %s350 = smul.addr %s349, 8
        %s351 = scalar_lea.vmem %s3, %s350
        %s352 = smul.u32 16, %s19
        %p354 = scmp.eq.s32.totalorder %s21, 0
        // Predicated region
        $region74: #{generator_forward.50} parent=68 // pred_check
          %p355 = pneg %p354
        $region75: #{generator_forward.50} parent=68 // pred_check_branch
          %357 = sbr.rel (%p355) target = $region77
        $region76: #{generator_forward.50} parent=68 // pred_region
          %358 = vst [vmem:[#allocation2] sm:$0xff] 0.0
          %359 = vst [vmem:[#allocation2 + $0x8] sm:$0xff] 0.0
          %360 = vst [vmem:[#allocation2 + $0x10] sm:$0xff] 0.0
          %361 = vst [vmem:[#allocation2 + $0x18] sm:$0xff] 0.0
          %362 = vst [vmem:[#allocation2 + $0x20] sm:$0xff] 0.0
          %363 = vst [vmem:[#allocation2 + $0x28] sm:$0xff] 0.0
          %364 = vst [vmem:[#allocation2 + $0x30] sm:$0xff] 0.0
          %365 = vst [vmem:[#allocation2 + $0x38] sm:$0xff] 0.0
          %366 = vst [vmem:[#allocation2 + $0x40] sm:$0xff] 0.0
          %367 = vst [vmem:[#allocation2 + $0x48] sm:$0xff] 0.0
          %368 = vst [vmem:[#allocation2 + $0x50] sm:$0xff] 0.0
          %369 = vst [vmem:[#allocation2 + $0x58] sm:$0xff] 0.0
          %370 = vst [vmem:[#allocation2 + $0x60] sm:$0xff] 0.0
          %371 = vst [vmem:[#allocation2 + $0x68] sm:$0xff] 0.0
          %372 = vst [vmem:[#allocation2 + $0x70] sm:$0xff] 0.0
          %373 = vst [vmem:[#allocation2 + $0x78] sm:$0xff] 0.0
        $region77: #{generator_forward.50} parent=68 // pred_fallthru
          _
        %v374 = vld [vmem:[#allocation2] sm:$0xff]
        %v375 = vld [vmem:[#allocation2 + $0x8] sm:$0xff]
        %v376 = vld [vmem:[#allocation2 + $0x10] sm:$0xff]
        %v377 = vld [vmem:[#allocation2 + $0x18] sm:$0xff]
        %v378 = vld [vmem:[#allocation2 + $0x20] sm:$0xff]
        %v379 = vld [vmem:[#allocation2 + $0x28] sm:$0xff]
        %v380 = vld [vmem:[#allocation2 + $0x30] sm:$0xff]
        %v381 = vld [vmem:[#allocation2 + $0x38] sm:$0xff]
        %v382 = vld [vmem:[#allocation2 + $0x40] sm:$0xff]
        %v383 = vld [vmem:[#allocation2 + $0x48] sm:$0xff]
        %v384 = vld [vmem:[#allocation2 + $0x50] sm:$0xff]
        %v385 = vld [vmem:[#allocation2 + $0x58] sm:$0xff]
        %v386 = vld [vmem:[#allocation2 + $0x60] sm:$0xff]
        %v387 = vld [vmem:[#allocation2 + $0x68] sm:$0xff]
        %v388 = vld [vmem:[#allocation2 + $0x70] sm:$0xff]
        %v389 = vld [vmem:[#allocation2 + $0x78] sm:$0xff]
        %v390 = vld [vmem:[%s296] sm:$0xf]
        %v391 = vld [vmem:[%s296 + $0x4] sm:$0xf]
        %v392 = vld [vmem:[%s296 + $0x8] sm:$0xf]
        %v393 = vld [vmem:[%s296 + $0xc] sm:$0xf]
        %v394 = vld [vmem:[%s296 + $0x10] sm:$0xf]
        %v395 = vld [vmem:[%s296 + $0x14] sm:$0xf]
        %v396 = vld [vmem:[%s296 + $0x18] sm:$0xf]
        %v397 = vld [vmem:[%s296 + $0x1c] sm:$0xf]
        %v398 = vld [vmem:[%s296 + $0x20] sm:$0xf]
        %v399 = vld [vmem:[%s296 + $0x24] sm:$0xf]
        %v400 = vld [vmem:[%s296 + $0x28] sm:$0xf]
        %v401 = vld [vmem:[%s296 + $0x2c] sm:$0xf]
        %v402 = vld [vmem:[%s296 + $0x30] sm:$0xf]
        %v403 = vld [vmem:[%s296 + $0x34] sm:$0xf]
        %v404 = vld [vmem:[%s296 + $0x38] sm:$0xf]
        %v405 = vld [vmem:[%s296 + $0x3c] sm:$0xf]
        %v406 = vld [vmem:[%s339] sm:$0xf]
        %v407 = vld [vmem:[%s339 + $0x4] sm:$0xf]
        %v408 = vld [vmem:[%s339 + $0x8] sm:$0xf]
        %v409 = vld [vmem:[%s339 + $0xc] sm:$0xf]
        %v410 = vld [vmem:[%s339 + $0x10] sm:$0xf]
        %v411 = vld [vmem:[%s339 + $0x14] sm:$0xf]
        %v412 = vld [vmem:[%s339 + $0x18] sm:$0xf]
        %v413 = vld [vmem:[%s339 + $0x1c] sm:$0xf]
        %v414 = vld [vmem:[%s339 + $0x20] sm:$0xf]
        %v415 = vld [vmem:[%s339 + $0x24] sm:$0xf]
        %v416 = vld [vmem:[%s339 + $0x28] sm:$0xf]
        %v417 = vld [vmem:[%s339 + $0x2c] sm:$0xf]
        %v418 = vld [vmem:[%s339 + $0x30] sm:$0xf]
        %v419 = vld [vmem:[%s339 + $0x34] sm:$0xf]
        %v420 = vld [vmem:[%s339 + $0x38] sm:$0xf]
        %v421 = vld [vmem:[%s339 + $0x3c] sm:$0xf]
        %v438 = vunpack.c.l.b16 %v390
        %v439 = vunpack.c.l.b16 %v391
        %v440 = vunpack.c.l.b16 %v392
        %v441 = vunpack.c.l.b16 %v393
        %v442 = vunpack.c.l.b16 %v394
        %v443 = vunpack.c.l.b16 %v395
        %v444 = vunpack.c.l.b16 %v396
        %v445 = vunpack.c.l.b16 %v397
        %v446 = vunpack.c.l.b16 %v398
        %v447 = vunpack.c.l.b16 %v399
        %v448 = vunpack.c.l.b16 %v400
        %v449 = vunpack.c.l.b16 %v401
        %v450 = vunpack.c.l.b16 %v402
        %v451 = vunpack.c.l.b16 %v403
        %v452 = vunpack.c.l.b16 %v404
        %v453 = vunpack.c.l.b16 %v405
        %v454 = vpack.c.b16 %v439, %v438
        %v455 = vpack.c.b16 %v441, %v440
        %v456 = vpack.c.b16 %v443, %v442
        %v457 = vpack.c.b16 %v445, %v444
        %v458 = vpack.c.b16 %v447, %v446
        %v459 = vpack.c.b16 %v449, %v448
        %v460 = vpack.c.b16 %v451, %v450
        %v461 = vpack.c.b16 %v453, %v452
        %v486 = vunpack.c.l.b16 %v406
        %v487 = vunpack.c.l.b16 %v407
        %v488 = vunpack.c.l.b16 %v408
        %v489 = vunpack.c.l.b16 %v409
        %v490 = vunpack.c.l.b16 %v410
        %v491 = vunpack.c.l.b16 %v411
        %v492 = vunpack.c.l.b16 %v412
        %v493 = vunpack.c.l.b16 %v413
        %v494 = vunpack.c.l.b16 %v414
        %v495 = vunpack.c.l.b16 %v415
        %v496 = vunpack.c.l.b16 %v416
        %v497 = vunpack.c.l.b16 %v417
        %v498 = vunpack.c.l.b16 %v418
        %v499 = vunpack.c.l.b16 %v419
        %v500 = vunpack.c.l.b16 %v420
        %v501 = vunpack.c.l.b16 %v421
        %v502 = vpack.c.b16 %v487, %v486
        %v503 = vpack.c.b16 %v489, %v488
        %v504 = vpack.c.b16 %v491, %v490
        %v505 = vpack.c.b16 %v493, %v492
        %v506 = vpack.c.b16 %v495, %v494
        %v507 = vpack.c.b16 %v497, %v496
        %v508 = vpack.c.b16 %v499, %v498
        %v509 = vpack.c.b16 %v501, %v500
        %518 = vmatprep.subr.bf16.mxu0 0
        %519 = vmatpush1.bf16.msra.mxu0 %v502
        %520 = vmatprep.subr.bf16.mxu0 0
        %521 = vmatpush1.bf16.msra.mxu0 %v503
        %522 = vmatprep.subr.bf16.mxu0 0
        %523 = vmatpush1.bf16.msra.mxu0 %v504
        %524 = vmatprep.subr.bf16.mxu0 0
        %525 = vmatpush1.bf16.msra.mxu0 %v505
        %526 = vmatprep.subr.bf16.mxu0 0
        %527 = vmatpush1.bf16.msra.mxu0 %v506
        %528 = vmatprep.subr.bf16.mxu0 0
        %529 = vmatpush1.bf16.msra.mxu0 %v507
        %530 = vmatprep.subr.bf16.mxu0 0
        %531 = vmatpush1.bf16.msra.mxu0 %v508
        %532 = vmatprep.subr.bf16.mxu0 0
        %533 = vmatpush1.bf16.msra.mxu0 %v509
        %534 = vmatprep.subr.bf16.mxu0 0
        %535 = vmatpush1.bf16.msra.mxu0 0
        %536 = vmatprep.subr.bf16.mxu0 0
        %537 = vmatpush1.bf16.msra.mxu0 0
        %538 = vmatprep.subr.bf16.mxu0 0
        %539 = vmatpush1.bf16.msra.mxu0 0
        %540 = vmatprep.subr.bf16.mxu0 0
        %541 = vmatpush1.bf16.msra.mxu0 0
        %542 = vmatprep.subr.bf16.mxu0 0
        %543 = vmatpush1.bf16.msra.mxu0 0
        %544 = vmatprep.subr.bf16.mxu0 0
        %545 = vmatpush1.bf16.msra.mxu0 0
        %546 = vmatprep.subr.bf16.mxu0 0
        %547 = vmatpush1.bf16.msra.mxu0 0
        %548 = vmatprep.subr.bf16.mxu0 0
        %549 = vmatpush1.bf16.msra.mxu0 0
        %550 = vmatprep.mubr.bf16.mxu0 0
        %551 = vmatmul.mubr.bf16.gmra.mrb[0].mxu0 %v454
        %v552 = vpop.f32.mrb[0].mxu0
        %v553 = vadd.f32 0.0, %v552
        %v554 = vpop.f32.mrb[0].mxu0
        %v555 = vpop.f32.mrb[0].mxu0
        %v556 = vadd.f32 0.0, %v555
        %v557 = vpop.f32.mrb[0].mxu0
        %558 = vmatprep.mubr.bf16.mxu0 0
        %559 = vmatmul.mubr.bf16.gmra.mrb[0].mxu0 %v455
        %v560 = vpop.f32.mrb[0].mxu0
        %v561 = vadd.f32 0.0, %v560
        %v562 = vpop.f32.mrb[0].mxu0
        %v563 = vpop.f32.mrb[0].mxu0
        %v564 = vadd.f32 0.0, %v563
        %v565 = vpop.f32.mrb[0].mxu0
        %566 = vmatprep.mubr.bf16.mxu0 0
        %567 = vmatmul.mubr.bf16.gmra.mrb[0].mxu0 %v456
        %v568 = vpop.f32.mrb[0].mxu0
        %v569 = vadd.f32 0.0, %v568
        %v570 = vpop.f32.mrb[0].mxu0
        %v571 = vpop.f32.mrb[0].mxu0
        %v572 = vadd.f32 0.0, %v571
        %v573 = vpop.f32.mrb[0].mxu0
        %574 = vmatprep.mubr.bf16.mxu0 0
        %575 = vmatmul.mubr.bf16.gmra.mrb[0].mxu0 %v457
        %v576 = vpop.f32.mrb[0].mxu0
        %v577 = vadd.f32 0.0, %v576
        %v578 = vpop.f32.mrb[0].mxu0
        %v579 = vpop.f32.mrb[0].mxu0
        %v580 = vadd.f32 0.0, %v579
        %v581 = vpop.f32.mrb[0].mxu0
        %582 = vmatprep.mubr.bf16.mxu0 0
        %583 = vmatmul.mubr.bf16.gmra.mrb[0].mxu0 %v458
        %v584 = vpop.f32.mrb[0].mxu0
        %v585 = vadd.f32 0.0, %v584
        %v586 = vpop.f32.mrb[0].mxu0
        %v587 = vpop.f32.mrb[0].mxu0
        %v588 = vadd.f32 0.0, %v587
        %v589 = vpop.f32.mrb[0].mxu0
        %590 = vmatprep.mubr.bf16.mxu0 0
        %591 = vmatmul.mubr.bf16.gmra.mrb[0].mxu0 %v459
        %v592 = vpop.f32.mrb[0].mxu0
        %v593 = vadd.f32 0.0, %v592
        %v594 = vpop.f32.mrb[0].mxu0
        %v595 = vpop.f32.mrb[0].mxu0
        %v596 = vadd.f32 0.0, %v595
        %v597 = vpop.f32.mrb[0].mxu0
        %598 = vmatprep.mubr.bf16.mxu0 0
        %599 = vmatmul.mubr.bf16.gmra.mrb[0].mxu0 %v460
        %v600 = vpop.f32.mrb[0].mxu0
        %v601 = vadd.f32 0.0, %v600
        %v602 = vpop.f32.mrb[0].mxu0
        %v603 = vpop.f32.mrb[0].mxu0
        %v604 = vadd.f32 0.0, %v603
        %v605 = vpop.f32.mrb[0].mxu0
        %606 = vmatprep.mubr.bf16.mxu0 0
        %607 = vmatmul.mubr.bf16.gmra.mrb[0].mxu0 %v461
        %v608 = vpop.f32.mrb[0].mxu0
        %v609 = vadd.f32 0.0, %v608
        %v610 = vpop.f32.mrb[0].mxu0
        %v611 = vpop.f32.mrb[0].mxu0
        %v612 = vadd.f32 0.0, %v611
        %v613 = vpop.f32.mrb[0].mxu0
        %614 = vdwg.mxu0
        %v615 = vadd.f32 %v374, %v553
        %v616 = vadd.f32 %v375, %v556
        %v617 = vadd.f32 %v376, %v561
        %v618 = vadd.f32 %v377, %v564
        %v619 = vadd.f32 %v378, %v569
        %v620 = vadd.f32 %v379, %v572
        %v621 = vadd.f32 %v380, %v577
        %v622 = vadd.f32 %v381, %v580
        %v623 = vadd.f32 %v382, %v585
        %v624 = vadd.f32 %v383, %v588
        %v625 = vadd.f32 %v384, %v593
        %v626 = vadd.f32 %v385, %v596
        %v627 = vadd.f32 %v386, %v601
        %v628 = vadd.f32 %v387, %v604
        %v629 = vadd.f32 %v388, %v609
        %v630 = vadd.f32 %v389, %v612
        %631 = vst [vmem:[#allocation2] sm:$0xff] %v615
        %632 = vst [vmem:[#allocation2 + $0x8] sm:$0xff] %v616
        %633 = vst [vmem:[#allocation2 + $0x10] sm:$0xff] %v617
        %634 = vst [vmem:[#allocation2 + $0x18] sm:$0xff] %v618
        %635 = vst [vmem:[#allocation2 + $0x20] sm:$0xff] %v619
        %636 = vst [vmem:[#allocation2 + $0x28] sm:$0xff] %v620
        %637 = vst [vmem:[#allocation2 + $0x30] sm:$0xff] %v621
        %638 = vst [vmem:[#allocation2 + $0x38] sm:$0xff] %v622
        %639 = vst [vmem:[#allocation2 + $0x40] sm:$0xff] %v623
        %640 = vst [vmem:[#allocation2 + $0x48] sm:$0xff] %v624
        %641 = vst [vmem:[#allocation2 + $0x50] sm:$0xff] %v625
        %642 = vst [vmem:[#allocation2 + $0x58] sm:$0xff] %v626
        %643 = vst [vmem:[#allocation2 + $0x60] sm:$0xff] %v627
        %644 = vst [vmem:[#allocation2 + $0x68] sm:$0xff] %v628
        %645 = vst [vmem:[#allocation2 + $0x70] sm:$0xff] %v629
        %646 = vst [vmem:[#allocation2 + $0x78] sm:$0xff] %v630
        %p647 = scmp.eq.s32.totalorder %s21, 4
        // Predicated region
        $region78: #{generator_forward.50} parent=68 // pred_check
          %p648 = pneg %p647
        $region79: #{generator_forward.50} parent=68 // pred_check_branch
          %650 = sbr.rel (%p648) target = $region81
        $region80: #{generator_forward.50} parent=68 // pred_region
          %v651 = vld [vmem:[#allocation2] sm:$0xff]
          %v652 = vld [vmem:[#allocation2 + $0x8] sm:$0xff]
          %v653 = vld [vmem:[#allocation2 + $0x10] sm:$0xff]
          %v654 = vld [vmem:[#allocation2 + $0x18] sm:$0xff]
          %v655 = vld [vmem:[#allocation2 + $0x20] sm:$0xff]
          %v656 = vld [vmem:[#allocation2 + $0x28] sm:$0xff]
          %v657 = vld [vmem:[#allocation2 + $0x30] sm:$0xff]
          %v658 = vld [vmem:[#allocation2 + $0x38] sm:$0xff]
          %v659 = vld [vmem:[#allocation2 + $0x40] sm:$0xff]
          %v660 = vld [vmem:[#allocation2 + $0x48] sm:$0xff]
          %v661 = vld [vmem:[#allocation2 + $0x50] sm:$0xff]
          %v662 = vld [vmem:[#allocation2 + $0x58] sm:$0xff]
          %v663 = vld [vmem:[#allocation2 + $0x60] sm:$0xff]
          %v664 = vld [vmem:[#allocation2 + $0x68] sm:$0xff]
          %v665 = vld [vmem:[#allocation2 + $0x70] sm:$0xff]
          %v666 = vld [vmem:[#allocation2 + $0x78] sm:$0xff]
          %v667 = vld [vmem:[%s343] sm:$0x1]
          %v669 = vlaneseq
          %v670 = vshrl.u32 %v669, 7
          %v671 = vsub.s32 0, %v670
          %v672 = vrot.slane %v667, %v671
          %v674 = vadd.f32 %v651, %v672
          %v675 = vadd.f32 %v652, %v672
          %v676 = vadd.f32 %v653, %v672
          %v677 = vadd.f32 %v654, %v672
          %v678 = vadd.f32 %v655, %v672
          %v679 = vadd.f32 %v656, %v672
          %v680 = vadd.f32 %v657, %v672
          %v681 = vadd.f32 %v658, %v672
          %v682 = vadd.f32 %v659, %v672
          %v683 = vadd.f32 %v660, %v672
          %v684 = vadd.f32 %v661, %v672
          %v685 = vadd.f32 %v662, %v672
          %v686 = vadd.f32 %v663, %v672
          %v687 = vadd.f32 %v664, %v672
          %v688 = vadd.f32 %v665, %v672
          %v689 = vadd.f32 %v666, %v672
          %690 = vst [vmem:[%s351] sm:$0xff] %v674
          %691 = vst [vmem:[%s351 + $0x8] sm:$0xff] %v675
          %692 = vst [vmem:[%s351 + $0x10] sm:$0xff] %v676
          %693 = vst [vmem:[%s351 + $0x18] sm:$0xff] %v677
          %694 = vst [vmem:[%s351 + $0x20] sm:$0xff] %v678
          %695 = vst [vmem:[%s351 + $0x28] sm:$0xff] %v679
          %696 = vst [vmem:[%s351 + $0x30] sm:$0xff] %v680
          %697 = vst [vmem:[%s351 + $0x38] sm:$0xff] %v681
          %698 = vst [vmem:[%s351 + $0x40] sm:$0xff] %v682
          %699 = vst [vmem:[%s351 + $0x48] sm:$0xff] %v683
          %700 = vst [vmem:[%s351 + $0x50] sm:$0xff] %v684
          %701 = vst [vmem:[%s351 + $0x58] sm:$0xff] %v685
          %702 = vst [vmem:[%s351 + $0x60] sm:$0xff] %v686
          %703 = vst [vmem:[%s351 + $0x68] sm:$0xff] %v687
          %704 = vst [vmem:[%s351 + $0x70] sm:$0xff] %v688
          %705 = vst [vmem:[%s351 + $0x78] sm:$0xff] %v689
        $region81: #{generator_forward.50} parent=68 // pred_fallthru
          _
        %s706 = smul.u32 16, %s19
        %p707 = scmp.lt.s32.totalorder %s706, 15
        %s708 = scalar_select %p707, %s706, 15
        %p709 = scmp.lt.s32.totalorder %s20, 0
        %s710 = scalar_select %p709, %s20, 0
        %s711 = sadd.s32 %s710, %s708
        %s712 = smul.addr %s711, 8
        %s713 = scalar_lea.vmem %s3, %s712
        // Predicated region
        $region82: #{generator_forward.50} parent=68 // pred_check
          %p714 = pneg %p135
        $region83: #{generator_forward.50} parent=68 // pred_check_branch
          %716 = sbr.rel (%p714) target = $region85
        $region84: #{generator_forward.50} parent=68 // pred_region
          %s717 = smul.u32 16, %s19
        $region85: #{generator_forward.50} parent=68 // pred_fallthru
          _
        // Predicated region
        $region86: #{generator_forward.50} parent=68 // pred_check
          %p718 = pneg %p135
        $region87: #{generator_forward.50} parent=68 // pred_check_branch
          %720 = sbr.rel (%p718) target = $region89
        $region88: #{generator_forward.50} parent=68 // pred_region
          %s721 = smul.u32 16, %s19
          %p722 = scmp.lt.s32.totalorder %s721, 15
          %s723 = scalar_select %p722, %s721, 15
          %p724 = scmp.lt.s32.totalorder %s20, 0
          %s725 = scalar_select %p724, %s20, 0
          %s726 = sadd.s32 %s725, %s723
          %s727 = smul.addr %s726, 8
          %s728 = scalar_lea.vmem %s3, %s727
        $region89: #{generator_forward.50} parent=68 // pred_fallthru
          _
      $region69: #{generator_forward.50} parent=5 // pred_fallthru
        _
      %p729 = scmp.le.s32.totalorder 2, %s9
      // Predicated region
      $region90: #{generator_forward.50} parent=5 // pred_check
        %p730 = pneg %p729
      $region91: #{generator_forward.50} parent=5 // pred_check_branch
        %732 = sbr.rel (%p730) target = $region93
      $region92: #{generator_forward.50} parent=5 // pred_region
        %s733 = ssub.s32 %s9, 2
      $region93: #{generator_forward.50} parent=5 // pred_fallthru
        _
    $region6: #{generator_forward.50} parent=1 // loop_footer
      %s13 = sadd.s32 1, %s9
    $region7: #{generator_forward.50} parent=1 // loop_footer_branch
      %8 = sbr.rel target = $region3
    $region8: #{generator_forward.50} parent=1 // loop_exit
      _

// kernel: generator_forward.53
$region0: #{generator_forward.53}
  #allocation0 [shape = 'u32[]', space=smem, size = 0x4, offset = 0x4, fixed_abs, tag = 'smem constant byte address 0x4 - core index']
  #allocation1 [shape = 'u32[144,128]{1,0:T(1,128)}', space=vmem, size = 0x12000, scoped, tag = 'internal scratch']
  %s0 = inlined_call_operand.vmem [shape: f32[2,16,256], index: 0, kind: input, shape index: {}]
  %s1 = inlined_call_operand.vmem [shape: f32[2,16,256], index: 1, kind: output, shape index: {}]
  %s2 = sld [smem:[#allocation0]]
  $region109: #{generator_forward.53} parent=0
    _
  %s4 = ssub.s32 1, %s2
  %s5 = scalar_select 0, %s4, %s2
  $region1: #{generator_forward.53} parent=0
    #allocation2 [shape = 'u8[16384]{0}', space=vmem, size = 0x4000, scoped, tag = 'input window, operand 0']
    #allocation3 [shape = 'u8[16384]{0}', space=vmem, size = 0x4000, scoped, tag = 'output window, operand 0']
    loop: start=0, step=1, limit=6
    $region2: #{generator_forward.53} parent=1 // loop_pre_header
      _
    $region3: #{generator_forward.53} parent=1 // loop_header
      %s7 = sphi 0, %s11
      %p8 = scmp.ge.s32.totalorder %s7, 6
      %s14 = sphi 0, %s26
      %s15 = sphi 0, %s22
      %s16 = sphi 0, %s14
      %s17 = sphi 0, %s15
      %s18 = sphi 0, %s16
      %s19 = sphi 0, %s17
      %s31 = sphi 0, %s33
      %s34 = sphi 0, %s31
      %s35 = sphi 0, %s34
      %s51 = sphi 0, %s35
      %s59 = sphi 0, %s61
      %s62 = sphi 0, %s59
      %s63 = sphi 0, %s62
      %s79 = sphi 0, %s63
    $region4: #{generator_forward.53} parent=1 // loop_header_branch
      %10 = sbr.rel (%p8) target = $region8
    $region5: #{generator_forward.53} parent=1 // loop_body
      %s12 = ssub.s32 %s7, 1
      %s13 = ssub.s32 %s7, 2
      %s20 = sadd.s32 1, %s15
      %p21 = scmp.ge.s32.totalorder %s20, 2
      %s22 = scalar_select %p21, 0, %s20
      %s23 = sadd.s32 1, %s14
      %s24 = scalar_select %p21, %s23, %s14
      %p25 = scmp.ge.s32.totalorder %s24, 2
      %s26 = scalar_select %p25, 0, %s24
      %s27 = ssub.s32 %s14, %s26
      %s28 = ssub.s32 %s15, %s22
      %s29 = sor.u32 %s27, %s28
      %p30 = scmp.eq.s32.totalorder %s29, 0
      %s32 = sadd.s32 %s31, 1
      %s33 = scalar_select %p30, %s31, %s32
      %p36 = pneg %p30
      %p37 = scmp.eq.s32.totalorder %s7, 3
      %p38 = por %p36, %p37
      %p39 = scmp.ne.s32.totalorder %s31, %s34
      %p40 = scmp.eq.s32.totalorder %s7, 0
      %p41 = por %p39, %p40
      %p42 = scmp.ne.s32.totalorder %s31, %s34
      %p43 = scmp.eq.s32.totalorder %s12, 3
      %p44 = por %p42, %p43
      %p45 = scmp.ne.s32.totalorder %s34, %s35
      %p46 = scmp.eq.s32.totalorder %s12, 0
      %p47 = por %p45, %p46
      %p48 = scmp.ne.s32.totalorder %s34, %s35
      %p49 = scmp.eq.s32.totalorder %s13, 3
      %p50 = por %p48, %p49
      %p52 = scmp.ne.s32.totalorder %s35, %s51
      %p53 = scmp.eq.s32.totalorder %s13, 0
      %p54 = por %p52, %p53
      %s55 = ssub.s32 %s14, %s26
      %s56 = ssub.s32 %s15, %s22
      %s57 = sor.u32 %s55, %s56
      %p58 = scmp.eq.s32.totalorder %s57, 0
      %s60 = sadd.s32 %s59, 1
      %s61 = scalar_select %p58, %s59, %s60
      %p64 = pneg %p58
      %p65 = scmp.eq.s32.totalorder %s7, 3
      %p66 = por %p64, %p65
      %p67 = scmp.ne.s32.totalorder %s59, %s62
      %p68 = scmp.eq.s32.totalorder %s7, 0
      %p69 = por %p67, %p68
      %p70 = scmp.ne.s32.totalorder %s59, %s62
      %p71 = scmp.eq.s32.totalorder %s12, 3
      %p72 = por %p70, %p71
      %p73 = scmp.ne.s32.totalorder %s62, %s63
      %p74 = scmp.eq.s32.totalorder %s12, 0
      %p75 = por %p73, %p74
      %p76 = scmp.ne.s32.totalorder %s62, %s63
      %p77 = scmp.eq.s32.totalorder %s13, 3
      %p78 = por %p76, %p77
      %p80 = scmp.ne.s32.totalorder %s63, %s79
      %p81 = scmp.eq.s32.totalorder %s13, 0
      %p82 = por %p80, %p81
      %p83 = scmp.le.s32.totalorder 1, %s7
      %p84 = scmp.lt.s32.totalorder %s7, 5
      %p85 = pnand %p83, %p84
      %p86 = pneg %p85
      // Predicated region
      $region9: #{generator_forward.53} parent=5 // pred_check
        _
      $region10: #{generator_forward.53} parent=5 // pred_check_branch
        %88 = sbr.rel (%p85) target = $region12
      $region11: #{generator_forward.53} parent=5 // pred_region
        %s89 = ssub.s32 %s7, 1
      $region12: #{generator_forward.53} parent=5 // pred_fallthru
        _
      %p90 = scmp.lt.s32.totalorder %s7, 4
      // Predicated region
      $region13: #{generator_forward.53} parent=5 // pred_check
        %p91 = pneg %p90
      $region14: #{generator_forward.53} parent=5 // pred_check_branch
        %93 = sbr.rel (%p91) target = $region16
      $region15: #{generator_forward.53} parent=5 // pred_region
        // Predicated region
        $region17: #{generator_forward.53} parent=15 // pred_check
          %p94 = pneg %p41
        $region18: #{generator_forward.53} parent=15 // pred_check_branch
          %96 = sbr.rel (%p94) target = $region20
        $region19: #{generator_forward.53} parent=15 // pred_region
          %s97 = sand.u32 %s31, 1
          %s98 = sand.u32 %s31, 1
          %s99 = smul.addr %s98, 16
          %s100 = scalar_lea.vmem [#allocation2], %s99
          %s101 = smul.addr %s14, 4
          %s102 = sadd.s32 %s15, %s101
          %s103 = smul.addr %s102, 8
          %s104 = scalar_lea.vmem %s0, %s103
          // Predicated region
          $region21: #{generator_forward.53} parent=19 // pred_check
            _
          $region22: #{generator_forward.53} parent=19 // pred_check_branch
            %106 = sbr.rel (0) target = $region24
          $region23: #{generator_forward.53} parent=19 // pred_region
            // Predicated region
            $region25: #{generator_forward.53} parent=23 // pred_check
              _
            $region26: #{generator_forward.53} parent=23 // pred_check_branch
              %108 = sbr.rel (0) target = $region28
            $region27: #{generator_forward.53} parent=23 // pred_region
              // Predicated region
              $region40: #{generator_forward.53} parent=27 // pred_check
                _
              $region41: #{generator_forward.53} parent=27 // pred_check_branch
                %125 = sbr.rel (0) target = $region43
              $region42: #{generator_forward.53} parent=27 // pred_region
                loop: start=0, step=1, limit=1
                $region44: #{generator_forward.53} parent=42 // loop_pre_header
                  _
                $region45: #{generator_forward.53} parent=42 // loop_header
                  %s127 = sphi 0, %s131
                  %p128 = scmp.ge.s32.totalorder %s127, 1
                  %s132 = sphi %s104, %s104
                  %s133 = sphi %s100, %s100
                $region46: #{generator_forward.53} parent=42 // loop_header_branch
                  %130 = sbr.rel (%p128) target = $region50
                $region47: #{generator_forward.53} parent=42 // loop_body
                  %v134 = vld [vmem:[%s132] sm:$0xff]
                  %135 = vst [vmem:[%s133] sm:$0xff] %v134
                  %v136 = vld [vmem:[%s132 + $0x10] sm:$0xff]
                  %137 = vst [vmem:[%s133 + $0x8] sm:$0xff] %v136
                $region48: #{generator_forward.53} parent=42 // loop_footer
                  %s131 = sadd.s32 1, %s127
                $region49: #{generator_forward.53} parent=42 // loop_footer_branch
                  %126 = sbr.rel target = $region45
                $region50: #{generator_forward.53} parent=42 // loop_exit
                  _
              $region43: #{generator_forward.53} parent=27 // pred_fallthru
                _
              // Predicated region
              $region51: #{generator_forward.53} parent=27 // pred_check
                _
              $region52: #{generator_forward.53} parent=27 // pred_check_branch
                %139 = sbr.rel target = $region54
              $region53: #{generator_forward.53} parent=27 // pred_region
                _
              $region54: #{generator_forward.53} parent=27 // pred_fallthru
                _
            $region28: #{generator_forward.53} parent=23 // pred_fallthru
              _
            // Predicated region
            $region29: #{generator_forward.53} parent=23 // pred_check
              _
            $region30: #{generator_forward.53} parent=23 // pred_check_branch
              %110 = sbr.rel target = $region32
            $region31: #{generator_forward.53} parent=23 // pred_region
              loop: start=0, step=1, limit=1
              $region33: #{generator_forward.53} parent=31 // loop_pre_header
                _
              $region34: #{generator_forward.53} parent=31 // loop_header
                %s113 = sphi 0, %s117
                %p114 = scmp.ge.s32.totalorder %s113, 1
                %s118 = sphi %s104, %s104
                %s119 = sphi %s100, %s100
              $region35: #{generator_forward.53} parent=31 // loop_header_branch
                %116 = sbr.rel (%p114) target = $region39
              $region36: #{generator_forward.53} parent=31 // loop_body
                %v120 = vld [vmem:[%s118] sm:$0xff]
                %121 = vst [vmem:[%s119] sm:$0xff] %v120
                %v122 = vld [vmem:[%s118 + $0x10] sm:$0xff]
                %123 = vst [vmem:[%s119 + $0x8] sm:$0xff] %v122
              $region37: #{generator_forward.53} parent=31 // loop_footer
                %s117 = sadd.s32 1, %s113
              $region38: #{generator_forward.53} parent=31 // loop_footer_branch
                %112 = sbr.rel target = $region34
              $region39: #{generator_forward.53} parent=31 // loop_exit
                _
            $region32: #{generator_forward.53} parent=23 // pred_fallthru
              _
          $region24: #{generator_forward.53} parent=19 // pred_fallthru
            _
          %140 = vnop
        $region20: #{generator_forward.53} parent=15 // pred_fallthru
          _
      $region16: #{generator_forward.53} parent=5 // pred_fallthru
        _
      %p141 = scmp.le.s32.totalorder 1, %s7
      %p142 = scmp.lt.s32.totalorder %s7, 5
      %p143 = pnand %p141, %p142
      %p144 = pneg %p143
      // Predicated region
      $region55: #{generator_forward.53} parent=5 // pred_check
        _
      $region56: #{generator_forward.53} parent=5 // pred_check_branch
        %146 = sbr.rel (%p143) target = $region58
      $region57: #{generator_forward.53} parent=5 // pred_region
        %s147 = ssub.s32 %s7, 1
        %s148 = sand.u32 %s34, 1
        %s149 = sand.u32 %s34, 1
        %s150 = smul.addr %s149, 16
        %s151 = scalar_lea.vmem [#allocation2], %s150
        // Predicated region
        $region59: #{generator_forward.53} parent=57 // pred_check
          %p152 = pneg %p47
        $region60: #{generator_forward.53} parent=57 // pred_check_branch
          %154 = sbr.rel (%p152) target = $region62
        $region61: #{generator_forward.53} parent=57 // pred_region
          _
        $region62: #{generator_forward.53} parent=57 // pred_fallthru
          _
        %s155 = sand.u32 %s34, 1
        %s156 = sand.u32 %s34, 1
        %s157 = smul.addr %s156, 16
        %s158 = scalar_lea.vmem [#allocation2], %s157
        %p159 = pneg %p47
        %p160 = pneg %p44
        %p161 = pneg %p75
        %p162 = pneg %p72
        %s163 = sand.u32 %s62, 1
        %s164 = sand.u32 %s62, 1
        %s165 = smul.addr %s164, 16
        %s166 = scalar_lea.vmem [#allocation3], %s165
        %v167 = vld [vmem:[%s151] sm:$0xff]
        %v168 = vld [vmem:[%s151 + $0x8] sm:$0xff]
        %v169 = vadd.f32 %v167, %v168
        %v170 = vrot.slane %v169, 4
        %v171 = vadd.f32 %v169, %v170
        %v172 = vrot.slane %v171, 2
        %v173 = vadd.f32 %v171, %v172
        %v174 = vrot.slane %v173, 1
        %v175 = vadd.f32 %v173, %v174
        %v176 = vrcp.pop 16.0
        %v177 = vmul.f32 %v175, %v176
        %v178 = vsub.f32 %v167, %v177
        %v179 = vsub.f32 %v168, %v177
        %v180 = vmul.f32 %v178, %v178
        %v181 = vmul.f32 %v179, %v179
        %v182 = vadd.f32 %v180, %v181
        %v183 = vrot.slane %v182, 4
        %v184 = vadd.f32 %v182, %v183
        %v185 = vrot.slane %v184, 2
        %v186 = vadd.f32 %v184, %v185
        %v187 = vrot.slane %v186, 1
        %v188 = vadd.f32 %v186, %v187
        %v189 = vmul.f32 %v188, %v176
        %v190 = vadd.f32 %v189, 1e-05
        %v191 = vrsqrt.pop %v190
        %v192 = vmul.f32 %v178, %v191
        %v193 = vmul.f32 %v179, %v191
        %v194 = vmax.f32 %v192, 0.0
        %v195 = vmax.f32 %v193, 0.0
        %196 = vst [vmem:[%s166] sm:$0xff] %v194
        %197 = vst [vmem:[%s166 + $0x8] sm:$0xff] %v195
        %s198 = sand.u32 %s62, 1
        %s199 = sand.u32 %s62, 1
        %s200 = smul.addr %s199, 16
        %s201 = scalar_lea.vmem [#allocation3], %s200
        // Predicated region
        $region63: #{generator_forward.53} parent=57 // pred_check
          %p202 = pneg %p72
        $region64: #{generator_forward.53} parent=57 // pred_check_branch
          %204 = sbr.rel (%p202) target = $region66
        $region65: #{generator_forward.53} parent=57 // pred_region
          %s205 = smul.addr %s16, 4
          %s206 = sadd.s32 %s17, %s205
          %s207 = smul.addr %s206, 8
          %s208 = scalar_lea.vmem %s1, %s207
          // Predicated region
          $region67: #{generator_forward.53} parent=65 // pred_check
            _
          $region68: #{generator_forward.53} parent=65 // pred_check_branch
            %210 = sbr.rel (0) target = $region70
          $region69: #{generator_forward.53} parent=65 // pred_region
            // Predicated region
            $region71: #{generator_forward.53} parent=69 // pred_check
              _
            $region72: #{generator_forward.53} parent=69 // pred_check_branch
              %212 = sbr.rel (0) target = $region74
            $region73: #{generator_forward.53} parent=69 // pred_region
              // Predicated region
              $region86: #{generator_forward.53} parent=73 // pred_check
                _
              $region87: #{generator_forward.53} parent=73 // pred_check_branch
                %229 = sbr.rel (0) target = $region89
              $region88: #{generator_forward.53} parent=73 // pred_region
                loop: start=0, step=1, limit=1
                $region90: #{generator_forward.53} parent=88 // loop_pre_header
                  _
                $region91: #{generator_forward.53} parent=88 // loop_header
                  %s231 = sphi 0, %s235
                  %p232 = scmp.ge.s32.totalorder %s231, 1
                  %s236 = sphi %s201, %s201
                  %s237 = sphi %s208, %s208
                $region92: #{generator_forward.53} parent=88 // loop_header_branch
                  %234 = sbr.rel (%p232) target = $region96
                $region93: #{generator_forward.53} parent=88 // loop_body
                  %v238 = vld [vmem:[%s236] sm:$0xff]
                  %239 = vst [vmem:[%s237] sm:$0xff] %v238
                  %v240 = vld [vmem:[%s236 + $0x8] sm:$0xff]
                  %241 = vst [vmem:[%s237 + $0x10] sm:$0xff] %v240
                $region94: #{generator_forward.53} parent=88 // loop_footer
                  %s235 = sadd.s32 1, %s231
                $region95: #{generator_forward.53} parent=88 // loop_footer_branch
                  %230 = sbr.rel target = $region91
                $region96: #{generator_forward.53} parent=88 // loop_exit
                  _
              $region89: #{generator_forward.53} parent=73 // pred_fallthru
                _
              // Predicated region
              $region97: #{generator_forward.53} parent=73 // pred_check
                _
              $region98: #{generator_forward.53} parent=73 // pred_check_branch
                %243 = sbr.rel target = $region100
              $region99: #{generator_forward.53} parent=73 // pred_region
                _
              $region100: #{generator_forward.53} parent=73 // pred_fallthru
                _
            $region74: #{generator_forward.53} parent=69 // pred_fallthru
              _
            // Predicated region
            $region75: #{generator_forward.53} parent=69 // pred_check
              _
            $region76: #{generator_forward.53} parent=69 // pred_check_branch
              %214 = sbr.rel target = $region78
            $region77: #{generator_forward.53} parent=69 // pred_region
              loop: start=0, step=1, limit=1
              $region79: #{generator_forward.53} parent=77 // loop_pre_header
                _
              $region80: #{generator_forward.53} parent=77 // loop_header
                %s217 = sphi 0, %s221
                %p218 = scmp.ge.s32.totalorder %s217, 1
                %s222 = sphi %s201, %s201
                %s223 = sphi %s208, %s208
              $region81: #{generator_forward.53} parent=77 // loop_header_branch
                %220 = sbr.rel (%p218) target = $region85
              $region82: #{generator_forward.53} parent=77 // loop_body
                %v224 = vld [vmem:[%s222] sm:$0xff]
                %225 = vst [vmem:[%s223] sm:$0xff] %v224
                %v226 = vld [vmem:[%s222 + $0x8] sm:$0xff]
                %227 = vst [vmem:[%s223 + $0x10] sm:$0xff] %v226
              $region83: #{generator_forward.53} parent=77 // loop_footer
                %s221 = sadd.s32 1, %s217
              $region84: #{generator_forward.53} parent=77 // loop_footer_branch
                %216 = sbr.rel target = $region80
              $region85: #{generator_forward.53} parent=77 // loop_exit
                _
            $region78: #{generator_forward.53} parent=69 // pred_fallthru
              _
          $region70: #{generator_forward.53} parent=65 // pred_fallthru
            _
          %244 = vnop
        $region66: #{generator_forward.53} parent=57 // pred_fallthru
          _
      $region58: #{generator_forward.53} parent=5 // pred_fallthru
        _
      %p245 = scmp.le.s32.totalorder 2, %s7
      // Predicated region
      $region101: #{generator_forward.53} parent=5 // pred_check
        %p246 = pneg %p245
      $region102: #{generator_forward.53} parent=5 // pred_check_branch
        %248 = sbr.rel (%p246) target = $region104
      $region103: #{generator_forward.53} parent=5 // pred_region
        %s249 = ssub.s32 %s7, 2
        // Predicated region
        $region105: #{generator_forward.53} parent=103 // pred_check
          %p250 = pneg %p78
        $region106: #{generator_forward.53} parent=103 // pred_check_branch
          %252 = sbr.rel (%p250) target = $region108
        $region107: #{generator_forward.53} parent=103 // pred_region
          %s253 = sand.u32 %s63, 1
          %s254 = sand.u32 %s63, 1
          %s255 = smul.addr %s254, 16
          %s256 = scalar_lea.vmem [#allocation3], %s255
        $region108: #{generator_forward.53} parent=103 // pred_fallthru
          _
      $region104: #{generator_forward.53} parent=5 // pred_fallthru
        _
    $region6: #{generator_forward.53} parent=1 // loop_footer
      %s11 = sadd.s32 1, %s7
    $region7: #{generator_forward.53} parent=1 // loop_footer_branch
      %6 = sbr.rel target = $region3
    $region8: #{generator_forward.53} parent=1 // loop_exit
      _

// kernel: generator_forward.52
$region0: #{generator_forward.52}
  #allocation0 [shape = 'u32[]', space=smem, size = 0x4, offset = 0x4, fixed_abs, tag = 'smem constant byte address 0x4 - core index']
  #allocation1 [shape = 'u32[144,128]{1,0:T(1,128)}', space=vmem, size = 0x12000, scoped, tag = 'internal scratch']
  #allocation2 [shape = 'f32[32,256]{1,0:T(8,128)}', space=vmem, size = 0x8000, scoped, tag = 'scratch operand']
  %s0 = inlined_call_operand.vmem [shape: bf16[32,1152], index: 0, kind: input, shape index: {}]
  %s1 = inlined_call_operand.vmem [shape: bf16[1152,256], index: 1, kind: input, shape index: {}]
  %s2 = inlined_call_operand.vmem [shape: f32[1,256], index: 2, kind: input, shape index: {}]
  %s3 = inlined_call_operand.vmem [shape: f32[32,256], index: 3, kind: output, shape index: {}]
  %s4 = sld [smem:[#allocation0]]
  $region79: #{generator_forward.52} parent=0
    _
  %s6 = ssub.s32 1, %s4
  %s7 = scalar_select 0, %s6, %s4
  $region1: #{generator_forward.52} parent=0
    #allocation3 [shape = 'u8[49152]{0}', space=vmem, size = 0xc000, scoped, tag = 'input window, operand 0']
    loop: start=0, step=1, limit=5
    $region2: #{generator_forward.52} parent=1 // loop_pre_header
      _
    $region3: #{generator_forward.52} parent=1 // loop_header
      %s9 = sphi 0, %s13
      %p10 = scmp.ge.s32.totalorder %s9, 5
      %s16 = sphi 0, %s35
      %s17 = sphi 0, %s31
      %s18 = sphi 0, %s27
      %s19 = sphi 0, %s16
      %s20 = sphi 0, %s17
      %s21 = sphi 0, %s18
      %s22 = sphi 0, %s19
      %s23 = sphi 0, %s20
      %s24 = sphi 0, %s21
      %s40 = sphi 0, %s42
      %s43 = sphi 0, %s40
      %s44 = sphi 0, %s43
      %s60 = sphi 0, %s44
      %s68 = sphi 0, %s70
      %s71 = sphi 0, %s68
      %s72 = sphi 0, %s71
      %s88 = sphi 0, %s72
      %s94 = sphi 0, %s96
      %s97 = sphi 0, %s94
      %s98 = sphi 0, %s97
      %s114 = sphi 0, %s98
      %s122 = sphi 0, %s124
      %s125 = sphi 0, %s122
      %s126 = sphi 0, %s125
      %s142 = sphi 0, %s126
    $region4: #{generator_forward.52} parent=1 // loop_header_branch
      %12 = sbr.rel (%p10) target = $region8
    $region5: #{generator_forward.52} parent=1 // loop_body
      %s14 = ssub.s32 %s9, 1
      %s15 = ssub.s32 %s9, 2
      %s25 = sadd.s32 1, %s18
      %p26 = scmp.ge.s32.totalorder %s25, 3
      %s27 = scalar_select %p26, 0, %s25
      %s28 = sadd.s32 1, %s17
      %s29 = scalar_select %p26, %s28, %s17
      %p30 = scmp.ge.s32.totalorder %s29, 1
      %s31 = scalar_select %p30, 0, %s29
      %s32 = sadd.s32 1, %s16
      %s33 = scalar_select %p30, %s32, %s16
      %p34 = scmp.ge.s32.totalorder %s33, 1
      %s35 = scalar_select %p34, 0, %s33
      %s36 = ssub.s32 %s16, %s35
      %s37 = ssub.s32 %s18, %s27
      %s38 = sor.u32 %s36, %s37
      %p39 = scmp.eq.s32.totalorder %s38, 0
      %s41 = sadd.s32 %s40, 1
      %s42 = scalar_select %p39, %s40, %s41
      %p45 = pneg %p39
      %p46 = scmp.eq.s32.totalorder %s9, 2
      %p47 = por %p45, %p46
      %p48 = scmp.ne.s32.totalorder %s40, %s43
      %p49 = scmp.eq.s32.totalorder %s9, 0
      %p50 = por %p48, %p49
      %p51 = scmp.ne.s32.totalorder %s40, %s43
      %p52 = scmp.eq.s32.totalorder %s14, 2
      %p53 = por %p51, %p52
      %p54 = scmp.ne.s32.totalorder %s43, %s44
      %p55 = scmp.eq.s32.totalorder %s14, 0
      %p56 = por %p54, %p55
      %p57 = scmp.ne.s32.totalorder %s43, %s44
      %p58 = scmp.eq.s32.totalorder %s15, 2
      %p59 = por %p57, %p58
      %p61 = scmp.ne.s32.totalorder %s44, %s60
      %p62 = scmp.eq.s32.totalorder %s15, 0
      %p63 = por %p61, %p62
      %s64 = ssub.s32 %s18, %s27
      %s65 = ssub.s32 %s17, %s31
      %s66 = sor.u32 %s64, %s65
      %p67 = scmp.eq.s32.totalorder %s66, 0
      %s69 = sadd.s32 %s68, 1
      %s70 = scalar_select %p67, %s68, %s69
      %p73 = pneg %p67
      %p74 = scmp.eq.s32.totalorder %s9, 2
      %p75 = por %p73, %p74
      %p76 = scmp.ne.s32.totalorder %s68, %s71
      %p77 = scmp.eq.s32.totalorder %s9, 0
      %p78 = por %p76, %p77
      %p79 = scmp.ne.s32.totalorder %s68, %s71
      %p80 = scmp.eq.s32.totalorder %s14, 2
      %p81 = por %p79, %p80
      %p82 = scmp.ne.s32.totalorder %s71, %s72
      %p83 = scmp.eq.s32.totalorder %s14, 0
      %p84 = por %p82, %p83
      %p85 = scmp.ne.s32.totalorder %s71, %s72
      %p86 = scmp.eq.s32.totalorder %s15, 2
      %p87 = por %p85, %p86
      %p89 = scmp.ne.s32.totalorder %s72, %s88
      %p90 = scmp.eq.s32.totalorder %s15, 0
      %p91 = por %p89, %p90
      %s92 = ssub.s32 %s17, %s31
      %p93 = scmp.eq.s32.totalorder %s92, 0
      %s95 = sadd.s32 %s94, 1
      %s96 = scalar_select %p93, %s94, %s95
      %p99 = pneg %p93
      %p100 = scmp.eq.s32.totalorder %s9, 2
      %p101 = por %p99, %p100
      %p102 = scmp.ne.s32.totalorder %s94, %s97
      %p103 = scmp.eq.s32.totalorder %s9, 0
      %p104 = por %p102, %p103
      %p105 = scmp.ne.s32.totalorder %s94, %s97
      %p106 = scmp.eq.s32.totalorder %s14, 2
      %p107 = por %p105, %p106
      %p108 = scmp.ne.s32.totalorder %s97, %s98
      %p109 = scmp.eq.s32.totalorder %s14, 0
      %p110 = por %p108, %p109
      %p111 = scmp.ne.s32.totalorder %s97, %s98
      %p112 = scmp.eq.s32.totalorder %s15, 2
      %p113 = por %p111, %p112
      %p115 = scmp.ne.s32.totalorder %s98, %s114
      %p116 = scmp.eq.s32.totalorder %s15, 0
      %p117 = por %p115, %p116
      %s118 = ssub.s32 %s16, %s35
      %s119 = ssub.s32 %s17, %s31
      %s120 = sor.u32 %s118, %s119
      %p121 = scmp.eq.s32.totalorder %s120, 0
      %s123 = sadd.s32 %s122, 1
      %s124 = scalar_select %p121, %s122, %s123
      %p127 = pneg %p121
      %p128 = scmp.eq.s32.totalorder %s9, 2
      %p129 = por %p127, %p128
      %p130 = scmp.ne.s32.totalorder %s122, %s125
      %p131 = scmp.eq.s32.totalorder %s9, 0
      %p132 = por %p130, %p131
      %p133 = scmp.ne.s32.totalorder %s122, %s125
      %p134 = scmp.eq.s32.totalorder %s14, 2
      %p135 = por %p133, %p134
      %p136 = scmp.ne.s32.totalorder %s125, %s126
      %p137 = scmp.eq.s32.totalorder %s14, 0
      %p138 = por %p136, %p137
      %p139 = scmp.ne.s32.totalorder %s125, %s126
      %p140 = scmp.eq.s32.totalorder %s15, 2
      %p141 = por %p139, %p140
      %p143 = scmp.ne.s32.totalorder %s126, %s142
      %p144 = scmp.eq.s32.totalorder %s15, 0
      %p145 = por %p143, %p144
      %p146 = scmp.le.s32.totalorder 1, %s9
      %p147 = scmp.lt.s32.totalorder %s9, 4
      %p148 = pnand %p146, %p147
      %p149 = pneg %p148
      // Predicated region
      $region9: #{generator_forward.52} parent=5 // pred_check
        _
      $region10: #{generator_forward.52} parent=5 // pred_check_branch
        %151 = sbr.rel (%p148) target = $region12
      $region11: #{generator_forward.52} parent=5 // pred_region
        %s152 = ssub.s32 %s9, 1
        // Predicated region
        $region13: #{generator_forward.52} parent=11 // pred_check
          %p153 = pneg %p110
        $region14: #{generator_forward.52} parent=11 // pred_check_branch
          %155 = sbr.rel (%p153) target = $region16
        $region15: #{generator_forward.52} parent=11 // pred_region
          %s156 = smul.u32 2, %s20
          %p157 = scmp.lt.s32.totalorder %s156, 1
          %s158 = scalar_select %p157, %s156, 1
          %s159 = scalar_lea.vmem %s2, %s158
          %s160 = smul.u32 2, %s20
        $region16: #{generator_forward.52} parent=11 // pred_fallthru
          _
      $region12: #{generator_forward.52} parent=5 // pred_fallthru
        _
      %p161 = scmp.lt.s32.totalorder %s9, 3
      // Predicated region
      $region17: #{generator_forward.52} parent=5 // pred_check
        %p162 = pneg %p161
      $region18: #{generator_forward.52} parent=5 // pred_check_branch
        %164 = sbr.rel (%p162) target = $region20
      $region19: #{generator_forward.52} parent=5 // pred_region
        // Predicated region
        $region21: #{generator_forward.52} parent=19 // pred_check
          %p165 = pneg %p50
        $region22: #{generator_forward.52} parent=19 // pred_check_branch
          %167 = sbr.rel (%p165) target = $region24
        $region23: #{generator_forward.52} parent=19 // pred_region
          %s168 = sand.u32 %s40, 1
          %s169 = sand.u32 %s40, 1
          %s170 = smul.addr %s169, 48
          %s171 = scalar_lea.vmem [#allocation3], %s170
          %s172 = smul.u32 4, %s16
          %s173 = smul.u32 3, %s18
          %s174 = smul.addr %s172, 9
          %s175 = sadd.s32 %s173, %s174
          %s176 = smul.addr %s175, 4
          %s177 = scalar_lea.vmem %s0, %s176
          // Predicated region
          $region25: #{generator_forward.52} parent=23 // pred_check
            _
          $region26: #{generator_forward.52} parent=23 // pred_check_branch
            %179 = sbr.rel (0) target = $region28
          $region27: #{generator_forward.52} parent=23 // pred_region
            // Predicated region
            $region29: #{generator_forward.52} parent=27 // pred_check
              _
            $region30: #{generator_forward.52} parent=27 // pred_check_branch
              %181 = sbr.rel (0) target = $region32
            $region31: #{generator_forward.52} parent=27 // pred_region
              %s182 = scalar_lea.vmem %s177, 8
              %s183 = scalar_lea.vmem %s171, 8 [#allocation3]
              loop: start=0, step=1, limit=1
              $region33: #{generator_forward.52} parent=31 // loop_pre_header
                _
              $region34: #{generator_forward.52} parent=31 // loop_header
                %s185 = sphi 0, %s189
                %p186 = scmp.ge.s32.totalorder %s185, 1
                %s190 = sphi %s177, %s177
                %s191 = sphi %s171, %s171
              $region35: #{generator_forward.52} parent=31 // loop_header_branch
                %188 = sbr.rel (%p186) target = $region39
              $region36: #{generator_forward.52} parent=31 // loop_body
                %v192 = vld [vmem:[%s190] sm:$0xff]
                %193 = vst [vmem:[%s191] sm:$0xff] %v192
                %v194 = vld [vmem:[%s190 + $0x24] sm:$0xff]
                %195 = vst [vmem:[%s191 + $0xc] sm:$0xff] %v194
                %v196 = vld [vmem:[%s190 + $0x48] sm:$0xff]
                %197 = vst [vmem:[%s191 + $0x18] sm:$0xff] %v196
                %v198 = vld [vmem:[%s190 + $0x6c] sm:$0xff]
                %199 = vst [vmem:[%s191 + $0x24] sm:$0xff] %v198
              $region37: #{generator_forward.52} parent=31 // loop_footer
                %s189 = sadd.s32 1, %s185
              $region38: #{generator_forward.52} parent=31 // loop_footer_branch
                %184 = sbr.rel target = $region34
              $region39: #{generator_forward.52} parent=31 // loop_exit
                _
              loop: start=0, step=1, limit=1
              $region40: #{generator_forward.52} parent=31 // loop_pre_header
                _
              $region41: #{generator_forward.52} parent=31 // loop_header
                %s202 = sphi 0, %s206
                %p203 = scmp.ge.s32.totalorder %s202, 1
                %s207 = sphi %s182, %s182
                %s208 = sphi %s183, %s183
              $region42: #{generator_forward.52} parent=31 // loop_header_branch
                %205 = sbr.rel (%p203) target = $region46
              $region43: #{generator_forward.52} parent=31 // loop_body
                %v209 = vld [vmem:[%s207] sm:$0xf]
                %210 = vst [vmem:[%s208] sm:$0xf] %v209
                %v211 = vld [vmem:[%s207 + $0x24] sm:$0xf]
                %212 = vst [vmem:[%s208 + $0xc] sm:$0xf] %v211
                %v213 = vld [vmem:[%s207 + $0x48] sm:$0xf]
                %214 = vst [vmem:[%s208 + $0x18] sm:$0xf] %v213
                %v215 = vld [vmem:[%s207 + $0x6c] sm:$0xf]
                %216 = vst [vmem:[%s208 + $0x24] sm:$0xf] %v215
              $region44: #{generator_forward.52} parent=31 // loop_footer
                %s206 = sadd.s32 1, %s202
              $region45: #{generator_forward.52} parent=31 // loop_footer_branch
                %201 = sbr.rel target = $region41
              $region46: #{generator_forward.52} parent=31 // loop_exit
                _
            $region32: #{generator_forward.52} parent=27 // pred_fallthru
              _
          $region28: #{generator_forward.52} parent=23 // pred_fallthru
            _
          %217 = vnop
        $region24: #{generator_forward.52} parent=19 // pred_fallthru
          _
        // Predicated region
        $region47: #{generator_forward.52} parent=19 // pred_check
          %p218 = pneg %p78
        $region48: #{generator_forward.52} parent=19 // pred_check_branch
          %220 = sbr.rel (%p218) target = $region50
        $region49: #{generator_forward.52} parent=19 // pred_region
          %s221 = smul.u32 48, %s18
          %s222 = smul.u32 2, %s17
          %p223 = scmp.lt.s32.totalorder %s221, 143
          %s224 = scalar_select %p223, %s221, 143
          %p225 = scmp.lt.s32.totalorder %s222, 1
          %s226 = scalar_select %p225, %s222, 1
          %s227 = smul.addr %s224, 2
          %s228 = sadd.s32 %s226, %s227
          %s229 = smul.addr %s228, 4
          %s230 = scalar_lea.vmem %s1, %s229
          %s231 = smul.u32 48, %s18
          %s232 = smul.u32 2, %s17
        $region50: #{generator_forward.52} parent=19 // pred_fallthru
          _
      $region20: #{generator_forward.52} parent=5 // pred_fallthru
        _
      %p233 = scmp.le.s32.totalorder 1, %s9
      %p234 = scmp.lt.s32.totalorder %s9, 4
      %p235 = pnand %p233, %p234
      %p236 = pneg %p235
      // Predicated region
      $region51: #{generator_forward.52} parent=5 // pred_check
        _
      $region52: #{generator_forward.52} parent=5 // pred_check_branch
        %238 = sbr.rel (%p235) target = $region54
      $region53: #{generator_forward.52} parent=5 // pred_region
        %s239 = ssub.s32 %s9, 1
        %s240 = sand.u32 %s43, 1
        %s241 = sand.u32 %s43, 1
        %s242 = smul.addr %s241, 48
        %s243 = scalar_lea.vmem [#allocation3], %s242
        // Predicated region
        $region55: #{generator_forward.52} parent=53 // pred_check
          %p244 = pneg %p56
        $region56: #{generator_forward.52} parent=53 // pred_check_branch
          %246 = sbr.rel (%p244) target = $region58
        $region57: #{generator_forward.52} parent=53 // pred_region
          _
        $region58: #{generator_forward.52} parent=53 // pred_fallthru
          _
        %s247 = sand.u32 %s43, 1
        %s248 = sand.u32 %s43, 1
        %s249 = smul.addr %s248, 48
        %s250 = scalar_lea.vmem [#allocation3], %s249
        %p251 = pneg %p56
        %p252 = pneg %p53
        %s253 = smul.u32 48, %s21
        %s254 = smul.u32 2, %s20
        %p255 = scmp.lt.s32.totalorder %s253, 143
        %s256 = scalar_select %p255, %s253, 143
        %p257 = scmp.lt.s32.totalorder %s254, 1
        %s258 = scalar_select %p257, %s254, 1
        %s259 = smul.addr %s256, 2
        %s260 = sadd.s32 %s258, %s259
        %s261 = smul.addr %s260, 4
        %s262 = scalar_lea.vmem %s1, %s261
        %p263 = pneg %p84
        %p264 = pneg %p81
        %s265 = smul.u32 2, %s20
        %p266 = scmp.lt.s32.totalorder %s265, 1
        %s267 = scalar_select %p266, %s265, 1
        %s268 = scalar_lea.vmem %s2, %s267
        %p269 = pneg %p110
        %p270 = pneg %p107
        %p271 = pneg %p138
        %p272 = pneg %p135
        %s273 = smul.u32 4, %s19
        %s274 = smul.u32 2, %s20
        %p275 = scmp.lt.s32.totalorder %s273, 3
        %s276 = scalar_select %p275, %s273, 3
        %p277 = scmp.lt.s32.totalorder %s274, 1
        %s278 = scalar_select %p277, %s274, 1
        %s279 = smul.addr %s276, 2
        %s280 = sadd.s32 %s278, %s279
        %s281 = smul.addr %s280, 8
        %s282 = scalar_lea.vmem %s3, %s281
        %s283 = smul.u32 4, %s19
        %s284 = smul.u32 3, %s21
        %s285 = smul.u32 48, %s21
        %s286 = smul.u32 2, %s20
        %p287 = scmp.lt.s32.totalorder %s285, 143
        %s288 = scalar_select %p287, %s285, 143
        %p289 = scmp.lt.s32.totalorder %s286, 1
        %s290 = scalar_select %p289, %s286, 1
        %s291 = smul.addr %s288, 2
        %s292 = sadd.s32 %s290, %s291
        %s293 = smul.addr %s292, 4
        %s294 = scalar_lea.vmem %s1, %s293
        %s295 = smul.u32 48, %s21
        %s296 = smul.u32 2, %s20
        %s297 = smul.u32 2, %s20
        %p298 = scmp.lt.s32.totalorder %s297, 1
        %s299 = scalar_select %p298, %s297, 1
        %s300 = scalar_lea.vmem %s2, %s299
        %s301 = smul.u32 2, %s20
        %s302 = smul.u32 4, %s19
        %s303 = smul.u32 2, %s20
        %p304 = scmp.lt.s32.totalorder %s302, 3
        %s305 = scalar_select %p304, %s302, 3
        %p306 = scmp.lt.s32.totalorder %s303, 1
        %s307 = scalar_select %p306, %s303, 1
        %s308 = smul.addr %s305, 2
        %s309 = sadd.s32 %s307, %s308
        %s310 = smul.addr %s309, 8
        %s311 = scalar_lea.vmem %s3, %s310
        %s312 = smul.u32 4, %s19
        %s313 = smul.u32 2, %s20
        %p315 = scmp.eq.s32.totalorder %s21, 0
        // Predicated region
        $region59: #{generator_forward.52} parent=53 // pred_check
          %p316 = pneg %p315
        $region60: #{generator_forward.52} parent=53 // pred_check_branch
          %318 = sbr.rel (%p316) target = $region62
        $region61: #{generator_forward.52} parent=53 // pred_region
          %319 = vst [vmem:[#allocation2] sm:$0xff] 0.0
          %320 = vst [vmem:[#allocation2 + $0x8] sm:$0xff] 0.0
          %321 = vst [vmem:[#allocation2 + $0x10] sm:$0xff] 0.0
          %322 = vst [vmem:[#allocation2 + $0x18] sm:$0xff] 0.0
          %323 = vst [vmem:[#allocation2 + $0x20] sm:$0xff] 0.0
          %324 = vst [vmem:[#allocation2 + $0x28] sm:$0xff] 0.0
          %325 = vst [vmem:[#allocation2 + $0x30] sm:$0xff] 0.0
          %326 = vst [vmem:[#allocation2 + $0x38] sm:$0xff] 0.0
        $region62: #{generator_forward.52} parent=53 // pred_fallthru
          _
        %v327 = vld [vmem:[#allocation2] sm:$0xff]
        %v328 = vld [vmem:[#allocation2 + $0x8] sm:$0xff]
        %v329 = vld [vmem:[#allocation2 + $0x10] sm:$0xff]
        %v330 = vld [vmem:[#allocation2 + $0x18] sm:$0xff]
        %v331 = vld [vmem:[#allocation2 + $0x20] sm:$0xff]
        %v332 = vld [vmem:[#allocation2 + $0x28] sm:$0xff]
        %v333 = vld [vmem:[#allocation2 + $0x30] sm:$0xff]
        %v334 = vld [vmem:[#allocation2 + $0x38] sm:$0xff]
        %v335 = vld [vmem:[%s243] sm:$0xff]
        %v336 = vld [vmem:[%s243 + $0x8] sm:$0xf]
        %v337 = vld [vmem:[%s243 + $0xc] sm:$0xff]
        %v338 = vld [vmem:[%s243 + $0x14] sm:$0xf]
        %v339 = vld [vmem:[%s243 + $0x18] sm:$0xff]
        %v340 = vld [vmem:[%s243 + $0x20] sm:$0xf]
        %v341 = vld [vmem:[%s243 + $0x24] sm:$0xff]
        %v342 = vld [vmem:[%s243 + $0x2c] sm:$0xf]
        %v343 = vld [vmem:[%s294] sm:$0xff]
        %v344 = vld [vmem:[%s294 + $0x8] sm:$0xff]
        %v345 = vld [vmem:[%s294 + $0x10] sm:$0xff]
        %v346 = vld [vmem:[%s294 + $0x18] sm:$0xff]
        %v347 = vld [vmem:[%s294 + $0x20] sm:$0xff]
        %v348 = vld [vmem:[%s294 + $0x28] sm:$0xff]
        %v349 = vld [vmem:[%s294 + $0x30] sm:$0xff]
        %v350 = vld [vmem:[%s294 + $0x38] sm:$0xff]
        %v351 = vld [vmem:[%s294 + $0x40] sm:$0xff]
        %v352 = vld [vmem:[%s294 + $0x48] sm:$0xff]
        %v353 = vld [vmem:[%s294 + $0x50] sm:$0xff]
        %v354 = vld [vmem:[%s294 + $0x58] sm:$0xff]
        %v355 = vld [vmem:[%s294 + $0x60] sm:$0xff]
        %v356 = vld [vmem:[%s294 + $0x68] sm:$0xff]
        %v357 = vld [vmem:[%s294 + $0x70] sm:$0xff]
        %v358 = vld [vmem:[%s294 + $0x78] sm:$0xff]
        %v359 = vld [vmem:[%s294 + $0x80] sm:$0xff]
        %v360 = vld [vmem:[%s294 + $0x88] sm:$0xff]
        %v361 = vld [vmem:[%s294 + $0x90] sm:$0xff]
        %v362 = vld [vmem:[%s294 + $0x98] sm:$0xff]
        %v363 = vld [vmem:[%s294 + $0xa0] sm:$0xff]
        %v364 = vld [vmem:[%s294 + $0xa8] sm:$0xff]
        %v365 = vld [vmem:[%s294 + $0xb0] sm:$0xff]
        %v366 = vld [vmem:[%s294 + $0xb8] sm:$0xff]
        %v367 = vld [vmem:[%s294 + $0xc0] sm:$0xff]
        %v368 = vld [vmem:[%s294 + $0xc8] sm:$0xff]
        %v369 = vld [vmem:[%s294 + $0xd0] sm:$0xff]
        %v370 = vld [vmem:[%s294 + $0xd8] sm:$0xff]
        %v371 = vld [vmem:[%s294 + $0xe0] sm:$0xff]
        %v372 = vld [vmem:[%s294 + $0xe8] sm:$0xff]
        %v373 = vld [vmem:[%s294 + $0xf0] sm:$0xff]
        %v374 = vld [vmem:[%s294 + $0xf8] sm:$0xff]
        %v375 = vld [vmem:[%s294 + $0x100] sm:$0xff]
        %v376 = vld [vmem:[%s294 + $0x108] sm:$0xff]
        %v377 = vld [vmem:[%s294 + $0x110] sm:$0xff]
        %v378 = vld [vmem:[%s294 + $0x118] sm:$0xff]
        %v379 = vld [vmem:[%s294 + $0x120] sm:$0xff]
        %v380 = vld [vmem:[%s294 + $0x128] sm:$0xff]
        %v381 = vld [vmem:[%s294 + $0x130] sm:$0xff]
        %v382 = vld [vmem:[%s294 + $0x138] sm:$0xff]
        %v383 = vld [vmem:[%s294 + $0x140] sm:$0xff]
        %v384 = vld [vmem:[%s294 + $0x148] sm:$0xff]
        %v385 = vld [vmem:[%s294 + $0x150] sm:$0xff]
        %v386 = vld [vmem:[%s294 + $0x158] sm:$0xff]
        %v387 = vld [vmem:[%s294 + $0x160] sm:$0xff]
        %v388 = vld [vmem:[%s294 + $0x168] sm:$0xff]
        %v389 = vld [vmem:[%s294 + $0x170] sm:$0xff]
        %v390 = vld [vmem:[%s294 + $0x178] sm:$0xff]
        %v399 = vunpack.c.l.b16 %v335
        %v400 = vunpack.c.h.b16 %v335
        %v401 = vunpack.c.l.b16 %v336
        %v402 = vunpack.c.l.b16 %v337
        %v403 = vunpack.c.h.b16 %v337
        %v404 = vunpack.c.l.b16 %v338
        %v405 = vunpack.c.l.b16 %v339
        %v406 = vunpack.c.h.b16 %v339
        %v407 = vunpack.c.l.b16 %v340
        %v408 = vunpack.c.l.b16 %v341
        %v409 = vunpack.c.h.b16 %v341
        %v410 = vunpack.c.l.b16 %v342
        %v411 = vpack.c.b16 %v402, %v399
        %v412 = vpack.c.b16 %v403, %v400
        %v413 = vpack.c.b16 %v404, %v401
        %v414 = vpack.c.b16 %v408, %v405
        %v415 = vpack.c.b16 %v409, %v406
        %v416 = vpack.c.b16 %v410, %v407
        %v471 = vunpack.c.l.b16 %v343
        %v472 = vunpack.c.h.b16 %v343
        %v473 = vunpack.c.l.b16 %v344
        %v474 = vunpack.c.h.b16 %v344
        %v475 = vunpack.c.l.b16 %v345
        %v476 = vunpack.c.h.b16 %v345
        %v477 = vunpack.c.l.b16 %v346
        %v478 = vunpack.c.h.b16 %v346
        %v479 = vunpack.c.l.b16 %v347
        %v480 = vunpack.c.h.b16 %v347
        %v481 = vunpack.c.l.b16 %v348
        %v482 = vunpack.c.h.b16 %v348
        %v483 = vunpack.c.l.b16 %v349
        %v484 = vunpack.c.h.b16 %v349
        %v485 = vunpack.c.l.b16 %v350
        %v486 = vunpack.c.h.b16 %v350
        %v487 = vunpack.c.l.b16 %v351
        %v488 = vunpack.c.h.b16 %v351
        %v489 = vunpack.c.l.b16 %v352
        %v490 = vunpack.c.h.b16 %v352
        %v491 = vunpack.c.l.b16 %v353
        %v492 = vunpack.c.h.b16 %v353
        %v493 = vunpack.c.l.b16 %v354
        %v494 = vunpack.c.h.b16 %v354
        %v495 = vunpack.c.l.b16 %v355
        %v496 = vunpack.c.h.b16 %v355
        %v497 = vunpack.c.l.b16 %v356
        %v498 = vunpack.c.h.b16 %v356
        %v499 = vunpack.c.l.b16 %v357
        %v500 = vunpack.c.h.b16 %v357
        %v501 = vunpack.c.l.b16 %v358
        %v502 = vunpack.c.h.b16 %v358
        %v503 = vunpack.c.l.b16 %v359
        %v504 = vunpack.c.h.b16 %v359
        %v505 = vunpack.c.l.b16 %v360
        %v506 = vunpack.c.h.b16 %v360
        %v507 = vunpack.c.l.b16 %v361
        %v508 = vunpack.c.h.b16 %v361
        %v509 = vunpack.c.l.b16 %v362
        %v510 = vunpack.c.h.b16 %v362
        %v511 = vunpack.c.l.b16 %v363
        %v512 = vunpack.c.h.b16 %v363
        %v513 = vunpack.c.l.b16 %v364
        %v514 = vunpack.c.h.b16 %v364
        %v515 = vunpack.c.l.b16 %v365
        %v516 = vunpack.c.h.b16 %v365
        %v517 = vunpack.c.l.b16 %v366
        %v518 = vunpack.c.h.b16 %v366
        %v519 = vunpack.c.l.b16 %v367
        %v520 = vunpack.c.h.b16 %v367
        %v521 = vunpack.c.l.b16 %v368
        %v522 = vunpack.c.h.b16 %v368
        %v523 = vunpack.c.l.b16 %v369
        %v524 = vunpack.c.h.b16 %v369
        %v525 = vunpack.c.l.b16 %v370
        %v526 = vunpack.c.h.b16 %v370
        %v527 = vunpack.c.l.b16 %v371
        %v528 = vunpack.c.h.b16 %v371
        %v529 = vunpack.c.l.b16 %v372
        %v530 = vunpack.c.h.b16 %v372
        %v531 = vunpack.c.l.b16 %v373
        %v532 = vunpack.c.h.b16 %v373
        %v533 = vunpack.c.l.b16 %v374
        %v534 = vunpack.c.h.b16 %v374
        %v535 = vunpack.c.l.b16 %v375
        %v536 = vunpack.c.h.b16 %v375
        %v537 = vunpack.c.l.b16 %v376
        %v538 = vunpack.c.h.b16 %v376
        %v539 = vunpack.c.l.b16 %v377
        %v540 = vunpack.c.h.b16 %v377
        %v541 = vunpack.c.l.b16 %v378
        %v542 = vunpack.c.h.b16 %v378
        %v543 = vunpack.c.l.b16 %v379
        %v544 = vunpack.c.h.b16 %v379
        %v545 = vunpack.c.l.b16 %v380
        %v546 = vunpack.c.h.b16 %v380
        %v547 = vunpack.c.l.b16 %v381
        %v548 = vunpack.c.h.b16 %v381
        %v549 = vunpack.c.l.b16 %v382
        %v550 = vunpack.c.h.b16 %v382
        %v551 = vunpack.c.l.b16 %v383
        %v552 = vunpack.c.h.b16 %v383
        %v553 = vunpack.c.l.b16 %v384
        %v554 = vunpack.c.h.b16 %v384
        %v555 = vunpack.c.l.b16 %v385
        %v556 = vunpack.c.h.b16 %v385
        %v557 = vunpack.c.l.b16 %v386
        %v558 = vunpack.c.h.b16 %v386
        %v559 = vunpack.c.l.b16 %v387
        %v560 = vunpack.c.h.b16 %v387
        %v561 = vunpack.c.l.b16 %v388
        %v562 = vunpack.c.h.b16 %v388
        %v563 = vunpack.c.l.b16 %v389
        %v564 = vunpack.c.h.b16 %v389
        %v565 = vunpack.c.l.b16 %v390
        %v566 = vunpack.c.h.b16 %v390
        %v567 = vpack.c.b16 %v473, %v471
        %v568 = vpack.c.b16 %v474, %v472
        %v569 = vpack.c.b16 %v477, %v475
        %v570 = vpack.c.b16 %v478, %v476
        %v571 = vpack.c.b16 %v481, %v479
        %v572 = vpack.c.b16 %v482, %v480
        %v573 = vpack.c.b16 %v485, %v483
        %v574 = vpack.c.b16 %v486, %v484
        %v575 = vpack.c.b16 %v489, %v487
        %v576 = vpack.c.b16 %v490, %v488
        %v577 = vpack.c.b16 %v493, %v491
        %v578 = vpack.c.b16 %v494, %v492
        %v579 = vpack.c.b16 %v497, %v495
        %v580 = vpack.c.b16 %v498, %v496
        %v581 = vpack.c.b16 %v501, %v499
        %v582 = vpack.c.b16 %v502, %v500
        %v583 = vpack.c.b16 %v505, %v503
        %v584 = vpack.c.b16 %v506, %v504
        %v585 = vpack.c.b16 %v509, %v507
        %v586 = vpack.c.b16 %v510, %v508
        %v587 = vpack.c.b16 %v513, %v511
        %v588 = vpack.c.b16 %v514, %v512
        %v589 = vpack.c.b16 %v517, %v515
        %v590 = vpack.c.b16 %v518, %v516
        %v591 = vpack.c.b16 %v521, %v519
        %v592 = vpack.c.b16 %v522, %v520
        %v593 = vpack.c.b16 %v525, %v523
        %v594 = vpack.c.b16 %v526, %v524
        %v595 = vpack.c.b16 %v529, %v527
        %v596 = vpack.c.b16 %v530, %v528
        %v597 = vpack.c.b16 %v533, %v531
        %v598 = vpack.c.b16 %v534, %v532
        %v599 = vpack.c.b16 %v537, %v535
        %v600 = vpack.c.b16 %v538, %v536
        %v601 = vpack.c.b16 %v541, %v539
        %v602 = vpack.c.b16 %v542, %v540
        %v603 = vpack.c.b16 %v545, %v543
        %v604 = vpack.c.b16 %v546, %v544
        %v605 = vpack.c.b16 %v549, %v547
        %v606 = vpack.c.b16 %v550, %v548
        %v607 = vpack.c.b16 %v553, %v551
        %v608 = vpack.c.b16 %v554, %v552
        %v609 = vpack.c.b16 %v557, %v555
        %v610 = vpack.c.b16 %v558, %v556
        %v611 = vpack.c.b16 %v561, %v559
        %v612 = vpack.c.b16 %v562, %v560
        %v613 = vpack.c.b16 %v565, %v563
        %v614 = vpack.c.b16 %v566, %v564
        %663 = vmatprep.subr.bf16.mxu0 %v568
        %664 = vmatpush1.bf16.msra.mxu0 %v567
        %665 = vmatprep.subr.bf16.mxu0 %v570
        %666 = vmatpush1.bf16.msra.mxu0 %v569
        %667 = vmatprep.subr.bf16.mxu0 %v572
        %668 = vmatpush1.bf16.msra.mxu0 %v571
        %669 = vmatprep.subr.bf16.mxu0 %v574
        %670 = vmatpush1.bf16.msra.mxu0 %v573
        %671 = vmatprep.subr.bf16.mxu0 %v576
        %672 = vmatpush1.bf16.msra.mxu0 %v575
        %673 = vmatprep.subr.bf16.mxu0 %v578
        %674 = vmatpush1.bf16.msra.mxu0 %v577
        %675 = vmatprep.subr.bf16.mxu0 %v580
        %676 = vmatpush1.bf16.msra.mxu0 %v579
        %677 = vmatprep.subr.bf16.mxu0 %v582
        %678 = vmatpush1.bf16.msra.mxu0 %v581
        %679 = vmatprep.subr.bf16.mxu0 %v584
        %680 = vmatpush1.bf16.msra.mxu0 %v583
        %681 = vmatprep.subr.bf16.mxu0 %v586
        %682 = vmatpush1.bf16.msra.mxu0 %v585
        %683 = vmatprep.subr.bf16.mxu0 %v588
        %684 = vmatpush1.bf16.msra.mxu0 %v587
        %685 = vmatprep.subr.bf16.mxu0 %v590
        %686 = vmatpush1.bf16.msra.mxu0 %v589
        %687 = vmatprep.subr.bf16.mxu0 %v592
        %688 = vmatpush1.bf16.msra.mxu0 %v591
        %689 = vmatprep.subr.bf16.mxu0 %v594
        %690 = vmatpush1.bf16.msra.mxu0 %v593
        %691 = vmatprep.subr.bf16.mxu0 %v596
        %692 = vmatpush1.bf16.msra.mxu0 %v595
        %693 = vmatprep.subr.bf16.mxu0 %v598
        %694 = vmatpush1.bf16.msra.mxu0 %v597
        %695 = vmatprep.mubr.bf16.mxu0 %v412
        %696 = vmatmul.mubr.bf16.gmra.mrb[0].mxu0 %v411
        %v697 = vpop.f32.mrb[0].mxu0
        %v698 = vadd.f32 0.0, %v697
        %v699 = vpop.f32.mrb[0].mxu0
        %v700 = vadd.f32 0.0, %v699
        %v701 = vpop.f32.mrb[0].mxu0
        %v702 = vadd.f32 0.0, %v701
        %v703 = vpop.f32.mrb[0].mxu0
        %v704 = vadd.f32 0.0, %v703
        %705 = vmatprep.mubr.bf16.mxu0 %v415
        %706 = vmatmul.mubr.bf16.gmra.mrb[0].mxu0 %v414
        %v707 = vpop.f32.mrb[0].mxu0
        %v708 = vadd.f32 0.0, %v707
        %v709 = vpop.f32.mrb[0].mxu0
        %v710 = vadd.f32 0.0, %v709
        %v711 = vpop.f32.mrb[0].mxu0
        %v712 = vadd.f32 0.0, %v711
        %v713 = vpop.f32.mrb[0].mxu0
        %v714 = vadd.f32 0.0, %v713
        %715 = vdwg.mxu0
        %716 = vmatprep.subr.bf16.mxu0 %v600
        %717 = vmatpush1.bf16.msra.mxu0 %v599
        %718 = vmatprep.subr.bf16.mxu0 %v602
        %719 = vmatpush1.bf16.msra.mxu0 %v601
        %720 = vmatprep.subr.bf16.mxu0 %v604
        %721 = vmatpush1.bf16.msra.mxu0 %v603
        %722 = vmatprep.subr.bf16.mxu0 %v606
        %723 = vmatpush1.bf16.msra.mxu0 %v605
        %724 = vmatprep.subr.bf16.mxu0 %v608
        %725 = vmatpush1.bf16.msra.mxu0 %v607
        %726 = vmatprep.subr.bf16.mxu0 %v610
        %727 = vmatpush1.bf16.msra.mxu0 %v609
        %728 = vmatprep.subr.bf16.mxu0 %v612
        %729 = vmatpush1.bf16.msra.mxu0 %v611
        %730 = vmatprep.subr.bf16.mxu0 %v614
        %731 = vmatpush1.bf16.msra.mxu0 %v613
        %732 = vmatprep.subr.bf16.mxu0 0
        %733 = vmatpush1.bf16.msra.mxu0 0
        %734 = vmatprep.subr.bf16.mxu0 0
        %735 = vmatpush1.bf16.msra.mxu0 0
        %736 = vmatprep.subr.bf16.mxu0 0
        %737 = vmatpush1.bf16.msra.mxu0 0
        %738 = vmatprep.subr.bf16.mxu0 0
        %739 = vmatpush1.bf16.msra.mxu0 0
        %740 = vmatprep.subr.bf16.mxu0 0
        %741 = vmatpush1.bf16.msra.mxu0 0
        %742 = vmatprep.subr.bf16.mxu0 0
        %743 = vmatpush1.bf16.msra.mxu0 0
        %744 = vmatprep.subr.bf16.mxu0 0
        %745 = vmatpush1.bf16.msra.mxu0 0
        %746 = vmatprep.subr.bf16.mxu0 0
        %747 = vmatpush1.bf16.msra.mxu0 0
        %748 = vmatprep.mubr.bf16.mxu0 0
        %749 = vmatmul.mubr.bf16.gmra.mrb[0].mxu0 %v413
        %v750 = vpop.f32.mrb[0].mxu0
        %v751 = vadd.f32 %v698, %v750
        %v752 = vpop.f32.mrb[0].mxu0
        %v753 = vadd.f32 %v700, %v752
        %v754 = vpop.f32.mrb[0].mxu0
        %v755 = vadd.f32 %v702, %v754
        %v756 = vpop.f32.mrb[0].mxu0
        %v757 = vadd.f32 %v704, %v756
        %758 = vmatprep.mubr.bf16.mxu0 0
        %759 = vmatmul.mubr.bf16.gmra.mrb[0].mxu0 %v416
        %v760 = vpop.f32.mrb[0].mxu0
        %v761 = vadd.f32 %v708, %v760
        %v762 = vpop.f32.mrb[0].mxu0
        %v763 = vadd.f32 %v710, %v762
        %v764 = vpop.f32.mrb[0].mxu0
        %v765 = vadd.f32 %v712, %v764
        %v766 = vpop.f32.mrb[0].mxu0
        %v767 = vadd.f32 %v714, %v766
        %768 = vdwg.mxu0
        %v769 = vadd.f32 %v327, %v751
        %v770 = vadd.f32 %v328, %v753
        %v771 = vadd.f32 %v329, %v755
        %v772 = vadd.f32 %v330, %v757
        %v773 = vadd.f32 %v331, %v761
        %v774 = vadd.f32 %v332, %v763
        %v775 = vadd.f32 %v333, %v765
        %v776 = vadd.f32 %v334, %v767
        %777 = vst [vmem:[#allocation2] sm:$0xff] %v769
        %778 = vst [vmem:[#allocation2 + $0x8] sm:$0xff] %v770
        %779 = vst [vmem:[#allocation2 + $0x10] sm:$0xff] %v771
        %780 = vst [vmem:[#allocation2 + $0x18] sm:$0xff] %v772
        %781 = vst [vmem:[#allocation2 + $0x20] sm:$0xff] %v773
        %782 = vst [vmem:[#allocation2 + $0x28] sm:$0xff] %v774
        %783 = vst [vmem:[#allocation2 + $0x30] sm:$0xff] %v775
        %784 = vst [vmem:[#allocation2 + $0x38] sm:$0xff] %v776
        %p785 = scmp.eq.s32.totalorder %s21, 2
        // Predicated region
        $region63: #{generator_forward.52} parent=53 // pred_check
          %p786 = pneg %p785
        $region64: #{generator_forward.52} parent=53 // pred_check_branch
          %788 = sbr.rel (%p786) target = $region66
        $region65: #{generator_forward.52} parent=53 // pred_region
          %v789 = vld [vmem:[#allocation2] sm:$0xff]
          %v790 = vld [vmem:[#allocation2 + $0x8] sm:$0xff]
          %v791 = vld [vmem:[#allocation2 + $0x10] sm:$0xff]
          %v792 = vld [vmem:[#allocation2 + $0x18] sm:$0xff]
          %v793 = vld [vmem:[#allocation2 + $0x20] sm:$0xff]
          %v794 = vld [vmem:[#allocation2 + $0x28] sm:$0xff]
          %v795 = vld [vmem:[#allocation2 + $0x30] sm:$0xff]
          %v796 = vld [vmem:[#allocation2 + $0x38] sm:$0xff]
          %v797 = vld [vmem:[%s300] sm:$0x3]
          %v799 = vlaneseq
          %v800 = vshrl.u32 %v799, 7
          %v801 = vsub.s32 0, %v800
          %v802 = vrot.slane %v797, %v801
          %v803 = vlaneseq
          %v804 = vshrl.u32 %v803, 7
          %v805 = vsub.s32 1, %v804
          %v806 = vrot.slane %v797, %v805
          %v809 = vadd.f32 %v789, %v802
          %v810 = vadd.f32 %v790, %v806
          %v811 = vadd.f32 %v791, %v802
          %v812 = vadd.f32 %v792, %v806
          %v813 = vadd.f32 %v793, %v802
          %v814 = vadd.f32 %v794, %v806
          %v815 = vadd.f32 %v795, %v802
          %v816 = vadd.f32 %v796, %v806
          %817 = vst [vmem:[%s311] sm:$0xff] %v809
          %818 = vst [vmem:[%s311 + $0x8] sm:$0xff] %v810
          %819 = vst [vmem:[%s311 + $0x10] sm:$0xff] %v811
          %820 = vst [vmem:[%s311 + $0x18] sm:$0xff] %v812
          %821 = vst [vmem:[%s311 + $0x20] sm:$0xff] %v813
          %822 = vst [vmem:[%s311 + $0x28] sm:$0xff] %v814
          %823 = vst [vmem:[%s311 + $0x30] sm:$0xff] %v815
          %824 = vst [vmem:[%s311 + $0x38] sm:$0xff] %v816
        $region66: #{generator_forward.52} parent=53 // pred_fallthru
          _
        %s825 = smul.u32 4, %s19
        %s826 = smul.u32 2, %s20
        %p827 = scmp.lt.s32.totalorder %s825, 3
        %s828 = scalar_select %p827, %s825, 3
        %p829 = scmp.lt.s32.totalorder %s826, 1
        %s830 = scalar_select %p829, %s826, 1
        %s831 = smul.addr %s828, 2
        %s832 = sadd.s32 %s830, %s831
        %s833 = smul.addr %s832, 8
        %s834 = scalar_lea.vmem %s3, %s833
        // Predicated region
        $region67: #{generator_forward.52} parent=53 // pred_check
          %p835 = pneg %p135
        $region68: #{generator_forward.52} parent=53 // pred_check_branch
          %837 = sbr.rel (%p835) target = $region70
        $region69: #{generator_forward.52} parent=53 // pred_region
          %s838 = smul.u32 4, %s19
          %s839 = smul.u32 2, %s20
        $region70: #{generator_forward.52} parent=53 // pred_fallthru
          _
        // Predicated region
        $region71: #{generator_forward.52} parent=53 // pred_check
          %p840 = pneg %p135
        $region72: #{generator_forward.52} parent=53 // pred_check_branch
          %842 = sbr.rel (%p840) target = $region74
        $region73: #{generator_forward.52} parent=53 // pred_region
          %s843 = smul.u32 4, %s19
          %s844 = smul.u32 2, %s20
          %p845 = scmp.lt.s32.totalorder %s843, 3
          %s846 = scalar_select %p845, %s843, 3
          %p847 = scmp.lt.s32.totalorder %s844, 1
          %s848 = scalar_select %p847, %s844, 1
          %s849 = smul.addr %s846, 2
          %s850 = sadd.s32 %s848, %s849
          %s851 = smul.addr %s850, 8
          %s852 = scalar_lea.vmem %s3, %s851
        $region74: #{generator_forward.52} parent=53 // pred_fallthru
          _
      $region54: #{generator_forward.52} parent=5 // pred_fallthru
        _
      %p853 = scmp.le.s32.totalorder 2, %s9
      // Predicated region
      $region75: #{generator_forward.52} parent=5 // pred_check
        %p854 = pneg %p853
      $region76: #{generator_forward.52} parent=5 // pred_check_branch
        %856 = sbr.rel (%p854) target = $region78
      $region77: #{generator_forward.52} parent=5 // pred_region
        %s857 = ssub.s32 %s9, 2
      $region78: #{generator_forward.52} parent=5 // pred_fallthru
        _
    $region6: #{generator_forward.52} parent=1 // loop_footer
      %s13 = sadd.s32 1, %s9
    $region7: #{generator_forward.52} parent=1 // loop_footer_branch
      %8 = sbr.rel target = $region3
    $region8: #{generator_forward.52} parent=1 // loop_exit
      _

// kernel: generator_forward.54
$region0: #{generator_forward.54}
  #allocation0 [shape = 'u32[]', space=smem, size = 0x4, offset = 0x4, fixed_abs, tag = 'smem constant byte address 0x4 - core index']
  #allocation1 [shape = 'u32[144,128]{1,0:T(1,128)}', space=vmem, size = 0x12000, scoped, tag = 'internal scratch']
  #allocation2 [shape = 'f32[32,256]{1,0:T(8,128)}', space=vmem, size = 0x8000, scoped, tag = 'scratch operand']
  %s0 = inlined_call_operand.vmem [shape: bf16[32,2304], index: 0, kind: input, shape index: {}]
  %s1 = inlined_call_operand.vmem [shape: bf16[2304,256], index: 1, kind: input, shape index: {}]
  %s2 = inlined_call_operand.vmem [shape: f32[1,256], index: 2, kind: input, shape index: {}]
  %s3 = inlined_call_operand.vmem [shape: f32[32,256], index: 3, kind: output, shape index: {}]
  %s4 = sld [smem:[#allocation0]]
  $region79: #{generator_forward.54} parent=0
    _
  %s6 = ssub.s32 1, %s4
  %s7 = scalar_select 0, %s6, %s4
  $region1: #{generator_forward.54} parent=0
    #allocation3 [shape = 'u8[49152]{0}', space=vmem, size = 0xc000, scoped, tag = 'input window, operand 0']
    loop: start=0, step=1, limit=8
    $region2: #{generator_forward.54} parent=1 // loop_pre_header
      _
    $region3: #{generator_forward.54} parent=1 // loop_header
      %s9 = sphi 0, %s13
      %p10 = scmp.ge.s32.totalorder %s9, 8
      %s16 = sphi 0, %s35
      %s17 = sphi 0, %s31
      %s18 = sphi 0, %s27
      %s19 = sphi 0, %s16
      %s20 = sphi 0, %s17
      %s21 = sphi 0, %s18
      %s22 = sphi 0, %s19
      %s23 = sphi 0, %s20
      %s24 = sphi 0, %s21
      %s40 = sphi 0, %s42
      %s43 = sphi 0, %s40
      %s44 = sphi 0, %s43
      %s60 = sphi 0, %s44
      %s68 = sphi 0, %s70
      %s71 = sphi 0, %s68
      %s72 = sphi 0, %s71
      %s88 = sphi 0, %s72
      %s94 = sphi 0, %s96
      %s97 = sphi 0, %s94
      %s98 = sphi 0, %s97
      %s114 = sphi 0, %s98
      %s122 = sphi 0, %s124
      %s125 = sphi 0, %s122
      %s126 = sphi 0, %s125
      %s142 = sphi 0, %s126
    $region4: #{generator_forward.54} parent=1 // loop_header_branch
      %12 = sbr.rel (%p10) target = $region8
    $region5: #{generator_forward.54} parent=1 // loop_body
      %s14 = ssub.s32 %s9, 1
      %s15 = ssub.s32 %s9, 2
      %s25 = sadd.s32 1, %s18
      %p26 = scmp.ge.s32.totalorder %s25, 6
      %s27 = scalar_select %p26, 0, %s25
      %s28 = sadd.s32 1, %s17
      %s29 = scalar_select %p26, %s28, %s17
      %p30 = scmp.ge.s32.totalorder %s29, 1
      %s31 = scalar_select %p30, 0, %s29
      %s32 = sadd.s32 1, %s16
      %s33 = scalar_select %p30, %s32, %s16
      %p34 = scmp.ge.s32.totalorder %s33, 1
      %s35 = scalar_select %p34, 0, %s33
      %s36 = ssub.s32 %s16, %s35
      %s37 = ssub.s32 %s18, %s27
      %s38 = sor.u32 %s36, %s37
      %p39 = scmp.eq.s32.totalorder %s38, 0
      %s41 = sadd.s32 %s40, 1
      %s42 = scalar_select %p39, %s40, %s41
      %p45 = pneg %p39
      %p46 = scmp.eq.s32.totalorder %s9, 5
      %p47 = por %p45, %p46
      %p48 = scmp.ne.s32.totalorder %s40, %s43
      %p49 = scmp.eq.s32.totalorder %s9, 0
      %p50 = por %p48, %p49
      %p51 = scmp.ne.s32.totalorder %s40, %s43
      %p52 = scmp.eq.s32.totalorder %s14, 5
      %p53 = por %p51, %p52
      %p54 = scmp.ne.s32.totalorder %s43, %s44
      %p55 = scmp.eq.s32.totalorder %s14, 0
      %p56 = por %p54, %p55
      %p57 = scmp.ne.s32.totalorder %s43, %s44
      %p58 = scmp.eq.s32.totalorder %s15, 5
      %p59 = por %p57, %p58
      %p61 = scmp.ne.s32.totalorder %s44, %s60
      %p62 = scmp.eq.s32.totalorder %s15, 0
      %p63 = por %p61, %p62
      %s64 = ssub.s32 %s18, %s27
      %s65 = ssub.s32 %s17, %s31
      %s66 = sor.u32 %s64, %s65
      %p67 = scmp.eq.s32.totalorder %s66, 0
      %s69 = sadd.s32 %s68, 1
      %s70 = scalar_select %p67, %s68, %s69
      %p73 = pneg %p67
      %p74 = scmp.eq.s32.totalorder %s9, 5
      %p75 = por %p73, %p74
      %p76 = scmp.ne.s32.totalorder %s68, %s71
      %p77 = scmp.eq.s32.totalorder %s9, 0
      %p78 = por %p76, %p77
      %p79 = scmp.ne.s32.totalorder %s68, %s71
      %p80 = scmp.eq.s32.totalorder %s14, 5
      %p81 = por %p79, %p80
      %p82 = scmp.ne.s32.totalorder %s71, %s72
      %p83 = scmp.eq.s32.totalorder %s14, 0
      %p84 = por %p82, %p83
      %p85 = scmp.ne.s32.totalorder %s71, %s72
      %p86 = scmp.eq.s32.totalorder %s15, 5
      %p87 = por %p85, %p86
      %p89 = scmp.ne.s32.totalorder %s72, %s88
      %p90 = scmp.eq.s32.totalorder %s15, 0
      %p91 = por %p89, %p90
      %s92 = ssub.s32 %s17, %s31
      %p93 = scmp.eq.s32.totalorder %s92, 0
      %s95 = sadd.s32 %s94, 1
      %s96 = scalar_select %p93, %s94, %s95
      %p99 = pneg %p93
      %p100 = scmp.eq.s32.totalorder %s9, 5
      %p101 = por %p99, %p100
      %p102 = scmp.ne.s32.totalorder %s94, %s97
      %p103 = scmp.eq.s32.totalorder %s9, 0
      %p104 = por %p102, %p103
      %p105 = scmp.ne.s32.totalorder %s94, %s97
      %p106 = scmp.eq.s32.totalorder %s14, 5
      %p107 = por %p105, %p106
      %p108 = scmp.ne.s32.totalorder %s97, %s98
      %p109 = scmp.eq.s32.totalorder %s14, 0
      %p110 = por %p108, %p109
      %p111 = scmp.ne.s32.totalorder %s97, %s98
      %p112 = scmp.eq.s32.totalorder %s15, 5
      %p113 = por %p111, %p112
      %p115 = scmp.ne.s32.totalorder %s98, %s114
      %p116 = scmp.eq.s32.totalorder %s15, 0
      %p117 = por %p115, %p116
      %s118 = ssub.s32 %s16, %s35
      %s119 = ssub.s32 %s17, %s31
      %s120 = sor.u32 %s118, %s119
      %p121 = scmp.eq.s32.totalorder %s120, 0
      %s123 = sadd.s32 %s122, 1
      %s124 = scalar_select %p121, %s122, %s123
      %p127 = pneg %p121
      %p128 = scmp.eq.s32.totalorder %s9, 5
      %p129 = por %p127, %p128
      %p130 = scmp.ne.s32.totalorder %s122, %s125
      %p131 = scmp.eq.s32.totalorder %s9, 0
      %p132 = por %p130, %p131
      %p133 = scmp.ne.s32.totalorder %s122, %s125
      %p134 = scmp.eq.s32.totalorder %s14, 5
      %p135 = por %p133, %p134
      %p136 = scmp.ne.s32.totalorder %s125, %s126
      %p137 = scmp.eq.s32.totalorder %s14, 0
      %p138 = por %p136, %p137
      %p139 = scmp.ne.s32.totalorder %s125, %s126
      %p140 = scmp.eq.s32.totalorder %s15, 5
      %p141 = por %p139, %p140
      %p143 = scmp.ne.s32.totalorder %s126, %s142
      %p144 = scmp.eq.s32.totalorder %s15, 0
      %p145 = por %p143, %p144
      %p146 = scmp.le.s32.totalorder 1, %s9
      %p147 = scmp.lt.s32.totalorder %s9, 7
      %p148 = pnand %p146, %p147
      %p149 = pneg %p148
      // Predicated region
      $region9: #{generator_forward.54} parent=5 // pred_check
        _
      $region10: #{generator_forward.54} parent=5 // pred_check_branch
        %151 = sbr.rel (%p148) target = $region12
      $region11: #{generator_forward.54} parent=5 // pred_region
        %s152 = ssub.s32 %s9, 1
        // Predicated region
        $region13: #{generator_forward.54} parent=11 // pred_check
          %p153 = pneg %p110
        $region14: #{generator_forward.54} parent=11 // pred_check_branch
          %155 = sbr.rel (%p153) target = $region16
        $region15: #{generator_forward.54} parent=11 // pred_region
          %s156 = smul.u32 2, %s20
          %p157 = scmp.lt.s32.totalorder %s156, 1
          %s158 = scalar_select %p157, %s156, 1
          %s159 = scalar_lea.vmem %s2, %s158
          %s160 = smul.u32 2, %s20
        $region16: #{generator_forward.54} parent=11 // pred_fallthru
          _
      $region12: #{generator_forward.54} parent=5 // pred_fallthru
        _
      %p161 = scmp.lt.s32.totalorder %s9, 6
      // Predicated region
      $region17: #{generator_forward.54} parent=5 // pred_check
        %p162 = pneg %p161
      $region18: #{generator_forward.54} parent=5 // pred_check_branch
        %164 = sbr.rel (%p162) target = $region20
      $region19: #{generator_forward.54} parent=5 // pred_region
        // Predicated region
        $region21: #{generator_forward.54} parent=19 // pred_check
          %p165 = pneg %p50
        $region22: #{generator_forward.54} parent=19 // pred_check_branch
          %167 = sbr.rel (%p165) target = $region24
        $region23: #{generator_forward.54} parent=19 // pred_region
          %s168 = sand.u32 %s40, 1
          %s169 = sand.u32 %s40, 1
          %s170 = smul.addr %s169, 48
          %s171 = scalar_lea.vmem [#allocation3], %s170
          %s172 = smul.u32 4, %s16
          %s173 = smul.u32 3, %s18
          %s174 = smul.addr %s172, 18
          %s175 = sadd.s32 %s173, %s174
          %s176 = smul.addr %s175, 4
          %s177 = scalar_lea.vmem %s0, %s176
          // Predicated region
          $region25: #{generator_forward.54} parent=23 // pred_check
            _
          $region26: #{generator_forward.54} parent=23 // pred_check_branch
            %179 = sbr.rel (0) target = $region28
          $region27: #{generator_forward.54} parent=23 // pred_region
            // Predicated region
            $region29: #{generator_forward.54} parent=27 // pred_check
              _
            $region30: #{generator_forward.54} parent=27 // pred_check_branch
              %181 = sbr.rel (0) target = $region32
            $region31: #{generator_forward.54} parent=27 // pred_region
              %s182 = scalar_lea.vmem %s177, 8
              %s183 = scalar_lea.vmem %s171, 8 [#allocation3]
              loop: start=0, step=1, limit=1
              $region33: #{generator_forward.54} parent=31 // loop_pre_header
                _
              $region34: #{generator_forward.54} parent=31 // loop_header
                %s185 = sphi 0, %s189
                %p186 = scmp.ge.s32.totalorder %s185, 1
                %s190 = sphi %s177, %s177
                %s191 = sphi %s171, %s171
              $region35: #{generator_forward.54} parent=31 // loop_header_branch
                %188 = sbr.rel (%p186) target = $region39
              $region36: #{generator_forward.54} parent=31 // loop_body
                %v192 = vld [vmem:[%s190] sm:$0xff]
                %193 = vst [vmem:[%s191] sm:$0xff] %v192
                %v194 = vld [vmem:[%s190 + $0x48] sm:$0xff]
                %195 = vst [vmem:[%s191 + $0xc] sm:$0xff] %v194
                %v196 = vld [vmem:[%s190 + $0x90] sm:$0xff]
                %197 = vst [vmem:[%s191 + $0x18] sm:$0xff] %v196
                %v198 = vld [vmem:[%s190 + $0xd8] sm:$0xff]
                %199 = vst [vmem:[%s191 + $0x24] sm:$0xff] %v198
              $region37: #{generator_forward.54} parent=31 // loop_footer
                %s189 = sadd.s32 1, %s185
              $region38: #{generator_forward.54} parent=31 // loop_footer_branch
                %184 = sbr.rel target = $region34
              $region39: #{generator_forward.54} parent=31 // loop_exit
                _
              loop: start=0, step=1, limit=1
              $region40: #{generator_forward.54} parent=31 // loop_pre_header
                _
              $region41: #{generator_forward.54} parent=31 // loop_header
                %s202 = sphi 0, %s206
                %p203 = scmp.ge.s32.totalorder %s202, 1
                %s207 = sphi %s182, %s182
                %s208 = sphi %s183, %s183
              $region42: #{generator_forward.54} parent=31 // loop_header_branch
                %205 = sbr.rel (%p203) target = $region46
              $region43: #{generator_forward.54} parent=31 // loop_body
                %v209 = vld [vmem:[%s207] sm:$0xf]
                %210 = vst [vmem:[%s208] sm:$0xf] %v209
                %v211 = vld [vmem:[%s207 + $0x48] sm:$0xf]
                %212 = vst [vmem:[%s208 + $0xc] sm:$0xf] %v211
                %v213 = vld [vmem:[%s207 + $0x90] sm:$0xf]
                %214 = vst [vmem:[%s208 + $0x18] sm:$0xf] %v213
                %v215 = vld [vmem:[%s207 + $0xd8] sm:$0xf]
                %216 = vst [vmem:[%s208 + $0x24] sm:$0xf] %v215
              $region44: #{generator_forward.54} parent=31 // loop_footer
                %s206 = sadd.s32 1, %s202
              $region45: #{generator_forward.54} parent=31 // loop_footer_branch
                %201 = sbr.rel target = $region41
              $region46: #{generator_forward.54} parent=31 // loop_exit
                _
            $region32: #{generator_forward.54} parent=27 // pred_fallthru
              _
          $region28: #{generator_forward.54} parent=23 // pred_fallthru
            _
          %217 = vnop
        $region24: #{generator_forward.54} parent=19 // pred_fallthru
          _
        // Predicated region
        $region47: #{generator_forward.54} parent=19 // pred_check
          %p218 = pneg %p78
        $region48: #{generator_forward.54} parent=19 // pred_check_branch
          %220 = sbr.rel (%p218) target = $region50
        $region49: #{generator_forward.54} parent=19 // pred_region
          %s221 = smul.u32 48, %s18
          %s222 = smul.u32 2, %s17
          %p223 = scmp.lt.s32.totalorder %s221, 287
          %s224 = scalar_select %p223, %s221, 287
          %p225 = scmp.lt.s32.totalorder %s222, 1
          %s226 = scalar_select %p225, %s222, 1
          %s227 = smul.addr %s224, 2
          %s228 = sadd.s32 %s226, %s227
          %s229 = smul.addr %s228, 4
          %s230 = scalar_lea.vmem %s1, %s229
          %s231 = smul.u32 48, %s18
          %s232 = smul.u32 2, %s17
        $region50: #{generator_forward.54} parent=19 // pred_fallthru
          _
      $region20: #{generator_forward.54} parent=5 // pred_fallthru
        _
      %p233 = scmp.le.s32.totalorder 1, %s9
      %p234 = scmp.lt.s32.totalorder %s9, 7
      %p235 = pnand %p233, %p234
      %p236 = pneg %p235
      // Predicated region
      $region51: #{generator_forward.54} parent=5 // pred_check
        _
      $region52: #{generator_forward.54} parent=5 // pred_check_branch
        %238 = sbr.rel (%p235) target = $region54
      $region53: #{generator_forward.54} parent=5 // pred_region
        %s239 = ssub.s32 %s9, 1
        %s240 = sand.u32 %s43, 1
        %s241 = sand.u32 %s43, 1
        %s242 = smul.addr %s241, 48
        %s243 = scalar_lea.vmem [#allocation3], %s242
        // Predicated region
        $region55: #{generator_forward.54} parent=53 // pred_check
          %p244 = pneg %p56
        $region56: #{generator_forward.54} parent=53 // pred_check_branch
          %246 = sbr.rel (%p244) target = $region58
        $region57: #{generator_forward.54} parent=53 // pred_region
          _
        $region58: #{generator_forward.54} parent=53 // pred_fallthru
          _
        %s247 = sand.u32 %s43, 1
        %s248 = sand.u32 %s43, 1
        %s249 = smul.addr %s248, 48
        %s250 = scalar_lea.vmem [#allocation3], %s249
        %p251 = pneg %p56
        %p252 = pneg %p53
        %s253 = smul.u32 48, %s21
        %s254 = smul.u32 2, %s20
        %p255 = scmp.lt.s32.totalorder %s253, 287
        %s256 = scalar_select %p255, %s253, 287
        %p257 = scmp.lt.s32.totalorder %s254, 1
        %s258 = scalar_select %p257, %s254, 1
        %s259 = smul.addr %s256, 2
        %s260 = sadd.s32 %s258, %s259
        %s261 = smul.addr %s260, 4
        %s262 = scalar_lea.vmem %s1, %s261
        %p263 = pneg %p84
        %p264 = pneg %p81
        %s265 = smul.u32 2, %s20
        %p266 = scmp.lt.s32.totalorder %s265, 1
        %s267 = scalar_select %p266, %s265, 1
        %s268 = scalar_lea.vmem %s2, %s267
        %p269 = pneg %p110
        %p270 = pneg %p107
        %p271 = pneg %p138
        %p272 = pneg %p135
        %s273 = smul.u32 4, %s19
        %s274 = smul.u32 2, %s20
        %p275 = scmp.lt.s32.totalorder %s273, 3
        %s276 = scalar_select %p275, %s273, 3
        %p277 = scmp.lt.s32.totalorder %s274, 1
        %s278 = scalar_select %p277, %s274, 1
        %s279 = smul.addr %s276, 2
        %s280 = sadd.s32 %s278, %s279
        %s281 = smul.addr %s280, 8
        %s282 = scalar_lea.vmem %s3, %s281
        %s283 = smul.u32 4, %s19
        %s284 = smul.u32 3, %s21
        %s285 = smul.u32 48, %s21
        %s286 = smul.u32 2, %s20
        %p287 = scmp.lt.s32.totalorder %s285, 287
        %s288 = scalar_select %p287, %s285, 287
        %p289 = scmp.lt.s32.totalorder %s286, 1
        %s290 = scalar_select %p289, %s286, 1
        %s291 = smul.addr %s288, 2
        %s292 = sadd.s32 %s290, %s291
        %s293 = smul.addr %s292, 4
        %s294 = scalar_lea.vmem %s1, %s293
        %s295 = smul.u32 48, %s21
        %s296 = smul.u32 2, %s20
        %s297 = smul.u32 2, %s20
        %p298 = scmp.lt.s32.totalorder %s297, 1
        %s299 = scalar_select %p298, %s297, 1
        %s300 = scalar_lea.vmem %s2, %s299
        %s301 = smul.u32 2, %s20
        %s302 = smul.u32 4, %s19
        %s303 = smul.u32 2, %s20
        %p304 = scmp.lt.s32.totalorder %s302, 3
        %s305 = scalar_select %p304, %s302, 3
        %p306 = scmp.lt.s32.totalorder %s303, 1
        %s307 = scalar_select %p306, %s303, 1
        %s308 = smul.addr %s305, 2
        %s309 = sadd.s32 %s307, %s308
        %s310 = smul.addr %s309, 8
        %s311 = scalar_lea.vmem %s3, %s310
        %s312 = smul.u32 4, %s19
        %s313 = smul.u32 2, %s20
        %p315 = scmp.eq.s32.totalorder %s21, 0
        // Predicated region
        $region59: #{generator_forward.54} parent=53 // pred_check
          %p316 = pneg %p315
        $region60: #{generator_forward.54} parent=53 // pred_check_branch
          %318 = sbr.rel (%p316) target = $region62
        $region61: #{generator_forward.54} parent=53 // pred_region
          %319 = vst [vmem:[#allocation2] sm:$0xff] 0.0
          %320 = vst [vmem:[#allocation2 + $0x8] sm:$0xff] 0.0
          %321 = vst [vmem:[#allocation2 + $0x10] sm:$0xff] 0.0
          %322 = vst [vmem:[#allocation2 + $0x18] sm:$0xff] 0.0
          %323 = vst [vmem:[#allocation2 + $0x20] sm:$0xff] 0.0
          %324 = vst [vmem:[#allocation2 + $0x28] sm:$0xff] 0.0
          %325 = vst [vmem:[#allocation2 + $0x30] sm:$0xff] 0.0
          %326 = vst [vmem:[#allocation2 + $0x38] sm:$0xff] 0.0
        $region62: #{generator_forward.54} parent=53 // pred_fallthru
          _
        %v327 = vld [vmem:[#allocation2] sm:$0xff]
        %v328 = vld [vmem:[#allocation2 + $0x8] sm:$0xff]
        %v329 = vld [vmem:[#allocation2 + $0x10] sm:$0xff]
        %v330 = vld [vmem:[#allocation2 + $0x18] sm:$0xff]
        %v331 = vld [vmem:[#allocation2 + $0x20] sm:$0xff]
        %v332 = vld [vmem:[#allocation2 + $0x28] sm:$0xff]
        %v333 = vld [vmem:[#allocation2 + $0x30] sm:$0xff]
        %v334 = vld [vmem:[#allocation2 + $0x38] sm:$0xff]
        %v335 = vld [vmem:[%s243] sm:$0xff]
        %v336 = vld [vmem:[%s243 + $0x8] sm:$0xf]
        %v337 = vld [vmem:[%s243 + $0xc] sm:$0xff]
        %v338 = vld [vmem:[%s243 + $0x14] sm:$0xf]
        %v339 = vld [vmem:[%s243 + $0x18] sm:$0xff]
        %v340 = vld [vmem:[%s243 + $0x20] sm:$0xf]
        %v341 = vld [vmem:[%s243 + $0x24] sm:$0xff]
        %v342 = vld [vmem:[%s243 + $0x2c] sm:$0xf]
        %v343 = vld [vmem:[%s294] sm:$0xff]
        %v344 = vld [vmem:[%s294 + $0x8] sm:$0xff]
        %v345 = vld [vmem:[%s294 + $0x10] sm:$0xff]
        %v346 = vld [vmem:[%s294 + $0x18] sm:$0xff]
        %v347 = vld [vmem:[%s294 + $0x20] sm:$0xff]
        %v348 = vld [vmem:[%s294 + $0x28] sm:$0xff]
        %v349 = vld [vmem:[%s294 + $0x30] sm:$0xff]
        %v350 = vld [vmem:[%s294 + $0x38] sm:$0xff]
        %v351 = vld [vmem:[%s294 + $0x40] sm:$0xff]
        %v352 = vld [vmem:[%s294 + $0x48] sm:$0xff]
        %v353 = vld [vmem:[%s294 + $0x50] sm:$0xff]
        %v354 = vld [vmem:[%s294 + $0x58] sm:$0xff]
        %v355 = vld [vmem:[%s294 + $0x60] sm:$0xff]
        %v356 = vld [vmem:[%s294 + $0x68] sm:$0xff]
        %v357 = vld [vmem:[%s294 + $0x70] sm:$0xff]
        %v358 = vld [vmem:[%s294 + $0x78] sm:$0xff]
        %v359 = vld [vmem:[%s294 + $0x80] sm:$0xff]
        %v360 = vld [vmem:[%s294 + $0x88] sm:$0xff]
        %v361 = vld [vmem:[%s294 + $0x90] sm:$0xff]
        %v362 = vld [vmem:[%s294 + $0x98] sm:$0xff]
        %v363 = vld [vmem:[%s294 + $0xa0] sm:$0xff]
        %v364 = vld [vmem:[%s294 + $0xa8] sm:$0xff]
        %v365 = vld [vmem:[%s294 + $0xb0] sm:$0xff]
        %v366 = vld [vmem:[%s294 + $0xb8] sm:$0xff]
        %v367 = vld [vmem:[%s294 + $0xc0] sm:$0xff]
        %v368 = vld [vmem:[%s294 + $0xc8] sm:$0xff]
        %v369 = vld [vmem:[%s294 + $0xd0] sm:$0xff]
        %v370 = vld [vmem:[%s294 + $0xd8] sm:$0xff]
        %v371 = vld [vmem:[%s294 + $0xe0] sm:$0xff]
        %v372 = vld [vmem:[%s294 + $0xe8] sm:$0xff]
        %v373 = vld [vmem:[%s294 + $0xf0] sm:$0xff]
        %v374 = vld [vmem:[%s294 + $0xf8] sm:$0xff]
        %v375 = vld [vmem:[%s294 + $0x100] sm:$0xff]
        %v376 = vld [vmem:[%s294 + $0x108] sm:$0xff]
        %v377 = vld [vmem:[%s294 + $0x110] sm:$0xff]
        %v378 = vld [vmem:[%s294 + $0x118] sm:$0xff]
        %v379 = vld [vmem:[%s294 + $0x120] sm:$0xff]
        %v380 = vld [vmem:[%s294 + $0x128] sm:$0xff]
        %v381 = vld [vmem:[%s294 + $0x130] sm:$0xff]
        %v382 = vld [vmem:[%s294 + $0x138] sm:$0xff]
        %v383 = vld [vmem:[%s294 + $0x140] sm:$0xff]
        %v384 = vld [vmem:[%s294 + $0x148] sm:$0xff]
        %v385 = vld [vmem:[%s294 + $0x150] sm:$0xff]
        %v386 = vld [vmem:[%s294 + $0x158] sm:$0xff]
        %v387 = vld [vmem:[%s294 + $0x160] sm:$0xff]
        %v388 = vld [vmem:[%s294 + $0x168] sm:$0xff]
        %v389 = vld [vmem:[%s294 + $0x170] sm:$0xff]
        %v390 = vld [vmem:[%s294 + $0x178] sm:$0xff]
        %v399 = vunpack.c.l.b16 %v335
        %v400 = vunpack.c.h.b16 %v335
        %v401 = vunpack.c.l.b16 %v336
        %v402 = vunpack.c.l.b16 %v337
        %v403 = vunpack.c.h.b16 %v337
        %v404 = vunpack.c.l.b16 %v338
        %v405 = vunpack.c.l.b16 %v339
        %v406 = vunpack.c.h.b16 %v339
        %v407 = vunpack.c.l.b16 %v340
        %v408 = vunpack.c.l.b16 %v341
        %v409 = vunpack.c.h.b16 %v341
        %v410 = vunpack.c.l.b16 %v342
        %v411 = vpack.c.b16 %v402, %v399
        %v412 = vpack.c.b16 %v403, %v400
        %v413 = vpack.c.b16 %v404, %v401
        %v414 = vpack.c.b16 %v408, %v405
        %v415 = vpack.c.b16 %v409, %v406
        %v416 = vpack.c.b16 %v410, %v407
        %v471 = vunpack.c.l.b16 %v343
        %v472 = vunpack.c.h.b16 %v343
        %v473 = vunpack.c.l.b16 %v344
        %v474 = vunpack.c.h.b16 %v344
        %v475 = vunpack.c.l.b16 %v345
        %v476 = vunpack.c.h.b16 %v345
        %v477 = vunpack.c.l.b16 %v346
        %v478 = vunpack.c.h.b16 %v346
        %v479 = vunpack.c.l.b16 %v347
        %v480 = vunpack.c.h.b16 %v347
        %v481 = vunpack.c.l.b16 %v348
        %v482 = vunpack.c.h.b16 %v348
        %v483 = vunpack.c.l.b16 %v349
        %v484 = vunpack.c.h.b16 %v349
        %v485 = vunpack.c.l.b16 %v350
        %v486 = vunpack.c.h.b16 %v350
        %v487 = vunpack.c.l.b16 %v351
        %v488 = vunpack.c.h.b16 %v351
        %v489 = vunpack.c.l.b16 %v352
        %v490 = vunpack.c.h.b16 %v352
        %v491 = vunpack.c.l.b16 %v353
        %v492 = vunpack.c.h.b16 %v353
        %v493 = vunpack.c.l.b16 %v354
        %v494 = vunpack.c.h.b16 %v354
        %v495 = vunpack.c.l.b16 %v355
        %v496 = vunpack.c.h.b16 %v355
        %v497 = vunpack.c.l.b16 %v356
        %v498 = vunpack.c.h.b16 %v356
        %v499 = vunpack.c.l.b16 %v357
        %v500 = vunpack.c.h.b16 %v357
        %v501 = vunpack.c.l.b16 %v358
        %v502 = vunpack.c.h.b16 %v358
        %v503 = vunpack.c.l.b16 %v359
        %v504 = vunpack.c.h.b16 %v359
        %v505 = vunpack.c.l.b16 %v360
        %v506 = vunpack.c.h.b16 %v360
        %v507 = vunpack.c.l.b16 %v361
        %v508 = vunpack.c.h.b16 %v361
        %v509 = vunpack.c.l.b16 %v362
        %v510 = vunpack.c.h.b16 %v362
        %v511 = vunpack.c.l.b16 %v363
        %v512 = vunpack.c.h.b16 %v363
        %v513 = vunpack.c.l.b16 %v364
        %v514 = vunpack.c.h.b16 %v364
        %v515 = vunpack.c.l.b16 %v365
        %v516 = vunpack.c.h.b16 %v365
        %v517 = vunpack.c.l.b16 %v366
        %v518 = vunpack.c.h.b16 %v366
        %v519 = vunpack.c.l.b16 %v367
        %v520 = vunpack.c.h.b16 %v367
        %v521 = vunpack.c.l.b16 %v368
        %v522 = vunpack.c.h.b16 %v368
        %v523 = vunpack.c.l.b16 %v369
        %v524 = vunpack.c.h.b16 %v369
        %v525 = vunpack.c.l.b16 %v370
        %v526 = vunpack.c.h.b16 %v370
        %v527 = vunpack.c.l.b16 %v371
        %v528 = vunpack.c.h.b16 %v371
        %v529 = vunpack.c.l.b16 %v372
        %v530 = vunpack.c.h.b16 %v372
        %v531 = vunpack.c.l.b16 %v373
        %v532 = vunpack.c.h.b16 %v373
        %v533 = vunpack.c.l.b16 %v374
        %v534 = vunpack.c.h.b16 %v374
        %v535 = vunpack.c.l.b16 %v375
        %v536 = vunpack.c.h.b16 %v375
        %v537 = vunpack.c.l.b16 %v376
        %v538 = vunpack.c.h.b16 %v376
        %v539 = vunpack.c.l.b16 %v377
        %v540 = vunpack.c.h.b16 %v377
        %v541 = vunpack.c.l.b16 %v378
        %v542 = vunpack.c.h.b16 %v378
        %v543 = vunpack.c.l.b16 %v379
        %v544 = vunpack.c.h.b16 %v379
        %v545 = vunpack.c.l.b16 %v380
        %v546 = vunpack.c.h.b16 %v380
        %v547 = vunpack.c.l.b16 %v381
        %v548 = vunpack.c.h.b16 %v381
        %v549 = vunpack.c.l.b16 %v382
        %v550 = vunpack.c.h.b16 %v382
        %v551 = vunpack.c.l.b16 %v383
        %v552 = vunpack.c.h.b16 %v383
        %v553 = vunpack.c.l.b16 %v384
        %v554 = vunpack.c.h.b16 %v384
        %v555 = vunpack.c.l.b16 %v385
        %v556 = vunpack.c.h.b16 %v385
        %v557 = vunpack.c.l.b16 %v386
        %v558 = vunpack.c.h.b16 %v386
        %v559 = vunpack.c.l.b16 %v387
        %v560 = vunpack.c.h.b16 %v387
        %v561 = vunpack.c.l.b16 %v388
        %v562 = vunpack.c.h.b16 %v388
        %v563 = vunpack.c.l.b16 %v389
        %v564 = vunpack.c.h.b16 %v389
        %v565 = vunpack.c.l.b16 %v390
        %v566 = vunpack.c.h.b16 %v390
        %v567 = vpack.c.b16 %v473, %v471
        %v568 = vpack.c.b16 %v474, %v472
        %v569 = vpack.c.b16 %v477, %v475
        %v570 = vpack.c.b16 %v478, %v476
        %v571 = vpack.c.b16 %v481, %v479
        %v572 = vpack.c.b16 %v482, %v480
        %v573 = vpack.c.b16 %v485, %v483
        %v574 = vpack.c.b16 %v486, %v484
        %v575 = vpack.c.b16 %v489, %v487
        %v576 = vpack.c.b16 %v490, %v488
        %v577 = vpack.c.b16 %v493, %v491
        %v578 = vpack.c.b16 %v494, %v492
        %v579 = vpack.c.b16 %v497, %v495
        %v580 = vpack.c.b16 %v498, %v496
        %v581 = vpack.c.b16 %v501, %v499
        %v582 = vpack.c.b16 %v502, %v500
        %v583 = vpack.c.b16 %v505, %v503
        %v584 = vpack.c.b16 %v506, %v504
        %v585 = vpack.c.b16 %v509, %v507
        %v586 = vpack.c.b16 %v510, %v508
        %v587 = vpack.c.b16 %v513, %v511
        %v588 = vpack.c.b16 %v514, %v512
        %v589 = vpack.c.b16 %v517, %v515
        %v590 = vpack.c.b16 %v518, %v516
        %v591 = vpack.c.b16 %v521, %v519
        %v592 = vpack.c.b16 %v522, %v520
        %v593 = vpack.c.b16 %v525, %v523
        %v594 = vpack.c.b16 %v526, %v524
        %v595 = vpack.c.b16 %v529, %v527
        %v596 = vpack.c.b16 %v530, %v528
        %v597 = vpack.c.b16 %v533, %v531
        %v598 = vpack.c.b16 %v534, %v532
        %v599 = vpack.c.b16 %v537, %v535
        %v600 = vpack.c.b16 %v538, %v536
        %v601 = vpack.c.b16 %v541, %v539
        %v602 = vpack.c.b16 %v542, %v540
        %v603 = vpack.c.b16 %v545, %v543
        %v604 = vpack.c.b16 %v546, %v544
        %v605 = vpack.c.b16 %v549, %v547
        %v606 = vpack.c.b16 %v550, %v548
        %v607 = vpack.c.b16 %v553, %v551
        %v608 = vpack.c.b16 %v554, %v552
        %v609 = vpack.c.b16 %v557, %v555
        %v610 = vpack.c.b16 %v558, %v556
        %v611 = vpack.c.b16 %v561, %v559
        %v612 = vpack.c.b16 %v562, %v560
        %v613 = vpack.c.b16 %v565, %v563
        %v614 = vpack.c.b16 %v566, %v564
        %663 = vmatprep.subr.bf16.mxu0 %v568
        %664 = vmatpush1.bf16.msra.mxu0 %v567
        %665 = vmatprep.subr.bf16.mxu0 %v570
        %666 = vmatpush1.bf16.msra.mxu0 %v569
        %667 = vmatprep.subr.bf16.mxu0 %v572
        %668 = vmatpush1.bf16.msra.mxu0 %v571
        %669 = vmatprep.subr.bf16.mxu0 %v574
        %670 = vmatpush1.bf16.msra.mxu0 %v573
        %671 = vmatprep.subr.bf16.mxu0 %v576
        %672 = vmatpush1.bf16.msra.mxu0 %v575
        %673 = vmatprep.subr.bf16.mxu0 %v578
        %674 = vmatpush1.bf16.msra.mxu0 %v577
        %675 = vmatprep.subr.bf16.mxu0 %v580
        %676 = vmatpush1.bf16.msra.mxu0 %v579
        %677 = vmatprep.subr.bf16.mxu0 %v582
        %678 = vmatpush1.bf16.msra.mxu0 %v581
        %679 = vmatprep.subr.bf16.mxu0 %v584
        %680 = vmatpush1.bf16.msra.mxu0 %v583
        %681 = vmatprep.subr.bf16.mxu0 %v586
        %682 = vmatpush1.bf16.msra.mxu0 %v585
        %683 = vmatprep.subr.bf16.mxu0 %v588
        %684 = vmatpush1.bf16.msra.mxu0 %v587
        %685 = vmatprep.subr.bf16.mxu0 %v590
        %686 = vmatpush1.bf16.msra.mxu0 %v589
        %687 = vmatprep.subr.bf16.mxu0 %v592
        %688 = vmatpush1.bf16.msra.mxu0 %v591
        %689 = vmatprep.subr.bf16.mxu0 %v594
        %690 = vmatpush1.bf16.msra.mxu0 %v593
        %691 = vmatprep.subr.bf16.mxu0 %v596
        %692 = vmatpush1.bf16.msra.mxu0 %v595
        %693 = vmatprep.subr.bf16.mxu0 %v598
        %694 = vmatpush1.bf16.msra.mxu0 %v597
        %695 = vmatprep.mubr.bf16.mxu0 %v412
        %696 = vmatmul.mubr.bf16.gmra.mrb[0].mxu0 %v411
        %v697 = vpop.f32.mrb[0].mxu0
        %v698 = vadd.f32 0.0, %v697
        %v699 = vpop.f32.mrb[0].mxu0
        %v700 = vadd.f32 0.0, %v699
        %v701 = vpop.f32.mrb[0].mxu0
        %v702 = vadd.f32 0.0, %v701
        %v703 = vpop.f32.mrb[0].mxu0
        %v704 = vadd.f32 0.0, %v703
        %705 = vmatprep.mubr.bf16.mxu0 %v415
        %706 = vmatmul.mubr.bf16.gmra.mrb[0].mxu0 %v414
        %v707 = vpop.f32.mrb[0].mxu0
        %v708 = vadd.f32 0.0, %v707
        %v709 = vpop.f32.mrb[0].mxu0
        %v710 = vadd.f32 0.0, %v709
        %v711 = vpop.f32.mrb[0].mxu0
        %v712 = vadd.f32 0.0, %v711
        %v713 = vpop.f32.mrb[0].mxu0
        %v714 = vadd.f32 0.0, %v713
        %715 = vdwg.mxu0
        %716 = vmatprep.subr.bf16.mxu0 %v600
        %717 = vmatpush1.bf16.msra.mxu0 %v599
        %718 = vmatprep.subr.bf16.mxu0 %v602
        %719 = vmatpush1.bf16.msra.mxu0 %v601
        %720 = vmatprep.subr.bf16.mxu0 %v604
        %721 = vmatpush1.bf16.msra.mxu0 %v603
        %722 = vmatprep.subr.bf16.mxu0 %v606
        %723 = vmatpush1.bf16.msra.mxu0 %v605
        %724 = vmatprep.subr.bf16.mxu0 %v608
        %725 = vmatpush1.bf16.msra.mxu0 %v607
        %726 = vmatprep.subr.bf16.mxu0 %v610
        %727 = vmatpush1.bf16.msra.mxu0 %v609
        %728 = vmatprep.subr.bf16.mxu0 %v612
        %729 = vmatpush1.bf16.msra.mxu0 %v611
        %730 = vmatprep.subr.bf16.mxu0 %v614
        %731 = vmatpush1.bf16.msra.mxu0 %v613
        %732 = vmatprep.subr.bf16.mxu0 0
        %733 = vmatpush1.bf16.msra.mxu0 0
        %734 = vmatprep.subr.bf16.mxu0 0
        %735 = vmatpush1.bf16.msra.mxu0 0
        %736 = vmatprep.subr.bf16.mxu0 0
        %737 = vmatpush1.bf16.msra.mxu0 0
        %738 = vmatprep.subr.bf16.mxu0 0
        %739 = vmatpush1.bf16.msra.mxu0 0
        %740 = vmatprep.subr.bf16.mxu0 0
        %741 = vmatpush1.bf16.msra.mxu0 0
        %742 = vmatprep.subr.bf16.mxu0 0
        %743 = vmatpush1.bf16.msra.mxu0 0
        %744 = vmatprep.subr.bf16.mxu0 0
        %745 = vmatpush1.bf16.msra.mxu0 0
        %746 = vmatprep.subr.bf16.mxu0 0
        %747 = vmatpush1.bf16.msra.mxu0 0
        %748 = vmatprep.mubr.bf16.mxu0 0
        %749 = vmatmul.mubr.bf16.gmra.mrb[0].mxu0 %v413
        %v750 = vpop.f32.mrb[0].mxu0
        %v751 = vadd.f32 %v698, %v750
        %v752 = vpop.f32.mrb[0].mxu0
        %v753 = vadd.f32 %v700, %v752
        %v754 = vpop.f32.mrb[0].mxu0
        %v755 = vadd.f32 %v702, %v754
        %v756 = vpop.f32.mrb[0].mxu0
        %v757 = vadd.f32 %v704, %v756
        %758 = vmatprep.mubr.bf16.mxu0 0
        %759 = vmatmul.mubr.bf16.gmra.mrb[0].mxu0 %v416
        %v760 = vpop.f32.mrb[0].mxu0
        %v761 = vadd.f32 %v708, %v760
        %v762 = vpop.f32.mrb[0].mxu0
        %v763 = vadd.f32 %v710, %v762
        %v764 = vpop.f32.mrb[0].mxu0
        %v765 = vadd.f32 %v712, %v764
        %v766 = vpop.f32.mrb[0].mxu0
        %v767 = vadd.f32 %v714, %v766
        %768 = vdwg.mxu0
        %v769 = vadd.f32 %v327, %v751
        %v770 = vadd.f32 %v328, %v753
        %v771 = vadd.f32 %v329, %v755
        %v772 = vadd.f32 %v330, %v757
        %v773 = vadd.f32 %v331, %v761
        %v774 = vadd.f32 %v332, %v763
        %v775 = vadd.f32 %v333, %v765
        %v776 = vadd.f32 %v334, %v767
        %777 = vst [vmem:[#allocation2] sm:$0xff] %v769
        %778 = vst [vmem:[#allocation2 + $0x8] sm:$0xff] %v770
        %779 = vst [vmem:[#allocation2 + $0x10] sm:$0xff] %v771
        %780 = vst [vmem:[#allocation2 + $0x18] sm:$0xff] %v772
        %781 = vst [vmem:[#allocation2 + $0x20] sm:$0xff] %v773
        %782 = vst [vmem:[#allocation2 + $0x28] sm:$0xff] %v774
        %783 = vst [vmem:[#allocation2 + $0x30] sm:$0xff] %v775
        %784 = vst [vmem:[#allocation2 + $0x38] sm:$0xff] %v776
        %p785 = scmp.eq.s32.totalorder %s21, 5
        // Predicated region
        $region63: #{generator_forward.54} parent=53 // pred_check
          %p786 = pneg %p785
        $region64: #{generator_forward.54} parent=53 // pred_check_branch
          %788 = sbr.rel (%p786) target = $region66
        $region65: #{generator_forward.54} parent=53 // pred_region
          %v789 = vld [vmem:[#allocation2] sm:$0xff]
          %v790 = vld [vmem:[#allocation2 + $0x8] sm:$0xff]
          %v791 = vld [vmem:[#allocation2 + $0x10] sm:$0xff]
          %v792 = vld [vmem:[#allocation2 + $0x18] sm:$0xff]
          %v793 = vld [vmem:[#allocation2 + $0x20] sm:$0xff]
          %v794 = vld [vmem:[#allocation2 + $0x28] sm:$0xff]
          %v795 = vld [vmem:[#allocation2 + $0x30] sm:$0xff]
          %v796 = vld [vmem:[#allocation2 + $0x38] sm:$0xff]
          %v797 = vld [vmem:[%s300] sm:$0x3]
          %v799 = vlaneseq
          %v800 = vshrl.u32 %v799, 7
          %v801 = vsub.s32 0, %v800
          %v802 = vrot.slane %v797, %v801
          %v803 = vlaneseq
          %v804 = vshrl.u32 %v803, 7
          %v805 = vsub.s32 1, %v804
          %v806 = vrot.slane %v797, %v805
          %v809 = vadd.f32 %v789, %v802
          %v810 = vadd.f32 %v790, %v806
          %v811 = vadd.f32 %v791, %v802
          %v812 = vadd.f32 %v792, %v806
          %v813 = vadd.f32 %v793, %v802
          %v814 = vadd.f32 %v794, %v806
          %v815 = vadd.f32 %v795, %v802
          %v816 = vadd.f32 %v796, %v806
          %817 = vst [vmem:[%s311] sm:$0xff] %v809
          %818 = vst [vmem:[%s311 + $0x8] sm:$0xff] %v810
          %819 = vst [vmem:[%s311 + $0x10] sm:$0xff] %v811
          %820 = vst [vmem:[%s311 + $0x18] sm:$0xff] %v812
          %821 = vst [vmem:[%s311 + $0x20] sm:$0xff] %v813
          %822 = vst [vmem:[%s311 + $0x28] sm:$0xff] %v814
          %823 = vst [vmem:[%s311 + $0x30] sm:$0xff] %v815
          %824 = vst [vmem:[%s311 + $0x38] sm:$0xff] %v816
        $region66: #{generator_forward.54} parent=53 // pred_fallthru
          _
        %s825 = smul.u32 4, %s19
        %s826 = smul.u32 2, %s20
        %p827 = scmp.lt.s32.totalorder %s825, 3
        %s828 = scalar_select %p827, %s825, 3
        %p829 = scmp.lt.s32.totalorder %s826, 1
        %s830 = scalar_select %p829, %s826, 1
        %s831 = smul.addr %s828, 2
        %s832 = sadd.s32 %s830, %s831
        %s833 = smul.addr %s832, 8
        %s834 = scalar_lea.vmem %s3, %s833
        // Predicated region
        $region67: #{generator_forward.54} parent=53 // pred_check
          %p835 = pneg %p135
        $region68: #{generator_forward.54} parent=53 // pred_check_branch
          %837 = sbr.rel (%p835) target = $region70
        $region69: #{generator_forward.54} parent=53 // pred_region
          %s838 = smul.u32 4, %s19
          %s839 = smul.u32 2, %s20
        $region70: #{generator_forward.54} parent=53 // pred_fallthru
          _
        // Predicated region
        $region71: #{generator_forward.54} parent=53 // pred_check
          %p840 = pneg %p135
        $region72: #{generator_forward.54} parent=53 // pred_check_branch
          %842 = sbr.rel (%p840) target = $region74
        $region73: #{generator_forward.54} parent=53 // pred_region
          %s843 = smul.u32 4, %s19
          %s844 = smul.u32 2, %s20
          %p845 = scmp.lt.s32.totalorder %s843, 3
          %s846 = scalar_select %p845, %s843, 3
          %p847 = scmp.lt.s32.totalorder %s844, 1
          %s848 = scalar_select %p847, %s844, 1
          %s849 = smul.addr %s846, 2
          %s850 = sadd.s32 %s848, %s849
          %s851 = smul.addr %s850, 8
          %s852 = scalar_lea.vmem %s3, %s851
        $region74: #{generator_forward.54} parent=53 // pred_fallthru
          _
      $region54: #{generator_forward.54} parent=5 // pred_fallthru
        _
      %p853 = scmp.le.s32.totalorder 2, %s9
      // Predicated region
      $region75: #{generator_forward.54} parent=5 // pred_check
        %p854 = pneg %p853
      $region76: #{generator_forward.54} parent=5 // pred_check_branch
        %856 = sbr.rel (%p854) target = $region78
      $region77: #{generator_forward.54} parent=5 // pred_region
        %s857 = ssub.s32 %s9, 2
      $region78: #{generator_forward.54} parent=5 // pred_fallthru
        _
    $region6: #{generator_forward.54} parent=1 // loop_footer
      %s13 = sadd.s32 1, %s9
    $region7: #{generator_forward.54} parent=1 // loop_footer_branch
      %8 = sbr.rel target = $region3
    $region8: #{generator_forward.54} parent=1 // loop_exit
      _

// kernel: generator_forward.57
$region0: #{generator_forward.57}
  #allocation0 [shape = 'u32[]', space=smem, size = 0x4, offset = 0x4, fixed_abs, tag = 'smem constant byte address 0x4 - core index']
  #allocation1 [shape = 'u32[144,128]{1,0:T(1,128)}', space=vmem, size = 0x12000, scoped, tag = 'internal scratch']
  %s0 = inlined_call_operand.vmem [shape: f32[2,16,256], index: 0, kind: input, shape index: {}]
  %s1 = inlined_call_operand.vmem [shape: f32[2,16,256], index: 1, kind: input, shape index: {}]
  %s2 = inlined_call_operand.vmem [shape: f32[2,16,256], index: 2, kind: output, shape index: {}]
  %s3 = sld [smem:[#allocation0]]
  $region151: #{generator_forward.57} parent=0
    _
  %s5 = ssub.s32 1, %s3
  %s6 = scalar_select 0, %s5, %s3
  $region1: #{generator_forward.57} parent=0
    #allocation2 [shape = 'u8[16384]{0}', space=vmem, size = 0x4000, scoped, tag = 'input window, operand 0']
    #allocation3 [shape = 'u8[16384]{0}', space=vmem, size = 0x4000, scoped, tag = 'input window, operand 1']
    #allocation4 [shape = 'u8[16384]{0}', space=vmem, size = 0x4000, scoped, tag = 'output window, operand 0']
    loop: start=0, step=1, limit=6
    $region2: #{generator_forward.57} parent=1 // loop_pre_header
      _
    $region3: #{generator_forward.57} parent=1 // loop_header
      %s8 = sphi 0, %s12
      %p9 = scmp.ge.s32.totalorder %s8, 6
      %s15 = sphi 0, %s27
      %s16 = sphi 0, %s23
      %s17 = sphi 0, %s15
      %s18 = sphi 0, %s16
      %s19 = sphi 0, %s17
      %s20 = sphi 0, %s18
      %s32 = sphi 0, %s34
      %s35 = sphi 0, %s32
      %s36 = sphi 0, %s35
      %s52 = sphi 0, %s36
      %s60 = sphi 0, %s62
      %s63 = sphi 0, %s60
      %s64 = sphi 0, %s63
      %s80 = sphi 0, %s64
      %s88 = sphi 0, %s90
      %s91 = sphi 0, %s88
      %s92 = sphi 0, %s91
      %s108 = sphi 0, %s92
    $region4: #{generator_forward.57} parent=1 // loop_header_branch
      %11 = sbr.rel (%p9) target = $region8
    $region5: #{generator_forward.57} parent=1 // loop_body
      %s13 = ssub.s32 %s8, 1
      %s14 = ssub.s32 %s8, 2
      %s21 = sadd.s32 1, %s16
      %p22 = scmp.ge.s32.totalorder %s21, 2
      %s23 = scalar_select %p22, 0, %s21
      %s24 = sadd.s32 1, %s15
      %s25 = scalar_select %p22, %s24, %s15
      %p26 = scmp.ge.s32.totalorder %s25, 2
      %s27 = scalar_select %p26, 0, %s25
      %s28 = ssub.s32 %s15, %s27
      %s29 = ssub.s32 %s16, %s23
      %s30 = sor.u32 %s28, %s29
      %p31 = scmp.eq.s32.totalorder %s30, 0
      %s33 = sadd.s32 %s32, 1
      %s34 = scalar_select %p31, %s32, %s33
      %p37 = pneg %p31
      %p38 = scmp.eq.s32.totalorder %s8, 3
      %p39 = por %p37, %p38
      %p40 = scmp.ne.s32.totalorder %s32, %s35
      %p41 = scmp.eq.s32.totalorder %s8, 0
      %p42 = por %p40, %p41
      %p43 = scmp.ne.s32.totalorder %s32, %s35
      %p44 = scmp.eq.s32.totalorder %s13, 3
      %p45 = por %p43, %p44
      %p46 = scmp.ne.s32.totalorder %s35, %s36
      %p47 = scmp.eq.s32.totalorder %s13, 0
      %p48 = por %p46, %p47
      %p49 = scmp.ne.s32.totalorder %s35, %s36
      %p50 = scmp.eq.s32.totalorder %s14, 3
      %p51 = por %p49, %p50
      %p53 = scmp.ne.s32.totalorder %s36, %s52
      %p54 = scmp.eq.s32.totalorder %s14, 0
      %p55 = por %p53, %p54
      %s56 = ssub.s32 %s15, %s27
      %s57 = ssub.s32 %s16, %s23
      %s58 = sor.u32 %s56, %s57
      %p59 = scmp.eq.s32.totalorder %s58, 0
      %s61 = sadd.s32 %s60, 1
      %s62 = scalar_select %p59, %s60, %s61
      %p65 = pneg %p59
      %p66 = scmp.eq.s32.totalorder %s8, 3
      %p67 = por %p65, %p66
      %p68 = scmp.ne.s32.totalorder %s60, %s63
      %p69 = scmp.eq.s32.totalorder %s8, 0
      %p70 = por %p68, %p69
      %p71 = scmp.ne.s32.totalorder %s60, %s63
      %p72 = scmp.eq.s32.totalorder %s13, 3
      %p73 = por %p71, %p72
      %p74 = scmp.ne.s32.totalorder %s63, %s64
      %p75 = scmp.eq.s32.totalorder %s13, 0
      %p76 = por %p74, %p75
      %p77 = scmp.ne.s32.totalorder %s63, %s64
      %p78 = scmp.eq.s32.totalorder %s14, 3
      %p79 = por %p77, %p78
      %p81 = scmp.ne.s32.totalorder %s64, %s80
      %p82 = scmp.eq.s32.totalorder %s14, 0
      %p83 = por %p81, %p82
      %s84 = ssub.s32 %s15, %s27
      %s85 = ssub.s32 %s16, %s23
      %s86 = sor.u32 %s84, %s85
      %p87 = scmp.eq.s32.totalorder %s86, 0
      %s89 = sadd.s32 %s88, 1
      %s90 = scalar_select %p87, %s88, %s89
      %p93 = pneg %p87
      %p94 = scmp.eq.s32.totalorder %s8, 3
      %p95 = por %p93, %p94
      %p96 = scmp.ne.s32.totalorder %s88, %s91
      %p97 = scmp.eq.s32.totalorder %s8, 0
      %p98 = por %p96, %p97
      %p99 = scmp.ne.s32.totalorder %s88, %s91
      %p100 = scmp.eq.s32.totalorder %s13, 3
      %p101 = por %p99, %p100
      %p102 = scmp.ne.s32.totalorder %s91, %s92
      %p103 = scmp.eq.s32.totalorder %s13, 0
      %p104 = por %p102, %p103
      %p105 = scmp.ne.s32.totalorder %s91, %s92
      %p106 = scmp.eq.s32.totalorder %s14, 3
      %p107 = por %p105, %p106
      %p109 = scmp.ne.s32.totalorder %s92, %s108
      %p110 = scmp.eq.s32.totalorder %s14, 0
      %p111 = por %p109, %p110
      %p112 = scmp.le.s32.totalorder 1, %s8
      %p113 = scmp.lt.s32.totalorder %s8, 5
      %p114 = pnand %p112, %p113
      %p115 = pneg %p114
      // Predicated region
      $region9: #{generator_forward.57} parent=5 // pred_check
        _
      $region10: #{generator_forward.57} parent=5 // pred_check_branch
        %117 = sbr.rel (%p114) target = $region12
      $region11: #{generator_forward.57} parent=5 // pred_region
        %s118 = ssub.s32 %s8, 1
      $region12: #{generator_forward.57} parent=5 // pred_fallthru
        _
      %p119 = scmp.lt.s32.totalorder %s8, 4
      // Predicated region
      $region13: #{generator_forward.57} parent=5 // pred_check
        %p120 = pneg %p119
      $region14: #{generator_forward.57} parent=5 // pred_check_branch
        %122 = sbr.rel (%p120) target = $region16
      $region15: #{generator_forward.57} parent=5 // pred_region
        // Predicated region
        $region17: #{generator_forward.57} parent=15 // pred_check
          %p123 = pneg %p42
        $region18: #{generator_forward.57} parent=15 // pred_check_branch
          %125 = sbr.rel (%p123) target = $region20
        $region19: #{generator_forward.57} parent=15 // pred_region
          %s126 = sand.u32 %s32, 1
          %s127 = sand.u32 %s32, 1
          %s128 = smul.addr %s127, 16
          %s129 = scalar_lea.vmem [#allocation2], %s128
          %s130 = smul.addr %s15, 4
          %s131 = sadd.s32 %s16, %s130
          %s132 = smul.addr %s131, 8
          %s133 = scalar_lea.vmem %s0, %s132
          // Predicated region
          $region21: #{generator_forward.57} parent=19 // pred_check
            _
          $region22: #{generator_forward.57} parent=19 // pred_check_branch
            %135 = sbr.rel (0) target = $region24
          $region23: #{generator_forward.57} parent=19 // pred_region
            // Predicated region
            $region25: #{generator_forward.57} parent=23 // pred_check
              _
            $region26: #{generator_forward.57} parent=23 // pred_check_branch
              %137 = sbr.rel (0) target = $region28
            $region27: #{generator_forward.57} parent=23 // pred_region
              // Predicated region
              $region40: #{generator_forward.57} parent=27 // pred_check
                _
              $region41: #{generator_forward.57} parent=27 // pred_check_branch
                %154 = sbr.rel (0) target = $region43
              $region42: #{generator_forward.57} parent=27 // pred_region
                loop: start=0, step=1, limit=1
                $region44: #{generator_forward.57} parent=42 // loop_pre_header
                  _
                $region45: #{generator_forward.57} parent=42 // loop_header
                  %s156 = sphi 0, %s160
                  %p157 = scmp.ge.s32.totalorder %s156, 1
                  %s161 = sphi %s133, %s133
                  %s162 = sphi %s129, %s129
                $region46: #{generator_forward.57} parent=42 // loop_header_branch
                  %159 = sbr.rel (%p157) target = $region50
                $region47: #{generator_forward.57} parent=42 // loop_body
                  %v163 = vld [vmem:[%s161] sm:$0xff]
                  %164 = vst [vmem:[%s162] sm:$0xff] %v163
                  %v165 = vld [vmem:[%s161 + $0x10] sm:$0xff]
                  %166 = vst [vmem:[%s162 + $0x8] sm:$0xff] %v165
                $region48: #{generator_forward.57} parent=42 // loop_footer
                  %s160 = sadd.s32 1, %s156
                $region49: #{generator_forward.57} parent=42 // loop_footer_branch
                  %155 = sbr.rel target = $region45
                $region50: #{generator_forward.57} parent=42 // loop_exit
                  _
              $region43: #{generator_forward.57} parent=27 // pred_fallthru
                _
              // Predicated region
              $region51: #{generator_forward.57} parent=27 // pred_check
                _
              $region52: #{generator_forward.57} parent=27 // pred_check_branch
                %168 = sbr.rel target = $region54
              $region53: #{generator_forward.57} parent=27 // pred_region
                _
              $region54: #{generator_forward.57} parent=27 // pred_fallthru
                _
            $region28: #{generator_forward.57} parent=23 // pred_fallthru
              _
            // Predicated region
            $region29: #{generator_forward.57} parent=23 // pred_check
              _
            $region30: #{generator_forward.57} parent=23 // pred_check_branch
              %139 = sbr.rel target = $region32
            $region31: #{generator_forward.57} parent=23 // pred_region
              loop: start=0, step=1, limit=1
              $region33: #{generator_forward.57} parent=31 // loop_pre_header
                _
              $region34: #{generator_forward.57} parent=31 // loop_header
                %s142 = sphi 0, %s146
                %p143 = scmp.ge.s32.totalorder %s142, 1
                %s147 = sphi %s133, %s133
                %s148 = sphi %s129, %s129
              $region35: #{generator_forward.57} parent=31 // loop_header_branch
                %145 = sbr.rel (%p143) target = $region39
              $region36: #{generator_forward.57} parent=31 // loop_body
                %v149 = vld [vmem:[%s147] sm:$0xff]
                %150 = vst [vmem:[%s148] sm:$0xff] %v149
                %v151 = vld [vmem:[%s147 + $0x10] sm:$0xff]
                %152 = vst [vmem:[%s148 + $0x8] sm:$0xff] %v151
              $region37: #{generator_forward.57} parent=31 // loop_footer
                %s146 = sadd.s32 1, %s142
              $region38: #{generator_forward.57} parent=31 // loop_footer_branch
                %141 = sbr.rel target = $region34
              $region39: #{generator_forward.57} parent=31 // loop_exit
                _
            $region32: #{generator_forward.57} parent=23 // pred_fallthru
              _
          $region24: #{generator_forward.57} parent=19 // pred_fallthru
            _
          %169 = vnop
        $region20: #{generator_forward.57} parent=15 // pred_fallthru
          _
        // Predicated region
        $region55: #{generator_forward.57} parent=15 // pred_check
          %p170 = pneg %p70
        $region56: #{generator_forward.57} parent=15 // pred_check_branch
          %172 = sbr.rel (%p170) target = $region58
        $region57: #{generator_forward.57} parent=15 // pred_region
          %s173 = sand.u32 %s60, 1
          %s174 = sand.u32 %s60, 1
          %s175 = smul.addr %s174, 16
          %s176 = scalar_lea.vmem [#allocation3], %s175
          %s177 = smul.addr %s15, 4
          %s178 = sadd.s32 %s16, %s177
          %s179 = smul.addr %s178, 8
          %s180 = scalar_lea.vmem %s1, %s179
          // Predicated region
          $region59: #{generator_forward.57} parent=57 // pred_check
            _
          $region60: #{generator_forward.57} parent=57 // pred_check_branch
            %182 = sbr.rel (0) target = $region62
          $region61: #{generator_forward.57} parent=57 // pred_region
            // Predicated region
            $region63: #{generator_forward.57} parent=61 // pred_check
              _
            $region64: #{generator_forward.57} parent=61 // pred_check_branch
              %184 = sbr.rel (0) target = $region66
            $region65: #{generator_forward.57} parent=61 // pred_region
              // Predicated region
              $region78: #{generator_forward.57} parent=65 // pred_check
                _
              $region79: #{generator_forward.57} parent=65 // pred_check_branch
                %201 = sbr.rel (0) target = $region81
              $region80: #{generator_forward.57} parent=65 // pred_region
                loop: start=0, step=1, limit=1
                $region82: #{generator_forward.57} parent=80 // loop_pre_header
                  _
                $region83: #{generator_forward.57} parent=80 // loop_header
                  %s203 = sphi 0, %s207
                  %p204 = scmp.ge.s32.totalorder %s203, 1
                  %s208 = sphi %s180, %s180
                  %s209 = sphi %s176, %s176
                $region84: #{generator_forward.57} parent=80 // loop_header_branch
                  %206 = sbr.rel (%p204) target = $region88
                $region85: #{generator_forward.57} parent=80 // loop_body
                  %v210 = vld [vmem:[%s208] sm:$0xff]
                  %211 = vst [vmem:[%s209] sm:$0xff] %v210
                  %v212 = vld [vmem:[%s208 + $0x10] sm:$0xff]
                  %213 = vst [vmem:[%s209 + $0x8] sm:$0xff] %v212
                $region86: #{generator_forward.57} parent=80 // loop_footer
                  %s207 = sadd.s32 1, %s203
                $region87: #{generator_forward.57} parent=80 // loop_footer_branch
                  %202 = sbr.rel target = $region83
                $region88: #{generator_forward.57} parent=80 // loop_exit
                  _
              $region81: #{generator_forward.57} parent=65 // pred_fallthru
                _
              // Predicated region
              $region89: #{generator_forward.57} parent=65 // pred_check
                _
              $region90: #{generator_forward.57} parent=65 // pred_check_branch
                %215 = sbr.rel target = $region92
              $region91: #{generator_forward.57} parent=65 // pred_region
                _
              $region92: #{generator_forward.57} parent=65 // pred_fallthru
                _
            $region66: #{generator_forward.57} parent=61 // pred_fallthru
              _
            // Predicated region
            $region67: #{generator_forward.57} parent=61 // pred_check
              _
            $region68: #{generator_forward.57} parent=61 // pred_check_branch
              %186 = sbr.rel target = $region70
            $region69: #{generator_forward.57} parent=61 // pred_region
              loop: start=0, step=1, limit=1
              $region71: #{generator_forward.57} parent=69 // loop_pre_header
                _
              $region72: #{generator_forward.57} parent=69 // loop_header
                %s189 = sphi 0, %s193
                %p190 = scmp.ge.s32.totalorder %s189, 1
                %s194 = sphi %s180, %s180
                %s195 = sphi %s176, %s176
              $region73: #{generator_forward.57} parent=69 // loop_header_branch
                %192 = sbr.rel (%p190) target = $region77
              $region74: #{generator_forward.57} parent=69 // loop_body
                %v196 = vld [vmem:[%s194] sm:$0xff]
                %197 = vst [vmem:[%s195] sm:$0xff] %v196
                %v198 = vld [vmem:[%s194 + $0x10] sm:$0xff]
                %199 = vst [vmem:[%s195 + $0x8] sm:$0xff] %v198
              $region75: #{generator_forward.57} parent=69 // loop_footer
                %s193 = sadd.s32 1, %s189
              $region76: #{generator_forward.57} parent=69 // loop_footer_branch
                %188 = sbr.rel target = $region72
              $region77: #{generator_forward.57} parent=69 // loop_exit
                _
            $region70: #{generator_forward.57} parent=61 // pred_fallthru
              _
          $region62: #{generator_forward.57} parent=57 // pred_fallthru
            _
          %216 = vnop
        $region58: #{generator_forward.57} parent=15 // pred_fallthru
          _
      $region16: #{generator_forward.57} parent=5 // pred_fallthru
        _
      %p217 = scmp.le.s32.totalorder 1, %s8
      %p218 = scmp.lt.s32.totalorder %s8, 5
      %p219 = pnand %p217, %p218
      %p220 = pneg %p219
      // Predicated region
      $region93: #{generator_forward.57} parent=5 // pred_check
        _
      $region94: #{generator_forward.57} parent=5 // pred_check_branch
        %222 = sbr.rel (%p219) target = $region96
      $region95: #{generator_forward.57} parent=5 // pred_region
        %s223 = ssub.s32 %s8, 1
        %s224 = sand.u32 %s35, 1
        %s225 = sand.u32 %s35, 1
        %s226 = smul.addr %s225, 16
        %s227 = scalar_lea.vmem [#allocation2], %s226
        // Predicated region
        $region97: #{generator_forward.57} parent=95 // pred_check
          %p228 = pneg %p48
        $region98: #{generator_forward.57} parent=95 // pred_check_branch
          %230 = sbr.rel (%p228) target = $region100
        $region99: #{generator_forward.57} parent=95 // pred_region
          _
        $region100: #{generator_forward.57} parent=95 // pred_fallthru
          _
        %s231 = sand.u32 %s63, 1
        %s232 = sand.u32 %s63, 1
        %s233 = smul.addr %s232, 16
        %s234 = scalar_lea.vmem [#allocation3], %s233
        // Predicated region
        $region101: #{generator_forward.57} parent=95 // pred_check
          %p235 = pneg %p76
        $region102: #{generator_forward.57} parent=95 // pred_check_branch
          %237 = sbr.rel (%p235) target = $region104
        $region103: #{generator_forward.57} parent=95 // pred_region
          _
        $region104: #{generator_forward.57} parent=95 // pred_fallthru
          _
        %s238 = sand.u32 %s35, 1
        %s239 = sand.u32 %s35, 1
        %s240 = smul.addr %s239, 16
        %s241 = scalar_lea.vmem [#allocation2], %s240
        %p242 = pneg %p48
        %p243 = pneg %p45
        %s244 = sand.u32 %s63, 1
        %s245 = sand.u32 %s63, 1
        %s246 = smul.addr %s245, 16
        %s247 = scalar_lea.vmem [#allocation3], %s246
        %p248 = pneg %p76
        %p249 = pneg %p73
        %p250 = pneg %p104
        %p251 = pneg %p101
        %s252 = sand.u32 %s91, 1
        %s253 = sand.u32 %s91, 1
        %s254 = smul.addr %s253, 16
        %s255 = scalar_lea.vmem [#allocation4], %s254
        %v256 = vld [vmem:[%s227] sm:$0xff]
        %v257 = vld [vmem:[%s227 + $0x8] sm:$0xff]
        %v258 = vadd.f32 %v256, %v257
        %v259 = vrot.slane %v258, 4
        %v260 = vadd.f32 %v258, %v259
        %v261 = vrot.slane %v260, 2
        %v262 = vadd.f32 %v260, %v261
        %v263 = vrot.slane %v262, 1
        %v264 = vadd.f32 %v262, %v263
        %v265 = vrcp.pop 16.0
        %v266 = vmul.f32 %v264, %v265
        %v267 = vsub.f32 %v256, %v266
        %v268 = vsub.f32 %v257, %v266
        %v269 = vmul.f32 %v267, %v267
        %v270 = vmul.f32 %v268, %v268
        %v271 = vadd.f32 %v269, %v270
        %v272 = vrot.slane %v271, 4
        %v273 = vadd.f32 %v271, %v272
        %v274 = vrot.slane %v273, 2
        %v275 = vadd.f32 %v273, %v274
        %v276 = vrot.slane %v275, 1
        %v277 = vadd.f32 %v275, %v276
        %v278 = vmul.f32 %v277, %v265
        %v279 = vld [vmem:[%s234] sm:$0xff]
        %v280 = vld [vmem:[%s234 + $0x8] sm:$0xff]
        %v281 = vadd.f32 %v278, 1e-05
        %v282 = vrsqrt.pop %v281
        %v283 = vmul.f32 %v267, %v282
        %v284 = vmul.f32 %v268, %v282
        %v285 = vadd.f32 %v279, %v283
        %v286 = vadd.f32 %v280, %v284
        %287 = vst [vmem:[%s255] sm:$0xff] %v285
        %288 = vst [vmem:[%s255 + $0x8] sm:$0xff] %v286
        %s289 = sand.u32 %s91, 1
        %s290 = sand.u32 %s91, 1
        %s291 = smul.addr %s290, 16
        %s292 = scalar_lea.vmem [#allocation4], %s291
        // Predicated region
        $region105: #{generator_forward.57} parent=95 // pred_check
          %p293 = pneg %p101
        $region106: #{generator_forward.57} parent=95 // pred_check_branch
          %295 = sbr.rel (%p293) target = $region108
        $region107: #{generator_forward.57} parent=95 // pred_region
          %s296 = smul.addr %s17, 4
          %s297 = sadd.s32 %s18, %s296
          %s298 = smul.addr %s297, 8
          %s299 = scalar_lea.vmem %s2, %s298
          // Predicated region
          $region109: #{generator_forward.57} parent=107 // pred_check
            _
          $region110: #{generator_forward.57} parent=107 // pred_check_branch
            %301 = sbr.rel (0) target = $region112
          $region111: #{generator_forward.57} parent=107 // pred_region
            // Predicated region
            $region113: #{generator_forward.57} parent=111 // pred_check
              _
            $region114: #{generator_forward.57} parent=111 // pred_check_branch
              %303 = sbr.rel (0) target = $region116
            $region115: #{generator_forward.57} parent=111 // pred_region
              // Predicated region
              $region128: #{generator_forward.57} parent=115 // pred_check
                _
              $region129: #{generator_forward.57} parent=115 // pred_check_branch
                %320 = sbr.rel (0) target = $region131
              $region130: #{generator_forward.57} parent=115 // pred_region
                loop: start=0, step=1, limit=1
                $region132: #{generator_forward.57} parent=130 // loop_pre_header
                  _
                $region133: #{generator_forward.57} parent=130 // loop_header
                  %s322 = sphi 0, %s326
                  %p323 = scmp.ge.s32.totalorder %s322, 1
                  %s327 = sphi %s292, %s292
                  %s328 = sphi %s299, %s299
                $region134: #{generator_forward.57} parent=130 // loop_header_branch
                  %325 = sbr.rel (%p323) target = $region138
                $region135: #{generator_forward.57} parent=130 // loop_body
                  %v329 = vld [vmem:[%s327] sm:$0xff]
                  %330 = vst [vmem:[%s328] sm:$0xff] %v329
                  %v331 = vld [vmem:[%s327 + $0x8] sm:$0xff]
                  %332 = vst [vmem:[%s328 + $0x10] sm:$0xff] %v331
                $region136: #{generator_forward.57} parent=130 // loop_footer
                  %s326 = sadd.s32 1, %s322
                $region137: #{generator_forward.57} parent=130 // loop_footer_branch
                  %321 = sbr.rel target = $region133
                $region138: #{generator_forward.57} parent=130 // loop_exit
                  _
              $region131: #{generator_forward.57} parent=115 // pred_fallthru
                _
              // Predicated region
              $region139: #{generator_forward.57} parent=115 // pred_check
                _
              $region140: #{generator_forward.57} parent=115 // pred_check_branch
                %334 = sbr.rel target = $region142
              $region141: #{generator_forward.57} parent=115 // pred_region
                _
              $region142: #{generator_forward.57} parent=115 // pred_fallthru
                _
            $region116: #{generator_forward.57} parent=111 // pred_fallthru
              _
            // Predicated region
            $region117: #{generator_forward.57} parent=111 // pred_check
              _
            $region118: #{generator_forward.57} parent=111 // pred_check_branch
              %305 = sbr.rel target = $region120
            $region119: #{generator_forward.57} parent=111 // pred_region
              loop: start=0, step=1, limit=1
              $region121: #{generator_forward.57} parent=119 // loop_pre_header
                _
              $region122: #{generator_forward.57} parent=119 // loop_header
                %s308 = sphi 0, %s312
                %p309 = scmp.ge.s32.totalorder %s308, 1
                %s313 = sphi %s292, %s292
                %s314 = sphi %s299, %s299
              $region123: #{generator_forward.57} parent=119 // loop_header_branch
                %311 = sbr.rel (%p309) target = $region127
              $region124: #{generator_forward.57} parent=119 // loop_body
                %v315 = vld [vmem:[%s313] sm:$0xff]
                %316 = vst [vmem:[%s314] sm:$0xff] %v315
                %v317 = vld [vmem:[%s313 + $0x8] sm:$0xff]
                %318 = vst [vmem:[%s314 + $0x10] sm:$0xff] %v317
              $region125: #{generator_forward.57} parent=119 // loop_footer
                %s312 = sadd.s32 1, %s308
              $region126: #{generator_forward.57} parent=119 // loop_footer_branch
                %307 = sbr.rel target = $region122
              $region127: #{generator_forward.57} parent=119 // loop_exit
                _
            $region120: #{generator_forward.57} parent=111 // pred_fallthru
              _
          $region112: #{generator_forward.57} parent=107 // pred_fallthru
            _
          %335 = vnop
        $region108: #{generator_forward.57} parent=95 // pred_fallthru
          _
      $region96: #{generator_forward.57} parent=5 // pred_fallthru
        _
      %p336 = scmp.le.s32.totalorder 2, %s8
      // Predicated region
      $region143: #{generator_forward.57} parent=5 // pred_check
        %p337 = pneg %p336
      $region144: #{generator_forward.57} parent=5 // pred_check_branch
        %339 = sbr.rel (%p337) target = $region146
      $region145: #{generator_forward.57} parent=5 // pred_region
        %s340 = ssub.s32 %s8, 2
        // Predicated region
        $region147: #{generator_forward.57} parent=145 // pred_check
          %p341 = pneg %p107
        $region148: #{generator_forward.57} parent=145 // pred_check_branch
          %343 = sbr.rel (%p341) target = $region150
        $region149: #{generator_forward.57} parent=145 // pred_region
          %s344 = sand.u32 %s92, 1
          %s345 = sand.u32 %s92, 1
          %s346 = smul.addr %s345, 16
          %s347 = scalar_lea.vmem [#allocation4], %s346
        $region150: #{generator_forward.57} parent=145 // pred_fallthru
          _
      $region146: #{generator_forward.57} parent=5 // pred_fallthru
        _
    $region6: #{generator_forward.57} parent=1 // loop_footer
      %s12 = sadd.s32 1, %s8
    $region7: #{generator_forward.57} parent=1 // loop_footer_branch
      %7 = sbr.rel target = $region3
    $region8: #{generator_forward.57} parent=1 // loop_exit
      _

// kernel: tile.13
$region0: #{tile.13}
  #allocation0 [shape = 's32[1]{0}', space=sflag, size = 0x4, scoped, tag = 'scoped memory for tile.13']
  %s0 = inlined_call_operand.vmem [shape: f32[128], index: 0, kind: input, shape index: {}]
  %s1 = inlined_call_operand.vmem [shape: f32[4,128], index: 1, kind: output, shape index: {}]
  // Predicated region
  $region2: #{tile.13} parent=0 // pred_check
    _
  $region3: #{tile.13} parent=0 // pred_check_branch
    %3 = sbr.rel (0) target = $region5
  $region4: #{tile.13} parent=0 // pred_region
    _
  $region5: #{tile.13} parent=0 // pred_fallthru
    _
  %v4 = vld [vmem:[%s0] ss:$0 sm:$0xff]
  %5 = vst [vmem:[%s1] sm:$0xf] %v4

// kernel: generator_forward.90
$region0: #{generator_forward.90}
  #allocation0 [shape = 'u32[]', space=smem, size = 0x4, offset = 0x4, fixed_abs, tag = 'smem constant byte address 0x4 - core index']
  #allocation1 [shape = 'u32[144,128]{1,0:T(1,128)}', space=vmem, size = 0x12000, scoped, tag = 'internal scratch']
  #allocation2 [shape = 'f32[32,256]{1,0:T(8,128)}', space=vmem, size = 0x8000, scoped, tag = 'scratch operand']
  %s0 = inlined_call_operand.vmem [shape: bf16[32,1024], index: 0, kind: input, shape index: {}]
  %s1 = inlined_call_operand.vmem [shape: bf16[1024,512], index: 1, kind: input, shape index: {}]
  %s2 = inlined_call_operand.vmem [shape: f32[1,512], index: 2, kind: input, shape index: {}]
  %s3 = inlined_call_operand.vmem [shape: f32[32,512], index: 3, kind: output, shape index: {}]
  %s4 = sld [smem:[#allocation0]]
  $region133: #{generator_forward.90} parent=0
    _
  %s6 = ssub.s32 1, %s4
  %s7 = scalar_select 0, %s6, %s4
  $region1: #{generator_forward.90} parent=0
    #allocation3 [shape = 'u8[65536]{0}', space=vmem, size = 0x10000, scoped, tag = 'input window, operand 0']
    #allocation4 [shape = 'u8[524288]{0}', space=vmem, size = 0x80000, scoped, tag = 'input window, operand 1']
    #allocation5 [shape = 'u8[65536]{0}', space=vmem, size = 0x10000, scoped, tag = 'output window, operand 0']
    loop: start=0, step=1, limit=6
    $region2: #{generator_forward.90} parent=1 // loop_pre_header
      _
    $region3: #{generator_forward.90} parent=1 // loop_header
      %s9 = sphi 0, %s13
      %p10 = scmp.ge.s32.totalorder %s9, 6
      %s16 = sphi 0, %s35
      %s17 = sphi 0, %s31
      %s18 = sphi 0, %s27
      %s19 = sphi 0, %s16
      %s20 = sphi 0, %s17
      %s21 = sphi 0, %s18
      %s22 = sphi 0, %s19
      %s23 = sphi 0, %s20
      %s24 = sphi 0, %s21
      %s40 = sphi 0, %s42
      %s43 = sphi 0, %s40
      %s44 = sphi 0, %s43
      %s60 = sphi 0, %s44
      %s68 = sphi 0, %s70
      %s71 = sphi 0, %s68
      %s72 = sphi 0, %s71
      %s88 = sphi 0, %s72
      %s94 = sphi 0, %s96
      %s97 = sphi 0, %s94
      %s98 = sphi 0, %s97
      %s114 = sphi 0, %s98
      %s122 = sphi 0, %s124
      %s125 = sphi 0, %s122
      %s126 = sphi 0, %s125
      %s142 = sphi 0, %s126
    $region4: #{generator_forward.90} parent=1 // loop_header_branch
      %12 = sbr.rel (%p10) target = $region8
    $region5: #{generator_forward.90} parent=1 // loop_body
      %s14 = ssub.s32 %s9, 1
      %s15 = ssub.s32 %s9, 2
      %s25 = sadd.s32 1, %s18
      %p26 = scmp.ge.s32.totalorder %s25, 2
      %s27 = scalar_select %p26, 0, %s25
      %s28 = sadd.s32 1, %s17
      %s29 = scalar_select %p26, %s28, %s17
      %p30 = scmp.ge.s32.totalorder %s29, 2
      %s31 = scalar_select %p30, 0, %s29
      %s32 = sadd.s32 1, %s16
      %s33 = scalar_select %p30, %s32, %s16
      %p34 = scmp.ge.s32.totalorder %s33, 1
      %s35 = scalar_select %p34, 0, %s33
      %s36 = ssub.s32 %s16, %s35
      %s37 = ssub.s32 %s18, %s27
      %s38 = sor.u32 %s36, %s37
      %p39 = scmp.eq.s32.totalorder %s38, 0
      %s41 = sadd.s32 %s40, 1
      %s42 = scalar_select %p39, %s40, %s41
      %p45 = pneg %p39
      %p46 = scmp.eq.s32.totalorder %s9, 3
      %p47 = por %p45, %p46
      %p48 = scmp.ne.s32.totalorder %s40, %s43
      %p49 = scmp.eq.s32.totalorder %s9, 0
      %p50 = por %p48, %p49
      %p51 = scmp.ne.s32.totalorder %s40, %s43
      %p52 = scmp.eq.s32.totalorder %s14, 3
      %p53 = por %p51, %p52
      %p54 = scmp.ne.s32.totalorder %s43, %s44
      %p55 = scmp.eq.s32.totalorder %s14, 0
      %p56 = por %p54, %p55
      %p57 = scmp.ne.s32.totalorder %s43, %s44
      %p58 = scmp.eq.s32.totalorder %s15, 3
      %p59 = por %p57, %p58
      %p61 = scmp.ne.s32.totalorder %s44, %s60
      %p62 = scmp.eq.s32.totalorder %s15, 0
      %p63 = por %p61, %p62
      %s64 = ssub.s32 %s18, %s27
      %s65 = ssub.s32 %s17, %s31
      %s66 = sor.u32 %s64, %s65
      %p67 = scmp.eq.s32.totalorder %s66, 0
      %s69 = sadd.s32 %s68, 1
      %s70 = scalar_select %p67, %s68, %s69
      %p73 = pneg %p67
      %p74 = scmp.eq.s32.totalorder %s9, 3
      %p75 = por %p73, %p74
      %p76 = scmp.ne.s32.totalorder %s68, %s71
      %p77 = scmp.eq.s32.totalorder %s9, 0
      %p78 = por %p76, %p77
      %p79 = scmp.ne.s32.totalorder %s68, %s71
      %p80 = scmp.eq.s32.totalorder %s14, 3
      %p81 = por %p79, %p80
      %p82 = scmp.ne.s32.totalorder %s71, %s72
      %p83 = scmp.eq.s32.totalorder %s14, 0
      %p84 = por %p82, %p83
      %p85 = scmp.ne.s32.totalorder %s71, %s72
      %p86 = scmp.eq.s32.totalorder %s15, 3
      %p87 = por %p85, %p86
      %p89 = scmp.ne.s32.totalorder %s72, %s88
      %p90 = scmp.eq.s32.totalorder %s15, 0
      %p91 = por %p89, %p90
      %s92 = ssub.s32 %s17, %s31
      %p93 = scmp.eq.s32.totalorder %s92, 0
      %s95 = sadd.s32 %s94, 1
      %s96 = scalar_select %p93, %s94, %s95
      %p99 = pneg %p93
      %p100 = scmp.eq.s32.totalorder %s9, 3
      %p101 = por %p99, %p100
      %p102 = scmp.ne.s32.totalorder %s94, %s97
      %p103 = scmp.eq.s32.totalorder %s9, 0
      %p104 = por %p102, %p103
      %p105 = scmp.ne.s32.totalorder %s94, %s97
      %p106 = scmp.eq.s32.totalorder %s14, 3
      %p107 = por %p105, %p106
      %p108 = scmp.ne.s32.totalorder %s97, %s98
      %p109 = scmp.eq.s32.totalorder %s14, 0
      %p110 = por %p108, %p109
      %p111 = scmp.ne.s32.totalorder %s97, %s98
      %p112 = scmp.eq.s32.totalorder %s15, 3
      %p113 = por %p111, %p112
      %p115 = scmp.ne.s32.totalorder %s98, %s114
      %p116 = scmp.eq.s32.totalorder %s15, 0
      %p117 = por %p115, %p116
      %s118 = ssub.s32 %s16, %s35
      %s119 = ssub.s32 %s17, %s31
      %s120 = sor.u32 %s118, %s119
      %p121 = scmp.eq.s32.totalorder %s120, 0
      %s123 = sadd.s32 %s122, 1
      %s124 = scalar_select %p121, %s122, %s123
      %p127 = pneg %p121
      %p128 = scmp.eq.s32.totalorder %s9, 3
      %p129 = por %p127, %p128
      %p130 = scmp.ne.s32.totalorder %s122, %s125
      %p131 = scmp.eq.s32.totalorder %s9, 0
      %p132 = por %p130, %p131
      %p133 = scmp.ne.s32.totalorder %s122, %s125
      %p134 = scmp.eq.s32.totalorder %s14, 3
      %p135 = por %p133, %p134
      %p136 = scmp.ne.s32.totalorder %s125, %s126
      %p137 = scmp.eq.s32.totalorder %s14, 0
      %p138 = por %p136, %p137
      %p139 = scmp.ne.s32.totalorder %s125, %s126
      %p140 = scmp.eq.s32.totalorder %s15, 3
      %p141 = por %p139, %p140
      %p143 = scmp.ne.s32.totalorder %s126, %s142
      %p144 = scmp.eq.s32.totalorder %s15, 0
      %p145 = por %p143, %p144
      %p146 = scmp.le.s32.totalorder 1, %s9
      %p147 = scmp.lt.s32.totalorder %s9, 5
      %p148 = pnand %p146, %p147
      %p149 = pneg %p148
      // Predicated region
      $region9: #{generator_forward.90} parent=5 // pred_check
        _
      $region10: #{generator_forward.90} parent=5 // pred_check_branch
        %151 = sbr.rel (%p148) target = $region12
      $region11: #{generator_forward.90} parent=5 // pred_region
        %s152 = ssub.s32 %s9, 1
      $region12: #{generator_forward.90} parent=5 // pred_fallthru
        _
      %p153 = scmp.lt.s32.totalorder %s9, 4
      // Predicated region
      $region13: #{generator_forward.90} parent=5 // pred_check
        %p154 = pneg %p153
      $region14: #{generator_forward.90} parent=5 // pred_check_branch
        %156 = sbr.rel (%p154) target = $region16
      $region15: #{generator_forward.90} parent=5 // pred_region
        // Predicated region
        $region17: #{generator_forward.90} parent=15 // pred_check
          %p157 = pneg %p50
        $region18: #{generator_forward.90} parent=15 // pred_check_branch
          %159 = sbr.rel (%p157) target = $region20
        $region19: #{generator_forward.90} parent=15 // pred_region
          %s160 = sand.u32 %s40, 1
          %s161 = sand.u32 %s40, 1
          %s162 = smul.addr %s161, 64
          %s163 = scalar_lea.vmem [#allocation3], %s162
          %s164 = smul.u32 4, %s16
          %s165 = smul.u32 4, %s18
          %s166 = smul.addr %s164, 8
          %s167 = sadd.s32 %s165, %s166
          %s168 = smul.addr %s167, 4
          %s169 = scalar_lea.vmem %s0, %s168
          // Predicated region
          $region21: #{generator_forward.90} parent=19 // pred_check
            _
          $region22: #{generator_forward.90} parent=19 // pred_check_branch
            %171 = sbr.rel (0) target = $region24
          $region23: #{generator_forward.90} parent=19 // pred_region
            // Predicated region
            $region25: #{generator_forward.90} parent=23 // pred_check
              _
            $region26: #{generator_forward.90} parent=23 // pred_check_branch
              %173 = sbr.rel (0) target = $region28
            $region27: #{generator_forward.90} parent=23 // pred_region
              loop: start=0, step=1, limit=1
              $region29: #{generator_forward.90} parent=27 // loop_pre_header
                _
              $region30: #{generator_forward.90} parent=27 // loop_header
                %s175 = sphi 0, %s179
                %p176 = scmp.ge.s32.totalorder %s175, 1
                %s180 = sphi %s169, %s169
                %s181 = sphi %s163, %s163
              $region31: #{generator_forward.90} parent=27 // loop_header_branch
                %178 = sbr.rel (%p176) target = $region35
              $region32: #{generator_forward.90} parent=27 // loop_body
                %v182 = vld [vmem:[%s180] sm:$0xff]
                %183 = vst [vmem:[%s181] sm:$0xff] %v182
                %v184 = vld [vmem:[%s180 + $0x8] sm:$0xff]
                %185 = vst [vmem:[%s181 + $0x8] sm:$0xff] %v184
                %v186 = vld [vmem:[%s180 + $0x20] sm:$0xff]
                %187 = vst [vmem:[%s181 + $0x10] sm:$0xff] %v186
                %v188 = vld [vmem:[%s180 + $0x28] sm:$0xff]
                %189 = vst [vmem:[%s181 + $0x18] sm:$0xff] %v188
                %v190 = vld [vmem:[%s180 + $0x40] sm:$0xff]
                %191 = vst [vmem:[%s181 + $0x20] sm:$0xff] %v190
                %v192 = vld [vmem:[%s180 + $0x48] sm:$0xff]
                %193 = vst [vmem:[%s181 + $0x28] sm:$0xff] %v192
                %v194 = vld [vmem:[%s180 + $0x60] sm:$0xff]
                %195 = vst [vmem:[%s181 + $0x30] sm:$0xff] %v194
                %v196 = vld [vmem:[%s180 + $0x68] sm:$0xff]
                %197 = vst [vmem:[%s181 + $0x38] sm:$0xff] %v196
              $region33: #{generator_forward.90} parent=27 // loop_footer
                %s179 = sadd.s32 1, %s175
              $region34: #{generator_forward.90} parent=27 // loop_footer_branch
                %174 = sbr.rel target = $region30
              $region35: #{generator_forward.90} parent=27 // loop_exit
                _
            $region28: #{generator_forward.90} parent=23 // pred_fallthru
              _
            // Predicated region
            $region36: #{generator_forward.90} parent=23 // pred_check
              _
            $region37: #{generator_forward.90} parent=23 // pred_check_branch
              %199 = sbr.rel target = $region39
            $region38: #{generator_forward.90} parent=23 // pred_region
              _
            $region39: #{generator_forward.90} parent=23 // pred_fallthru
              _
          $region24: #{generator_forward.90} parent=19 // pred_fallthru
            _
          %200 = vnop
        $region20: #{generator_forward.90} parent=15 // pred_fallthru
          _
        // Predicated region
        $region40: #{generator_forward.90} parent=15 // pred_check
          %p201 = pneg %p78
        $region41: #{generator_forward.90} parent=15 // pred_check_branch
          %203 = sbr.rel (%p201) target = $region43
        $region42: #{generator_forward.90} parent=15 // pred_region
          %s204 = sand.u32 %s68, 1
          %s205 = sand.u32 %s68, 1
          %s206 = smul.addr %s205, 512
          %s207 = scalar_lea.vmem [#allocation4], %s206
          %s208 = smul.u32 64, %s18
          %s209 = smul.u32 2, %s17
          %s210 = smul.addr %s208, 4
          %s211 = sadd.s32 %s209, %s210
          %s212 = smul.addr %s211, 4
          %s213 = scalar_lea.vmem %s1, %s212
          // Predicated region
          $region44: #{generator_forward.90} parent=42 // pred_check
            _
          $region45: #{generator_forward.90} parent=42 // pred_check_branch
            %215 = sbr.rel (0) target = $region47
          $region46: #{generator_forward.90} parent=42 // pred_region
            // Predicated region
            $region48: #{generator_forward.90} parent=46 // pred_check
              _
            $region49: #{generator_forward.90} parent=46 // pred_check_branch
              %217 = sbr.rel (0) target = $region51
            $region50: #{generator_forward.90} parent=46 // pred_region
              // Predicated region
              $region63: #{generator_forward.90} parent=50 // pred_check
                _
              $region64: #{generator_forward.90} parent=50 // pred_check_branch
                %358 = sbr.rel (0) target = $region66
              $region65: #{generator_forward.90} parent=50 // pred_region
                loop: start=0, step=1, limit=1
                $region67: #{generator_forward.90} parent=65 // loop_pre_header
                  _
                $region68: #{generator_forward.90} parent=65 // loop_header
                  %s360 = sphi 0, %s364
                  %p361 = scmp.ge.s32.totalorder %s360, 1
                  %s365 = sphi %s213, %s213
                  %s366 = sphi %s207, %s207
                $region69: #{generator_forward.90} parent=65 // loop_header_branch
                  %363 = sbr.rel (%p361) target = $region73
                $region70: #{generator_forward.90} parent=65 // loop_body
                  %v367 = vld [vmem:[%s365] sm:$0xff]
                  %368 = vst [vmem:[%s366] sm:$0xff] %v367
                  %v369 = vld [vmem:[%s365 + $0x10] sm:$0xff]
                  %370 = vst [vmem:[%s366 + $0x8] sm:$0xff] %v369
                  %v371 = vld [vmem:[%s365 + $0x20] sm:$0xff]
                  %372 = vst [vmem:[%s366 + $0x10] sm:$0xff] %v371
                  %v373 = vld [vmem:[%s365 + $0x30] sm:$0xff]
                  %374 = vst [vmem:[%s366 + $0x18] sm:$0xff] %v373
                  %v375 = vld [vmem:[%s365 + $0x40] sm:$0xff]
                  %376 = vst [vmem:[%s366 + $0x20] sm:$0xff] %v375
                  %v377 = vld [vmem:[%s365 + $0x50] sm:$0xff]
                  %378 = vst [vmem:[%s366 + $0x28] sm:$0xff] %v377
                  %v379 = vld [vmem:[%s365 + $0x60] sm:$0xff]
                  %380 = vst [vmem:[%s366 + $0x30] sm:$0xff] %v379
                  %v381 = vld [vmem:[%s365 + $0x70] sm:$0xff]
                  %382 = vst [vmem:[%s366 + $0x38] sm:$0xff] %v381
                  %v383 = vld [vmem:[%s365 + $0x80] sm:$0xff]
                  %384 = vst [vmem:[%s366 + $0x40] sm:$0xff] %v383
                  %v385 = vld [vmem:[%s365 + $0x90] sm:$0xff]
                  %386 = vst [vmem:[%s366 + $0x48] sm:$0xff] %v385
                  %v387 = vld [vmem:[%s365 + $0xa0] sm:$0xff]
                  %388 = vst [vmem:[%s366 + $0x50] sm:$0xff] %v387
                  %v389 = vld [vmem:[%s365 + $0xb0] sm:$0xff]
                  %390 = vst [vmem:[%s366 + $0x58] sm:$0xff] %v389
                  %v391 = vld [vmem:[%s365 + $0xc0] sm:$0xff]
                  %392 = vst [vmem:[%s366 + $0x60] sm:$0xff] %v391
                  %v393 = vld [vmem:[%s365 + $0xd0] sm:$0xff]
                  %394 = vst [vmem:[%s366 + $0x68] sm:$0xff] %v393
                  %v395 = vld [vmem:[%s365 + $0xe0] sm:$0xff]
                  %396 = vst [vmem:[%s366 + $0x70] sm:$0xff] %v395
                  %v397 = vld [vmem:[%s365 + $0xf0] sm:$0xff]
                  %398 = vst [vmem:[%s366 + $0x78] sm:$0xff] %v397
                  %v399 = vld [vmem:[%s365 + $0x100] sm:$0xff]
                  %400 = vst [vmem:[%s366 + $0x80] sm:$0xff] %v399
                  %v401 = vld [vmem:[%s365 + $0x110] sm:$0xff]
                  %402 = vst [vmem:[%s366 + $0x88] sm:$0xff] %v401
                  %v403 = vld [vmem:[%s365 + $0x120] sm:$0xff]
                  %404 = vst [vmem:[%s366 + $0x90] sm:$0xff] %v403
                  %v405 = vld [vmem:[%s365 + $0x130] sm:$0xff]
                  %406 = vst [vmem:[%s366 + $0x98] sm:$0xff] %v405
                  %v407 = vld [vmem:[%s365 + $0x140] sm:$0xff]
                  %408 = vst [vmem:[%s366 + $0xa0] sm:$0xff] %v407
                  %v409 = vld [vmem:[%s365 + $0x150] sm:$0xff]
                  %410 = vst [vmem:[%s366 + $0xa8] sm:$0xff] %v409
                  %v411 = vld [vmem:[%s365 + $0x160] sm:$0xff]
                  %412 = vst [vmem:[%s366 + $0xb0] sm:$0xff] %v411
                  %v413 = vld [vmem:[%s365 + $0x170] sm:$0xff]
                  %414 = vst [vmem:[%s366 + $0xb8] sm:$0xff] %v413
                  %v415 = vld [vmem:[%s365 + $0x180] sm:$0xff]
                  %416 = vst [vmem:[%s366 + $0xc0] sm:$0xff] %v415
                  %v417 = vld [vmem:[%s365 + $0x190] sm:$0xff]
                  %418 = vst [vmem:[%s366 + $0xc8] sm:$0xff] %v417
                  %v419 = vld [vmem:[%s365 + $0x1a0] sm:$0xff]
                  %420 = vst [vmem:[%s366 + $0xd0] sm:$0xff] %v419
                  %v421 = vld [vmem:[%s365 + $0x1b0] sm:$0xff]
                  %422 = vst [vmem:[%s366 + $0xd8] sm:$0xff] %v421
                  %v423 = vld [vmem:[%s365 + $0x1c0] sm:$0xff]
                  %424 = vst [vmem:[%s366 + $0xe0] sm:$0xff] %v423
                  %v425 = vld [vmem:[%s365 + $0x1d0] sm:$0xff]
                  %426 = vst [vmem:[%s366 + $0xe8] sm:$0xff] %v425
                  %v427 = vld [vmem:[%s365 + $0x1e0] sm:$0xff]
                  %428 = vst [vmem:[%s366 + $0xf0] sm:$0xff] %v427
                  %v429 = vld [vmem:[%s365 + $0x1f0] sm:$0xff]
                  %430 = vst [vmem:[%s366 + $0xf8] sm:$0xff] %v429
                  %v431 = vld [vmem:[%s365 + $0x200] sm:$0xff]
                  %432 = vst [vmem:[%s366 + $0x100] sm:$0xff] %v431
                  %v433 = vld [vmem:[%s365 + $0x210] sm:$0xff]
                  %434 = vst [vmem:[%s366 + $0x108] sm:$0xff] %v433
                  %v435 = vld [vmem:[%s365 + $0x220] sm:$0xff]
                  %436 = vst [vmem:[%s366 + $0x110] sm:$0xff] %v435
                  %v437 = vld [vmem:[%s365 + $0x230] sm:$0xff]
                  %438 = vst [vmem:[%s366 + $0x118] sm:$0xff] %v437
                  %v439 = vld [vmem:[%s365 + $0x240] sm:$0xff]
                  %440 = vst [vmem:[%s366 + $0x120] sm:$0xff] %v439
                  %v441 = vld [vmem:[%s365 + $0x250] sm:$0xff]
                  %442 = vst [vmem:[%s366 + $0x128] sm:$0xff] %v441
                  %v443 = vld [vmem:[%s365 + $0x260] sm:$0xff]
                  %444 = vst [vmem:[%s366 + $0x130] sm:$0xff] %v443
                  %v445 = vld [vmem:[%s365 + $0x270] sm:$0xff]
                  %446 = vst [vmem:[%s366 + $0x138] sm:$0xff] %v445
                  %v447 = vld [vmem:[%s365 + $0x280] sm:$0xff]
                  %448 = vst [vmem:[%s366 + $0x140] sm:$0xff] %v447
                  %v449 = vld [vmem:[%s365 + $0x290] sm:$0xff]
                  %450 = vst [vmem:[%s366 + $0x148] sm:$0xff] %v449
                  %v451 = vld [vmem:[%s365 + $0x2a0] sm:$0xff]
                  %452 = vst [vmem:[%s366 + $0x150] sm:$0xff] %v451
                  %v453 = vld [vmem:[%s365 + $0x2b0] sm:$0xff]
                  %454 = vst [vmem:[%s366 + $0x158] sm:$0xff] %v453
                  %v455 = vld [vmem:[%s365 + $0x2c0] sm:$0xff]
                  %456 = vst [vmem:[%s366 + $0x160] sm:$0xff] %v455
                  %v457 = vld [vmem:[%s365 + $0x2d0] sm:$0xff]
                  %458 = vst [vmem:[%s366 + $0x168] sm:$0xff] %v457
                  %v459 = vld [vmem:[%s365 + $0x2e0] sm:$0xff]
                  %460 = vst [vmem:[%s366 + $0x170] sm:$0xff] %v459
                  %v461 = vld [vmem:[%s365 + $0x2f0] sm:$0xff]
                  %462 = vst [vmem:[%s366 + $0x178] sm:$0xff] %v461
                  %v463 = vld [vmem:[%s365 + $0x300] sm:$0xff]
                  %464 = vst [vmem:[%s366 + $0x180] sm:$0xff] %v463
                  %v465 = vld [vmem:[%s365 + $0x310] sm:$0xff]
                  %466 = vst [vmem:[%s366 + $0x188] sm:$0xff] %v465
                  %v467 = vld [vmem:[%s365 + $0x320] sm:$0xff]
                  %468 = vst [vmem:[%s366 + $0x190] sm:$0xff] %v467
                  %v469 = vld [vmem:[%s365 + $0x330] sm:$0xff]
                  %470 = vst [vmem:[%s366 + $0x198] sm:$0xff] %v469
                  %v471 = vld [vmem:[%s365 + $0x340] sm:$0xff]
                  %472 = vst [vmem:[%s366 + $0x1a0] sm:$0xff] %v471
                  %v473 = vld [vmem:[%s365 + $0x350] sm:$0xff]
                  %474 = vst [vmem:[%s366 + $0x1a8] sm:$0xff] %v473
                  %v475 = vld [vmem:[%s365 + $0x360] sm:$0xff]
                  %476 = vst [vmem:[%s366 + $0x1b0] sm:$0xff] %v475
                  %v477 = vld [vmem:[%s365 + $0x370] sm:$0xff]
                  %478 = vst [vmem:[%s366 + $0x1b8] sm:$0xff] %v477
                  %v479 = vld [vmem:[%s365 + $0x380] sm:$0xff]
                  %480 = vst [vmem:[%s366 + $0x1c0] sm:$0xff] %v479
                  %v481 = vld [vmem:[%s365 + $0x390] sm:$0xff]
                  %482 = vst [vmem:[%s366 + $0x1c8] sm:$0xff] %v481
                  %v483 = vld [vmem:[%s365 + $0x3a0] sm:$0xff]
                  %484 = vst [vmem:[%s366 + $0x1d0] sm:$0xff] %v483
                  %v485 = vld [vmem:[%s365 + $0x3b0] sm:$0xff]
                  %486 = vst [vmem:[%s366 + $0x1d8] sm:$0xff] %v485
                  %v487 = vld [vmem:[%s365 + $0x3c0] sm:$0xff]
                  %488 = vst [vmem:[%s366 + $0x1e0] sm:$0xff] %v487
                  %v489 = vld [vmem:[%s365 + $0x3d0] sm:$0xff]
                  %490 = vst [vmem:[%s366 + $0x1e8] sm:$0xff] %v489
                  %v491 = vld [vmem:[%s365 + $0x3e0] sm:$0xff]
                  %492 = vst [vmem:[%s366 + $0x1f0] sm:$0xff] %v491
                  %v493 = vld [vmem:[%s365 + $0x3f0] sm:$0xff]
                  %494 = vst [vmem:[%s366 + $0x1f8] sm:$0xff] %v493
                $region71: #{generator_forward.90} parent=65 // loop_footer
                  %s364 = sadd.s32 1, %s360
                $region72: #{generator_forward.90} parent=65 // loop_footer_branch
                  %359 = sbr.rel target = $region68
                $region73: #{generator_forward.90} parent=65 // loop_exit
                  _
              $region66: #{generator_forward.90} parent=50 // pred_fallthru
                _
              // Predicated region
              $region74: #{generator_forward.90} parent=50 // pred_check
                _
              $region75: #{generator_forward.90} parent=50 // pred_check_branch
                %496 = sbr.rel target = $region77
              $region76: #{generator_forward.90} parent=50 // pred_region
                _
              $region77: #{generator_forward.90} parent=50 // pred_fallthru
                _
            $region51: #{generator_forward.90} parent=46 // pred_fallthru
              _
            // Predicated region
            $region52: #{generator_forward.90} parent=46 // pred_check
              _
            $region53: #{generator_forward.90} parent=46 // pred_check_branch
              %219 = sbr.rel target = $region55
            $region54: #{generator_forward.90} parent=46 // pred_region
              loop: start=0, step=1, limit=1
              $region56: #{generator_forward.90} parent=54 // loop_pre_header
                _
              $region57: #{generator_forward.90} parent=54 // loop_header
                %s222 = sphi 0, %s226
                %p223 = scmp.ge.s32.totalorder %s222, 1
                %s227 = sphi %s213, %s213
                %s228 = sphi %s207, %s207
              $region58: #{generator_forward.90} parent=54 // loop_header_branch
                %225 = sbr.rel (%p223) target = $region62
              $region59: #{generator_forward.90} parent=54 // loop_body
                %v229 = vld [vmem:[%s227] sm:$0xff]
                %230 = vst [vmem:[%s228] sm:$0xff] %v229
                %v231 = vld [vmem:[%s227 + $0x10] sm:$0xff]
                %232 = vst [vmem:[%s228 + $0x8] sm:$0xff] %v231
                %v233 = vld [vmem:[%s227 + $0x20] sm:$0xff]
                %234 = vst [vmem:[%s228 + $0x10] sm:$0xff] %v233
                %v235 = vld [vmem:[%s227 + $0x30] sm:$0xff]
                %236 = vst [vmem:[%s228 + $0x18] sm:$0xff] %v235
                %v237 = vld [vmem:[%s227 + $0x40] sm:$0xff]
                %238 = vst [vmem:[%s228 + $0x20] sm:$0xff] %v237
                %v239 = vld [vmem:[%s227 + $0x50] sm:$0xff]
                %240 = vst [vmem:[%s228 + $0x28] sm:$0xff] %v239
                %v241 = vld [vmem:[%s227 + $0x60] sm:$0xff]
                %242 = vst [vmem:[%s228 + $0x30] sm:$0xff] %v241
                %v243 = vld [vmem:[%s227 + $0x70] sm:$0xff]
                %244 = vst [vmem:[%s228 + $0x38] sm:$0xff] %v243
                %v245 = vld [vmem:[%s227 + $0x80] sm:$0xff]
                %246 = vst [vmem:[%s228 + $0x40] sm:$0xff] %v245
                %v247 = vld [vmem:[%s227 + $0x90] sm:$0xff]
                %248 = vst [vmem:[%s228 + $0x48] sm:$0xff] %v247
                %v249 = vld [vmem:[%s227 + $0xa0] sm:$0xff]
                %250 = vst [vmem:[%s228 + $0x50] sm:$0xff] %v249
                %v251 = vld [vmem:[%s227 + $0xb0] sm:$0xff]
                %252 = vst [vmem:[%s228 + $0x58] sm:$0xff] %v251
                %v253 = vld [vmem:[%s227 + $0xc0] sm:$0xff]
                %254 = vst [vmem:[%s228 + $0x60] sm:$0xff] %v253
                %v255 = vld [vmem:[%s227 + $0xd0] sm:$0xff]
                %256 = vst [vmem:[%s228 + $0x68] sm:$0xff] %v255
                %v257 = vld [vmem:[%s227 + $0xe0] sm:$0xff]
                %258 = vst [vmem:[%s228 + $0x70] sm:$0xff] %v257
                %v259 = vld [vmem:[%s227 + $0xf0] sm:$0xff]
                %260 = vst [vmem:[%s228 + $0x78] sm:$0xff] %v259
                %v261 = vld [vmem:[%s227 + $0x100] sm:$0xff]
                %262 = vst [vmem:[%s228 + $0x80] sm:$0xff] %v261
                %v263 = vld [vmem:[%s227 + $0x110] sm:$0xff]
                %264 = vst [vmem:[%s228 + $0x88] sm:$0xff] %v263
                %v265 = vld [vmem:[%s227 + $0x120] sm:$0xff]
                %266 = vst [vmem:[%s228 + $0x90] sm:$0xff] %v265
                %v267 = vld [vmem:[%s227 + $0x130] sm:$0xff]
                %268 = vst [vmem:[%s228 + $0x98] sm:$0xff] %v267
                %v269 = vld [vmem:[%s227 + $0x140] sm:$0xff]
                %270 = vst [vmem:[%s228 + $0xa0] sm:$0xff] %v269
                %v271 = vld [vmem:[%s227 + $0x150] sm:$0xff]
                %272 = vst [vmem:[%s228 + $0xa8] sm:$0xff] %v271
                %v273 = vld [vmem:[%s227 + $0x160] sm:$0xff]
                %274 = vst [vmem:[%s228 + $0xb0] sm:$0xff] %v273
                %v275 = vld [vmem:[%s227 + $0x170] sm:$0xff]
                %276 = vst [vmem:[%s228 + $0xb8] sm:$0xff] %v275
                %v277 = vld [vmem:[%s227 + $0x180] sm:$0xff]
                %278 = vst [vmem:[%s228 + $0xc0] sm:$0xff] %v277
                %v279 = vld [vmem:[%s227 + $0x190] sm:$0xff]
                %280 = vst [vmem:[%s228 + $0xc8] sm:$0xff] %v279
                %v281 = vld [vmem:[%s227 + $0x1a0] sm:$0xff]
                %282 = vst [vmem:[%s228 + $0xd0] sm:$0xff] %v281
                %v283 = vld [vmem:[%s227 + $0x1b0] sm:$0xff]
                %284 = vst [vmem:[%s228 + $0xd8] sm:$0xff] %v283
                %v285 = vld [vmem:[%s227 + $0x1c0] sm:$0xff]
                %286 = vst [vmem:[%s228 + $0xe0] sm:$0xff] %v285
                %v287 = vld [vmem:[%s227 + $0x1d0] sm:$0xff]
                %288 = vst [vmem:[%s228 + $0xe8] sm:$0xff] %v287
                %v289 = vld [vmem:[%s227 + $0x1e0] sm:$0xff]
                %290 = vst [vmem:[%s228 + $0xf0] sm:$0xff] %v289
                %v291 = vld [vmem:[%s227 + $0x1f0] sm:$0xff]
                %292 = vst [vmem:[%s228 + $0xf8] sm:$0xff] %v291
                %v293 = vld [vmem:[%s227 + $0x200] sm:$0xff]
                %294 = vst [vmem:[%s228 + $0x100] sm:$0xff] %v293
                %v295 = vld [vmem:[%s227 + $0x210] sm:$0xff]
                %296 = vst [vmem:[%s228 + $0x108] sm:$0xff] %v295
                %v297 = vld [vmem:[%s227 + $0x220] sm:$0xff]
                %298 = vst [vmem:[%s228 + $0x110] sm:$0xff] %v297
                %v299 = vld [vmem:[%s227 + $0x230] sm:$0xff]
                %300 = vst [vmem:[%s228 + $0x118] sm:$0xff] %v299
                %v301 = vld [vmem:[%s227 + $0x240] sm:$0xff]
                %302 = vst [vmem:[%s228 + $0x120] sm:$0xff] %v301
                %v303 = vld [vmem:[%s227 + $0x250] sm:$0xff]
                %304 = vst [vmem:[%s228 + $0x128] sm:$0xff] %v303
                %v305 = vld [vmem:[%s227 + $0x260] sm:$0xff]
                %306 = vst [vmem:[%s228 + $0x130] sm:$0xff] %v305
                %v307 = vld [vmem:[%s227 + $0x270] sm:$0xff]
                %308 = vst [vmem:[%s228 + $0x138] sm:$0xff] %v307
                %v309 = vld [vmem:[%s227 + $0x280] sm:$0xff]
                %310 = vst [vmem:[%s228 + $0x140] sm:$0xff] %v309
                %v311 = vld [vmem:[%s227 + $0x290] sm:$0xff]
                %312 = vst [vmem:[%s228 + $0x148] sm:$0xff] %v311
                %v313 = vld [vmem:[%s227 + $0x2a0] sm:$0xff]
                %314 = vst [vmem:[%s228 + $0x150] sm:$0xff] %v313
                %v315 = vld [vmem:[%s227 + $0x2b0] sm:$0xff]
                %316 = vst [vmem:[%s228 + $0x158] sm:$0xff] %v315
                %v317 = vld [vmem:[%s227 + $0x2c0] sm:$0xff]
                %318 = vst [vmem:[%s228 + $0x160] sm:$0xff] %v317
                %v319 = vld [vmem:[%s227 + $0x2d0] sm:$0xff]
                %320 = vst [vmem:[%s228 + $0x168] sm:$0xff] %v319
                %v321 = vld [vmem:[%s227 + $0x2e0] sm:$0xff]
                %322 = vst [vmem:[%s228 + $0x170] sm:$0xff] %v321
                %v323 = vld [vmem:[%s227 + $0x2f0] sm:$0xff]
                %324 = vst [vmem:[%s228 + $0x178] sm:$0xff] %v323
                %v325 = vld [vmem:[%s227 + $0x300] sm:$0xff]
                %326 = vst [vmem:[%s228 + $0x180] sm:$0xff] %v325
                %v327 = vld [vmem:[%s227 + $0x310] sm:$0xff]
                %328 = vst [vmem:[%s228 + $0x188] sm:$0xff] %v327
                %v329 = vld [vmem:[%s227 + $0x320] sm:$0xff]
                %330 = vst [vmem:[%s228 + $0x190] sm:$0xff] %v329
                %v331 = vld [vmem:[%s227 + $0x330] sm:$0xff]
                %332 = vst [vmem:[%s228 + $0x198] sm:$0xff] %v331
                %v333 = vld [vmem:[%s227 + $0x340] sm:$0xff]
                %334 = vst [vmem:[%s228 + $0x1a0] sm:$0xff] %v333
                %v335 = vld [vmem:[%s227 + $0x350] sm:$0xff]
                %336 = vst [vmem:[%s228 + $0x1a8] sm:$0xff] %v335
                %v337 = vld [vmem:[%s227 + $0x360] sm:$0xff]
                %338 = vst [vmem:[%s228 + $0x1b0] sm:$0xff] %v337
                %v339 = vld [vmem:[%s227 + $0x370] sm:$0xff]
                %340 = vst [vmem:[%s228 + $0x1b8] sm:$0xff] %v339
                %v341 = vld [vmem:[%s227 + $0x380] sm:$0xff]
                %342 = vst [vmem:[%s228 + $0x1c0] sm:$0xff] %v341
                %v343 = vld [vmem:[%s227 + $0x390] sm:$0xff]
                %344 = vst [vmem:[%s228 + $0x1c8] sm:$0xff] %v343
                %v345 = vld [vmem:[%s227 + $0x3a0] sm:$0xff]
                %346 = vst [vmem:[%s228 + $0x1d0] sm:$0xff] %v345
                %v347 = vld [vmem:[%s227 + $0x3b0] sm:$0xff]
                %348 = vst [vmem:[%s228 + $0x1d8] sm:$0xff] %v347
                %v349 = vld [vmem:[%s227 + $0x3c0] sm:$0xff]
                %350 = vst [vmem:[%s228 + $0x1e0] sm:$0xff] %v349
                %v351 = vld [vmem:[%s227 + $0x3d0] sm:$0xff]
                %352 = vst [vmem:[%s228 + $0x1e8] sm:$0xff] %v351
                %v353 = vld [vmem:[%s227 + $0x3e0] sm:$0xff]
                %354 = vst [vmem:[%s228 + $0x1f0] sm:$0xff] %v353
                %v355 = vld [vmem:[%s227 + $0x3f0] sm:$0xff]
                %356 = vst [vmem:[%s228 + $0x1f8] sm:$0xff] %v355
              $region60: #{generator_forward.90} parent=54 // loop_footer
                %s226 = sadd.s32 1, %s222
              $region61: #{generator_forward.90} parent=54 // loop_footer_branch
                %221 = sbr.rel target = $region57
              $region62: #{generator_forward.90} parent=54 // loop_exit
                _
            $region55: #{generator_forward.90} parent=46 // pred_fallthru
              _
          $region47: #{generator_forward.90} parent=42 // pred_fallthru
            _
          %497 = vnop
        $region43: #{generator_forward.90} parent=15 // pred_fallthru
          _
        // Predicated region
        $region78: #{generator_forward.90} parent=15 // pred_check
          %p498 = pneg %p104
        $region79: #{generator_forward.90} parent=15 // pred_check_branch
          %500 = sbr.rel (%p498) target = $region81
        $region80: #{generator_forward.90} parent=15 // pred_region
          %s501 = smul.u32 2, %s17
          %p502 = scmp.lt.s32.totalorder %s501, 3
          %s503 = scalar_select %p502, %s501, 3
          %s504 = scalar_lea.vmem %s2, %s503
          %s505 = smul.u32 2, %s17
        $region81: #{generator_forward.90} parent=15 // pred_fallthru
          _
      $region16: #{generator_forward.90} parent=5 // pred_fallthru
        _
      %p506 = scmp.le.s32.totalorder 1, %s9
      %p507 = scmp.lt.s32.totalorder %s9, 5
      %p508 = pnand %p506, %p507
      %p509 = pneg %p508
      // Predicated region
      $region82: #{generator_forward.90} parent=5 // pred_check
        _
      $region83: #{generator_forward.90} parent=5 // pred_check_branch
        %511 = sbr.rel (%p508) target = $region85
      $region84: #{generator_forward.90} parent=5 // pred_region
        %s512 = ssub.s32 %s9, 1
        %s513 = sand.u32 %s43, 1
        %s514 = sand.u32 %s43, 1
        %s515 = smul.addr %s514, 64
        %s516 = scalar_lea.vmem [#allocation3], %s515
        // Predicated region
        $region86: #{generator_forward.90} parent=84 // pred_check
          %p517 = pneg %p56
        $region87: #{generator_forward.90} parent=84 // pred_check_branch
          %519 = sbr.rel (%p517) target = $region89
        $region88: #{generator_forward.90} parent=84 // pred_region
          _
        $region89: #{generator_forward.90} parent=84 // pred_fallthru
          _
        %s520 = sand.u32 %s71, 1
        %s521 = sand.u32 %s71, 1
        %s522 = smul.addr %s521, 512
        %s523 = scalar_lea.vmem [#allocation4], %s522
        // Predicated region
        $region90: #{generator_forward.90} parent=84 // pred_check
          %p524 = pneg %p84
        $region91: #{generator_forward.90} parent=84 // pred_check_branch
          %526 = sbr.rel (%p524) target = $region93
        $region92: #{generator_forward.90} parent=84 // pred_region
          _
        $region93: #{generator_forward.90} parent=84 // pred_fallthru
          _
        %s527 = sand.u32 %s43, 1
        %s528 = sand.u32 %s43, 1
        %s529 = smul.addr %s528, 64
        %s530 = scalar_lea.vmem [#allocation3], %s529
        %p531 = pneg %p56
        %p532 = pneg %p53
        %s533 = sand.u32 %s71, 1
        %s534 = sand.u32 %s71, 1
        %s535 = smul.addr %s534, 512
        %s536 = scalar_lea.vmem [#allocation4], %s535
        %p537 = pneg %p84
        %p538 = pneg %p81
        %s539 = smul.u32 2, %s20
        %p540 = scmp.lt.s32.totalorder %s539, 3
        %s541 = scalar_select %p540, %s539, 3
        %s542 = scalar_lea.vmem %s2, %s541
        %p543 = pneg %p110
        %p544 = pneg %p107
        %p545 = pneg %p138
        %p546 = pneg %p135
        %s547 = sand.u32 %s125, 1
        %s548 = sand.u32 %s125, 1
        %s549 = smul.addr %s548, 64
        %s550 = scalar_lea.vmem [#allocation5], %s549
        %s551 = smul.u32 4, %s19
        %s552 = smul.u32 4, %s21
        %s553 = smul.u32 64, %s21
        %s554 = smul.u32 2, %s20
        %s555 = smul.u32 2, %s20
        %p556 = scmp.lt.s32.totalorder %s555, 3
        %s557 = scalar_select %p556, %s555, 3
        %s558 = scalar_lea.vmem %s2, %s557
        %s559 = smul.u32 2, %s20
        %s560 = smul.u32 4, %s19
        %s561 = smul.u32 2, %s20
        %p562 = scmp.eq.s32.totalorder %s21, 0
        // Predicated region
        $region94: #{generator_forward.90} parent=84 // pred_check
          %p563 = pneg %p562
        $region95: #{generator_forward.90} parent=84 // pred_check_branch
          %565 = sbr.rel (%p563) target = $region97
        $region96: #{generator_forward.90} parent=84 // pred_region
          %566 = vst [vmem:[#allocation2] sm:$0xff] 0.0
          %567 = vst [vmem:[#allocation2 + $0x8] sm:$0xff] 0.0
          %568 = vst [vmem:[#allocation2 + $0x10] sm:$0xff] 0.0
          %569 = vst [vmem:[#allocation2 + $0x18] sm:$0xff] 0.0
          %570 = vst [vmem:[#allocation2 + $0x20] sm:$0xff] 0.0
          %571 = vst [vmem:[#allocation2 + $0x28] sm:$0xff] 0.0
          %572 = vst [vmem:[#allocation2 + $0x30] sm:$0xff] 0.0
          %573 = vst [vmem:[#allocation2 + $0x38] sm:$0xff] 0.0
        $region97: #{generator_forward.90} parent=84 // pred_fallthru
          _
        %v574 = vld [vmem:[#allocation2] sm:$0xff]
        %v575 = vld [vmem:[#allocation2 + $0x8] sm:$0xff]
        %v576 = vld [vmem:[#allocation2 + $0x10] sm:$0xff]
        %v577 = vld [vmem:[#allocation2 + $0x18] sm:$0xff]
        %v578 = vld [vmem:[#allocation2 + $0x20] sm:$0xff]
        %v579 = vld [vmem:[#allocation2 + $0x28] sm:$0xff]
        %v580 = vld [vmem:[#allocation2 + $0x30] sm:$0xff]
        %v581 = vld [vmem:[#allocation2 + $0x38] sm:$0xff]
        %v582 = vld [vmem:[%s516] sm:$0xff]
        %v583 = vld [vmem:[%s516 + $0x8] sm:$0xff]
        %v584 = vld [vmem:[%s516 + $0x10] sm:$0xff]
        %v585 = vld [vmem:[%s516 + $0x18] sm:$0xff]
        %v586 = vld [vmem:[%s516 + $0x20] sm:$0xff]
        %v587 = vld [vmem:[%s516 + $0x28] sm:$0xff]
        %v588 = vld [vmem:[%s516 + $0x30] sm:$0xff]
        %v589 = vld [vmem:[%s516 + $0x38] sm:$0xff]
        %v590 = vld [vmem:[%s523] sm:$0xff]
        %v591 = vld [vmem:[%s523 + $0x8] sm:$0xff]
        %v592 = vld [vmem:[%s523 + $0x10] sm:$0xff]
        %v593 = vld [vmem:[%s523 + $0x18] sm:$0xff]
        %v594 = vld [vmem:[%s523 + $0x20] sm:$0xff]
        %v595 = vld [vmem:[%s523 + $0x28] sm:$0xff]
        %v596 = vld [vmem:[%s523 + $0x30] sm:$0xff]
        %v597 = vld [vmem:[%s523 + $0x38] sm:$0xff]
        %v598 = vld [vmem:[%s523 + $0x40] sm:$0xff]
        %v599 = vld [vmem:[%s523 + $0x48] sm:$0xff]
        %v600 = vld [vmem:[%s523 + $0x50] sm:$0xff]
        %v601 = vld [vmem:[%s523 + $0x58] sm:$0xff]
        %v602 = vld [vmem:[%s523 + $0x60] sm:$0xff]
        %v603 = vld [vmem:[%s523 + $0x68] sm:$0xff]
        %v604 = vld [vmem:[%s523 + $0x70] sm:$0xff]
        %v605 = vld [vmem:[%s523 + $0x78] sm:$0xff]
        %v606 = vld [vmem:[%s523 + $0x80] sm:$0xff]
        %v607 = vld [vmem:[%s523 + $0x88] sm:$0xff]
        %v608 = vld [vmem:[%s523 + $0x90] sm:$0xff]
        %v609 = vld [vmem:[%s523 + $0x98] sm:$0xff]
        %v610 = vld [vmem:[%s523 + $0xa0] sm:$0xff]
        %v611 = vld [vmem:[%s523 + $0xa8] sm:$0xff]
        %v612 = vld [vmem:[%s523 + $0xb0] sm:$0xff]
        %v613 = vld [vmem:[%s523 + $0xb8] sm:$0xff]
        %v614 = vld [vmem:[%s523 + $0xc0] sm:$0xff]
        %v615 = vld [vmem:[%s523 + $0xc8] sm:$0xff]
        %v616 = vld [vmem:[%s523 + $0xd0] sm:$0xff]
        %v617 = vld [vmem:[%s523 + $0xd8] sm:$0xff]
        %v618 = vld [vmem:[%s523 + $0xe0] sm:$0xff]
        %v619 = vld [vmem:[%s523 + $0xe8] sm:$0xff]
        %v620 = vld [vmem:[%s523 + $0xf0] sm:$0xff]
        %v621 = vld [vmem:[%s523 + $0xf8] sm:$0xff]
        %v622 = vld [vmem:[%s523 + $0x100] sm:$0xff]
        %v623 = vld [vmem:[%s523 + $0x108] sm:$0xff]
        %v624 = vld [vmem:[%s523 + $0x110] sm:$0xff]
        %v625 = vld [vmem:[%s523 + $0x118] sm:$0xff]
        %v626 = vld [vmem:[%s523 + $0x120] sm:$0xff]
        %v627 = vld [vmem:[%s523 + $0x128] sm:$0xff]
        %v628 = vld [vmem:[%s523 + $0x130] sm:$0xff]
        %v629 = vld [vmem:[%s523 + $0x138] sm:$0xff]
        %v630 = vld [vmem:[%s523 + $0x140] sm:$0xff]
        %v631 = vld [vmem:[%s523 + $0x148] sm:$0xff]
        %v632 = vld [vmem:[%s523 + $0x150] sm:$0xff]
        %v633 = vld [vmem:[%s523 + $0x158] sm:$0xff]
        %v634 = vld [vmem:[%s523 + $0x160] sm:$0xff]
        %v635 = vld [vmem:[%s523 + $0x168] sm:$0xff]
        %v636 = vld [vmem:[%s523 + $0x170] sm:$0xff]
        %v637 = vld [vmem:[%s523 + $0x178] sm:$0xff]
        %v638 = vld [vmem:[%s523 + $0x180] sm:$0xff]
        %v639 = vld [vmem:[%s523 + $0x188] sm:$0xff]
        %v640 = vld [vmem:[%s523 + $0x190] sm:$0xff]
        %v641 = vld [vmem:[%s523 + $0x198] sm:$0xff]
        %v642 = vld [vmem:[%s523 + $0x1a0] sm:$0xff]
        %v643 = vld [vmem:[%s523 + $0x1a8] sm:$0xff]
        %v644 = vld [vmem:[%s523 + $0x1b0] sm:$0xff]
        %v645 = vld [vmem:[%s523 + $0x1b8] sm:$0xff]
        %v646 = vld [vmem:[%s523 + $0x1c0] sm:$0xff]
        %v647 = vld [vmem:[%s523 + $0x1c8] sm:$0xff]
        %v648 = vld [vmem:[%s523 + $0x1d0] sm:$0xff]
        %v649 = vld [vmem:[%s523 + $0x1d8] sm:$0xff]
        %v650 = vld [vmem:[%s523 + $0x1e0] sm:$0xff]
        %v651 = vld [vmem:[%s523 + $0x1e8] sm:$0xff]
        %v652 = vld [vmem:[%s523 + $0x1f0] sm:$0xff]
        %v653 = vld [vmem:[%s523 + $0x1f8] sm:$0xff]
        %v662 = vunpack.c.l.b16 %v582
        %v663 = vunpack.c.h.b16 %v582
        %v664 = vunpack.c.l.b16 %v583
        %v665 = vunpack.c.h.b16 %v583
        %v666 = vunpack.c.l.b16 %v584
        %v667 = vunpack.c.h.b16 %v584
        %v668 = vunpack.c.l.b16 %v585
        %v669 = vunpack.c.h.b16 %v585
        %v670 = vunpack.c.l.b16 %v586
        %v671 = vunpack.c.h.b16 %v586
        %v672 = vunpack.c.l.b16 %v587
        %v673 = vunpack.c.h.b16 %v587
        %v674 = vunpack.c.l.b16 %v588
        %v675 = vunpack.c.h.b16 %v588
        %v676 = vunpack.c.l.b16 %v589
        %v677 = vunpack.c.h.b16 %v589
        %v678 = vpack.c.b16 %v666, %v662
        %v679 = vpack.c.b16 %v667, %v663
        %v680 = vpack.c.b16 %v668, %v664
        %v681 = vpack.c.b16 %v669, %v665
        %v682 = vpack.c.b16 %v674, %v670
        %v683 = vpack.c.b16 %v675, %v671
        %v684 = vpack.c.b16 %v676, %v672
        %v685 = vpack.c.b16 %v677, %v673
        %v758 = vunpack.c.l.b16 %v590
        %v759 = vunpack.c.h.b16 %v590
        %v760 = vunpack.c.l.b16 %v591
        %v761 = vunpack.c.h.b16 %v591
        %v762 = vunpack.c.l.b16 %v592
        %v763 = vunpack.c.h.b16 %v592
        %v764 = vunpack.c.l.b16 %v593
        %v765 = vunpack.c.h.b16 %v593
        %v766 = vunpack.c.l.b16 %v594
        %v767 = vunpack.c.h.b16 %v594
        %v768 = vunpack.c.l.b16 %v595
        %v769 = vunpack.c.h.b16 %v595
        %v770 = vunpack.c.l.b16 %v596
        %v771 = vunpack.c.h.b16 %v596
        %v772 = vunpack.c.l.b16 %v597
        %v773 = vunpack.c.h.b16 %v597
        %v774 = vunpack.c.l.b16 %v598
        %v775 = vunpack.c.h.b16 %v598
        %v776 = vunpack.c.l.b16 %v599
        %v777 = vunpack.c.h.b16 %v599
        %v778 = vunpack.c.l.b16 %v600
        %v779 = vunpack.c.h.b16 %v600
        %v780 = vunpack.c.l.b16 %v601
        %v781 = vunpack.c.h.b16 %v601
        %v782 = vunpack.c.l.b16 %v602
        %v783 = vunpack.c.h.b16 %v602
        %v784 = vunpack.c.l.b16 %v603
        %v785 = vunpack.c.h.b16 %v603
        %v786 = vunpack.c.l.b16 %v604
        %v787 = vunpack.c.h.b16 %v604
        %v788 = vunpack.c.l.b16 %v605
        %v789 = vunpack.c.h.b16 %v605
        %v790 = vunpack.c.l.b16 %v606
        %v791 = vunpack.c.h.b16 %v606
        %v792 = vunpack.c.l.b16 %v607
        %v793 = vunpack.c.h.b16 %v607
        %v794 = vunpack.c.l.b16 %v608
        %v795 = vunpack.c.h.b16 %v608
        %v796 = vunpack.c.l.b16 %v609
        %v797 = vunpack.c.h.b16 %v609
        %v798 = vunpack.c.l.b16 %v610
        %v799 = vunpack.c.h.b16 %v610
        %v800 = vunpack.c.l.b16 %v611
        %v801 = vunpack.c.h.b16 %v611
        %v802 = vunpack.c.l.b16 %v612
        %v803 = vunpack.c.h.b16 %v612
        %v804 = vunpack.c.l.b16 %v613
        %v805 = vunpack.c.h.b16 %v613
        %v806 = vunpack.c.l.b16 %v614
        %v807 = vunpack.c.h.b16 %v614
        %v808 = vunpack.c.l.b16 %v615
        %v809 = vunpack.c.h.b16 %v615
        %v810 = vunpack.c.l.b16 %v616
        %v811 = vunpack.c.h.b16 %v616
        %v812 = vunpack.c.l.b16 %v617
        %v813 = vunpack.c.h.b16 %v617
        %v814 = vunpack.c.l.b16 %v618
        %v815 = vunpack.c.h.b16 %v618
        %v816 = vunpack.c.l.b16 %v619
        %v817 = vunpack.c.h.b16 %v619
        %v818 = vunpack.c.l.b16 %v620
        %v819 = vunpack.c.h.b16 %v620
        %v820 = vunpack.c.l.b16 %v621
        %v821 = vunpack.c.h.b16 %v621
        %v822 = vunpack.c.l.b16 %v622
        %v823 = vunpack.c.h.b16 %v622
        %v824 = vunpack.c.l.b16 %v623
        %v825 = vunpack.c.h.b16 %v623
        %v826 = vunpack.c.l.b16 %v624
        %v827 = vunpack.c.h.b16 %v624
        %v828 = vunpack.c.l.b16 %v625
        %v829 = vunpack.c.h.b16 %v625
        %v830 = vunpack.c.l.b16 %v626
        %v831 = vunpack.c.h.b16 %v626
        %v832 = vunpack.c.l.b16 %v627
        %v833 = vunpack.c.h.b16 %v627
        %v834 = vunpack.c.l.b16 %v628
        %v835 = vunpack.c.h.b16 %v628
        %v836 = vunpack.c.l.b16 %v629
        %v837 = vunpack.c.h.b16 %v629
        %v838 = vunpack.c.l.b16 %v630
        %v839 = vunpack.c.h.b16 %v630
        %v840 = vunpack.c.l.b16 %v631
        %v841 = vunpack.c.h.b16 %v631
        %v842 = vunpack.c.l.b16 %v632
        %v843 = vunpack.c.h.b16 %v632
        %v844 = vunpack.c.l.b16 %v633
        %v845 = vunpack.c.h.b16 %v633
        %v846 = vunpack.c.l.b16 %v634
        %v847 = vunpack.c.h.b16 %v634
        %v848 = vunpack.c.l.b16 %v635
        %v849 = vunpack.c.h.b16 %v635
        %v850 = vunpack.c.l.b16 %v636
        %v851 = vunpack.c.h.b16 %v636
        %v852 = vunpack.c.l.b16 %v637
        %v853 = vunpack.c.h.b16 %v637
        %v854 = vunpack.c.l.b16 %v638
        %v855 = vunpack.c.h.b16 %v638
        %v856 = vunpack.c.l.b16 %v639
        %v857 = vunpack.c.h.b16 %v639
        %v858 = vunpack.c.l.b16 %v640
        %v859 = vunpack.c.h.b16 %v640
        %v860 = vunpack.c.l.b16 %v641
        %v861 = vunpack.c.h.b16 %v641
        %v862 = vunpack.c.l.b16 %v642
        %v863 = vunpack.c.h.b16 %v642
        %v864 = vunpack.c.l.b16 %v643
        %v865 = vunpack.c.h.b16 %v643
        %v866 = vunpack.c.l.b16 %v644
        %v867 = vunpack.c.h.b16 %v644
        %v868 = vunpack.c.l.b16 %v645
        %v869 = vunpack.c.h.b16 %v645
        %v870 = vunpack.c.l.b16 %v646
        %v871 = vunpack.c.h.b16 %v646
        %v872 = vunpack.c.l.b16 %v647
        %v873 = vunpack.c.h.b16 %v647
        %v874 = vunpack.c.l.b16 %v648
        %v875 = vunpack.c.h.b16 %v648
        %v876 = vunpack.c.l.b16 %v649
        %v877 = vunpack.c.h.b16 %v649
        %v878 = vunpack.c.l.b16 %v650
        %v879 = vunpack.c.h.b16 %v650
        %v880 = vunpack.c.l.b16 %v651
        %v881 = vunpack.c.h.b16 %v651
        %v882 = vunpack.c.l.b16 %v652
        %v883 = vunpack.c.h.b16 %v652
        %v884 = vunpack.c.l.b16 %v653
        %v885 = vunpack.c.h.b16 %v653
        %v886 = vpack.c.b16 %v760, %v758
        %v887 = vpack.c.b16 %v761, %v759
        %v888 = vpack.c.b16 %v764, %v762
        %v889 = vpack.c.b16 %v765, %v763
        %v890 = vpack.c.b16 %v768, %v766
        %v891 = vpack.c.b16 %v769, %v767
        %v892 = vpack.c.b16 %v772, %v770
        %v893 = vpack.c.b16 %v773, %v771
        %v894 = vpack.c.b16 %v776, %v774
        %v895 = vpack.c.b16 %v777, %v775
        %v896 = vpack.c.b16 %v780, %v778
        %v897 = vpack.c.b16 %v781, %v779
        %v898 = vpack.c.b16 %v784, %v782
        %v899 = vpack.c.b16 %v785, %v783
        %v900 = vpack.c.b16 %v788, %v786
        %v901 = vpack.c.b16 %v789, %v787
        %v902 = vpack.c.b16 %v792, %v790
        %v903 = vpack.c.b16 %v793, %v791
        %v904 = vpack.c.b16 %v796, %v794
        %v905 = vpack.c.b16 %v797, %v795
        %v906 = vpack.c.b16 %v800, %v798
        %v907 = vpack.c.b16 %v801, %v799
        %v908 = vpack.c.b16 %v804, %v802
        %v909 = vpack.c.b16 %v805, %v803
        %v910 = vpack.c.b16 %v808, %v806
        %v911 = vpack.c.b16 %v809, %v807
        %v912 = vpack.c.b16 %v812, %v810
        %v913 = vpack.c.b16 %v813, %v811
        %v914 = vpack.c.b16 %v816, %v814
        %v915 = vpack.c.b16 %v817, %v815
        %v916 = vpack.c.b16 %v820, %v818
        %v917 = vpack.c.b16 %v821, %v819
        %v918 = vpack.c.b16 %v824, %v822
        %v919 = vpack.c.b16 %v825, %v823
        %v920 = vpack.c.b16 %v828, %v826
        %v921 = vpack.c.b16 %v829, %v827
        %v922 = vpack.c.b16 %v832, %v830
        %v923 = vpack.c.b16 %v833, %v831
        %v924 = vpack.c.b16 %v836, %v834
        %v925 = vpack.c.b16 %v837, %v835
        %v926 = vpack.c.b16 %v840, %v838
        %v927 = vpack.c.b16 %v841, %v839
        %v928 = vpack.c.b16 %v844, %v842
        %v929 = vpack.c.b16 %v845, %v843
        %v930 = vpack.c.b16 %v848, %v846
        %v931 = vpack.c.b16 %v849, %v847
        %v932 = vpack.c.b16 %v852, %v850
        %v933 = vpack.c.b16 %v853, %v851
        %v934 = vpack.c.b16 %v856, %v854
        %v935 = vpack.c.b16 %v857, %v855
        %v936 = vpack.c.b16 %v860, %v858
        %v937 = vpack.c.b16 %v861, %v859
        %v938 = vpack.c.b16 %v864, %v862
        %v939 = vpack.c.b16 %v865, %v863
        %v940 = vpack.c.b16 %v868, %v866
        %v941 = vpack.c.b16 %v869, %v867
        %v942 = vpack.c.b16 %v872, %v870
        %v943 = vpack.c.b16 %v873, %v871
        %v944 = vpack.c.b16 %v876, %v874
        %v945 = vpack.c.b16 %v877, %v875
        %v946 = vpack.c.b16 %v880, %v878
        %v947 = vpack.c.b16 %v881, %v879
        %v948 = vpack.c.b16 %v884, %v882
        %v949 = vpack.c.b16 %v885, %v883
        %1014 = vmatprep.subr.bf16.mxu0 %v887
        %1015 = vmatpush1.bf16.msra.mxu0 %v886
        %1016 = vmatprep.subr.bf16.mxu0 %v889
        %1017 = vmatpush1.bf16.msra.mxu0 %v888
        %1018 = vmatprep.subr.bf16.mxu0 %v891
        %1019 = vmatpush1.bf16.msra.mxu0 %v890
        %1020 = vmatprep.subr.bf16.mxu0 %v893
        %1021 = vmatpush1.bf16.msra.mxu0 %v892
        %1022 = vmatprep.subr.bf16.mxu0 %v895
        %1023 = vmatpush1.bf16.msra.mxu0 %v894
        %1024 = vmatprep.subr.bf16.mxu0 %v897
        %1025 = vmatpush1.bf16.msra.mxu0 %v896
        %1026 = vmatprep.subr.bf16.mxu0 %v899
        %1027 = vmatpush1.bf16.msra.mxu0 %v898
        %1028 = vmatprep.subr.bf16.mxu0 %v901
        %1029 = vmatpush1.bf16.msra.mxu0 %v900
        %1030 = vmatprep.subr.bf16.mxu0 %v903
        %1031 = vmatpush1.bf16.msra.mxu0 %v902
        %1032 = vmatprep.subr.bf16.mxu0 %v905
        %1033 = vmatpush1.bf16.msra.mxu0 %v904
        %1034 = vmatprep.subr.bf16.mxu0 %v907
        %1035 = vmatpush1.bf16.msra.mxu0 %v906
        %1036 = vmatprep.subr.bf16.mxu0 %v909
        %1037 = vmatpush1.bf16.msra.mxu0 %v908
        %1038 = vmatprep.subr.bf16.mxu0 %v911
        %1039 = vmatpush1.bf16.msra.mxu0 %v910
        %1040 = vmatprep.subr.bf16.mxu0 %v913
        %1041 = vmatpush1.bf16.msra.mxu0 %v912
        %1042 = vmatprep.subr.bf16.mxu0 %v915
        %1043 = vmatpush1.bf16.msra.mxu0 %v914
        %1044 = vmatprep.subr.bf16.mxu0 %v917
        %1045 = vmatpush1.bf16.msra.mxu0 %v916
        %1046 = vmatprep.mubr.bf16.mxu0 %v679
        %1047 = vmatmul.mubr.bf16.gmra.mrb[0].mxu0 %v678
        %v1048 = vpop.f32.mrb[0].mxu0
        %v1049 = vadd.f32 0.0, %v1048
        %v1050 = vpop.f32.mrb[0].mxu0
        %v1051 = vadd.f32 0.0, %v1050
        %v1052 = vpop.f32.mrb[0].mxu0
        %v1053 = vadd.f32 0.0, %v1052
        %v1054 = vpop.f32.mrb[0].mxu0
        %v1055 = vadd.f32 0.0, %v1054
        %1056 = vmatprep.mubr.bf16.mxu0 %v683
        %1057 = vmatmul.mubr.bf16.gmra.mrb[0].mxu0 %v682
        %v1058 = vpop.f32.mrb[0].mxu0
        %v1059 = vadd.f32 0.0, %v1058
        %v1060 = vpop.f32.mrb[0].mxu0
        %v1061 = vadd.f32 0.0, %v1060
        %v1062 = vpop.f32.mrb[0].mxu0
        %v1063 = vadd.f32 0.0, %v1062
        %v1064 = vpop.f32.mrb[0].mxu0
        %v1065 = vadd.f32 0.0, %v1064
        %1066 = vdwg.mxu0
        %1067 = vmatprep.subr.bf16.mxu0 %v919
        %1068 = vmatpush1.bf16.msra.mxu0 %v918
        %1069 = vmatprep.subr.bf16.mxu0 %v921
        %1070 = vmatpush1.bf16.msra.mxu0 %v920
        %1071 = vmatprep.subr.bf16.mxu0 %v923
        %1072 = vmatpush1.bf16.msra.mxu0 %v922
        %1073 = vmatprep.subr.bf16.mxu0 %v925
        %1074 = vmatpush1.bf16.msra.mxu0 %v924
        %1075 = vmatprep.subr.bf16.mxu0 %v927
        %1076 = vmatpush1.bf16.msra.mxu0 %v926
        %1077 = vmatprep.subr.bf16.mxu0 %v929
        %1078 = vmatpush1.bf16.msra.mxu0 %v928
        %1079 = vmatprep.subr.bf16.mxu0 %v931
        %1080 = vmatpush1.bf16.msra.mxu0 %v930
        %1081 = vmatprep.subr.bf16.mxu0 %v933
        %1082 = vmatpush1.bf16.msra.mxu0 %v932
        %1083 = vmatprep.subr.bf16.mxu0 %v935
        %1084 = vmatpush1.bf16.msra.mxu0 %v934
        %1085 = vmatprep.subr.bf16.mxu0 %v937
        %1086 = vmatpush1.bf16.msra.mxu0 %v936
        %1087 = vmatprep.subr.bf16.mxu0 %v939
        %1088 = vmatpush1.bf16.msra.mxu0 %v938
        %1089 = vmatprep.subr.bf16.mxu0 %v941
        %1090 = vmatpush1.bf16.msra.mxu0 %v940
        %1091 = vmatprep.subr.bf16.mxu0 %v943
        %1092 = vmatpush1.bf16.msra.mxu0 %v942
        %1093 = vmatprep.subr.bf16.mxu0 %v945
        %1094 = vmatpush1.bf16.msra.mxu0 %v944
        %1095 = vmatprep.subr.bf16.mxu0 %v947
        %1096 = vmatpush1.bf16.msra.mxu0 %v946
        %1097 = vmatprep.subr.bf16.mxu0 %v949
        %1098 = vmatpush1.bf16.msra.mxu0 %v948
        %1099 = vmatprep.mubr.bf16.mxu0 %v681
        %1100 = vmatmul.mubr.bf16.gmra.mrb[0].mxu0 %v680
        %v1101 = vpop.f32.mrb[0].mxu0
        %v1102 = vadd.f32 %v1049, %v1101
        %v1103 = vpop.f32.mrb[0].mxu0
        %v1104 = vadd.f32 %v1051, %v1103
        %v1105 = vpop.f32.mrb[0].mxu0
        %v1106 = vadd.f32 %v1053, %v1105
        %v1107 = vpop.f32.mrb[0].mxu0
        %v1108 = vadd.f32 %v1055, %v1107
        %1109 = vmatprep.mubr.bf16.mxu0 %v685
        %1110 = vmatmul.mubr.bf16.gmra.mrb[0].mxu0 %v684
        %v1111 = vpop.f32.mrb[0].mxu0
        %v1112 = vadd.f32 %v1059, %v1111
        %v1113 = vpop.f32.mrb[0].mxu0
        %v1114 = vadd.f32 %v1061, %v1113
        %v1115 = vpop.f32.mrb[0].mxu0
        %v1116 = vadd.f32 %v1063, %v1115
        %v1117 = vpop.f32.mrb[0].mxu0
        %v1118 = vadd.f32 %v1065, %v1117
        %1119 = vdwg.mxu0
        %v1120 = vadd.f32 %v574, %v1102
        %v1121 = vadd.f32 %v575, %v1104
        %v1122 = vadd.f32 %v576, %v1106
        %v1123 = vadd.f32 %v577, %v1108
        %v1124 = vadd.f32 %v578, %v1112
        %v1125 = vadd.f32 %v579, %v1114
        %v1126 = vadd.f32 %v580, %v1116
        %v1127 = vadd.f32 %v581, %v1118
        %1128 = vst [vmem:[#allocation2] sm:$0xff] %v1120
        %1129 = vst [vmem:[#allocation2 + $0x8] sm:$0xff] %v1121
        %1130 = vst [vmem:[#allocation2 + $0x10] sm:$0xff] %v1122
        %1131 = vst [vmem:[#allocation2 + $0x18] sm:$0xff] %v1123
        %1132 = vst [vmem:[#allocation2 + $0x20] sm:$0xff] %v1124
        %1133 = vst [vmem:[#allocation2 + $0x28] sm:$0xff] %v1125
        %1134 = vst [vmem:[#allocation2 + $0x30] sm:$0xff] %v1126
        %1135 = vst [vmem:[#allocation2 + $0x38] sm:$0xff] %v1127
        %p1136 = scmp.eq.s32.totalorder %s21, 1
        // Predicated region
        $region98: #{generator_forward.90} parent=84 // pred_check
          %p1137 = pneg %p1136
        $region99: #{generator_forward.90} parent=84 // pred_check_branch
          %1139 = sbr.rel (%p1137) target = $region101
        $region100: #{generator_forward.90} parent=84 // pred_region
          %v1140 = vld [vmem:[#allocation2] sm:$0xff]
          %v1141 = vld [vmem:[#allocation2 + $0x8] sm:$0xff]
          %v1142 = vld [vmem:[#allocation2 + $0x10] sm:$0xff]
          %v1143 = vld [vmem:[#allocation2 + $0x18] sm:$0xff]
          %v1144 = vld [vmem:[#allocation2 + $0x20] sm:$0xff]
          %v1145 = vld [vmem:[#allocation2 + $0x28] sm:$0xff]
          %v1146 = vld [vmem:[#allocation2 + $0x30] sm:$0xff]
          %v1147 = vld [vmem:[#allocation2 + $0x38] sm:$0xff]
          %v1148 = vld [vmem:[%s558] sm:$0x3]
          %v1150 = vlaneseq
          %v1151 = vshrl.u32 %v1150, 7
          %v1152 = vsub.s32 0, %v1151
          %v1153 = vrot.slane %v1148, %v1152
          %v1154 = vlaneseq
          %v1155 = vshrl.u32 %v1154, 7
          %v1156 = vsub.s32 1, %v1155
          %v1157 = vrot.slane %v1148, %v1156
          %v1160 = vadd.f32 %v1140, %v1153
          %v1161 = vadd.f32 %v1141, %v1157
          %v1162 = vadd.f32 %v1142, %v1153
          %v1163 = vadd.f32 %v1143, %v1157
          %v1164 = vadd.f32 %v1144, %v1153
          %v1165 = vadd.f32 %v1145, %v1157
          %v1166 = vadd.f32 %v1146, %v1153
          %v1167 = vadd.f32 %v1147, %v1157
          %1168 = vst [vmem:[%s550] sm:$0xff] %v1160
          %1169 = vst [vmem:[%s550 + $0x8] sm:$0xff] %v1161
          %1170 = vst [vmem:[%s550 + $0x10] sm:$0xff] %v1162
          %1171 = vst [vmem:[%s550 + $0x18] sm:$0xff] %v1163
          %1172 = vst [vmem:[%s550 + $0x20] sm:$0xff] %v1164
          %1173 = vst [vmem:[%s550 + $0x28] sm:$0xff] %v1165
          %1174 = vst [vmem:[%s550 + $0x30] sm:$0xff] %v1166
          %1175 = vst [vmem:[%s550 + $0x38] sm:$0xff] %v1167
        $region101: #{generator_forward.90} parent=84 // pred_fallthru
          _
        %s1176 = sand.u32 %s125, 1
        %s1177 = sand.u32 %s125, 1
        %s1178 = smul.addr %s1177, 64
        %s1179 = scalar_lea.vmem [#allocation5], %s1178
        // Predicated region
        $region102: #{generator_forward.90} parent=84 // pred_check
          %p1180 = pneg %p135
        $region103: #{generator_forward.90} parent=84 // pred_check_branch
          %1182 = sbr.rel (%p1180) target = $region105
        $region104: #{generator_forward.90} parent=84 // pred_region
          %s1183 = smul.u32 4, %s19
          %s1184 = smul.u32 2, %s20
          %s1185 = smul.addr %s1183, 4
          %s1186 = sadd.s32 %s1184, %s1185
          %s1187 = smul.addr %s1186, 8
          %s1188 = scalar_lea.vmem %s3, %s1187
          // Predicated region
          $region106: #{generator_forward.90} parent=104 // pred_check
            _
          $region107: #{generator_forward.90} parent=104 // pred_check_branch
            %1190 = sbr.rel (0) target = $region109
          $region108: #{generator_forward.90} parent=104 // pred_region
            // Predicated region
            $region110: #{generator_forward.90} parent=108 // pred_check
              _
            $region111: #{generator_forward.90} parent=108 // pred_check_branch
              %1192 = sbr.rel (0) target = $region113
            $region112: #{generator_forward.90} parent=108 // pred_region
              loop: start=0, step=1, limit=1
              $region114: #{generator_forward.90} parent=112 // loop_pre_header
                _
              $region115: #{generator_forward.90} parent=112 // loop_header
                %s1194 = sphi 0, %s1198
                %p1195 = scmp.ge.s32.totalorder %s1194, 1
                %s1199 = sphi %s1179, %s1179
                %s1200 = sphi %s1188, %s1188
              $region116: #{generator_forward.90} parent=112 // loop_header_branch
                %1197 = sbr.rel (%p1195) target = $region120
              $region117: #{generator_forward.90} parent=112 // loop_body
                %v1201 = vld [vmem:[%s1199] sm:$0xff]
                %1202 = vst [vmem:[%s1200] sm:$0xff] %v1201
                %v1203 = vld [vmem:[%s1199 + $0x8] sm:$0xff]
                %1204 = vst [vmem:[%s1200 + $0x8] sm:$0xff] %v1203
                %v1205 = vld [vmem:[%s1199 + $0x10] sm:$0xff]
                %1206 = vst [vmem:[%s1200 + $0x20] sm:$0xff] %v1205
                %v1207 = vld [vmem:[%s1199 + $0x18] sm:$0xff]
                %1208 = vst [vmem:[%s1200 + $0x28] sm:$0xff] %v1207
                %v1209 = vld [vmem:[%s1199 + $0x20] sm:$0xff]
                %1210 = vst [vmem:[%s1200 + $0x40] sm:$0xff] %v1209
                %v1211 = vld [vmem:[%s1199 + $0x28] sm:$0xff]
                %1212 = vst [vmem:[%s1200 + $0x48] sm:$0xff] %v1211
                %v1213 = vld [vmem:[%s1199 + $0x30] sm:$0xff]
                %1214 = vst [vmem:[%s1200 + $0x60] sm:$0xff] %v1213
                %v1215 = vld [vmem:[%s1199 + $0x38] sm:$0xff]
                %1216 = vst [vmem:[%s1200 + $0x68] sm:$0xff] %v1215
              $region118: #{generator_forward.90} parent=112 // loop_footer
                %s1198 = sadd.s32 1, %s1194
              $region119: #{generator_forward.90} parent=112 // loop_footer_branch
                %1193 = sbr.rel target = $region115
              $region120: #{generator_forward.90} parent=112 // loop_exit
                _
            $region113: #{generator_forward.90} parent=108 // pred_fallthru
              _
            // Predicated region
            $region121: #{generator_forward.90} parent=108 // pred_check
              _
            $region122: #{generator_forward.90} parent=108 // pred_check_branch
              %1218 = sbr.rel target = $region124
            $region123: #{generator_forward.90} parent=108 // pred_region
              _
            $region124: #{generator_forward.90} parent=108 // pred_fallthru
              _
          $region109: #{generator_forward.90} parent=104 // pred_fallthru
            _
          %1219 = vnop
        $region105: #{generator_forward.90} parent=84 // pred_fallthru
          _
      $region85: #{generator_forward.90} parent=5 // pred_fallthru
        _
      %p1220 = scmp.le.s32.totalorder 2, %s9
      // Predicated region
      $region125: #{generator_forward.90} parent=5 // pred_check
        %p1221 = pneg %p1220
      $region126: #{generator_forward.90} parent=5 // pred_check_branch
        %1223 = sbr.rel (%p1221) target = $region128
      $region127: #{generator_forward.90} parent=5 // pred_region
        %s1224 = ssub.s32 %s9, 2
        // Predicated region
        $region129: #{generator_forward.90} parent=127 // pred_check
          %p1225 = pneg %p141
        $region130: #{generator_forward.90} parent=127 // pred_check_branch
          %1227 = sbr.rel (%p1225) target = $region132
        $region131: #{generator_forward.90} parent=127 // pred_region
          %s1228 = sand.u32 %s126, 1
          %s1229 = sand.u32 %s126, 1
          %s1230 = smul.addr %s1229, 64
          %s1231 = scalar_lea.vmem [#allocation5], %s1230
        $region132: #{generator_forward.90} parent=127 // pred_fallthru
          _
      $region128: #{generator_forward.90} parent=5 // pred_fallthru
        _
    $region6: #{generator_forward.90} parent=1 // loop_footer
      %s13 = sadd.s32 1, %s9
    $region7: #{generator_forward.90} parent=1 // loop_footer_branch
      %8 = sbr.rel target = $region3
    $region8: #{generator_forward.90} parent=1 // loop_exit
      _

// kernel: tile.18
$region0: #{tile.18}
  #allocation0 [shape = 's32[1]{0}', space=sflag, size = 0x4, scoped, tag = 'scoped memory for tile.18']
  %s0 = inlined_call_operand.vmem [shape: f32[64], index: 0, kind: input, shape index: {}]
  %s1 = inlined_call_operand.vmem [shape: f32[4,64], index: 1, kind: output, shape index: {}]
  // Predicated region
  $region2: #{tile.18} parent=0 // pred_check
    _
  $region3: #{tile.18} parent=0 // pred_check_branch
    %3 = sbr.rel (0) target = $region5
  $region4: #{tile.18} parent=0 // pred_region
    _
  $region5: #{tile.18} parent=0 // pred_fallthru
    _
  %v4 = vld [vmem:[%s0] ss:$0 sm:$0xff]
  %5 = vst [vmem:[%s1] sm:$0xf] %v4

// kernel: tile.19
$region0: #{tile.19}
  %s0 = inlined_call_operand.vmem [shape: f32[4,64], index: 0, kind: input, shape index: {}]
  %s1 = inlined_call_operand.vmem [shape: f32[1,256], index: 1, kind: output, shape index: {}]
  $region1: #{tile.19} parent=0
    #allocation0 [shape = 'u8[8192]{0}', space=vmem, size = 0x2000, scoped, tag = 'scoped mem for output reshape']
    #allocation1 [shape = 'u8[4096]{0}', space=vmem, size = 0x1000, scoped, tag = 'scoped mem for input reshape']
    %s3 = sshllo.u32 0, 4
    %v4 = vld [vmem:[%s0] sm:%s3]
    %5 = vst [vmem:[#allocation1] sm:%s3] %v4
    %s6 = smov 3
    %v7 = vld [vmem:[#allocation1] ss:$2 sm:%s6]
    %vm8 = vcmask 523264
    %9 = vst.msk [vmem:[#allocation0] ss:$8 sm:$0x3] %vm8, %v7
    %s10 = scalar_lea.vmem [#allocation1], 1
    %s11 = smov 3
    %v12 = vld [vmem:[%s10] ss:$2 sm:%s11]
    %13 = vrot.lane.b32.xlu0 %v12, 64
    %v14 = vpop.permute.xlu0 %13
    %vm15 = vcmask 1048064
    %16 = vst.msk [vmem:[#allocation0] ss:$8 sm:$0x3] %vm15, %v14
    %s18 = sshllo.u32 0, 1
    %v20 = vld [vmem:[#allocation0] sm:%s18]
    %s21 = sshllo.u32 0, 1
    %22 = vst [vmem:[%s1] sm:%s21] %v20
    %s23 = scalar_lea.vmem [#allocation0], 8
    %v24 = vld [vmem:[%s23] sm:%s18]
    %s25 = sshllo.u32 0, 1
    %s26 = scalar_lea.vmem %s1, 1
    %27 = vst [vmem:[%s26] sm:%s25] %v24

// kernel: generator_forward.92
$region0: #{generator_forward.92}
  #allocation0 [shape = 'u32[]', space=smem, size = 0x4, offset = 0x4, fixed_abs, tag = 'smem constant byte address 0x4 - core index']
  #allocation1 [shape = 'u32[144,128]{1,0:T(1,128)}', space=vmem, size = 0x12000, scoped, tag = 'internal scratch']
  #allocation2 [shape = 'f32[128,256]{1,0:T(8,128)}', space=vmem, size = 0x20000, scoped, tag = 'scratch operand']
  %s0 = inlined_call_operand.vmem [shape: bf16[128,512], index: 0, kind: input, shape index: {}]
  %s1 = inlined_call_operand.vmem [shape: bf16[512,256], index: 1, kind: input, shape index: {}]
  %s2 = inlined_call_operand.vmem [shape: f32[1,256], index: 2, kind: input, shape index: {}]
  %s3 = inlined_call_operand.vmem [shape: f32[128,256], index: 3, kind: output, shape index: {}]
  %s4 = sld [smem:[#allocation0]]
  $region30: #{generator_forward.92} parent=0
    _
  %s6 = ssub.s32 1, %s4
  %s7 = scalar_select 0, %s6, %s4
  // Predicated region
  $region2: #{generator_forward.92} parent=0 // pred_check
    _
  $region3: #{generator_forward.92} parent=0 // pred_check_branch
    %9 = sbr.rel (0) target = $region5
  $region4: #{generator_forward.92} parent=0 // pred_region
    _
  $region5: #{generator_forward.92} parent=0 // pred_fallthru
    _
  // Predicated region
  $region6: #{generator_forward.92} parent=0 // pred_check
    _
  $region7: #{generator_forward.92} parent=0 // pred_check_branch
    %11 = sbr.rel (0) target = $region9
  $region8: #{generator_forward.92} parent=0 // pred_region
    _
  $region9: #{generator_forward.92} parent=0 // pred_fallthru
    _
  // Predicated region
  $region10: #{generator_forward.92} parent=0 // pred_check
    _
  $region11: #{generator_forward.92} parent=0 // pred_check_branch
    %13 = sbr.rel (0) target = $region13
  $region12: #{generator_forward.92} parent=0 // pred_region
    _
  $region13: #{generator_forward.92} parent=0 // pred_fallthru
    _
  %p14 = scmp.eq.s32.totalorder 0, 0
  // Predicated region
  $region14: #{generator_forward.92} parent=0 // pred_check
    %p15 = pneg %p14
  $region15: #{generator_forward.92} parent=0 // pred_check_branch
    %17 = sbr.rel (%p15) target = $region17
  $region16: #{generator_forward.92} parent=0 // pred_region
    %18 = vst [vmem:[#allocation2] sm:$0xff] 0.0
    %19 = vst [vmem:[#allocation2 + $0x8] sm:$0xff] 0.0
    %20 = vst [vmem:[#allocation2 + $0x10] sm:$0xff] 0.0
    %21 = vst [vmem:[#allocation2 + $0x18] sm:$0xff] 0.0
    %22 = vst [vmem:[#allocation2 + $0x20] sm:$0xff] 0.0
    %23 = vst [vmem:[#allocation2 + $0x28] sm:$0xff] 0.0
    %24 = vst [vmem:[#allocation2 + $0x30] sm:$0xff] 0.0
    %25 = vst [vmem:[#allocation2 + $0x38] sm:$0xff] 0.0
    %26 = vst [vmem:[#allocation2 + $0x40] sm:$0xff] 0.0
    %27 = vst [vmem:[#allocation2 + $0x48] sm:$0xff] 0.0
    %28 = vst [vmem:[#allocation2 + $0x50] sm:$0xff] 0.0
    %29 = vst [vmem:[#allocation2 + $0x58] sm:$0xff] 0.0
    %30 = vst [vmem:[#allocation2 + $0x60] sm:$0xff] 0.0
    %31 = vst [vmem:[#allocation2 + $0x68] sm:$0xff] 0.0
    %32 = vst [vmem:[#allocation2 + $0x70] sm:$0xff] 0.0
    %33 = vst [vmem:[#allocation2 + $0x78] sm:$0xff] 0.0
    %34 = vst [vmem:[#allocation2 + $0x80] sm:$0xff] 0.0
    %35 = vst [vmem:[#allocation2 + $0x88] sm:$0xff] 0.0
    %36 = vst [vmem:[#allocation2 + $0x90] sm:$0xff] 0.0
    %37 = vst [vmem:[#allocation2 + $0x98] sm:$0xff] 0.0
    %38 = vst [vmem:[#allocation2 + $0xa0] sm:$0xff] 0.0
    %39 = vst [vmem:[#allocation2 + $0xa8] sm:$0xff] 0.0
    %40 = vst [vmem:[#allocation2 + $0xb0] sm:$0xff] 0.0
    %41 = vst [vmem:[#allocation2 + $0xb8] sm:$0xff] 0.0
    %42 = vst [vmem:[#allocation2 + $0xc0] sm:$0xff] 0.0
    %43 = vst [vmem:[#allocation2 + $0xc8] sm:$0xff] 0.0
    %44 = vst [vmem:[#allocation2 + $0xd0] sm:$0xff] 0.0
    %45 = vst [vmem:[#allocation2 + $0xd8] sm:$0xff] 0.0
    %46 = vst [vmem:[#allocation2 + $0xe0] sm:$0xff] 0.0
    %47 = vst [vmem:[#allocation2 + $0xe8] sm:$0xff] 0.0
    %48 = vst [vmem:[#allocation2 + $0xf0] sm:$0xff] 0.0
    %49 = vst [vmem:[#allocation2 + $0xf8] sm:$0xff] 0.0
  $region17: #{generator_forward.92} parent=0 // pred_fallthru
    _
  %v50 = vld [vmem:[#allocation2] sm:$0xff]
  %v51 = vld [vmem:[#allocation2 + $0x8] sm:$0xff]
  %v52 = vld [vmem:[#allocation2 + $0x10] sm:$0xff]
  %v53 = vld [vmem:[#allocation2 + $0x18] sm:$0xff]
  %v54 = vld [vmem:[#allocation2 + $0x20] sm:$0xff]
  %v55 = vld [vmem:[#allocation2 + $0x28] sm:$0xff]
  %v56 = vld [vmem:[#allocation2 + $0x30] sm:$0xff]
  %v57 = vld [vmem:[#allocation2 + $0x38] sm:$0xff]
  %v58 = vld [vmem:[#allocation2 + $0x40] sm:$0xff]
  %v59 = vld [vmem:[#allocation2 + $0x48] sm:$0xff]
  %v60 = vld [vmem:[#allocation2 + $0x50] sm:$0xff]
  %v61 = vld [vmem:[#allocation2 + $0x58] sm:$0xff]
  %v62 = vld [vmem:[#allocation2 + $0x60] sm:$0xff]
  %v63 = vld [vmem:[#allocation2 + $0x68] sm:$0xff]
  %v64 = vld [vmem:[#allocation2 + $0x70] sm:$0xff]
  %v65 = vld [vmem:[#allocation2 + $0x78] sm:$0xff]
  %v66 = vld [vmem:[#allocation2 + $0x80] sm:$0xff]
  %v67 = vld [vmem:[#allocation2 + $0x88] sm:$0xff]
  %v68 = vld [vmem:[#allocation2 + $0x90] sm:$0xff]
  %v69 = vld [vmem:[#allocation2 + $0x98] sm:$0xff]
  %v70 = vld [vmem:[#allocation2 + $0xa0] sm:$0xff]
  %v71 = vld [vmem:[#allocation2 + $0xa8] sm:$0xff]
  %v72 = vld [vmem:[#allocation2 + $0xb0] sm:$0xff]
  %v73 = vld [vmem:[#allocation2 + $0xb8] sm:$0xff]
  %v74 = vld [vmem:[#allocation2 + $0xc0] sm:$0xff]
  %v75 = vld [vmem:[#allocation2 + $0xc8] sm:$0xff]
  %v76 = vld [vmem:[#allocation2 + $0xd0] sm:$0xff]
  %v77 = vld [vmem:[#allocation2 + $0xd8] sm:$0xff]
  %v78 = vld [vmem:[#allocation2 + $0xe0] sm:$0xff]
  %v79 = vld [vmem:[#allocation2 + $0xe8] sm:$0xff]
  %v80 = vld [vmem:[#allocation2 + $0xf0] sm:$0xff]
  %v81 = vld [vmem:[#allocation2 + $0xf8] sm:$0xff]
  %v82 = vld [vmem:[%s0] sm:$0xff]
  %v83 = vld [vmem:[%s0 + $0x8] sm:$0xff]
  %v84 = vld [vmem:[%s0 + $0x10] sm:$0xff]
  %v85 = vld [vmem:[%s0 + $0x18] sm:$0xff]
  %v86 = vld [vmem:[%s0 + $0x20] sm:$0xff]
  %v87 = vld [vmem:[%s0 + $0x28] sm:$0xff]
  %v88 = vld [vmem:[%s0 + $0x30] sm:$0xff]
  %v89 = vld [vmem:[%s0 + $0x38] sm:$0xff]
  %v90 = vld [vmem:[%s0 + $0x40] sm:$0xff]
  %v91 = vld [vmem:[%s0 + $0x48] sm:$0xff]
  %v92 = vld [vmem:[%s0 + $0x50] sm:$0xff]
  %v93 = vld [vmem:[%s0 + $0x58] sm:$0xff]
  %v94 = vld [vmem:[%s0 + $0x60] sm:$0xff]
  %v95 = vld [vmem:[%s0 + $0x68] sm:$0xff]
  %v96 = vld [vmem:[%s0 + $0x70] sm:$0xff]
  %v97 = vld [vmem:[%s0 + $0x78] sm:$0xff]
  %v98 = vld [vmem:[%s0 + $0x80] sm:$0xff]
  %v99 = vld [vmem:[%s0 + $0x88] sm:$0xff]
  %v100 = vld [vmem:[%s0 + $0x90] sm:$0xff]
  %v101 = vld [vmem:[%s0 + $0x98] sm:$0xff]
  %v102 = vld [vmem:[%s0 + $0xa0] sm:$0xff]
  %v103 = vld [vmem:[%s0 + $0xa8] sm:$0xff]
  %v104 = vld [vmem:[%s0 + $0xb0] sm:$0xff]
  %v105 = vld [vmem:[%s0 + $0xb8] sm:$0xff]
  %v106 = vld [vmem:[%s0 + $0xc0] sm:$0xff]
  %v107 = vld [vmem:[%s0 + $0xc8] sm:$0xff]
  %v108 = vld [vmem:[%s0 + $0xd0] sm:$0xff]
  %v109 = vld [vmem:[%s0 + $0xd8] sm:$0xff]
  %v110 = vld [vmem:[%s0 + $0xe0] sm:$0xff]
  %v111 = vld [vmem:[%s0 + $0xe8] sm:$0xff]
  %v112 = vld [vmem:[%s0 + $0xf0] sm:$0xff]
  %v113 = vld [vmem:[%s0 + $0xf8] sm:$0xff]
  %v114 = vld [vmem:[%s1] sm:$0xff]
  %v115 = vld [vmem:[%s1 + $0x8] sm:$0xff]
  %v116 = vld [vmem:[%s1 + $0x10] sm:$0xff]
  %v117 = vld [vmem:[%s1 + $0x18] sm:$0xff]
  %v118 = vld [vmem:[%s1 + $0x20] sm:$0xff]
  %v119 = vld [vmem:[%s1 + $0x28] sm:$0xff]
  %v120 = vld [vmem:[%s1 + $0x30] sm:$0xff]
  %v121 = vld [vmem:[%s1 + $0x38] sm:$0xff]
  %v122 = vld [vmem:[%s1 + $0x40] sm:$0xff]
  %v123 = vld [vmem:[%s1 + $0x48] sm:$0xff]
  %v124 = vld [vmem:[%s1 + $0x50] sm:$0xff]
  %v125 = vld [vmem:[%s1 + $0x58] sm:$0xff]
  %v126 = vld [vmem:[%s1 + $0x60] sm:$0xff]
  %v127 = vld [vmem:[%s1 + $0x68] sm:$0xff]
  %v128 = vld [vmem:[%s1 + $0x70] sm:$0xff]
  %v129 = vld [vmem:[%s1 + $0x78] sm:$0xff]
  %v130 = vld [vmem:[%s1 + $0x80] sm:$0xff]
  %v131 = vld [vmem:[%s1 + $0x88] sm:$0xff]
  %v132 = vld [vmem:[%s1 + $0x90] sm:$0xff]
  %v133 = vld [vmem:[%s1 + $0x98] sm:$0xff]
  %v134 = vld [vmem:[%s1 + $0xa0] sm:$0xff]
  %v135 = vld [vmem:[%s1 + $0xa8] sm:$0xff]
  %v136 = vld [vmem:[%s1 + $0xb0] sm:$0xff]
  %v137 = vld [vmem:[%s1 + $0xb8] sm:$0xff]
  %v138 = vld [vmem:[%s1 + $0xc0] sm:$0xff]
  %v139 = vld [vmem:[%s1 + $0xc8] sm:$0xff]
  %v140 = vld [vmem:[%s1 + $0xd0] sm:$0xff]
  %v141 = vld [vmem:[%s1 + $0xd8] sm:$0xff]
  %v142 = vld [vmem:[%s1 + $0xe0] sm:$0xff]
  %v143 = vld [vmem:[%s1 + $0xe8] sm:$0xff]
  %v144 = vld [vmem:[%s1 + $0xf0] sm:$0xff]
  %v145 = vld [vmem:[%s1 + $0xf8] sm:$0xff]
  %v146 = vld [vmem:[%s1 + $0x100] sm:$0xff]
  %v147 = vld [vmem:[%s1 + $0x108] sm:$0xff]
  %v148 = vld [vmem:[%s1 + $0x110] sm:$0xff]
  %v149 = vld [vmem:[%s1 + $0x118] sm:$0xff]
  %v150 = vld [vmem:[%s1 + $0x120] sm:$0xff]
  %v151 = vld [vmem:[%s1 + $0x128] sm:$0xff]
  %v152 = vld [vmem:[%s1 + $0x130] sm:$0xff]
  %v153 = vld [vmem:[%s1 + $0x138] sm:$0xff]
  %v154 = vld [vmem:[%s1 + $0x140] sm:$0xff]
  %v155 = vld [vmem:[%s1 + $0x148] sm:$0xff]
  %v156 = vld [vmem:[%s1 + $0x150] sm:$0xff]
  %v157 = vld [vmem:[%s1 + $0x158] sm:$0xff]
  %v158 = vld [vmem:[%s1 + $0x160] sm:$0xff]
  %v159 = vld [vmem:[%s1 + $0x168] sm:$0xff]
  %v160 = vld [vmem:[%s1 + $0x170] sm:$0xff]
  %v161 = vld [vmem:[%s1 + $0x178] sm:$0xff]
  %v162 = vld [vmem:[%s1 + $0x180] sm:$0xff]
  %v163 = vld [vmem:[%s1 + $0x188] sm:$0xff]
  %v164 = vld [vmem:[%s1 + $0x190] sm:$0xff]
  %v165 = vld [vmem:[%s1 + $0x198] sm:$0xff]
  %v166 = vld [vmem:[%s1 + $0x1a0] sm:$0xff]
  %v167 = vld [vmem:[%s1 + $0x1a8] sm:$0xff]
  %v168 = vld [vmem:[%s1 + $0x1b0] sm:$0xff]
  %v169 = vld [vmem:[%s1 + $0x1b8] sm:$0xff]
  %v170 = vld [vmem:[%s1 + $0x1c0] sm:$0xff]
  %v171 = vld [vmem:[%s1 + $0x1c8] sm:$0xff]
  %v172 = vld [vmem:[%s1 + $0x1d0] sm:$0xff]
  %v173 = vld [vmem:[%s1 + $0x1d8] sm:$0xff]
  %v174 = vld [vmem:[%s1 + $0x1e0] sm:$0xff]
  %v175 = vld [vmem:[%s1 + $0x1e8] sm:$0xff]
  %v176 = vld [vmem:[%s1 + $0x1f0] sm:$0xff]
  %v177 = vld [vmem:[%s1 + $0x1f8] sm:$0xff]
  %v210 = vunpack.c.l.b16 %v82
  %v211 = vunpack.c.h.b16 %v82
  %v212 = vunpack.c.l.b16 %v83
  %v213 = vunpack.c.h.b16 %v83
  %v214 = vunpack.c.l.b16 %v84
  %v215 = vunpack.c.h.b16 %v84
  %v216 = vunpack.c.l.b16 %v85
  %v217 = vunpack.c.h.b16 %v85
  %v218 = vunpack.c.l.b16 %v86
  %v219 = vunpack.c.h.b16 %v86
  %v220 = vunpack.c.l.b16 %v87
  %v221 = vunpack.c.h.b16 %v87
  %v222 = vunpack.c.l.b16 %v88
  %v223 = vunpack.c.h.b16 %v88
  %v224 = vunpack.c.l.b16 %v89
  %v225 = vunpack.c.h.b16 %v89
  %v226 = vunpack.c.l.b16 %v90
  %v227 = vunpack.c.h.b16 %v90
  %v228 = vunpack.c.l.b16 %v91
  %v229 = vunpack.c.h.b16 %v91
  %v230 = vunpack.c.l.b16 %v92
  %v231 = vunpack.c.h.b16 %v92
  %v232 = vunpack.c.l.b16 %v93
  %v233 = vunpack.c.h.b16 %v93
  %v234 = vunpack.c.l.b16 %v94
  %v235 = vunpack.c.h.b16 %v94
  %v236 = vunpack.c.l.b16 %v95
  %v237 = vunpack.c.h.b16 %v95
  %v238 = vunpack.c.l.b16 %v96
  %v239 = vunpack.c.h.b16 %v96
  %v240 = vunpack.c.l.b16 %v97
  %v241 = vunpack.c.h.b16 %v97
  %v242 = vunpack.c.l.b16 %v98
  %v243 = vunpack.c.h.b16 %v98
  %v244 = vunpack.c.l.b16 %v99
  %v245 = vunpack.c.h.b16 %v99
  %v246 = vunpack.c.l.b16 %v100
  %v247 = vunpack.c.h.b16 %v100
  %v248 = vunpack.c.l.b16 %v101
  %v249 = vunpack.c.h.b16 %v101
  %v250 = vunpack.c.l.b16 %v102
  %v251 = vunpack.c.h.b16 %v102
  %v252 = vunpack.c.l.b16 %v103
  %v253 = vunpack.c.h.b16 %v103
  %v254 = vunpack.c.l.b16 %v104
  %v255 = vunpack.c.h.b16 %v104
  %v256 = vunpack.c.l.b16 %v105
  %v257 = vunpack.c.h.b16 %v105
  %v258 = vunpack.c.l.b16 %v106
  %v259 = vunpack.c.h.b16 %v106
  %v260 = vunpack.c.l.b16 %v107
  %v261 = vunpack.c.h.b16 %v107
  %v262 = vunpack.c.l.b16 %v108
  %v263 = vunpack.c.h.b16 %v108
  %v264 = vunpack.c.l.b16 %v109
  %v265 = vunpack.c.h.b16 %v109
  %v266 = vunpack.c.l.b16 %v110
  %v267 = vunpack.c.h.b16 %v110
  %v268 = vunpack.c.l.b16 %v111
  %v269 = vunpack.c.h.b16 %v111
  %v270 = vunpack.c.l.b16 %v112
  %v271 = vunpack.c.h.b16 %v112
  %v272 = vunpack.c.l.b16 %v113
  %v273 = vunpack.c.h.b16 %v113
  %v274 = vpack.c.b16 %v214, %v210
  %v275 = vpack.c.b16 %v215, %v211
  %v276 = vpack.c.b16 %v216, %v212
  %v277 = vpack.c.b16 %v217, %v213
  %v278 = vpack.c.b16 %v222, %v218
  %v279 = vpack.c.b16 %v223, %v219
  %v280 = vpack.c.b16 %v224, %v220
  %v281 = vpack.c.b16 %v225, %v221
  %v282 = vpack.c.b16 %v230, %v226
  %v283 = vpack.c.b16 %v231, %v227
  %v284 = vpack.c.b16 %v232, %v228
  %v285 = vpack.c.b16 %v233, %v229
  %v286 = vpack.c.b16 %v238, %v234
  %v287 = vpack.c.b16 %v239, %v235
  %v288 = vpack.c.b16 %v240, %v236
  %v289 = vpack.c.b16 %v241, %v237
  %v290 = vpack.c.b16 %v246, %v242
  %v291 = vpack.c.b16 %v247, %v243
  %v292 = vpack.c.b16 %v248, %v244
  %v293 = vpack.c.b16 %v249, %v245
  %v294 = vpack.c.b16 %v254, %v250
  %v295 = vpack.c.b16 %v255, %v251
  %v296 = vpack.c.b16 %v256, %v252
  %v297 = vpack.c.b16 %v257, %v253
  %v298 = vpack.c.b16 %v262, %v258
  %v299 = vpack.c.b16 %v263, %v259
  %v300 = vpack.c.b16 %v264, %v260
  %v301 = vpack.c.b16 %v265, %v261
  %v302 = vpack.c.b16 %v270, %v266
  %v303 = vpack.c.b16 %v271, %v267
  %v304 = vpack.c.b16 %v272, %v268
  %v305 = vpack.c.b16 %v273, %v269
  %v402 = vunpack.c.l.b16 %v114
  %v403 = vunpack.c.h.b16 %v114
  %v404 = vunpack.c.l.b16 %v115
  %v405 = vunpack.c.h.b16 %v115
  %v406 = vunpack.c.l.b16 %v116
  %v407 = vunpack.c.h.b16 %v116
  %v408 = vunpack.c.l.b16 %v117
  %v409 = vunpack.c.h.b16 %v117
  %v410 = vunpack.c.l.b16 %v118
  %v411 = vunpack.c.h.b16 %v118
  %v412 = vunpack.c.l.b16 %v119
  %v413 = vunpack.c.h.b16 %v119
  %v414 = vunpack.c.l.b16 %v120
  %v415 = vunpack.c.h.b16 %v120
  %v416 = vunpack.c.l.b16 %v121
  %v417 = vunpack.c.h.b16 %v121
  %v418 = vunpack.c.l.b16 %v122
  %v419 = vunpack.c.h.b16 %v122
  %v420 = vunpack.c.l.b16 %v123
  %v421 = vunpack.c.h.b16 %v123
  %v422 = vunpack.c.l.b16 %v124
  %v423 = vunpack.c.h.b16 %v124
  %v424 = vunpack.c.l.b16 %v125
  %v425 = vunpack.c.h.b16 %v125
  %v426 = vunpack.c.l.b16 %v126
  %v427 = vunpack.c.h.b16 %v126
  %v428 = vunpack.c.l.b16 %v127
  %v429 = vunpack.c.h.b16 %v127
  %v430 = vunpack.c.l.b16 %v128
  %v431 = vunpack.c.h.b16 %v128
  %v432 = vunpack.c.l.b16 %v129
  %v433 = vunpack.c.h.b16 %v129
  %v434 = vunpack.c.l.b16 %v130
  %v435 = vunpack.c.h.b16 %v130
  %v436 = vunpack.c.l.b16 %v131
  %v437 = vunpack.c.h.b16 %v131
  %v438 = vunpack.c.l.b16 %v132
  %v439 = vunpack.c.h.b16 %v132
  %v440 = vunpack.c.l.b16 %v133
  %v441 = vunpack.c.h.b16 %v133
  %v442 = vunpack.c.l.b16 %v134
  %v443 = vunpack.c.h.b16 %v134
  %v444 = vunpack.c.l.b16 %v135
  %v445 = vunpack.c.h.b16 %v135
  %v446 = vunpack.c.l.b16 %v136
  %v447 = vunpack.c.h.b16 %v136
  %v448 = vunpack.c.l.b16 %v137
  %v449 = vunpack.c.h.b16 %v137
  %v450 = vunpack.c.l.b16 %v138
  %v451 = vunpack.c.h.b16 %v138
  %v452 = vunpack.c.l.b16 %v139
  %v453 = vunpack.c.h.b16 %v139
  %v454 = vunpack.c.l.b16 %v140
  %v455 = vunpack.c.h.b16 %v140
  %v456 = vunpack.c.l.b16 %v141
  %v457 = vunpack.c.h.b16 %v141
  %v458 = vunpack.c.l.b16 %v142
  %v459 = vunpack.c.h.b16 %v142
  %v460 = vunpack.c.l.b16 %v143
  %v461 = vunpack.c.h.b16 %v143
  %v462 = vunpack.c.l.b16 %v144
  %v463 = vunpack.c.h.b16 %v144
  %v464 = vunpack.c.l.b16 %v145
  %v465 = vunpack.c.h.b16 %v145
  %v466 = vunpack.c.l.b16 %v146
  %v467 = vunpack.c.h.b16 %v146
  %v468 = vunpack.c.l.b16 %v147
  %v469 = vunpack.c.h.b16 %v147
  %v470 = vunpack.c.l.b16 %v148
  %v471 = vunpack.c.h.b16 %v148
  %v472 = vunpack.c.l.b16 %v149
  %v473 = vunpack.c.h.b16 %v149
  %v474 = vunpack.c.l.b16 %v150
  %v475 = vunpack.c.h.b16 %v150
  %v476 = vunpack.c.l.b16 %v151
  %v477 = vunpack.c.h.b16 %v151
  %v478 = vunpack.c.l.b16 %v152
  %v479 = vunpack.c.h.b16 %v152
  %v480 = vunpack.c.l.b16 %v153
  %v481 = vunpack.c.h.b16 %v153
  %v482 = vunpack.c.l.b16 %v154
  %v483 = vunpack.c.h.b16 %v154
  %v484 = vunpack.c.l.b16 %v155
  %v485 = vunpack.c.h.b16 %v155
  %v486 = vunpack.c.l.b16 %v156
  %v487 = vunpack.c.h.b16 %v156
  %v488 = vunpack.c.l.b16 %v157
  %v489 = vunpack.c.h.b16 %v157
  %v490 = vunpack.c.l.b16 %v158
  %v491 = vunpack.c.h.b16 %v158
  %v492 = vunpack.c.l.b16 %v159
  %v493 = vunpack.c.h.b16 %v159
  %v494 = vunpack.c.l.b16 %v160
  %v495 = vunpack.c.h.b16 %v160
  %v496 = vunpack.c.l.b16 %v161
  %v497 = vunpack.c.h.b16 %v161
  %v498 = vunpack.c.l.b16 %v162
  %v499 = vunpack.c.h.b16 %v162
  %v500 = vunpack.c.l.b16 %v163
  %v501 = vunpack.c.h.b16 %v163
  %v502 = vunpack.c.l.b16 %v164
  %v503 = vunpack.c.h.b16 %v164
  %v504 = vunpack.c.l.b16 %v165
  %v505 = vunpack.c.h.b16 %v165
  %v506 = vunpack.c.l.b16 %v166
  %v507 = vunpack.c.h.b16 %v166
  %v508 = vunpack.c.l.b16 %v167
  %v509 = vunpack.c.h.b16 %v167
  %v510 = vunpack.c.l.b16 %v168
  %v511 = vunpack.c.h.b16 %v168
  %v512 = vunpack.c.l.b16 %v169
  %v513 = vunpack.c.h.b16 %v169
  %v514 = vunpack.c.l.b16 %v170
  %v515 = vunpack.c.h.b16 %v170
  %v516 = vunpack.c.l.b16 %v171
  %v517 = vunpack.c.h.b16 %v171
  %v518 = vunpack.c.l.b16 %v172
  %v519 = vunpack.c.h.b16 %v172
  %v520 = vunpack.c.l.b16 %v173
  %v521 = vunpack.c.h.b16 %v173
  %v522 = vunpack.c.l.b16 %v174
  %v523 = vunpack.c.h.b16 %v174
  %v524 = vunpack.c.l.b16 %v175
  %v525 = vunpack.c.h.b16 %v175
  %v526 = vunpack.c.l.b16 %v176
  %v527 = vunpack.c.h.b16 %v176
  %v528 = vunpack.c.l.b16 %v177
  %v529 = vunpack.c.h.b16 %v177
  %v530 = vpack.c.b16 %v404, %v402
  %v531 = vpack.c.b16 %v405, %v403
  %v532 = vpack.c.b16 %v408, %v406
  %v533 = vpack.c.b16 %v409, %v407
  %v534 = vpack.c.b16 %v412, %v410
  %v535 = vpack.c.b16 %v413, %v411
  %v536 = vpack.c.b16 %v416, %v414
  %v537 = vpack.c.b16 %v417, %v415
  %v538 = vpack.c.b16 %v420, %v418
  %v539 = vpack.c.b16 %v421, %v419
  %v540 = vpack.c.b16 %v424, %v422
  %v541 = vpack.c.b16 %v425, %v423
  %v542 = vpack.c.b16 %v428, %v426
  %v543 = vpack.c.b16 %v429, %v427
  %v544 = vpack.c.b16 %v432, %v430
  %v545 = vpack.c.b16 %v433, %v431
  %v546 = vpack.c.b16 %v436, %v434
  %v547 = vpack.c.b16 %v437, %v435
  %v548 = vpack.c.b16 %v440, %v438
  %v549 = vpack.c.b16 %v441, %v439
  %v550 = vpack.c.b16 %v444, %v442
  %v551 = vpack.c.b16 %v445, %v443
  %v552 = vpack.c.b16 %v448, %v446
  %v553 = vpack.c.b16 %v449, %v447
  %v554 = vpack.c.b16 %v452, %v450
  %v555 = vpack.c.b16 %v453, %v451
  %v556 = vpack.c.b16 %v456, %v454
  %v557 = vpack.c.b16 %v457, %v455
  %v558 = vpack.c.b16 %v460, %v458
  %v559 = vpack.c.b16 %v461, %v459
  %v560 = vpack.c.b16 %v464, %v462
  %v561 = vpack.c.b16 %v465, %v463
  %v562 = vpack.c.b16 %v468, %v466
  %v563 = vpack.c.b16 %v469, %v467
  %v564 = vpack.c.b16 %v472, %v470
  %v565 = vpack.c.b16 %v473, %v471
  %v566 = vpack.c.b16 %v476, %v474
  %v567 = vpack.c.b16 %v477, %v475
  %v568 = vpack.c.b16 %v480, %v478
  %v569 = vpack.c.b16 %v481, %v479
  %v570 = vpack.c.b16 %v484, %v482
  %v571 = vpack.c.b16 %v485, %v483
  %v572 = vpack.c.b16 %v488, %v486
  %v573 = vpack.c.b16 %v489, %v487
  %v574 = vpack.c.b16 %v492, %v490
  %v575 = vpack.c.b16 %v493, %v491
  %v576 = vpack.c.b16 %v496, %v494
  %v577 = vpack.c.b16 %v497, %v495
  %v578 = vpack.c.b16 %v500, %v498
  %v579 = vpack.c.b16 %v501, %v499
  %v580 = vpack.c.b16 %v504, %v502
  %v581 = vpack.c.b16 %v505, %v503
  %v582 = vpack.c.b16 %v508, %v506
  %v583 = vpack.c.b16 %v509, %v507
  %v584 = vpack.c.b16 %v512, %v510
  %v585 = vpack.c.b16 %v513, %v511
  %v586 = vpack.c.b16 %v516, %v514
  %v587 = vpack.c.b16 %v517, %v515
  %v588 = vpack.c.b16 %v520, %v518
  %v589 = vpack.c.b16 %v521, %v519
  %v590 = vpack.c.b16 %v524, %v522
  %v591 = vpack.c.b16 %v525, %v523
  %v592 = vpack.c.b16 %v528, %v526
  %v593 = vpack.c.b16 %v529, %v527
  %658 = vmatprep.subr.bf16.mxu0 %v531
  %659 = vmatpush1.bf16.msra.mxu0 %v530
  %660 = vmatprep.subr.bf16.mxu0 %v533
  %661 = vmatpush1.bf16.msra.mxu0 %v532
  %662 = vmatprep.subr.bf16.mxu0 %v535
  %663 = vmatpush1.bf16.msra.mxu0 %v534
  %664 = vmatprep.subr.bf16.mxu0 %v537
  %665 = vmatpush1.bf16.msra.mxu0 %v536
  %666 = vmatprep.subr.bf16.mxu0 %v539
  %667 = vmatpush1.bf16.msra.mxu0 %v538
  %668 = vmatprep.subr.bf16.mxu0 %v541
  %669 = vmatpush1.bf16.msra.mxu0 %v540
  %670 = vmatprep.subr.bf16.mxu0 %v543
  %671 = vmatpush1.bf16.msra.mxu0 %v542
  %672 = vmatprep.subr.bf16.mxu0 %v545
  %673 = vmatpush1.bf16.msra.mxu0 %v544
  %674 = vmatprep.subr.bf16.mxu0 %v547
  %675 = vmatpush1.bf16.msra.mxu0 %v546
  %676 = vmatprep.subr.bf16.mxu0 %v549
  %677 = vmatpush1.bf16.msra.mxu0 %v548
  %678 = vmatprep.subr.bf16.mxu0 %v551
  %679 = vmatpush1.bf16.msra.mxu0 %v550
  %680 = vmatprep.subr.bf16.mxu0 %v553
  %681 = vmatpush1.bf16.msra.mxu0 %v552
  %682 = vmatprep.subr.bf16.mxu0 %v555
  %683 = vmatpush1.bf16.msra.mxu0 %v554
  %684 = vmatprep.subr.bf16.mxu0 %v557
  %685 = vmatpush1.bf16.msra.mxu0 %v556
  %686 = vmatprep.subr.bf16.mxu0 %v559
  %687 = vmatpush1.bf16.msra.mxu0 %v558
  %688 = vmatprep.subr.bf16.mxu0 %v561
  %689 = vmatpush1.bf16.msra.mxu0 %v560
  %690 = vmatprep.mubr.bf16.mxu0 %v275
  %691 = vmatmul.mubr.bf16.gmra.mrb[0].mxu0 %v274
  %v692 = vpop.f32.mrb[0].mxu0
  %v693 = vadd.f32 0.0, %v692
  %v694 = vpop.f32.mrb[0].mxu0
  %v695 = vadd.f32 0.0, %v694
  %v696 = vpop.f32.mrb[0].mxu0
  %v697 = vadd.f32 0.0, %v696
  %v698 = vpop.f32.mrb[0].mxu0
  %v699 = vadd.f32 0.0, %v698
  %700 = vmatprep.mubr.bf16.mxu0 %v279
  %701 = vmatmul.mubr.bf16.gmra.mrb[0].mxu0 %v278
  %v702 = vpop.f32.mrb[0].mxu0
  %v703 = vadd.f32 0.0, %v702
  %v704 = vpop.f32.mrb[0].mxu0
  %v705 = vadd.f32 0.0, %v704
  %v706 = vpop.f32.mrb[0].mxu0
  %v707 = vadd.f32 0.0, %v706
  %v708 = vpop.f32.mrb[0].mxu0
  %v709 = vadd.f32 0.0, %v708
  %710 = vmatprep.mubr.bf16.mxu0 %v283
  %711 = vmatmul.mubr.bf16.gmra.mrb[0].mxu0 %v282
  %v712 = vpop.f32.mrb[0].mxu0
  %v713 = vadd.f32 0.0, %v712
  %v714 = vpop.f32.mrb[0].mxu0
  %v715 = vadd.f32 0.0, %v714
  %v716 = vpop.f32.mrb[0].mxu0
  %v717 = vadd.f32 0.0, %v716
  %v718 = vpop.f32.mrb[0].mxu0
  %v719 = vadd.f32 0.0, %v718
  %720 = vmatprep.mubr.bf16.mxu0 %v287
  %721 = vmatmul.mubr.bf16.gmra.mrb[0].mxu0 %v286
  %v722 = vpop.f32.mrb[0].mxu0
  %v723 = vadd.f32 0.0, %v722
  %v724 = vpop.f32.mrb[0].mxu0
  %v725 = vadd.f32 0.0, %v724
  %v726 = vpop.f32.mrb[0].mxu0
  %v727 = vadd.f32 0.0, %v726
  %v728 = vpop.f32.mrb[0].mxu0
  %v729 = vadd.f32 0.0, %v728
  %730 = vmatprep.mubr.bf16.mxu0 %v291
  %731 = vmatmul.mubr.bf16.gmra.mrb[0].mxu0 %v290
  %v732 = vpop.f32.mrb[0].mxu0
  %v733 = vadd.f32 0.0, %v732
  %v734 = vpop.f32.mrb[0].mxu0
  %v735 = vadd.f32 0.0, %v734
  %v736 = vpop.f32.mrb[0].mxu0
  %v737 = vadd.f32 0.0, %v736
  %v738 = vpop.f32.mrb[0].mxu0
  %v739 = vadd.f32 0.0, %v738
  %740 = vmatprep.mubr.bf16.mxu0 %v295
  %741 = vmatmul.mubr.bf16.gmra.mrb[0].mxu0 %v294
  %v742 = vpop.f32.mrb[0].mxu0
  %v743 = vadd.f32 0.0, %v742
  %v744 = vpop.f32.mrb[0].mxu0
  %v745 = vadd.f32 0.0, %v744
  %v746 = vpop.f32.mrb[0].mxu0
  %v747 = vadd.f32 0.0, %v746
  %v748 = vpop.f32.mrb[0].mxu0
  %v749 = vadd.f32 0.0, %v748
  %750 = vmatprep.mubr.bf16.mxu0 %v299
  %751 = vmatmul.mubr.bf16.gmra.mrb[0].mxu0 %v298
  %v752 = vpop.f32.mrb[0].mxu0
  %v753 = vadd.f32 0.0, %v752
  %v754 = vpop.f32.mrb[0].mxu0
  %v755 = vadd.f32 0.0, %v754
  %v756 = vpop.f32.mrb[0].mxu0
  %v757 = vadd.f32 0.0, %v756
  %v758 = vpop.f32.mrb[0].mxu0
  %v759 = vadd.f32 0.0, %v758
  %760 = vmatprep.mubr.bf16.mxu0 %v303
  %761 = vmatmul.mubr.bf16.gmra.mrb[0].mxu0 %v302
  %v762 = vpop.f32.mrb[0].mxu0
  %v763 = vadd.f32 0.0, %v762
  %v764 = vpop.f32.mrb[0].mxu0
  %v765 = vadd.f32 0.0, %v764
  %v766 = vpop.f32.mrb[0].mxu0
  %v767 = vadd.f32 0.0, %v766
  %v768 = vpop.f32.mrb[0].mxu0
  %v769 = vadd.f32 0.0, %v768
  %770 = vdwg.mxu0
  %771 = vmatprep.subr.bf16.mxu0 %v563
  %772 = vmatpush1.bf16.msra.mxu0 %v562
  %773 = vmatprep.subr.bf16.mxu0 %v565
  %774 = vmatpush1.bf16.msra.mxu0 %v564
  %775 = vmatprep.subr.bf16.mxu0 %v567
  %776 = vmatpush1.bf16.msra.mxu0 %v566
  %777 = vmatprep.subr.bf16.mxu0 %v569
  %778 = vmatpush1.bf16.msra.mxu0 %v568
  %779 = vmatprep.subr.bf16.mxu0 %v571
  %780 = vmatpush1.bf16.msra.mxu0 %v570
  %781 = vmatprep.subr.bf16.mxu0 %v573
  %782 = vmatpush1.bf16.msra.mxu0 %v572
  %783 = vmatprep.subr.bf16.mxu0 %v575
  %784 = vmatpush1.bf16.msra.mxu0 %v574
  %785 = vmatprep.subr.bf16.mxu0 %v577
  %786 = vmatpush1.bf16.msra.mxu0 %v576
  %787 = vmatprep.subr.bf16.mxu0 %v579
  %788 = vmatpush1.bf16.msra.mxu0 %v578
  %789 = vmatprep.subr.bf16.mxu0 %v581
  %790 = vmatpush1.bf16.msra.mxu0 %v580
  %791 = vmatprep.subr.bf16.mxu0 %v583
  %792 = vmatpush1.bf16.msra.mxu0 %v582
  %793 = vmatprep.subr.bf16.mxu0 %v585
  %794 = vmatpush1.bf16.msra.mxu0 %v584
  %795 = vmatprep.subr.bf16.mxu0 %v587
  %796 = vmatpush1.bf16.msra.mxu0 %v586
  %797 = vmatprep.subr.bf16.mxu0 %v589
  %798 = vmatpush1.bf16.msra.mxu0 %v588
  %799 = vmatprep.subr.bf16.mxu0 %v591
  %800 = vmatpush1.bf16.msra.mxu0 %v590
  %801 = vmatprep.subr.bf16.mxu0 %v593
  %802 = vmatpush1.bf16.msra.mxu0 %v592
  %803 = vmatprep.mubr.bf16.mxu0 %v277
  %804 = vmatmul.mubr.bf16.gmra.mrb[0].mxu0 %v276
  %v805 = vpop.f32.mrb[0].mxu0
  %v806 = vadd.f32 %v693, %v805
  %v807 = vpop.f32.mrb[0].mxu0
  %v808 = vadd.f32 %v695, %v807
  %v809 = vpop.f32.mrb[0].mxu0
  %v810 = vadd.f32 %v697, %v809
  %v811 = vpop.f32.mrb[0].mxu0
  %v812 = vadd.f32 %v699, %v811
  %813 = vmatprep.mubr.bf16.mxu0 %v281
  %814 = vmatmul.mubr.bf16.gmra.mrb[0].mxu0 %v280
  %v815 = vpop.f32.mrb[0].mxu0
  %v816 = vadd.f32 %v703, %v815
  %v817 = vpop.f32.mrb[0].mxu0
  %v818 = vadd.f32 %v705, %v817
  %v819 = vpop.f32.mrb[0].mxu0
  %v820 = vadd.f32 %v707, %v819
  %v821 = vpop.f32.mrb[0].mxu0
  %v822 = vadd.f32 %v709, %v821
  %823 = vmatprep.mubr.bf16.mxu0 %v285
  %824 = vmatmul.mubr.bf16.gmra.mrb[0].mxu0 %v284
  %v825 = vpop.f32.mrb[0].mxu0
  %v826 = vadd.f32 %v713, %v825
  %v827 = vpop.f32.mrb[0].mxu0
  %v828 = vadd.f32 %v715, %v827
  %v829 = vpop.f32.mrb[0].mxu0
  %v830 = vadd.f32 %v717, %v829
  %v831 = vpop.f32.mrb[0].mxu0
  %v832 = vadd.f32 %v719, %v831
  %833 = vmatprep.mubr.bf16.mxu0 %v289
  %834 = vmatmul.mubr.bf16.gmra.mrb[0].mxu0 %v288
  %v835 = vpop.f32.mrb[0].mxu0
  %v836 = vadd.f32 %v723, %v835
  %v837 = vpop.f32.mrb[0].mxu0
  %v838 = vadd.f32 %v725, %v837
  %v839 = vpop.f32.mrb[0].mxu0
  %v840 = vadd.f32 %v727, %v839
  %v841 = vpop.f32.mrb[0].mxu0
  %v842 = vadd.f32 %v729, %v841
  %843 = vmatprep.mubr.bf16.mxu0 %v293
  %844 = vmatmul.mubr.bf16.gmra.mrb[0].mxu0 %v292
  %v845 = vpop.f32.mrb[0].mxu0
  %v846 = vadd.f32 %v733, %v845
  %v847 = vpop.f32.mrb[0].mxu0
  %v848 = vadd.f32 %v735, %v847
  %v849 = vpop.f32.mrb[0].mxu0
  %v850 = vadd.f32 %v737, %v849
  %v851 = vpop.f32.mrb[0].mxu0
  %v852 = vadd.f32 %v739, %v851
  %853 = vmatprep.mubr.bf16.mxu0 %v297
  %854 = vmatmul.mubr.bf16.gmra.mrb[0].mxu0 %v296
  %v855 = vpop.f32.mrb[0].mxu0
  %v856 = vadd.f32 %v743, %v855
  %v857 = vpop.f32.mrb[0].mxu0
  %v858 = vadd.f32 %v745, %v857
  %v859 = vpop.f32.mrb[0].mxu0
  %v860 = vadd.f32 %v747, %v859
  %v861 = vpop.f32.mrb[0].mxu0
  %v862 = vadd.f32 %v749, %v861
  %863 = vmatprep.mubr.bf16.mxu0 %v301
  %864 = vmatmul.mubr.bf16.gmra.mrb[0].mxu0 %v300
  %v865 = vpop.f32.mrb[0].mxu0
  %v866 = vadd.f32 %v753, %v865
  %v867 = vpop.f32.mrb[0].mxu0
  %v868 = vadd.f32 %v755, %v867
  %v869 = vpop.f32.mrb[0].mxu0
  %v870 = vadd.f32 %v757, %v869
  %v871 = vpop.f32.mrb[0].mxu0
  %v872 = vadd.f32 %v759, %v871
  %873 = vmatprep.mubr.bf16.mxu0 %v305
  %874 = vmatmul.mubr.bf16.gmra.mrb[0].mxu0 %v304
  %v875 = vpop.f32.mrb[0].mxu0
  %v876 = vadd.f32 %v763, %v875
  %v877 = vpop.f32.mrb[0].mxu0
  %v878 = vadd.f32 %v765, %v877
  %v879 = vpop.f32.mrb[0].mxu0
  %v880 = vadd.f32 %v767, %v879
  %v881 = vpop.f32.mrb[0].mxu0
  %v882 = vadd.f32 %v769, %v881
  %883 = vdwg.mxu0
  %v884 = vadd.f32 %v50, %v806
  %v885 = vadd.f32 %v51, %v808
  %v886 = vadd.f32 %v52, %v810
  %v887 = vadd.f32 %v53, %v812
  %v888 = vadd.f32 %v54, %v816
  %v889 = vadd.f32 %v55, %v818
  %v890 = vadd.f32 %v56, %v820
  %v891 = vadd.f32 %v57, %v822
  %v892 = vadd.f32 %v58, %v826
  %v893 = vadd.f32 %v59, %v828
  %v894 = vadd.f32 %v60, %v830
  %v895 = vadd.f32 %v61, %v832
  %v896 = vadd.f32 %v62, %v836
  %v897 = vadd.f32 %v63, %v838
  %v898 = vadd.f32 %v64, %v840
  %v899 = vadd.f32 %v65, %v842
  %v900 = vadd.f32 %v66, %v846
  %v901 = vadd.f32 %v67, %v848
  %v902 = vadd.f32 %v68, %v850
  %v903 = vadd.f32 %v69, %v852
  %v904 = vadd.f32 %v70, %v856
  %v905 = vadd.f32 %v71, %v858
  %v906 = vadd.f32 %v72, %v860
  %v907 = vadd.f32 %v73, %v862
  %v908 = vadd.f32 %v74, %v866
  %v909 = vadd.f32 %v75, %v868
  %v910 = vadd.f32 %v76, %v870
  %v911 = vadd.f32 %v77, %v872
  %v912 = vadd.f32 %v78, %v876
  %v913 = vadd.f32 %v79, %v878
  %v914 = vadd.f32 %v80, %v880
  %v915 = vadd.f32 %v81, %v882
  %916 = vst [vmem:[#allocation2] sm:$0xff] %v884
  %917 = vst [vmem:[#allocation2 + $0x8] sm:$0xff] %v885
  %918 = vst [vmem:[#allocation2 + $0x10] sm:$0xff] %v886
  %919 = vst [vmem:[#allocation2 + $0x18] sm:$0xff] %v887
  %920 = vst [vmem:[#allocation2 + $0x20] sm:$0xff] %v888
  %921 = vst [vmem:[#allocation2 + $0x28] sm:$0xff] %v889
  %922 = vst [vmem:[#allocation2 + $0x30] sm:$0xff] %v890
  %923 = vst [vmem:[#allocation2 + $0x38] sm:$0xff] %v891
  %924 = vst [vmem:[#allocation2 + $0x40] sm:$0xff] %v892
  %925 = vst [vmem:[#allocation2 + $0x48] sm:$0xff] %v893
  %926 = vst [vmem:[#allocation2 + $0x50] sm:$0xff] %v894
  %927 = vst [vmem:[#allocation2 + $0x58] sm:$0xff] %v895
  %928 = vst [vmem:[#allocation2 + $0x60] sm:$0xff] %v896
  %929 = vst [vmem:[#allocation2 + $0x68] sm:$0xff] %v897
  %930 = vst [vmem:[#allocation2 + $0x70] sm:$0xff] %v898
  %931 = vst [vmem:[#allocation2 + $0x78] sm:$0xff] %v899
  %932 = vst [vmem:[#allocation2 + $0x80] sm:$0xff] %v900
  %933 = vst [vmem:[#allocation2 + $0x88] sm:$0xff] %v901
  %934 = vst [vmem:[#allocation2 + $0x90] sm:$0xff] %v902
  %935 = vst [vmem:[#allocation2 + $0x98] sm:$0xff] %v903
  %936 = vst [vmem:[#allocation2 + $0xa0] sm:$0xff] %v904
  %937 = vst [vmem:[#allocation2 + $0xa8] sm:$0xff] %v905
  %938 = vst [vmem:[#allocation2 + $0xb0] sm:$0xff] %v906
  %939 = vst [vmem:[#allocation2 + $0xb8] sm:$0xff] %v907
  %940 = vst [vmem:[#allocation2 + $0xc0] sm:$0xff] %v908
  %941 = vst [vmem:[#allocation2 + $0xc8] sm:$0xff] %v909
  %942 = vst [vmem:[#allocation2 + $0xd0] sm:$0xff] %v910
  %943 = vst [vmem:[#allocation2 + $0xd8] sm:$0xff] %v911
  %944 = vst [vmem:[#allocation2 + $0xe0] sm:$0xff] %v912
  %945 = vst [vmem:[#allocation2 + $0xe8] sm:$0xff] %v913
  %946 = vst [vmem:[#allocation2 + $0xf0] sm:$0xff] %v914
  %947 = vst [vmem:[#allocation2 + $0xf8] sm:$0xff] %v915
  // Predicated region
  $region18: #{generator_forward.92} parent=0 // pred_check
    %p948 = pneg %p14
  $region19: #{generator_forward.92} parent=0 // pred_check_branch
    %950 = sbr.rel (%p948) target = $region21
  $region20: #{generator_forward.92} parent=0 // pred_region
    %v951 = vld [vmem:[#allocation2] sm:$0xff]
    %v952 = vld [vmem:[#allocation2 + $0x8] sm:$0xff]
    %v953 = vld [vmem:[#allocation2 + $0x10] sm:$0xff]
    %v954 = vld [vmem:[#allocation2 + $0x18] sm:$0xff]
    %v955 = vld [vmem:[#allocation2 + $0x20] sm:$0xff]
    %v956 = vld [vmem:[#allocation2 + $0x28] sm:$0xff]
    %v957 = vld [vmem:[#allocation2 + $0x30] sm:$0xff]
    %v958 = vld [vmem:[#allocation2 + $0x38] sm:$0xff]
    %v959 = vld [vmem:[#allocation2 + $0x40] sm:$0xff]
    %v960 = vld [vmem:[#allocation2 + $0x48] sm:$0xff]
    %v961 = vld [vmem:[#allocation2 + $0x50] sm:$0xff]
    %v962 = vld [vmem:[#allocation2 + $0x58] sm:$0xff]
    %v963 = vld [vmem:[#allocation2 + $0x60] sm:$0xff]
    %v964 = vld [vmem:[#allocation2 + $0x68] sm:$0xff]
    %v965 = vld [vmem:[#allocation2 + $0x70] sm:$0xff]
    %v966 = vld [vmem:[#allocation2 + $0x78] sm:$0xff]
    %v967 = vld [vmem:[#allocation2 + $0x80] sm:$0xff]
    %v968 = vld [vmem:[#allocation2 + $0x88] sm:$0xff]
    %v969 = vld [vmem:[#allocation2 + $0x90] sm:$0xff]
    %v970 = vld [vmem:[#allocation2 + $0x98] sm:$0xff]
    %v971 = vld [vmem:[#allocation2 + $0xa0] sm:$0xff]
    %v972 = vld [vmem:[#allocation2 + $0xa8] sm:$0xff]
    %v973 = vld [vmem:[#allocation2 + $0xb0] sm:$0xff]
    %v974 = vld [vmem:[#allocation2 + $0xb8] sm:$0xff]
    %v975 = vld [vmem:[#allocation2 + $0xc0] sm:$0xff]
    %v976 = vld [vmem:[#allocation2 + $0xc8] sm:$0xff]
    %v977 = vld [vmem:[#allocation2 + $0xd0] sm:$0xff]
    %v978 = vld [vmem:[#allocation2 + $0xd8] sm:$0xff]
    %v979 = vld [vmem:[#allocation2 + $0xe0] sm:$0xff]
    %v980 = vld [vmem:[#allocation2 + $0xe8] sm:$0xff]
    %v981 = vld [vmem:[#allocation2 + $0xf0] sm:$0xff]
    %v982 = vld [vmem:[#allocation2 + $0xf8] sm:$0xff]
    %v983 = vld [vmem:[%s2] sm:$0x3]
    %v985 = vlaneseq
    %v986 = vshrl.u32 %v985, 7
    %v987 = vsub.s32 0, %v986
    %v988 = vrot.slane %v983, %v987
    %v989 = vlaneseq
    %v990 = vshrl.u32 %v989, 7
    %v991 = vsub.s32 1, %v990
    %v992 = vrot.slane %v983, %v991
    %v995 = vadd.f32 %v951, %v988
    %v996 = vadd.f32 %v952, %v992
    %v997 = vadd.f32 %v953, %v988
    %v998 = vadd.f32 %v954, %v992
    %v999 = vadd.f32 %v955, %v988
    %v1000 = vadd.f32 %v956, %v992
    %v1001 = vadd.f32 %v957, %v988
    %v1002 = vadd.f32 %v958, %v992
    %v1003 = vadd.f32 %v959, %v988
    %v1004 = vadd.f32 %v960, %v992
    %v1005 = vadd.f32 %v961, %v988
    %v1006 = vadd.f32 %v962, %v992
    %v1007 = vadd.f32 %v963, %v988
    %v1008 = vadd.f32 %v964, %v992
    %v1009 = vadd.f32 %v965, %v988
    %v1010 = vadd.f32 %v966, %v992
    %v1011 = vadd.f32 %v967, %v988
    %v1012 = vadd.f32 %v968, %v992
    %v1013 = vadd.f32 %v969, %v988
    %v1014 = vadd.f32 %v970, %v992
    %v1015 = vadd.f32 %v971, %v988
    %v1016 = vadd.f32 %v972, %v992
    %v1017 = vadd.f32 %v973, %v988
    %v1018 = vadd.f32 %v974, %v992
    %v1019 = vadd.f32 %v975, %v988
    %v1020 = vadd.f32 %v976, %v992
    %v1021 = vadd.f32 %v977, %v988
    %v1022 = vadd.f32 %v978, %v992
    %v1023 = vadd.f32 %v979, %v988
    %v1024 = vadd.f32 %v980, %v992
    %v1025 = vadd.f32 %v981, %v988
    %v1026 = vadd.f32 %v982, %v992
    %1027 = vst [vmem:[%s3] sm:$0xff] %v995
    %1028 = vst [vmem:[%s3 + $0x8] sm:$0xff] %v996
    %1029 = vst [vmem:[%s3 + $0x10] sm:$0xff] %v997
    %1030 = vst [vmem:[%s3 + $0x18] sm:$0xff] %v998
    %1031 = vst [vmem:[%s3 + $0x20] sm:$0xff] %v999
    %1032 = vst [vmem:[%s3 + $0x28] sm:$0xff] %v1000
    %1033 = vst [vmem:[%s3 + $0x30] sm:$0xff] %v1001
    %1034 = vst [vmem:[%s3 + $0x38] sm:$0xff] %v1002
    %1035 = vst [vmem:[%s3 + $0x40] sm:$0xff] %v1003
    %1036 = vst [vmem:[%s3 + $0x48] sm:$0xff] %v1004
    %1037 = vst [vmem:[%s3 + $0x50] sm:$0xff] %v1005
    %1038 = vst [vmem:[%s3 + $0x58] sm:$0xff] %v1006
    %1039 = vst [vmem:[%s3 + $0x60] sm:$0xff] %v1007
    %1040 = vst [vmem:[%s3 + $0x68] sm:$0xff] %v1008
    %1041 = vst [vmem:[%s3 + $0x70] sm:$0xff] %v1009
    %1042 = vst [vmem:[%s3 + $0x78] sm:$0xff] %v1010
    %1043 = vst [vmem:[%s3 + $0x80] sm:$0xff] %v1011
    %1044 = vst [vmem:[%s3 + $0x88] sm:$0xff] %v1012
    %1045 = vst [vmem:[%s3 + $0x90] sm:$0xff] %v1013
    %1046 = vst [vmem:[%s3 + $0x98] sm:$0xff] %v1014
    %1047 = vst [vmem:[%s3 + $0xa0] sm:$0xff] %v1015
    %1048 = vst [vmem:[%s3 + $0xa8] sm:$0xff] %v1016
    %1049 = vst [vmem:[%s3 + $0xb0] sm:$0xff] %v1017
    %1050 = vst [vmem:[%s3 + $0xb8] sm:$0xff] %v1018
    %1051 = vst [vmem:[%s3 + $0xc0] sm:$0xff] %v1019
    %1052 = vst [vmem:[%s3 + $0xc8] sm:$0xff] %v1020
    %1053 = vst [vmem:[%s3 + $0xd0] sm:$0xff] %v1021
    %1054 = vst [vmem:[%s3 + $0xd8] sm:$0xff] %v1022
    %1055 = vst [vmem:[%s3 + $0xe0] sm:$0xff] %v1023
    %1056 = vst [vmem:[%s3 + $0xe8] sm:$0xff] %v1024
    %1057 = vst [vmem:[%s3 + $0xf0] sm:$0xff] %v1025
    %1058 = vst [vmem:[%s3 + $0xf8] sm:$0xff] %v1026
  $region21: #{generator_forward.92} parent=0 // pred_fallthru
    _
  // Predicated region
  $region22: #{generator_forward.92} parent=0 // pred_check
    _
  $region23: #{generator_forward.92} parent=0 // pred_check_branch
    %1060 = sbr.rel (0) target = $region25
  $region24: #{generator_forward.92} parent=0 // pred_region
    _
  $region25: #{generator_forward.92} parent=0 // pred_fallthru
    _
  // Predicated region
  $region26: #{generator_forward.92} parent=0 // pred_check
    _
  $region27: #{generator_forward.92} parent=0 // pred_check_branch
    %1062 = sbr.rel (0) target = $region29
  $region28: #{generator_forward.92} parent=0 // pred_region
    _
  $region29: #{generator_forward.92} parent=0 // pred_fallthru
    _

// kernel: generator_forward.94
$region0: #{generator_forward.94}
  #allocation0 [shape = 'u32[]', space=smem, size = 0x4, offset = 0x4, fixed_abs, tag = 'smem constant byte address 0x4 - core index']
  #allocation1 [shape = 'u32[144,128]{1,0:T(1,128)}', space=vmem, size = 0x12000, scoped, tag = 'internal scratch']
  #allocation2 [shape = 'f32[256,128]{1,0:T(8,128)}', space=vmem, size = 0x20000, scoped, tag = 'scratch operand']
  %s0 = inlined_call_operand.vmem [shape: bf16[512,3200], index: 0, kind: input, shape index: {}]
  %s1 = inlined_call_operand.vmem [shape: bf16[3200,128], index: 1, kind: input, shape index: {}]
  %s2 = inlined_call_operand.vmem [shape: f32[1,128], index: 2, kind: input, shape index: {}]
  %s3 = inlined_call_operand.vmem [shape: f32[512,128], index: 3, kind: output, shape index: {}]
  %s4 = sld [smem:[#allocation0]]
  $region94: #{generator_forward.94} parent=0
    _
  %s6 = ssub.s32 1, %s4
  %s7 = scalar_select 0, %s6, %s4
  $region1: #{generator_forward.94} parent=0
    #allocation3 [shape = 'u8[131072]{0}', space=vmem, size = 0x20000, scoped, tag = 'input window, operand 0']
    loop: start=0, step=1, limit=52
    $region2: #{generator_forward.94} parent=1 // loop_pre_header
      _
    $region3: #{generator_forward.94} parent=1 // loop_header
      %s9 = sphi 0, %s13
      %p10 = scmp.ge.s32.totalorder %s9, 52
      %s16 = sphi 0, %s35
      %s17 = sphi 0, %s31
      %s18 = sphi 0, %s27
      %s19 = sphi 0, %s16
      %s20 = sphi 0, %s17
      %s21 = sphi 0, %s18
      %s22 = sphi 0, %s19
      %s23 = sphi 0, %s20
      %s24 = sphi 0, %s21
      %s40 = sphi 0, %s42
      %s43 = sphi 0, %s40
      %s44 = sphi 0, %s43
      %s60 = sphi 0, %s44
      %s68 = sphi 0, %s70
      %s71 = sphi 0, %s68
      %s72 = sphi 0, %s71
      %s88 = sphi 0, %s72
      %s94 = sphi 0, %s96
      %s97 = sphi 0, %s94
      %s98 = sphi 0, %s97
      %s114 = sphi 0, %s98
      %s122 = sphi 0, %s124
      %s125 = sphi 0, %s122
      %s126 = sphi 0, %s125
      %s142 = sphi 0, %s126
    $region4: #{generator_forward.94} parent=1 // loop_header_branch
      %12 = sbr.rel (%p10) target = $region8
    $region5: #{generator_forward.94} parent=1 // loop_body
      %s14 = ssub.s32 %s9, 1
      %s15 = ssub.s32 %s9, 2
      %s25 = sadd.s32 1, %s18
      %p26 = scmp.ge.s32.totalorder %s25, 25
      %s27 = scalar_select %p26, 0, %s25
      %s28 = sadd.s32 1, %s17
      %s29 = scalar_select %p26, %s28, %s17
      %p30 = scmp.ge.s32.totalorder %s29, 1
      %s31 = scalar_select %p30, 0, %s29
      %s32 = sadd.s32 1, %s16
      %s33 = scalar_select %p30, %s32, %s16
      %p34 = scmp.ge.s32.totalorder %s33, 2
      %s35 = scalar_select %p34, 0, %s33
      %s36 = ssub.s32 %s16, %s35
      %s37 = ssub.s32 %s18, %s27
      %s38 = sor.u32 %s36, %s37
      %p39 = scmp.eq.s32.totalorder %s38, 0
      %s41 = sadd.s32 %s40, 1
      %s42 = scalar_select %p39, %s40, %s41
      %p45 = pneg %p39
      %p46 = scmp.eq.s32.totalorder %s9, 49
      %p47 = por %p45, %p46
      %p48 = scmp.ne.s32.totalorder %s40, %s43
      %p49 = scmp.eq.s32.totalorder %s9, 0
      %p50 = por %p48, %p49
      %p51 = scmp.ne.s32.totalorder %s40, %s43
      %p52 = scmp.eq.s32.totalorder %s14, 49
      %p53 = por %p51, %p52
      %p54 = scmp.ne.s32.totalorder %s43, %s44
      %p55 = scmp.eq.s32.totalorder %s14, 0
      %p56 = por %p54, %p55
      %p57 = scmp.ne.s32.totalorder %s43, %s44
      %p58 = scmp.eq.s32.totalorder %s15, 49
      %p59 = por %p57, %p58
      %p61 = scmp.ne.s32.totalorder %s44, %s60
      %p62 = scmp.eq.s32.totalorder %s15, 0
      %p63 = por %p61, %p62
      %s64 = ssub.s32 %s18, %s27
      %s65 = ssub.s32 %s17, %s31
      %s66 = sor.u32 %s64, %s65
      %p67 = scmp.eq.s32.totalorder %s66, 0
      %s69 = sadd.s32 %s68, 1
      %s70 = scalar_select %p67, %s68, %s69
      %p73 = pneg %p67
      %p74 = scmp.eq.s32.totalorder %s9, 49
      %p75 = por %p73, %p74
      %p76 = scmp.ne.s32.totalorder %s68, %s71
      %p77 = scmp.eq.s32.totalorder %s9, 0
      %p78 = por %p76, %p77
      %p79 = scmp.ne.s32.totalorder %s68, %s71
      %p80 = scmp.eq.s32.totalorder %s14, 49
      %p81 = por %p79, %p80
      %p82 = scmp.ne.s32.totalorder %s71, %s72
      %p83 = scmp.eq.s32.totalorder %s14, 0
      %p84 = por %p82, %p83
      %p85 = scmp.ne.s32.totalorder %s71, %s72
      %p86 = scmp.eq.s32.totalorder %s15, 49
      %p87 = por %p85, %p86
      %p89 = scmp.ne.s32.totalorder %s72, %s88
      %p90 = scmp.eq.s32.totalorder %s15, 0
      %p91 = por %p89, %p90
      %s92 = ssub.s32 %s17, %s31
      %p93 = scmp.eq.s32.totalorder %s92, 0
      %s95 = sadd.s32 %s94, 1
      %s96 = scalar_select %p93, %s94, %s95
      %p99 = pneg %p93
      %p100 = scmp.eq.s32.totalorder %s9, 49
      %p101 = por %p99, %p100
      %p102 = scmp.ne.s32.totalorder %s94, %s97
      %p103 = scmp.eq.s32.totalorder %s9, 0
      %p104 = por %p102, %p103
      %p105 = scmp.ne.s32.totalorder %s94, %s97
      %p106 = scmp.eq.s32.totalorder %s14, 49
      %p107 = por %p105, %p106
      %p108 = scmp.ne.s32.totalorder %s97, %s98
      %p109 = scmp.eq.s32.totalorder %s14, 0
      %p110 = por %p108, %p109
      %p111 = scmp.ne.s32.totalorder %s97, %s98
      %p112 = scmp.eq.s32.totalorder %s15, 49
      %p113 = por %p111, %p112
      %p115 = scmp.ne.s32.totalorder %s98, %s114
      %p116 = scmp.eq.s32.totalorder %s15, 0
      %p117 = por %p115, %p116
      %s118 = ssub.s32 %s16, %s35
      %s119 = ssub.s32 %s17, %s31
      %s120 = sor.u32 %s118, %s119
      %p121 = scmp.eq.s32.totalorder %s120, 0
      %s123 = sadd.s32 %s122, 1
      %s124 = scalar_select %p121, %s122, %s123
      %p127 = pneg %p121
      %p128 = scmp.eq.s32.totalorder %s9, 49
      %p129 = por %p127, %p128
      %p130 = scmp.ne.s32.totalorder %s122, %s125
      %p131 = scmp.eq.s32.totalorder %s9, 0
      %p132 = por %p130, %p131
      %p133 = scmp.ne.s32.totalorder %s122, %s125
      %p134 = scmp.eq.s32.totalorder %s14, 49
      %p135 = por %p133, %p134
      %p136 = scmp.ne.s32.totalorder %s125, %s126
      %p137 = scmp.eq.s32.totalorder %s14, 0
      %p138 = por %p136, %p137
      %p139 = scmp.ne.s32.totalorder %s125, %s126
      %p140 = scmp.eq.s32.totalorder %s15, 49
      %p141 = por %p139, %p140
      %p143 = scmp.ne.s32.totalorder %s126, %s142
      %p144 = scmp.eq.s32.totalorder %s15, 0
      %p145 = por %p143, %p144
      %p146 = scmp.le.s32.totalorder 1, %s9
      %p147 = scmp.lt.s32.totalorder %s9, 51
      %p148 = pnand %p146, %p147
      %p149 = pneg %p148
      // Predicated region
      $region9: #{generator_forward.94} parent=5 // pred_check
        _
      $region10: #{generator_forward.94} parent=5 // pred_check_branch
        %151 = sbr.rel (%p148) target = $region12
      $region11: #{generator_forward.94} parent=5 // pred_region
        %s152 = ssub.s32 %s9, 1
        // Predicated region
        $region13: #{generator_forward.94} parent=11 // pred_check
          %p153 = pneg %p110
        $region14: #{generator_forward.94} parent=11 // pred_check_branch
          %155 = sbr.rel (%p153) target = $region16
        $region15: #{generator_forward.94} parent=11 // pred_region
          %p156 = scmp.lt.s32.totalorder %s20, 0
          %s157 = scalar_select %p156, %s20, 0
          %s158 = scalar_lea.vmem %s2, %s157
        $region16: #{generator_forward.94} parent=11 // pred_fallthru
          _
      $region12: #{generator_forward.94} parent=5 // pred_fallthru
        _
      %p159 = scmp.lt.s32.totalorder %s9, 50
      // Predicated region
      $region17: #{generator_forward.94} parent=5 // pred_check
        %p160 = pneg %p159
      $region18: #{generator_forward.94} parent=5 // pred_check_branch
        %162 = sbr.rel (%p160) target = $region20
      $region19: #{generator_forward.94} parent=5 // pred_region
        // Predicated region
        $region21: #{generator_forward.94} parent=19 // pred_check
          %p163 = pneg %p50
        $region22: #{generator_forward.94} parent=19 // pred_check_branch
          %165 = sbr.rel (%p163) target = $region24
        $region23: #{generator_forward.94} parent=19 // pred_region
          %s166 = sand.u32 %s40, 1
          %s167 = sand.u32 %s40, 1
          %s168 = smul.addr %s167, 128
          %s169 = scalar_lea.vmem [#allocation3], %s168
          %s170 = smul.u32 32, %s16
          %s171 = smul.addr %s170, 25
          %s172 = sadd.s32 %s18, %s171
          %s173 = smul.addr %s172, 4
          %s174 = scalar_lea.vmem %s0, %s173
          // Predicated region
          $region25: #{generator_forward.94} parent=23 // pred_check
            _
          $region26: #{generator_forward.94} parent=23 // pred_check_branch
            %176 = sbr.rel (0) target = $region28
          $region27: #{generator_forward.94} parent=23 // pred_region
            // Predicated region
            $region29: #{generator_forward.94} parent=27 // pred_check
              _
            $region30: #{generator_forward.94} parent=27 // pred_check_branch
              %178 = sbr.rel target = $region32
            $region31: #{generator_forward.94} parent=27 // pred_region
              // Predicated region
              $region44: #{generator_forward.94} parent=31 // pred_check
                _
              $region45: #{generator_forward.94} parent=31 // pred_check_branch
                %255 = sbr.rel (0) target = $region47
              $region46: #{generator_forward.94} parent=31 // pred_region
                loop: start=0, step=1, limit=1
                $region48: #{generator_forward.94} parent=46 // loop_pre_header
                  _
                $region49: #{generator_forward.94} parent=46 // loop_header
                  %s257 = sphi 0, %s261
                  %p258 = scmp.ge.s32.totalorder %s257, 1
                  %s262 = sphi %s174, %s174
                  %s263 = sphi %s169, %s169
                $region50: #{generator_forward.94} parent=46 // loop_header_branch
                  %260 = sbr.rel (%p258) target = $region54
                $region51: #{generator_forward.94} parent=46 // loop_body
                  _
                $region52: #{generator_forward.94} parent=46 // loop_footer
                  %s261 = sadd.s32 1, %s257
                $region53: #{generator_forward.94} parent=46 // loop_footer_branch
                  %256 = sbr.rel target = $region49
                $region54: #{generator_forward.94} parent=46 // loop_exit
                  _
                loop: start=0, step=1, limit=1
                $region55: #{generator_forward.94} parent=46 // loop_pre_header
                  _
                $region56: #{generator_forward.94} parent=46 // loop_header
                  %s266 = sphi 0, %s270
                  %p267 = scmp.ge.s32.totalorder %s266, 1
                  %s271 = sphi %s174, %s174
                  %s272 = sphi %s169, %s169
                $region57: #{generator_forward.94} parent=46 // loop_header_branch
                  %269 = sbr.rel (%p267) target = $region61
                $region58: #{generator_forward.94} parent=46 // loop_body
                  %v273 = vld [vmem:[%s271] sm:$0xf]
                  %274 = vst [vmem:[%s272] sm:$0xf] %v273
                  %v275 = vld [vmem:[%s271 + $0x64] sm:$0xf]
                  %276 = vst [vmem:[%s272 + $0x4] sm:$0xf] %v275
                  %v277 = vld [vmem:[%s271 + $0xc8] sm:$0xf]
                  %278 = vst [vmem:[%s272 + $0x8] sm:$0xf] %v277
                  %v279 = vld [vmem:[%s271 + $0x12c] sm:$0xf]
                  %280 = vst [vmem:[%s272 + $0xc] sm:$0xf] %v279
                  %v281 = vld [vmem:[%s271 + $0x190] sm:$0xf]
                  %282 = vst [vmem:[%s272 + $0x10] sm:$0xf] %v281
                  %v283 = vld [vmem:[%s271 + $0x1f4] sm:$0xf]
                  %284 = vst [vmem:[%s272 + $0x14] sm:$0xf] %v283
                  %v285 = vld [vmem:[%s271 + $0x258] sm:$0xf]
                  %286 = vst [vmem:[%s272 + $0x18] sm:$0xf] %v285
                  %v287 = vld [vmem:[%s271 + $0x2bc] sm:$0xf]
                  %288 = vst [vmem:[%s272 + $0x1c] sm:$0xf] %v287
                  %v289 = vld [vmem:[%s271 + $0x320] sm:$0xf]
                  %290 = vst [vmem:[%s272 + $0x20] sm:$0xf] %v289
                  %v291 = vld [vmem:[%s271 + $0x384] sm:$0xf]
                  %292 = vst [vmem:[%s272 + $0x24] sm:$0xf] %v291
                  %v293 = vld [vmem:[%s271 + $0x3e8] sm:$0xf]
                  %294 = vst [vmem:[%s272 + $0x28] sm:$0xf] %v293
                  %v295 = vld [vmem:[%s271 + $0x44c] sm:$0xf]
                  %296 = vst [vmem:[%s272 + $0x2c] sm:$0xf] %v295
                  %v297 = vld [vmem:[%s271 + $0x4b0] sm:$0xf]
                  %298 = vst [vmem:[%s272 + $0x30] sm:$0xf] %v297
                  %v299 = vld [vmem:[%s271 + $0x514] sm:$0xf]
                  %300 = vst [vmem:[%s272 + $0x34] sm:$0xf] %v299
                  %v301 = vld [vmem:[%s271 + $0x578] sm:$0xf]
                  %302 = vst [vmem:[%s272 + $0x38] sm:$0xf] %v301
                  %v303 = vld [vmem:[%s271 + $0x5dc] sm:$0xf]
                  %304 = vst [vmem:[%s272 + $0x3c] sm:$0xf] %v303
                  %v305 = vld [vmem:[%s271 + $0x640] sm:$0xf]
                  %306 = vst [vmem:[%s272 + $0x40] sm:$0xf] %v305
                  %v307 = vld [vmem:[%s271 + $0x6a4] sm:$0xf]
                  %308 = vst [vmem:[%s272 + $0x44] sm:$0xf] %v307
                  %v309 = vld [vmem:[%s271 + $0x708] sm:$0xf]
                  %310 = vst [vmem:[%s272 + $0x48] sm:$0xf] %v309
                  %v311 = vld [vmem:[%s271 + $0x76c] sm:$0xf]
                  %312 = vst [vmem:[%s272 + $0x4c] sm:$0xf] %v311
                  %v313 = vld [vmem:[%s271 + $0x7d0] sm:$0xf]
                  %314 = vst [vmem:[%s272 + $0x50] sm:$0xf] %v313
                  %v315 = vld [vmem:[%s271 + $0x834] sm:$0xf]
                  %316 = vst [vmem:[%s272 + $0x54] sm:$0xf] %v315
                  %v317 = vld [vmem:[%s271 + $0x898] sm:$0xf]
                  %318 = vst [vmem:[%s272 + $0x58] sm:$0xf] %v317
                  %v319 = vld [vmem:[%s271 + $0x8fc] sm:$0xf]
                  %320 = vst [vmem:[%s272 + $0x5c] sm:$0xf] %v319
                  %v321 = vld [vmem:[%s271 + $0x960] sm:$0xf]
                  %322 = vst [vmem:[%s272 + $0x60] sm:$0xf] %v321
                  %v323 = vld [vmem:[%s271 + $0x9c4] sm:$0xf]
                  %324 = vst [vmem:[%s272 + $0x64] sm:$0xf] %v323
                  %v325 = vld [vmem:[%s271 + $0xa28] sm:$0xf]
                  %326 = vst [vmem:[%s272 + $0x68] sm:$0xf] %v325
                  %v327 = vld [vmem:[%s271 + $0xa8c] sm:$0xf]
                  %328 = vst [vmem:[%s272 + $0x6c] sm:$0xf] %v327
                  %v329 = vld [vmem:[%s271 + $0xaf0] sm:$0xf]
                  %330 = vst [vmem:[%s272 + $0x70] sm:$0xf] %v329
                  %v331 = vld [vmem:[%s271 + $0xb54] sm:$0xf]
                  %332 = vst [vmem:[%s272 + $0x74] sm:$0xf] %v331
                  %v333 = vld [vmem:[%s271 + $0xbb8] sm:$0xf]
                  %334 = vst [vmem:[%s272 + $0x78] sm:$0xf] %v333
                  %v335 = vld [vmem:[%s271 + $0xc1c] sm:$0xf]
                  %336 = vst [vmem:[%s272 + $0x7c] sm:$0xf] %v335
                $region59: #{generator_forward.94} parent=46 // loop_footer
                  %s270 = sadd.s32 1, %s266
                $region60: #{generator_forward.94} parent=46 // loop_footer_branch
                  %265 = sbr.rel target = $region56
                $region61: #{generator_forward.94} parent=46 // loop_exit
                  _
              $region47: #{generator_forward.94} parent=31 // pred_fallthru
                _
            $region32: #{generator_forward.94} parent=27 // pred_fallthru
              _
            // Predicated region
            $region33: #{generator_forward.94} parent=27 // pred_check
              _
            $region34: #{generator_forward.94} parent=27 // pred_check_branch
              %180 = sbr.rel (0) target = $region36
            $region35: #{generator_forward.94} parent=27 // pred_region
              loop: start=0, step=1, limit=1
              $region37: #{generator_forward.94} parent=35 // loop_pre_header
                _
              $region38: #{generator_forward.94} parent=35 // loop_header
                %s183 = sphi 0, %s187
                %p184 = scmp.ge.s32.totalorder %s183, 1
                %s188 = sphi %s174, %s174
                %s189 = sphi %s169, %s169
              $region39: #{generator_forward.94} parent=35 // loop_header_branch
                %186 = sbr.rel (%p184) target = $region43
              $region40: #{generator_forward.94} parent=35 // loop_body
                %v190 = vld [vmem:[%s188] sm:$0xf]
                %191 = vst [vmem:[%s189] sm:$0xf] %v190
                %v192 = vld [vmem:[%s188 + $0x64] sm:$0xf]
                %193 = vst [vmem:[%s189 + $0x4] sm:$0xf] %v192
                %v194 = vld [vmem:[%s188 + $0xc8] sm:$0xf]
                %195 = vst [vmem:[%s189 + $0x8] sm:$0xf] %v194
                %v196 = vld [vmem:[%s188 + $0x12c] sm:$0xf]
                %197 = vst [vmem:[%s189 + $0xc] sm:$0xf] %v196
                %v198 = vld [vmem:[%s188 + $0x190] sm:$0xf]
                %199 = vst [vmem:[%s189 + $0x10] sm:$0xf] %v198
                %v200 = vld [vmem:[%s188 + $0x1f4] sm:$0xf]
                %201 = vst [vmem:[%s189 + $0x14] sm:$0xf] %v200
                %v202 = vld [vmem:[%s188 + $0x258] sm:$0xf]
                %203 = vst [vmem:[%s189 + $0x18] sm:$0xf] %v202
                %v204 = vld [vmem:[%s188 + $0x2bc] sm:$0xf]
                %205 = vst [vmem:[%s189 + $0x1c] sm:$0xf] %v204
                %v206 = vld [vmem:[%s188 + $0x320] sm:$0xf]
                %207 = vst [vmem:[%s189 + $0x20] sm:$0xf] %v206
                %v208 = vld [vmem:[%s188 + $0x384] sm:$0xf]
                %209 = vst [vmem:[%s189 + $0x24] sm:$0xf] %v208
                %v210 = vld [vmem:[%s188 + $0x3e8] sm:$0xf]
                %211 = vst [vmem:[%s189 + $0x28] sm:$0xf] %v210
                %v212 = vld [vmem:[%s188 + $0x44c] sm:$0xf]
                %213 = vst [vmem:[%s189 + $0x2c] sm:$0xf] %v212
                %v214 = vld [vmem:[%s188 + $0x4b0] sm:$0xf]
                %215 = vst [vmem:[%s189 + $0x30] sm:$0xf] %v214
                %v216 = vld [vmem:[%s188 + $0x514] sm:$0xf]
                %217 = vst [vmem:[%s189 + $0x34] sm:$0xf] %v216
                %v218 = vld [vmem:[%s188 + $0x578] sm:$0xf]
                %219 = vst [vmem:[%s189 + $0x38] sm:$0xf] %v218
                %v220 = vld [vmem:[%s188 + $0x5dc] sm:$0xf]
                %221 = vst [vmem:[%s189 + $0x3c] sm:$0xf] %v220
                %v222 = vld [vmem:[%s188 + $0x640] sm:$0xf]
                %223 = vst [vmem:[%s189 + $0x40] sm:$0xf] %v222
                %v224 = vld [vmem:[%s188 + $0x6a4] sm:$0xf]
                %225 = vst [vmem:[%s189 + $0x44] sm:$0xf] %v224
                %v226 = vld [vmem:[%s188 + $0x708] sm:$0xf]
                %227 = vst [vmem:[%s189 + $0x48] sm:$0xf] %v226
                %v228 = vld [vmem:[%s188 + $0x76c] sm:$0xf]
                %229 = vst [vmem:[%s189 + $0x4c] sm:$0xf] %v228
                %v230 = vld [vmem:[%s188 + $0x7d0] sm:$0xf]
                %231 = vst [vmem:[%s189 + $0x50] sm:$0xf] %v230
                %v232 = vld [vmem:[%s188 + $0x834] sm:$0xf]
                %233 = vst [vmem:[%s189 + $0x54] sm:$0xf] %v232
                %v234 = vld [vmem:[%s188 + $0x898] sm:$0xf]
                %235 = vst [vmem:[%s189 + $0x58] sm:$0xf] %v234
                %v236 = vld [vmem:[%s188 + $0x8fc] sm:$0xf]
                %237 = vst [vmem:[%s189 + $0x5c] sm:$0xf] %v236
                %v238 = vld [vmem:[%s188 + $0x960] sm:$0xf]
                %239 = vst [vmem:[%s189 + $0x60] sm:$0xf] %v238
                %v240 = vld [vmem:[%s188 + $0x9c4] sm:$0xf]
                %241 = vst [vmem:[%s189 + $0x64] sm:$0xf] %v240
                %v242 = vld [vmem:[%s188 + $0xa28] sm:$0xf]
                %243 = vst [vmem:[%s189 + $0x68] sm:$0xf] %v242
                %v244 = vld [vmem:[%s188 + $0xa8c] sm:$0xf]
                %245 = vst [vmem:[%s189 + $0x6c] sm:$0xf] %v244
                %v246 = vld [vmem:[%s188 + $0xaf0] sm:$0xf]
                %247 = vst [vmem:[%s189 + $0x70] sm:$0xf] %v246
                %v248 = vld [vmem:[%s188 + $0xb54] sm:$0xf]
                %249 = vst [vmem:[%s189 + $0x74] sm:$0xf] %v248
                %v250 = vld [vmem:[%s188 + $0xbb8] sm:$0xf]
                %251 = vst [vmem:[%s189 + $0x78] sm:$0xf] %v250
                %v252 = vld [vmem:[%s188 + $0xc1c] sm:$0xf]
                %253 = vst [vmem:[%s189 + $0x7c] sm:$0xf] %v252
              $region41: #{generator_forward.94} parent=35 // loop_footer
                %s187 = sadd.s32 1, %s183
              $region42: #{generator_forward.94} parent=35 // loop_footer_branch
                %182 = sbr.rel target = $region38
              $region43: #{generator_forward.94} parent=35 // loop_exit
                _
            $region36: #{generator_forward.94} parent=27 // pred_fallthru
              _
          $region28: #{generator_forward.94} parent=23 // pred_fallthru
            _
          %337 = vnop
        $region24: #{generator_forward.94} parent=19 // pred_fallthru
          _
        // Predicated region
        $region62: #{generator_forward.94} parent=19 // pred_check
          %p338 = pneg %p78
        $region63: #{generator_forward.94} parent=19 // pred_check_branch
          %340 = sbr.rel (%p338) target = $region65
        $region64: #{generator_forward.94} parent=19 // pred_region
          %s341 = smul.u32 16, %s18
          %p342 = scmp.lt.s32.totalorder %s341, 399
          %s343 = scalar_select %p342, %s341, 399
          %p344 = scmp.lt.s32.totalorder %s17, 0
          %s345 = scalar_select %p344, %s17, 0
          %s346 = sadd.s32 %s345, %s343
          %s347 = smul.addr %s346, 4
          %s348 = scalar_lea.vmem %s1, %s347
          %s349 = smul.u32 16, %s18
        $region65: #{generator_forward.94} parent=19 // pred_fallthru
          _
      $region20: #{generator_forward.94} parent=5 // pred_fallthru
        _
      %p350 = scmp.le.s32.totalorder 1, %s9
      %p351 = scmp.lt.s32.totalorder %s9, 51
      %p352 = pnand %p350, %p351
      %p353 = pneg %p352
      // Predicated region
      $region66: #{generator_forward.94} parent=5 // pred_check
        _
      $region67: #{generator_forward.94} parent=5 // pred_check_branch
        %355 = sbr.rel (%p352) target = $region69
      $region68: #{generator_forward.94} parent=5 // pred_region
        %s356 = ssub.s32 %s9, 1
        %s357 = sand.u32 %s43, 1
        %s358 = sand.u32 %s43, 1
        %s359 = smul.addr %s358, 128
        %s360 = scalar_lea.vmem [#allocation3], %s359
        // Predicated region
        $region70: #{generator_forward.94} parent=68 // pred_check
          %p361 = pneg %p56
        $region71: #{generator_forward.94} parent=68 // pred_check_branch
          %363 = sbr.rel (%p361) target = $region73
        $region72: #{generator_forward.94} parent=68 // pred_region
          _
        $region73: #{generator_forward.94} parent=68 // pred_fallthru
          _
        %s364 = sand.u32 %s43, 1
        %s365 = sand.u32 %s43, 1
        %s366 = smul.addr %s365, 128
        %s367 = scalar_lea.vmem [#allocation3], %s366
        %p368 = pneg %p56
        %p369 = pneg %p53
        %s370 = smul.u32 16, %s21
        %p371 = scmp.lt.s32.totalorder %s370, 399
        %s372 = scalar_select %p371, %s370, 399
        %p373 = scmp.lt.s32.totalorder %s20, 0
        %s374 = scalar_select %p373, %s20, 0
        %s375 = sadd.s32 %s374, %s372
        %s376 = smul.addr %s375, 4
        %s377 = scalar_lea.vmem %s1, %s376
        %p378 = pneg %p84
        %p379 = pneg %p81
        %p380 = scmp.lt.s32.totalorder %s20, 0
        %s381 = scalar_select %p380, %s20, 0
        %s382 = scalar_lea.vmem %s2, %s381
        %p383 = pneg %p110
        %p384 = pneg %p107
        %p385 = pneg %p138
        %p386 = pneg %p135
        %s387 = smul.u32 32, %s19
        %p388 = scmp.lt.s32.totalorder %s387, 63
        %s389 = scalar_select %p388, %s387, 63
        %p390 = scmp.lt.s32.totalorder %s20, 0
        %s391 = scalar_select %p390, %s20, 0
        %s392 = sadd.s32 %s391, %s389
        %s393 = smul.addr %s392, 8
        %s394 = scalar_lea.vmem %s3, %s393
        %s395 = smul.u32 32, %s19
        %s396 = smul.u32 16, %s21
        %p397 = scmp.lt.s32.totalorder %s396, 399
        %s398 = scalar_select %p397, %s396, 399
        %p399 = scmp.lt.s32.totalorder %s20, 0
        %s400 = scalar_select %p399, %s20, 0
        %s401 = sadd.s32 %s400, %s398
        %s402 = smul.addr %s401, 4
        %s403 = scalar_lea.vmem %s1, %s402
        %s404 = smul.u32 16, %s21
        %p405 = scmp.lt.s32.totalorder %s20, 0
        %s406 = scalar_select %p405, %s20, 0
        %s407 = scalar_lea.vmem %s2, %s406
        %s408 = smul.u32 32, %s19
        %p409 = scmp.lt.s32.totalorder %s408, 63
        %s410 = scalar_select %p409, %s408, 63
        %p411 = scmp.lt.s32.totalorder %s20, 0
        %s412 = scalar_select %p411, %s20, 0
        %s413 = sadd.s32 %s412, %s410
        %s414 = smul.addr %s413, 8
        %s415 = scalar_lea.vmem %s3, %s414
        %s416 = smul.u32 32, %s19
        %p418 = scmp.eq.s32.totalorder %s21, 0
        // Predicated region
        $region74: #{generator_forward.94} parent=68 // pred_check
          %p419 = pneg %p418
        $region75: #{generator_forward.94} parent=68 // pred_check_branch
          %421 = sbr.rel (%p419) target = $region77
        $region76: #{generator_forward.94} parent=68 // pred_region
          %422 = vst [vmem:[#allocation2] sm:$0xff] 0.0
          %423 = vst [vmem:[#allocation2 + $0x8] sm:$0xff] 0.0
          %424 = vst [vmem:[#allocation2 + $0x10] sm:$0xff] 0.0
          %425 = vst [vmem:[#allocation2 + $0x18] sm:$0xff] 0.0
          %426 = vst [vmem:[#allocation2 + $0x20] sm:$0xff] 0.0
          %427 = vst [vmem:[#allocation2 + $0x28] sm:$0xff] 0.0
          %428 = vst [vmem:[#allocation2 + $0x30] sm:$0xff] 0.0
          %429 = vst [vmem:[#allocation2 + $0x38] sm:$0xff] 0.0
          %430 = vst [vmem:[#allocation2 + $0x40] sm:$0xff] 0.0
          %431 = vst [vmem:[#allocation2 + $0x48] sm:$0xff] 0.0
          %432 = vst [vmem:[#allocation2 + $0x50] sm:$0xff] 0.0
          %433 = vst [vmem:[#allocation2 + $0x58] sm:$0xff] 0.0
          %434 = vst [vmem:[#allocation2 + $0x60] sm:$0xff] 0.0
          %435 = vst [vmem:[#allocation2 + $0x68] sm:$0xff] 0.0
          %436 = vst [vmem:[#allocation2 + $0x70] sm:$0xff] 0.0
          %437 = vst [vmem:[#allocation2 + $0x78] sm:$0xff] 0.0
          %438 = vst [vmem:[#allocation2 + $0x80] sm:$0xff] 0.0
          %439 = vst [vmem:[#allocation2 + $0x88] sm:$0xff] 0.0
          %440 = vst [vmem:[#allocation2 + $0x90] sm:$0xff] 0.0
          %441 = vst [vmem:[#allocation2 + $0x98] sm:$0xff] 0.0
          %442 = vst [vmem:[#allocation2 + $0xa0] sm:$0xff] 0.0
          %443 = vst [vmem:[#allocation2 + $0xa8] sm:$0xff] 0.0
          %444 = vst [vmem:[#allocation2 + $0xb0] sm:$0xff] 0.0
          %445 = vst [vmem:[#allocation2 + $0xb8] sm:$0xff] 0.0
          %446 = vst [vmem:[#allocation2 + $0xc0] sm:$0xff] 0.0
          %447 = vst [vmem:[#allocation2 + $0xc8] sm:$0xff] 0.0
          %448 = vst [vmem:[#allocation2 + $0xd0] sm:$0xff] 0.0
          %449 = vst [vmem:[#allocation2 + $0xd8] sm:$0xff] 0.0
          %450 = vst [vmem:[#allocation2 + $0xe0] sm:$0xff] 0.0
          %451 = vst [vmem:[#allocation2 + $0xe8] sm:$0xff] 0.0
          %452 = vst [vmem:[#allocation2 + $0xf0] sm:$0xff] 0.0
          %453 = vst [vmem:[#allocation2 + $0xf8] sm:$0xff] 0.0
        $region77: #{generator_forward.94} parent=68 // pred_fallthru
          _
        %v454 = vld [vmem:[#allocation2] sm:$0xff]
        %v455 = vld [vmem:[#allocation2 + $0x8] sm:$0xff]
        %v456 = vld [vmem:[#allocation2 + $0x10] sm:$0xff]
        %v457 = vld [vmem:[#allocation2 + $0x18] sm:$0xff]
        %v458 = vld [vmem:[#allocation2 + $0x20] sm:$0xff]
        %v459 = vld [vmem:[#allocation2 + $0x28] sm:$0xff]
        %v460 = vld [vmem:[#allocation2 + $0x30] sm:$0xff]
        %v461 = vld [vmem:[#allocation2 + $0x38] sm:$0xff]
        %v462 = vld [vmem:[#allocation2 + $0x40] sm:$0xff]
        %v463 = vld [vmem:[#allocation2 + $0x48] sm:$0xff]
        %v464 = vld [vmem:[#allocation2 + $0x50] sm:$0xff]
        %v465 = vld [vmem:[#allocation2 + $0x58] sm:$0xff]
        %v466 = vld [vmem:[#allocation2 + $0x60] sm:$0xff]
        %v467 = vld [vmem:[#allocation2 + $0x68] sm:$0xff]
        %v468 = vld [vmem:[#allocation2 + $0x70] sm:$0xff]
        %v469 = vld [vmem:[#allocation2 + $0x78] sm:$0xff]
        %v470 = vld [vmem:[#allocation2 + $0x80] sm:$0xff]
        %v471 = vld [vmem:[#allocation2 + $0x88] sm:$0xff]
        %v472 = vld [vmem:[#allocation2 + $0x90] sm:$0xff]
        %v473 = vld [vmem:[#allocation2 + $0x98] sm:$0xff]
        %v474 = vld [vmem:[#allocation2 + $0xa0] sm:$0xff]
        %v475 = vld [vmem:[#allocation2 + $0xa8] sm:$0xff]
        %v476 = vld [vmem:[#allocation2 + $0xb0] sm:$0xff]
        %v477 = vld [vmem:[#allocation2 + $0xb8] sm:$0xff]
        %v478 = vld [vmem:[#allocation2 + $0xc0] sm:$0xff]
        %v479 = vld [vmem:[#allocation2 + $0xc8] sm:$0xff]
        %v480 = vld [vmem:[#allocation2 + $0xd0] sm:$0xff]
        %v481 = vld [vmem:[#allocation2 + $0xd8] sm:$0xff]
        %v482 = vld [vmem:[#allocation2 + $0xe0] sm:$0xff]
        %v483 = vld [vmem:[#allocation2 + $0xe8] sm:$0xff]
        %v484 = vld [vmem:[#allocation2 + $0xf0] sm:$0xff]
        %v485 = vld [vmem:[#allocation2 + $0xf8] sm:$0xff]
        %v486 = vld [vmem:[%s360] sm:$0xf]
        %v487 = vld [vmem:[%s360 + $0x4] sm:$0xf]
        %v488 = vld [vmem:[%s360 + $0x8] sm:$0xf]
        %v489 = vld [vmem:[%s360 + $0xc] sm:$0xf]
        %v490 = vld [vmem:[%s360 + $0x10] sm:$0xf]
        %v491 = vld [vmem:[%s360 + $0x14] sm:$0xf]
        %v492 = vld [vmem:[%s360 + $0x18] sm:$0xf]
        %v493 = vld [vmem:[%s360 + $0x1c] sm:$0xf]
        %v494 = vld [vmem:[%s360 + $0x20] sm:$0xf]
        %v495 = vld [vmem:[%s360 + $0x24] sm:$0xf]
        %v496 = vld [vmem:[%s360 + $0x28] sm:$0xf]
        %v497 = vld [vmem:[%s360 + $0x2c] sm:$0xf]
        %v498 = vld [vmem:[%s360 + $0x30] sm:$0xf]
        %v499 = vld [vmem:[%s360 + $0x34] sm:$0xf]
        %v500 = vld [vmem:[%s360 + $0x38] sm:$0xf]
        %v501 = vld [vmem:[%s360 + $0x3c] sm:$0xf]
        %v502 = vld [vmem:[%s360 + $0x40] sm:$0xf]
        %v503 = vld [vmem:[%s360 + $0x44] sm:$0xf]
        %v504 = vld [vmem:[%s360 + $0x48] sm:$0xf]
        %v505 = vld [vmem:[%s360 + $0x4c] sm:$0xf]
        %v506 = vld [vmem:[%s360 + $0x50] sm:$0xf]
        %v507 = vld [vmem:[%s360 + $0x54] sm:$0xf]
        %v508 = vld [vmem:[%s360 + $0x58] sm:$0xf]
        %v509 = vld [vmem:[%s360 + $0x5c] sm:$0xf]
        %v510 = vld [vmem:[%s360 + $0x60] sm:$0xf]
        %v511 = vld [vmem:[%s360 + $0x64] sm:$0xf]
        %v512 = vld [vmem:[%s360 + $0x68] sm:$0xf]
        %v513 = vld [vmem:[%s360 + $0x6c] sm:$0xf]
        %v514 = vld [vmem:[%s360 + $0x70] sm:$0xf]
        %v515 = vld [vmem:[%s360 + $0x74] sm:$0xf]
        %v516 = vld [vmem:[%s360 + $0x78] sm:$0xf]
        %v517 = vld [vmem:[%s360 + $0x7c] sm:$0xf]
        %v518 = vld [vmem:[%s403] sm:$0xf]
        %v519 = vld [vmem:[%s403 + $0x4] sm:$0xf]
        %v520 = vld [vmem:[%s403 + $0x8] sm:$0xf]
        %v521 = vld [vmem:[%s403 + $0xc] sm:$0xf]
        %v522 = vld [vmem:[%s403 + $0x10] sm:$0xf]
        %v523 = vld [vmem:[%s403 + $0x14] sm:$0xf]
        %v524 = vld [vmem:[%s403 + $0x18] sm:$0xf]
        %v525 = vld [vmem:[%s403 + $0x1c] sm:$0xf]
        %v526 = vld [vmem:[%s403 + $0x20] sm:$0xf]
        %v527 = vld [vmem:[%s403 + $0x24] sm:$0xf]
        %v528 = vld [vmem:[%s403 + $0x28] sm:$0xf]
        %v529 = vld [vmem:[%s403 + $0x2c] sm:$0xf]
        %v530 = vld [vmem:[%s403 + $0x30] sm:$0xf]
        %v531 = vld [vmem:[%s403 + $0x34] sm:$0xf]
        %v532 = vld [vmem:[%s403 + $0x38] sm:$0xf]
        %v533 = vld [vmem:[%s403 + $0x3c] sm:$0xf]
        %v566 = vunpack.c.l.b16 %v486
        %v567 = vunpack.c.l.b16 %v487
        %v568 = vunpack.c.l.b16 %v488
        %v569 = vunpack.c.l.b16 %v489
        %v570 = vunpack.c.l.b16 %v490
        %v571 = vunpack.c.l.b16 %v491
        %v572 = vunpack.c.l.b16 %v492
        %v573 = vunpack.c.l.b16 %v493
        %v574 = vunpack.c.l.b16 %v494
        %v575 = vunpack.c.l.b16 %v495
        %v576 = vunpack.c.l.b16 %v496
        %v577 = vunpack.c.l.b16 %v497
        %v578 = vunpack.c.l.b16 %v498
        %v579 = vunpack.c.l.b16 %v499
        %v580 = vunpack.c.l.b16 %v500
        %v581 = vunpack.c.l.b16 %v501
        %v582 = vunpack.c.l.b16 %v502
        %v583 = vunpack.c.l.b16 %v503
        %v584 = vunpack.c.l.b16 %v504
        %v585 = vunpack.c.l.b16 %v505
        %v586 = vunpack.c.l.b16 %v506
        %v587 = vunpack.c.l.b16 %v507
        %v588 = vunpack.c.l.b16 %v508
        %v589 = vunpack.c.l.b16 %v509
        %v590 = vunpack.c.l.b16 %v510
        %v591 = vunpack.c.l.b16 %v511
        %v592 = vunpack.c.l.b16 %v512
        %v593 = vunpack.c.l.b16 %v513
        %v594 = vunpack.c.l.b16 %v514
        %v595 = vunpack.c.l.b16 %v515
        %v596 = vunpack.c.l.b16 %v516
        %v597 = vunpack.c.l.b16 %v517
        %v598 = vpack.c.b16 %v567, %v566
        %v599 = vpack.c.b16 %v569, %v568
        %v600 = vpack.c.b16 %v571, %v570
        %v601 = vpack.c.b16 %v573, %v572
        %v602 = vpack.c.b16 %v575, %v574
        %v603 = vpack.c.b16 %v577, %v576
        %v604 = vpack.c.b16 %v579, %v578
        %v605 = vpack.c.b16 %v581, %v580
        %v606 = vpack.c.b16 %v583, %v582
        %v607 = vpack.c.b16 %v585, %v584
        %v608 = vpack.c.b16 %v587, %v586
        %v609 = vpack.c.b16 %v589, %v588
        %v610 = vpack.c.b16 %v591, %v590
        %v611 = vpack.c.b16 %v593, %v592
        %v612 = vpack.c.b16 %v595, %v594
        %v613 = vpack.c.b16 %v597, %v596
        %v646 = vunpack.c.l.b16 %v518
        %v647 = vunpack.c.l.b16 %v519
        %v648 = vunpack.c.l.b16 %v520
        %v649 = vunpack.c.l.b16 %v521
        %v650 = vunpack.c.l.b16 %v522
        %v651 = vunpack.c.l.b16 %v523
        %v652 = vunpack.c.l.b16 %v524
        %v653 = vunpack.c.l.b16 %v525
        %v654 = vunpack.c.l.b16 %v526
        %v655 = vunpack.c.l.b16 %v527
        %v656 = vunpack.c.l.b16 %v528
        %v657 = vunpack.c.l.b16 %v529
        %v658 = vunpack.c.l.b16 %v530
        %v659 = vunpack.c.l.b16 %v531
        %v660 = vunpack.c.l.b16 %v532
        %v661 = vunpack.c.l.b16 %v533
        %v662 = vpack.c.b16 %v647, %v646
        %v663 = vpack.c.b16 %v649, %v648
        %v664 = vpack.c.b16 %v651, %v650
        %v665 = vpack.c.b16 %v653, %v652
        %v666 = vpack.c.b16 %v655, %v654
        %v667 = vpack.c.b16 %v657, %v656
        %v668 = vpack.c.b16 %v659, %v658
        %v669 = vpack.c.b16 %v661, %v660
        %678 = vmatprep.subr.bf16.mxu0 0
        %679 = vmatpush1.bf16.msra.mxu0 %v662
        %680 = vmatprep.subr.bf16.mxu0 0
        %681 = vmatpush1.bf16.msra.mxu0 %v663
        %682 = vmatprep.subr.bf16.mxu0 0
        %683 = vmatpush1.bf16.msra.mxu0 %v664
        %684 = vmatprep.subr.bf16.mxu0 0
        %685 = vmatpush1.bf16.msra.mxu0 %v665
        %686 = vmatprep.subr.bf16.mxu0 0
        %687 = vmatpush1.bf16.msra.mxu0 %v666
        %688 = vmatprep.subr.bf16.mxu0 0
        %689 = vmatpush1.bf16.msra.mxu0 %v667
        %690 = vmatprep.subr.bf16.mxu0 0
        %691 = vmatpush1.bf16.msra.mxu0 %v668
        %692 = vmatprep.subr.bf16.mxu0 0
        %693 = vmatpush1.bf16.msra.mxu0 %v669
        %694 = vmatprep.subr.bf16.mxu0 0
        %695 = vmatpush1.bf16.msra.mxu0 0
        %696 = vmatprep.subr.bf16.mxu0 0
        %697 = vmatpush1.bf16.msra.mxu0 0
        %698 = vmatprep.subr.bf16.mxu0 0
        %699 = vmatpush1.bf16.msra.mxu0 0
        %700 = vmatprep.subr.bf16.mxu0 0
        %701 = vmatpush1.bf16.msra.mxu0 0
        %702 = vmatprep.subr.bf16.mxu0 0
        %703 = vmatpush1.bf16.msra.mxu0 0
        %704 = vmatprep.subr.bf16.mxu0 0
        %705 = vmatpush1.bf16.msra.mxu0 0
        %706 = vmatprep.subr.bf16.mxu0 0
        %707 = vmatpush1.bf16.msra.mxu0 0
        %708 = vmatprep.subr.bf16.mxu0 0
        %709 = vmatpush1.bf16.msra.mxu0 0
        %710 = vmatprep.mubr.bf16.mxu0 0
        %711 = vmatmul.mubr.bf16.gmra.mrb[0].mxu0 %v598
        %v712 = vpop.f32.mrb[0].mxu0
        %v713 = vadd.f32 0.0, %v712
        %v714 = vpop.f32.mrb[0].mxu0
        %v715 = vpop.f32.mrb[0].mxu0
        %v716 = vadd.f32 0.0, %v715
        %v717 = vpop.f32.mrb[0].mxu0
        %718 = vmatprep.mubr.bf16.mxu0 0
        %719 = vmatmul.mubr.bf16.gmra.mrb[0].mxu0 %v599
        %v720 = vpop.f32.mrb[0].mxu0
        %v721 = vadd.f32 0.0, %v720
        %v722 = vpop.f32.mrb[0].mxu0
        %v723 = vpop.f32.mrb[0].mxu0
        %v724 = vadd.f32 0.0, %v723
        %v725 = vpop.f32.mrb[0].mxu0
        %726 = vmatprep.mubr.bf16.mxu0 0
        %727 = vmatmul.mubr.bf16.gmra.mrb[0].mxu0 %v600
        %v728 = vpop.f32.mrb[0].mxu0
        %v729 = vadd.f32 0.0, %v728
        %v730 = vpop.f32.mrb[0].mxu0
        %v731 = vpop.f32.mrb[0].mxu0
        %v732 = vadd.f32 0.0, %v731
        %v733 = vpop.f32.mrb[0].mxu0
        %734 = vmatprep.mubr.bf16.mxu0 0
        %735 = vmatmul.mubr.bf16.gmra.mrb[0].mxu0 %v601
        %v736 = vpop.f32.mrb[0].mxu0
        %v737 = vadd.f32 0.0, %v736
        %v738 = vpop.f32.mrb[0].mxu0
        %v739 = vpop.f32.mrb[0].mxu0
        %v740 = vadd.f32 0.0, %v739
        %v741 = vpop.f32.mrb[0].mxu0
        %742 = vmatprep.mubr.bf16.mxu0 0
        %743 = vmatmul.mubr.bf16.gmra.mrb[0].mxu0 %v602
        %v744 = vpop.f32.mrb[0].mxu0
        %v745 = vadd.f32 0.0, %v744
        %v746 = vpop.f32.mrb[0].mxu0
        %v747 = vpop.f32.mrb[0].mxu0
        %v748 = vadd.f32 0.0, %v747
        %v749 = vpop.f32.mrb[0].mxu0
        %750 = vmatprep.mubr.bf16.mxu0 0
        %751 = vmatmul.mubr.bf16.gmra.mrb[0].mxu0 %v603
        %v752 = vpop.f32.mrb[0].mxu0
        %v753 = vadd.f32 0.0, %v752
        %v754 = vpop.f32.mrb[0].mxu0
        %v755 = vpop.f32.mrb[0].mxu0
        %v756 = vadd.f32 0.0, %v755
        %v757 = vpop.f32.mrb[0].mxu0
        %758 = vmatprep.mubr.bf16.mxu0 0
        %759 = vmatmul.mubr.bf16.gmra.mrb[0].mxu0 %v604
        %v760 = vpop.f32.mrb[0].mxu0
        %v761 = vadd.f32 0.0, %v760
        %v762 = vpop.f32.mrb[0].mxu0
        %v763 = vpop.f32.mrb[0].mxu0
        %v764 = vadd.f32 0.0, %v763
        %v765 = vpop.f32.mrb[0].mxu0
        %766 = vmatprep.mubr.bf16.mxu0 0
        %767 = vmatmul.mubr.bf16.gmra.mrb[0].mxu0 %v605
        %v768 = vpop.f32.mrb[0].mxu0
        %v769 = vadd.f32 0.0, %v768
        %v770 = vpop.f32.mrb[0].mxu0
        %v771 = vpop.f32.mrb[0].mxu0
        %v772 = vadd.f32 0.0, %v771
        %v773 = vpop.f32.mrb[0].mxu0
        %774 = vmatprep.mubr.bf16.mxu0 0
        %775 = vmatmul.mubr.bf16.gmra.mrb[0].mxu0 %v606
        %v776 = vpop.f32.mrb[0].mxu0
        %v777 = vadd.f32 0.0, %v776
        %v778 = vpop.f32.mrb[0].mxu0
        %v779 = vpop.f32.mrb[0].mxu0
        %v780 = vadd.f32 0.0, %v779
        %v781 = vpop.f32.mrb[0].mxu0
        %782 = vmatprep.mubr.bf16.mxu0 0
        %783 = vmatmul.mubr.bf16.gmra.mrb[0].mxu0 %v607
        %v784 = vpop.f32.mrb[0].mxu0
        %v785 = vadd.f32 0.0, %v784
        %v786 = vpop.f32.mrb[0].mxu0
        %v787 = vpop.f32.mrb[0].mxu0
        %v788 = vadd.f32 0.0, %v787
        %v789 = vpop.f32.mrb[0].mxu0
        %790 = vmatprep.mubr.bf16.mxu0 0
        %791 = vmatmul.mubr.bf16.gmra.mrb[0].mxu0 %v608
        %v792 = vpop.f32.mrb[0].mxu0
        %v793 = vadd.f32 0.0, %v792
        %v794 = vpop.f32.mrb[0].mxu0
        %v795 = vpop.f32.mrb[0].mxu0
        %v796 = vadd.f32 0.0, %v795
        %v797 = vpop.f32.mrb[0].mxu0
        %798 = vmatprep.mubr.bf16.mxu0 0
        %799 = vmatmul.mubr.bf16.gmra.mrb[0].mxu0 %v609
        %v800 = vpop.f32.mrb[0].mxu0
        %v801 = vadd.f32 0.0, %v800
        %v802 = vpop.f32.mrb[0].mxu0
        %v803 = vpop.f32.mrb[0].mxu0
        %v804 = vadd.f32 0.0, %v803
        %v805 = vpop.f32.mrb[0].mxu0
        %806 = vmatprep.mubr.bf16.mxu0 0
        %807 = vmatmul.mubr.bf16.gmra.mrb[0].mxu0 %v610
        %v808 = vpop.f32.mrb[0].mxu0
        %v809 = vadd.f32 0.0, %v808
        %v810 = vpop.f32.mrb[0].mxu0
        %v811 = vpop.f32.mrb[0].mxu0
        %v812 = vadd.f32 0.0, %v811
        %v813 = vpop.f32.mrb[0].mxu0
        %814 = vmatprep.mubr.bf16.mxu0 0
        %815 = vmatmul.mubr.bf16.gmra.mrb[0].mxu0 %v611
        %v816 = vpop.f32.mrb[0].mxu0
        %v817 = vadd.f32 0.0, %v816
        %v818 = vpop.f32.mrb[0].mxu0
        %v819 = vpop.f32.mrb[0].mxu0
        %v820 = vadd.f32 0.0, %v819
        %v821 = vpop.f32.mrb[0].mxu0
        %822 = vmatprep.mubr.bf16.mxu0 0
        %823 = vmatmul.mubr.bf16.gmra.mrb[0].mxu0 %v612
        %v824 = vpop.f32.mrb[0].mxu0
        %v825 = vadd.f32 0.0, %v824
        %v826 = vpop.f32.mrb[0].mxu0
        %v827 = vpop.f32.mrb[0].mxu0
        %v828 = vadd.f32 0.0, %v827
        %v829 = vpop.f32.mrb[0].mxu0
        %830 = vmatprep.mubr.bf16.mxu0 0
        %831 = vmatmul.mubr.bf16.gmra.mrb[0].mxu0 %v613
        %v832 = vpop.f32.mrb[0].mxu0
        %v833 = vadd.f32 0.0, %v832
        %v834 = vpop.f32.mrb[0].mxu0
        %v835 = vpop.f32.mrb[0].mxu0
        %v836 = vadd.f32 0.0, %v835
        %v837 = vpop.f32.mrb[0].mxu0
        %838 = vdwg.mxu0
        %v839 = vadd.f32 %v454, %v713
        %v840 = vadd.f32 %v455, %v716
        %v841 = vadd.f32 %v456, %v721
        %v842 = vadd.f32 %v457, %v724
        %v843 = vadd.f32 %v458, %v729
        %v844 = vadd.f32 %v459, %v732
        %v845 = vadd.f32 %v460, %v737
        %v846 = vadd.f32 %v461, %v740
        %v847 = vadd.f32 %v462, %v745
        %v848 = vadd.f32 %v463, %v748
        %v849 = vadd.f32 %v464, %v753
        %v850 = vadd.f32 %v465, %v756
        %v851 = vadd.f32 %v466, %v761
        %v852 = vadd.f32 %v467, %v764
        %v853 = vadd.f32 %v468, %v769
        %v854 = vadd.f32 %v469, %v772
        %v855 = vadd.f32 %v470, %v777
        %v856 = vadd.f32 %v471, %v780
        %v857 = vadd.f32 %v472, %v785
        %v858 = vadd.f32 %v473, %v788
        %v859 = vadd.f32 %v474, %v793
        %v860 = vadd.f32 %v475, %v796
        %v861 = vadd.f32 %v476, %v801
        %v862 = vadd.f32 %v477, %v804
        %v863 = vadd.f32 %v478, %v809
        %v864 = vadd.f32 %v479, %v812
        %v865 = vadd.f32 %v480, %v817
        %v866 = vadd.f32 %v481, %v820
        %v867 = vadd.f32 %v482, %v825
        %v868 = vadd.f32 %v483, %v828
        %v869 = vadd.f32 %v484, %v833
        %v870 = vadd.f32 %v485, %v836
        %871 = vst [vmem:[#allocation2] sm:$0xff] %v839
        %872 = vst [vmem:[#allocation2 + $0x8] sm:$0xff] %v840
        %873 = vst [vmem:[#allocation2 + $0x10] sm:$0xff] %v841
        %874 = vst [vmem:[#allocation2 + $0x18] sm:$0xff] %v842
        %875 = vst [vmem:[#allocation2 + $0x20] sm:$0xff] %v843
        %876 = vst [vmem:[#allocation2 + $0x28] sm:$0xff] %v844
        %877 = vst [vmem:[#allocation2 + $0x30] sm:$0xff] %v845
        %878 = vst [vmem:[#allocation2 + $0x38] sm:$0xff] %v846
        %879 = vst [vmem:[#allocation2 + $0x40] sm:$0xff] %v847
        %880 = vst [vmem:[#allocation2 + $0x48] sm:$0xff] %v848
        %881 = vst [vmem:[#allocation2 + $0x50] sm:$0xff] %v849
        %882 = vst [vmem:[#allocation2 + $0x58] sm:$0xff] %v850
        %883 = vst [vmem:[#allocation2 + $0x60] sm:$0xff] %v851
        %884 = vst [vmem:[#allocation2 + $0x68] sm:$0xff] %v852
        %885 = vst [vmem:[#allocation2 + $0x70] sm:$0xff] %v853
        %886 = vst [vmem:[#allocation2 + $0x78] sm:$0xff] %v854
        %887 = vst [vmem:[#allocation2 + $0x80] sm:$0xff] %v855
        %888 = vst [vmem:[#allocation2 + $0x88] sm:$0xff] %v856
        %889 = vst [vmem:[#allocation2 + $0x90] sm:$0xff] %v857
        %890 = vst [vmem:[#allocation2 + $0x98] sm:$0xff] %v858
        %891 = vst [vmem:[#allocation2 + $0xa0] sm:$0xff] %v859
        %892 = vst [vmem:[#allocation2 + $0xa8] sm:$0xff] %v860
        %893 = vst [vmem:[#allocation2 + $0xb0] sm:$0xff] %v861
        %894 = vst [vmem:[#allocation2 + $0xb8] sm:$0xff] %v862
        %895 = vst [vmem:[#allocation2 + $0xc0] sm:$0xff] %v863
        %896 = vst [vmem:[#allocation2 + $0xc8] sm:$0xff] %v864
        %897 = vst [vmem:[#allocation2 + $0xd0] sm:$0xff] %v865
        %898 = vst [vmem:[#allocation2 + $0xd8] sm:$0xff] %v866
        %899 = vst [vmem:[#allocation2 + $0xe0] sm:$0xff] %v867
        %900 = vst [vmem:[#allocation2 + $0xe8] sm:$0xff] %v868
        %901 = vst [vmem:[#allocation2 + $0xf0] sm:$0xff] %v869
        %902 = vst [vmem:[#allocation2 + $0xf8] sm:$0xff] %v870
        %p903 = scmp.eq.s32.totalorder %s21, 24
        // Predicated region
        $region78: #{generator_forward.94} parent=68 // pred_check
          %p904 = pneg %p903
        $region79: #{generator_forward.94} parent=68 // pred_check_branch
          %906 = sbr.rel (%p904) target = $region81
        $region80: #{generator_forward.94} parent=68 // pred_region
          %v907 = vld [vmem:[#allocation2] sm:$0xff]
          %v908 = vld [vmem:[#allocation2 + $0x8] sm:$0xff]
          %v909 = vld [vmem:[#allocation2 + $0x10] sm:$0xff]
          %v910 = vld [vmem:[#allocation2 + $0x18] sm:$0xff]
          %v911 = vld [vmem:[#allocation2 + $0x20] sm:$0xff]
          %v912 = vld [vmem:[#allocation2 + $0x28] sm:$0xff]
          %v913 = vld [vmem:[#allocation2 + $0x30] sm:$0xff]
          %v914 = vld [vmem:[#allocation2 + $0x38] sm:$0xff]
          %v915 = vld [vmem:[#allocation2 + $0x40] sm:$0xff]
          %v916 = vld [vmem:[#allocation2 + $0x48] sm:$0xff]
          %v917 = vld [vmem:[#allocation2 + $0x50] sm:$0xff]
          %v918 = vld [vmem:[#allocation2 + $0x58] sm:$0xff]
          %v919 = vld [vmem:[#allocation2 + $0x60] sm:$0xff]
          %v920 = vld [vmem:[#allocation2 + $0x68] sm:$0xff]
          %v921 = vld [vmem:[#allocation2 + $0x70] sm:$0xff]
          %v922 = vld [vmem:[#allocation2 + $0x78] sm:$0xff]
          %v923 = vld [vmem:[#allocation2 + $0x80] sm:$0xff]
          %v924 = vld [vmem:[#allocation2 + $0x88] sm:$0xff]
          %v925 = vld [vmem:[#allocation2 + $0x90] sm:$0xff]
          %v926 = vld [vmem:[#allocation2 + $0x98] sm:$0xff]
          %v927 = vld [vmem:[#allocation2 + $0xa0] sm:$0xff]
          %v928 = vld [vmem:[#allocation2 + $0xa8] sm:$0xff]
          %v929 = vld [vmem:[#allocation2 + $0xb0] sm:$0xff]
          %v930 = vld [vmem:[#allocation2 + $0xb8] sm:$0xff]
          %v931 = vld [vmem:[#allocation2 + $0xc0] sm:$0xff]
          %v932 = vld [vmem:[#allocation2 + $0xc8] sm:$0xff]
          %v933 = vld [vmem:[#allocation2 + $0xd0] sm:$0xff]
          %v934 = vld [vmem:[#allocation2 + $0xd8] sm:$0xff]
          %v935 = vld [vmem:[#allocation2 + $0xe0] sm:$0xff]
          %v936 = vld [vmem:[#allocation2 + $0xe8] sm:$0xff]
          %v937 = vld [vmem:[#allocation2 + $0xf0] sm:$0xff]
          %v938 = vld [vmem:[#allocation2 + $0xf8] sm:$0xff]
          %v939 = vld [vmem:[%s407] sm:$0x1]
          %v941 = vlaneseq
          %v942 = vshrl.u32 %v941, 7
          %v943 = vsub.s32 0, %v942
          %v944 = vrot.slane %v939, %v943
          %v946 = vadd.f32 %v907, %v944
          %v947 = vadd.f32 %v908, %v944
          %v948 = vadd.f32 %v909, %v944
          %v949 = vadd.f32 %v910, %v944
          %v950 = vadd.f32 %v911, %v944
          %v951 = vadd.f32 %v912, %v944
          %v952 = vadd.f32 %v913, %v944
          %v953 = vadd.f32 %v914, %v944
          %v954 = vadd.f32 %v915, %v944
          %v955 = vadd.f32 %v916, %v944
          %v956 = vadd.f32 %v917, %v944
          %v957 = vadd.f32 %v918, %v944
          %v958 = vadd.f32 %v919, %v944
          %v959 = vadd.f32 %v920, %v944
          %v960 = vadd.f32 %v921, %v944
          %v961 = vadd.f32 %v922, %v944
          %v962 = vadd.f32 %v923, %v944
          %v963 = vadd.f32 %v924, %v944
          %v964 = vadd.f32 %v925, %v944
          %v965 = vadd.f32 %v926, %v944
          %v966 = vadd.f32 %v927, %v944
          %v967 = vadd.f32 %v928, %v944
          %v968 = vadd.f32 %v929, %v944
          %v969 = vadd.f32 %v930, %v944
          %v970 = vadd.f32 %v931, %v944
          %v971 = vadd.f32 %v932, %v944
          %v972 = vadd.f32 %v933, %v944
          %v973 = vadd.f32 %v934, %v944
          %v974 = vadd.f32 %v935, %v944
          %v975 = vadd.f32 %v936, %v944
          %v976 = vadd.f32 %v937, %v944
          %v977 = vadd.f32 %v938, %v944
          %978 = vst [vmem:[%s415] sm:$0xff] %v946
          %979 = vst [vmem:[%s415 + $0x8] sm:$0xff] %v947
          %980 = vst [vmem:[%s415 + $0x10] sm:$0xff] %v948
          %981 = vst [vmem:[%s415 + $0x18] sm:$0xff] %v949
          %982 = vst [vmem:[%s415 + $0x20] sm:$0xff] %v950
          %983 = vst [vmem:[%s415 + $0x28] sm:$0xff] %v951
          %984 = vst [vmem:[%s415 + $0x30] sm:$0xff] %v952
          %985 = vst [vmem:[%s415 + $0x38] sm:$0xff] %v953
          %986 = vst [vmem:[%s415 + $0x40] sm:$0xff] %v954
          %987 = vst [vmem:[%s415 + $0x48] sm:$0xff] %v955
          %988 = vst [vmem:[%s415 + $0x50] sm:$0xff] %v956
          %989 = vst [vmem:[%s415 + $0x58] sm:$0xff] %v957
          %990 = vst [vmem:[%s415 + $0x60] sm:$0xff] %v958
          %991 = vst [vmem:[%s415 + $0x68] sm:$0xff] %v959
          %992 = vst [vmem:[%s415 + $0x70] sm:$0xff] %v960
          %993 = vst [vmem:[%s415 + $0x78] sm:$0xff] %v961
          %994 = vst [vmem:[%s415 + $0x80] sm:$0xff] %v962
          %995 = vst [vmem:[%s415 + $0x88] sm:$0xff] %v963
          %996 = vst [vmem:[%s415 + $0x90] sm:$0xff] %v964
          %997 = vst [vmem:[%s415 + $0x98] sm:$0xff] %v965
          %998 = vst [vmem:[%s415 + $0xa0] sm:$0xff] %v966
          %999 = vst [vmem:[%s415 + $0xa8] sm:$0xff] %v967
          %1000 = vst [vmem:[%s415 + $0xb0] sm:$0xff] %v968
          %1001 = vst [vmem:[%s415 + $0xb8] sm:$0xff] %v969
          %1002 = vst [vmem:[%s415 + $0xc0] sm:$0xff] %v970
          %1003 = vst [vmem:[%s415 + $0xc8] sm:$0xff] %v971
          %1004 = vst [vmem:[%s415 + $0xd0] sm:$0xff] %v972
          %1005 = vst [vmem:[%s415 + $0xd8] sm:$0xff] %v973
          %1006 = vst [vmem:[%s415 + $0xe0] sm:$0xff] %v974
          %1007 = vst [vmem:[%s415 + $0xe8] sm:$0xff] %v975
          %1008 = vst [vmem:[%s415 + $0xf0] sm:$0xff] %v976
          %1009 = vst [vmem:[%s415 + $0xf8] sm:$0xff] %v977
        $region81: #{generator_forward.94} parent=68 // pred_fallthru
          _
        %s1010 = smul.u32 32, %s19
        %p1011 = scmp.lt.s32.totalorder %s1010, 63
        %s1012 = scalar_select %p1011, %s1010, 63
        %p1013 = scmp.lt.s32.totalorder %s20, 0
        %s1014 = scalar_select %p1013, %s20, 0
        %s1015 = sadd.s32 %s1014, %s1012
        %s1016 = smul.addr %s1015, 8
        %s1017 = scalar_lea.vmem %s3, %s1016
        // Predicated region
        $region82: #{generator_forward.94} parent=68 // pred_check
          %p1018 = pneg %p135
        $region83: #{generator_forward.94} parent=68 // pred_check_branch
          %1020 = sbr.rel (%p1018) target = $region85
        $region84: #{generator_forward.94} parent=68 // pred_region
          %s1021 = smul.u32 32, %s19
        $region85: #{generator_forward.94} parent=68 // pred_fallthru
          _
      $region69: #{generator_forward.94} parent=5 // pred_fallthru
        _
      %p1022 = scmp.le.s32.totalorder 2, %s9
      // Predicated region
      $region86: #{generator_forward.94} parent=5 // pred_check
        %p1023 = pneg %p1022
      $region87: #{generator_forward.94} parent=5 // pred_check_branch
        %1025 = sbr.rel (%p1023) target = $region89
      $region88: #{generator_forward.94} parent=5 // pred_region
        %s1026 = ssub.s32 %s9, 2
        // Predicated region
        $region90: #{generator_forward.94} parent=88 // pred_check
          %p1027 = pneg %p141
        $region91: #{generator_forward.94} parent=88 // pred_check_branch
          %1029 = sbr.rel (%p1027) target = $region93
        $region92: #{generator_forward.94} parent=88 // pred_region
          %s1030 = smul.u32 32, %s22
          %p1031 = scmp.lt.s32.totalorder %s1030, 63
          %s1032 = scalar_select %p1031, %s1030, 63
          %p1033 = scmp.lt.s32.totalorder %s23, 0
          %s1034 = scalar_select %p1033, %s23, 0
          %s1035 = sadd.s32 %s1034, %s1032
          %s1036 = smul.addr %s1035, 8
          %s1037 = scalar_lea.vmem %s3, %s1036
        $region93: #{generator_forward.94} parent=88 // pred_fallthru
          _
      $region89: #{generator_forward.94} parent=5 // pred_fallthru
        _
    $region6: #{generator_forward.94} parent=1 // loop_footer
      %s13 = sadd.s32 1, %s9
    $region7: #{generator_forward.94} parent=1 // loop_footer_branch
      %8 = sbr.rel target = $region3
    $region8: #{generator_forward.94} parent=1 // loop_exit
      _

// kernel: generator_forward.95
$region0: #{generator_forward.95}
  #allocation0 [shape = 'u32[]', space=smem, size = 0x4, offset = 0x4, fixed_abs, tag = 'smem constant byte address 0x4 - core index']
  #allocation1 [shape = 'u32[144,128]{1,0:T(1,128)}', space=vmem, size = 0x12000, scoped, tag = 'internal scratch']
  %s0 = inlined_call_operand.vmem [shape: f32[2,256], index: 0, kind: input, shape index: {}]
  %s1 = inlined_call_operand.vmem [shape: f32[2,256], index: 1, kind: output, shape index: {}]
  %s2 = sld [smem:[#allocation0]]
  $region14: #{generator_forward.95} parent=0
    _
  %s4 = ssub.s32 1, %s2
  %s5 = scalar_select 0, %s4, %s2
  // Predicated region
  $region2: #{generator_forward.95} parent=0 // pred_check
    _
  $region3: #{generator_forward.95} parent=0 // pred_check_branch
    %7 = sbr.rel (0) target = $region5
  $region4: #{generator_forward.95} parent=0 // pred_region
    _
  $region5: #{generator_forward.95} parent=0 // pred_fallthru
    _
  %v8 = vld [vmem:[%s0] sm:$0xf]
  %v9 = vtanh.pop %v8
  %10 = vst [vmem:[%s1] sm:$0xf] %v9
  // Predicated region
  $region6: #{generator_forward.95} parent=0 // pred_check
    _
  $region7: #{generator_forward.95} parent=0 // pred_check_branch
    %12 = sbr.rel (0) target = $region9
  $region8: #{generator_forward.95} parent=0 // pred_region
    _
  $region9: #{generator_forward.95} parent=0 // pred_fallthru
    _
  // Predicated region
  $region10: #{generator_forward.95} parent=0 // pred_check
    _
  $region11: #{generator_forward.95} parent=0 // pred_check_branch
    %14 = sbr.rel (0) target = $region13
  $region12: #{generator_forward.95} parent=0 // pred_region
    _
  $region13: #{generator_forward.95} parent=0 // pred_fallthru
    _

</llo_original>
